<compile_context>
chip_gen: v6e
topology: v6e:2x2x1
jax: 0.10.0
libtpu: 0.0.40
codegen_flags: <defaults>
</compile_context>

<pallas_src>
import jax
import jax.numpy as jnp
from jax.experimental import pallas as pl
from jax.experimental.pallas import tpu as pltpu


# ---------------------------------------------------------------------------
# Fused conv block: 3x3 SAME conv + BN(batch stats) + ReLU + 2x2 max-pool
# ---------------------------------------------------------------------------
def _conv_bn_relu_pool(x, w_ref, g_ref, bt_ref, patch_ref):
    """x: (N,H,W,Cin) f32 value; w_ref: (9*Cin,Cout) bf16; g/bt: (1,Cout) f32;
    patch_ref: (N,H,W,9*Cin) f32 VMEM scratch. Returns (N,H//2,W//2,Cout) f32."""
    N, H, W, Cin = x.shape
    Cout = w_ref.shape[-1]

    # --- im2col with implicit zero padding (no HBM pad, no per-tap matmul) -------
    # Zero the patch buffer once, then write each of the 9 taps into its channel
    # slice; border pixels that fall outside the image keep the zero padding value.
    patch_ref[...] = jnp.zeros(patch_ref.shape, patch_ref.dtype)
    for k in range(9):
        oy, ox = k // 3 - 1, k % 3 - 1          # tap offset relative to output pixel
        h0, h1 = max(0, -oy), H - max(0, oy)
        w0, w1 = max(0, -ox), W - max(0, ox)
        patch_ref[:, h0:h1, w0:w1, k * Cin:(k + 1) * Cin] = (
            x[:, h0 + oy:h1 + oy, w0 + ox:w1 + ox, :])

    # --- conv = one wide-K bf16 matmul on the MXU, f32 accumulation --------------
    patches = patch_ref[...].reshape(N * H * W, 9 * Cin).astype(jnp.bfloat16)
    acc = jnp.dot(patches, w_ref[...], preferred_element_type=jnp.float32)
    # Conv bias intentionally omitted: BN over batch statistics cancels it exactly.

    # --- BatchNorm2d (current-batch stats, biased var, eps=1e-5) + ReLU ----------
    # Single reduction pass: var = E[x^2] - E[x]^2, folded into scale/shift.
    mean = jnp.mean(acc, axis=0, keepdims=True)
    var = jnp.mean(acc * acc, axis=0, keepdims=True) - mean * mean
    s = g_ref[...] * jax.lax.rsqrt(var + 1e-5)
    t = bt_ref[...] - mean * s
    y = jnp.maximum(acc * s + t, 0.0)                       # (N*H*W, Cout)

    # --- 2x2 max-pool, stride 2, floor mode (PyTorch semantics) -------------------
    Ho, Wo = H // 2, W // 2
    y = y.reshape(N, H, W, Cout)
    if H % 2:                                               # static: free when even
        y = y[:, :2 * Ho]
    if W % 2:
        y = y[:, :, :2 * Wo]
    # Row direction: leading-dim regroup (layout-friendly), max the two row phases.
    y = y.reshape(N, Ho, 2, 2 * Wo, Cout)
    y = jnp.maximum(y[:, :, 0], y[:, :, 1])                 # (N, Ho, 2*Wo, Cout)
    # Column direction: pair adjacent columns; tiny in-VMEM relayout, kept for
    # lowering robustness (few KB at these shapes).
    y = y.reshape(N, Ho, Wo, 2, Cout)
    y = jnp.maximum(y[:, :, :, 0], y[:, :, :, 1])           # (N, Ho, Wo, Cout)
    return y


def metaconv_kernel(x_ref,
                    w1, g1, t1, w2, g2, t2, w3, g3, t3, w4, g4, t4,
                    fcw_ref, fcb_ref,
                    o_ref,
                    p1, p2, p3, p4):
    """Whole MetaConv forward: 4 fused conv blocks + flatten + Linear."""
    x = x_ref[...]                                          # (N, H, W, Cin) f32, NHWC
    x = _conv_bn_relu_pool(x, w1, g1, t1, p1)
    x = _conv_bn_relu_pool(x, w2, g2, t2, p2)
    x = _conv_bn_relu_pool(x, w3, g3, t3, p3)
    x = _conv_bn_relu_pool(x, w4, g4, t4, p4)

    # Flatten in NHWC order (fc weight rows were pre-permuted in the wrapper to match
    # torch's NCHW .view(N,-1)). At in_size=16 the spatial dims are 1x1 -> free squeeze.
    N = x.shape[0]
    feat = x.reshape(N, -1).astype(jnp.bfloat16)
    o_ref[...] = (jnp.dot(feat, fcw_ref[...], preferred_element_type=jnp.float32)
                  + fcb_ref[...])


# ---------------------------------------------------------------------------
# Wrapper: layout conversion + single pallas_call
# ---------------------------------------------------------------------------
def metaconv_forward(x_nchw, params):
    x = jnp.transpose(x_nchw, (0, 2, 3, 1)).astype(jnp.float32)   # NCHW -> NHWC
    N, H, W, cin = x.shape
    O = params["fc_w"].shape[-1]

    args = [x]
    scratch = []
    h, w = H, W
    for (wk, bk, gk, btk) in params["blocks"]:
        del bk  # conv bias cancels under batch-stat BatchNorm; not sent to the kernel
        cout = wk.shape[-1]
        args += [
            wk.reshape(9 * cin, cout).astype(jnp.bfloat16),   # flat HWIO, bf16 MXU operand
            gk.reshape(1, cout).astype(jnp.float32),
            btk.reshape(1, cout).astype(jnp.float32),
        ]
        scratch.append(pltpu.VMEM((N, h, w, 9 * cin), jnp.float32))  # im2col patch buffer
        h, w, cin = h // 2, w // 2, cout

    # FC weight rows are in torch (C, Hf, Wf) flatten order; permute to the kernel's
    # NHWC (Hf, Wf, C) flatten order.
    Hf, Wf, C = h, w, cin
    fc_w = (params["fc_w"].reshape(C, Hf, Wf, O)
            .transpose(1, 2, 0, 3).reshape(Hf * Wf * C, O))
    args += [fc_w.astype(jnp.bfloat16),
             params["fc_b"].reshape(1, O).astype(jnp.float32)]

    vmem = pl.BlockSpec(memory_space=pltpu.MemorySpace.VMEM)
    return pl.pallas_call(
        metaconv_kernel,
        out_shape=jax.ShapeDtypeStruct((N, O), jnp.float32),
        in_specs=[vmem] * len(args),
        out_specs=vmem,
        scratch_shapes=scratch,
    )(*args)


# ---------------------------------------------------------------------------
# Pure-JAX reference (f32, PyTorch semantics) for correctness check
# ---------------------------------------------------------------------------
def metaconv_reference(x_nchw, params):
    x = jnp.transpose(x_nchw, (0, 2, 3, 1)).astype(jnp.float32)
    for (w, b, g, bt) in params["blocks"]:
        x = jax.lax.conv_general_dilated(
            x, w, (1, 1), "SAME",
            dimension_numbers=("NHWC", "HWIO", "NHWC"),
            precision=jax.lax.Precision.HIGHEST,
        ) + b
        mean = jnp.mean(x, axis=(0, 1, 2), keepdims=True)
        var = jnp.mean((x - mean) ** 2, axis=(0, 1, 2), keepdims=True)
        x = (x - mean) * jax.lax.rsqrt(var + 1e-5) * g + bt
        x = jnp.maximum(x, 0.0)
        x = jax.lax.reduce_window(x, -jnp.inf, jax.lax.max,
                                  (1, 2, 2, 1), (1, 2, 2, 1), "VALID")
    N = x.shape[0]
    x = jnp.transpose(x, (0, 3, 1, 2)).reshape(N, -1)      # torch NCHW flatten
    return jnp.dot(x, params["fc_w"],
                   precision=jax.lax.Precision.HIGHEST) + params["fc_b"]


# ---------------------------------------------------------------------------
# Deterministic synthetic parameters
# ---------------------------------------------------------------------------
def init_params(key, in_channels, hidden, out_channels, in_size):
    def conv_block_params(k, cin, cout):
        k1, k2, k3, k4 = jax.random.split(k, 4)
        w = jax.random.normal(k1, (3, 3, cin, cout), jnp.float32) / jnp.sqrt(9.0 * cin)
        b = 0.1 * jax.random.normal(k2, (cout,), jnp.float32)
        gamma = 1.0 + 0.1 * jax.random.normal(k3, (cout,), jnp.float32)
        beta = 0.1 * jax.random.normal(k4, (cout,), jnp.float32)
        return (w, b, gamma, beta)

    keys = jax.random.split(key, 6)
    blocks = [
        conv_block_params(keys[0], in_channels, hidden),
        conv_block_params(keys[1], hidden, hidden),
        conv_block_params(keys[2], hidden, hidden),
        conv_block_params(keys[3], hidden, hidden),
    ]
    feat = (in_size // 16) ** 2 * hidden
    fc_w = jax.random.normal(keys[4], (feat, out_channels), jnp.float32) / jnp.sqrt(feat)
    fc_b = 0.1 * jax.random.normal(keys[5], (out_channels,), jnp.float32)
    return {"blocks": blocks, "fc_w": fc_w, "fc_b": fc_b}


if __name__ == "__main__":
    # Small shapes consistent with the module: in_size=16 (divisible by 16), batch=2.
    batch, in_channels, in_size = 2, 3, 16
    hidden, out_channels = 32, 5

    key = jax.random.PRNGKey(0)
    k_param, k_x = jax.random.split(key)
    params = init_params(k_param, in_channels, hidden, out_channels, in_size)
    x = jax.random.normal(k_x, (batch, in_channels, in_size, in_size), jnp.float32)  # NCHW

    out = jax.block_until_ready(jax.jit(metaconv_forward)(x, params))
    ref = jax.block_until_ready(jax.jit(metaconv_reference)(x, params))

    assert out.shape == (batch, out_channels), out.shape
    assert bool(jnp.all(jnp.isfinite(out)))
    # bf16 MXU operands vs. f32-HIGHEST reference -> slightly looser tolerance.
    assert bool(jnp.allclose(out, ref, rtol=3e-2, atol=3e-2)), (out, ref)

    print("KERNEL_OK")
</pallas_src>

<mosaic_0001>
module attributes {stable_mosaic.version = 11 : i64} {
  func.func @metaconv_kernel(%arg0: memref<2x16x16x3xf32, #tpu.memory_space<vmem>>, %arg1: memref<27x32xbf16, #tpu.memory_space<vmem>>, %arg2: memref<1x32xf32, #tpu.memory_space<vmem>>, %arg3: memref<1x32xf32, #tpu.memory_space<vmem>>, %arg4: memref<288x32xbf16, #tpu.memory_space<vmem>>, %arg5: memref<1x32xf32, #tpu.memory_space<vmem>>, %arg6: memref<1x32xf32, #tpu.memory_space<vmem>>, %arg7: memref<288x32xbf16, #tpu.memory_space<vmem>>, %arg8: memref<1x32xf32, #tpu.memory_space<vmem>>, %arg9: memref<1x32xf32, #tpu.memory_space<vmem>>, %arg10: memref<288x32xbf16, #tpu.memory_space<vmem>>, %arg11: memref<1x32xf32, #tpu.memory_space<vmem>>, %arg12: memref<1x32xf32, #tpu.memory_space<vmem>>, %arg13: memref<32x5xbf16, #tpu.memory_space<vmem>>, %arg14: memref<1x5xf32, #tpu.memory_space<vmem>>, %arg15: memref<2x5xf32, #tpu.memory_space<vmem>>, %arg16: memref<2x16x16x27xf32, #tpu.memory_space<vmem>>, %arg17: memref<2x8x8x288xf32, #tpu.memory_space<vmem>>, %arg18: memref<2x4x4x288xf32, #tpu.memory_space<vmem>>, %arg19: memref<2x2x2x288xf32, #tpu.memory_space<vmem>>) attributes {dimension_semantics = [], scalar_prefetch = 0 : i64, scratch_operands = 4 : i64, tpu.core_type = #tpu.core_type<tc>} {
    %c0 = arith.constant 0 : index
    %c0_0 = arith.constant 0 : index
    %c0_1 = arith.constant 0 : index
    %c0_2 = arith.constant 0 : index
    %0 = vector.load %arg0[%c0, %c0_0, %c0_1, %c0_2] : memref<2x16x16x3xf32, #tpu.memory_space<vmem>>, vector<2x16x16x3xf32>
    %cst = arith.constant 0.000000e+00 : f32
    %1 = vector.broadcast %cst : f32 to vector<2x16x16x27xf32>
    %c0_3 = arith.constant 0 : index
    %c0_4 = arith.constant 0 : index
    %c0_5 = arith.constant 0 : index
    %c0_6 = arith.constant 0 : index
    %2 = vector.load %arg16[%c0_3, %c0_4, %c0_5, %c0_6] : memref<2x16x16x27xf32, #tpu.memory_space<vmem>>, vector<2x16x16x27xf32>
    tpu.vector_store %arg16[%c0_3, %c0_4, %c0_5, %c0_6], %1 {strides = array<i32>} : memref<2x16x16x27xf32, #tpu.memory_space<vmem>>, vector<2x16x16x27xf32>,
    %3 = vector.extract_strided_slice %0 {offsets = [0, 0, 0, 0], sizes = [2, 15, 15, 3], strides = [1, 1, 1, 1]} : vector<2x16x16x3xf32> to vector<2x15x15x3xf32>
    %c0_7 = arith.constant 0 : index
    %c1 = arith.constant 1 : index
    %c1_8 = arith.constant 1 : index
    %c0_9 = arith.constant 0 : index
    %4 = vector.load %arg16[%c0_7, %c1, %c1_8, %c0_9] : memref<2x16x16x27xf32, #tpu.memory_space<vmem>>, vector<2x15x15x3xf32>
    tpu.vector_store %arg16[%c0_7, %c1, %c1_8, %c0_9], %3 {strides = array<i32>} : memref<2x16x16x27xf32, #tpu.memory_space<vmem>>, vector<2x15x15x3xf32>,
    %5 = vector.extract_strided_slice %0 {offsets = [0, 0, 0, 0], sizes = [2, 15, 16, 3], strides = [1, 1, 1, 1]} : vector<2x16x16x3xf32> to vector<2x15x16x3xf32>
    %c0_10 = arith.constant 0 : index
    %c1_11 = arith.constant 1 : index
    %c0_12 = arith.constant 0 : index
    %c3 = arith.constant 3 : index
    %6 = vector.load %arg16[%c0_10, %c1_11, %c0_12, %c3] : memref<2x16x16x27xf32, #tpu.memory_space<vmem>>, vector<2x15x16x3xf32>
    tpu.vector_store %arg16[%c0_10, %c1_11, %c0_12, %c3], %5 {strides = array<i32>} : memref<2x16x16x27xf32, #tpu.memory_space<vmem>>, vector<2x15x16x3xf32>,
    %7 = vector.extract_strided_slice %0 {offsets = [0, 0, 1, 0], sizes = [2, 15, 15, 3], strides = [1, 1, 1, 1]} : vector<2x16x16x3xf32> to vector<2x15x15x3xf32>
    %c0_13 = arith.constant 0 : index
    %c1_14 = arith.constant 1 : index
    %c0_15 = arith.constant 0 : index
    %c6 = arith.constant 6 : index
    %8 = vector.load %arg16[%c0_13, %c1_14, %c0_15, %c6] : memref<2x16x16x27xf32, #tpu.memory_space<vmem>>, vector<2x15x15x3xf32>
    tpu.vector_store %arg16[%c0_13, %c1_14, %c0_15, %c6], %7 {strides = array<i32>} : memref<2x16x16x27xf32, #tpu.memory_space<vmem>>, vector<2x15x15x3xf32>,
    %9 = vector.extract_strided_slice %0 {offsets = [0, 0, 0, 0], sizes = [2, 16, 15, 3], strides = [1, 1, 1, 1]} : vector<2x16x16x3xf32> to vector<2x16x15x3xf32>
    %c0_16 = arith.constant 0 : index
    %c0_17 = arith.constant 0 : index
    %c1_18 = arith.constant 1 : index
    %c9 = arith.constant 9 : index
    %10 = vector.load %arg16[%c0_16, %c0_17, %c1_18, %c9] : memref<2x16x16x27xf32, #tpu.memory_space<vmem>>, vector<2x16x15x3xf32>
    tpu.vector_store %arg16[%c0_16, %c0_17, %c1_18, %c9], %9 {strides = array<i32>} : memref<2x16x16x27xf32, #tpu.memory_space<vmem>>, vector<2x16x15x3xf32>,
    %c0_19 = arith.constant 0 : index
    %c0_20 = arith.constant 0 : index
    %c0_21 = arith.constant 0 : index
    %c12 = arith.constant 12 : index
    %11 = vector.load %arg16[%c0_19, %c0_20, %c0_21, %c12] : memref<2x16x16x27xf32, #tpu.memory_space<vmem>>, vector<2x16x16x3xf32>
    tpu.vector_store %arg16[%c0_19, %c0_20, %c0_21, %c12], %0 {strides = array<i32>} : memref<2x16x16x27xf32, #tpu.memory_space<vmem>>, vector<2x16x16x3xf32>,
    %12 = vector.extract_strided_slice %0 {offsets = [0, 0, 1, 0], sizes = [2, 16, 15, 3], strides = [1, 1, 1, 1]} : vector<2x16x16x3xf32> to vector<2x16x15x3xf32>
    %c0_22 = arith.constant 0 : index
    %c0_23 = arith.constant 0 : index
    %c0_24 = arith.constant 0 : index
    %c15 = arith.constant 15 : index
    %13 = vector.load %arg16[%c0_22, %c0_23, %c0_24, %c15] : memref<2x16x16x27xf32, #tpu.memory_space<vmem>>, vector<2x16x15x3xf32>
    tpu.vector_store %arg16[%c0_22, %c0_23, %c0_24, %c15], %12 {strides = array<i32>} : memref<2x16x16x27xf32, #tpu.memory_space<vmem>>, vector<2x16x15x3xf32>,
    %14 = vector.extract_strided_slice %0 {offsets = [0, 1, 0, 0], sizes = [2, 15, 15, 3], strides = [1, 1, 1, 1]} : vector<2x16x16x3xf32> to vector<2x15x15x3xf32>
    %c0_25 = arith.constant 0 : index
    %c0_26 = arith.constant 0 : index
    %c1_27 = arith.constant 1 : index
    %c18 = arith.constant 18 : index
    %15 = vector.load %arg16[%c0_25, %c0_26, %c1_27, %c18] : memref<2x16x16x27xf32, #tpu.memory_space<vmem>>, vector<2x15x15x3xf32>
    tpu.vector_store %arg16[%c0_25, %c0_26, %c1_27, %c18], %14 {strides = array<i32>} : memref<2x16x16x27xf32, #tpu.memory_space<vmem>>, vector<2x15x15x3xf32>,
    %16 = vector.extract_strided_slice %0 {offsets = [0, 1, 0, 0], sizes = [2, 15, 16, 3], strides = [1, 1, 1, 1]} : vector<2x16x16x3xf32> to vector<2x15x16x3xf32>
    %c0_28 = arith.constant 0 : index
    %c0_29 = arith.constant 0 : index
    %c0_30 = arith.constant 0 : index
    %c21 = arith.constant 21 : index
    %17 = vector.load %arg16[%c0_28, %c0_29, %c0_30, %c21] : memref<2x16x16x27xf32, #tpu.memory_space<vmem>>, vector<2x15x16x3xf32>
    tpu.vector_store %arg16[%c0_28, %c0_29, %c0_30, %c21], %16 {strides = array<i32>} : memref<2x16x16x27xf32, #tpu.memory_space<vmem>>, vector<2x15x16x3xf32>,
    %18 = vector.extract_strided_slice %0 {offsets = [0, 1, 1, 0], sizes = [2, 15, 15, 3], strides = [1, 1, 1, 1]} : vector<2x16x16x3xf32> to vector<2x15x15x3xf32>
    %c0_31 = arith.constant 0 : index
    %c0_32 = arith.constant 0 : index
    %c0_33 = arith.constant 0 : index
    %c24 = arith.constant 24 : index
    %19 = vector.load %arg16[%c0_31, %c0_32, %c0_33, %c24] : memref<2x16x16x27xf32, #tpu.memory_space<vmem>>, vector<2x15x15x3xf32>
    tpu.vector_store %arg16[%c0_31, %c0_32, %c0_33, %c24], %18 {strides = array<i32>} : memref<2x16x16x27xf32, #tpu.memory_space<vmem>>, vector<2x15x15x3xf32>,
    %c0_34 = arith.constant 0 : index
    %c0_35 = arith.constant 0 : index
    %c0_36 = arith.constant 0 : index
    %c0_37 = arith.constant 0 : index
    %20 = vector.load %arg16[%c0_34, %c0_35, %c0_36, %c0_37] : memref<2x16x16x27xf32, #tpu.memory_space<vmem>>, vector<2x16x16x27xf32>
    %21 = vector.shape_cast %20 : vector<2x16x16x27xf32> to vector<512x27xf32>
    %22 = arith.truncf %21 : vector<512x27xf32> to vector<512x27xbf16>
    %c0_38 = arith.constant 0 : index
    %c0_39 = arith.constant 0 : index
    %23 = vector.load %arg1[%c0_38, %c0_39] : memref<27x32xbf16, #tpu.memory_space<vmem>>, vector<27x32xbf16>
    %cst_40 = arith.constant dense<0.000000e+00> : vector<512x32xf32>
    %24 = tpu.matmul %22, %23, %cst_40 {dimension_numbers = #tpu.dot_dimension_numbers<[1], [0], [0], [1], [0, 0, 1, 1], [], []>} : vector<512x27xbf16>, vector<27x32xbf16>, vector<512x32xf32> -> vector<512x32xf32>
    %cst_41 = arith.constant dense<0.000000e+00> : vector<32xf32>
    %25 = vector.multi_reduction <add>, %24, %cst_41 [0] : vector<512x32xf32> to vector<32xf32>
    %26 = vector.shape_cast %25 : vector<32xf32> to vector<1x32xf32>
    %cst_42 = arith.constant 5.120000e+02 : f32
    %27 = vector.broadcast %cst_42 : f32 to vector<1x32xf32>
    %28 = arith.divf %26, %27 : vector<1x32xf32>
    %29 = arith.mulf %24, %24 : vector<512x32xf32>
    %cst_43 = arith.constant dense<0.000000e+00> : vector<32xf32>
    %30 = vector.multi_reduction <add>, %29, %cst_43 [0] : vector<512x32xf32> to vector<32xf32>
    %31 = vector.shape_cast %30 : vector<32xf32> to vector<1x32xf32>
    %cst_44 = arith.constant 5.120000e+02 : f32
    %32 = vector.broadcast %cst_44 : f32 to vector<1x32xf32>
    %33 = arith.divf %31, %32 : vector<1x32xf32>
    %34 = arith.mulf %28, %28 : vector<1x32xf32>
    %35 = arith.subf %33, %34 : vector<1x32xf32>
    %c0_45 = arith.constant 0 : index
    %c0_46 = arith.constant 0 : index
    %36 = vector.load %arg2[%c0_45, %c0_46] : memref<1x32xf32, #tpu.memory_space<vmem>>, vector<1x32xf32>
    %cst_47 = arith.constant 9.99999974E-6 : f32
    %37 = vector.broadcast %cst_47 : f32 to vector<1x32xf32>
    %38 = arith.addf %35, %37 : vector<1x32xf32>
    %39 = math.rsqrt %38 : vector<1x32xf32>
    %40 = arith.mulf %36, %39 : vector<1x32xf32>
    %c0_48 = arith.constant 0 : index
    %c0_49 = arith.constant 0 : index
    %41 = vector.load %arg3[%c0_48, %c0_49] : memref<1x32xf32, #tpu.memory_space<vmem>>, vector<1x32xf32>
    %42 = arith.mulf %28, %40 : vector<1x32xf32>
    %43 = arith.subf %41, %42 : vector<1x32xf32>
    %44 = vector.broadcast %40 : vector<1x32xf32> to vector<512x32xf32>
    %45 = arith.mulf %24, %44 : vector<512x32xf32>
    %46 = vector.broadcast %43 : vector<1x32xf32> to vector<512x32xf32>
    %47 = arith.addf %45, %46 : vector<512x32xf32>
    %cst_50 = arith.constant 0.000000e+00 : f32
    %48 = vector.broadcast %cst_50 : f32 to vector<512x32xf32>
    %49 = arith.maximumf %47, %48 : vector<512x32xf32>
    %50 = vector.shape_cast %49 : vector<512x32xf32> to vector<2x16x16x32xf32>
    %51 = vector.shape_cast %50 : vector<2x16x16x32xf32> to vector<2x8x2x16x32xf32>
    %52 = vector.extract_strided_slice %51 {offsets = [0, 0, 0, 0, 0], sizes = [2, 8, 1, 16, 32], strides = [1, 1, 1, 1, 1]} : vector<2x8x2x16x32xf32> to vector<2x8x1x16x32xf32>
    %53 = vector.shape_cast %52 : vector<2x8x1x16x32xf32> to vector<2x8x16x32xf32>
    %54 = vector.extract_strided_slice %51 {offsets = [0, 0, 1, 0, 0], sizes = [2, 8, 1, 16, 32], strides = [1, 1, 1, 1, 1]} : vector<2x8x2x16x32xf32> to vector<2x8x1x16x32xf32>
    %55 = vector.shape_cast %54 : vector<2x8x1x16x32xf32> to vector<2x8x16x32xf32>
    %56 = arith.maximumf %53, %55 : vector<2x8x16x32xf32>
    %57 = vector.shape_cast %56 : vector<2x8x16x32xf32> to vector<2x8x8x2x32xf32>
    %58 = vector.extract_strided_slice %57 {offsets = [0, 0, 0, 0, 0], sizes = [2, 8, 8, 1, 32], strides = [1, 1, 1, 1, 1]} : vector<2x8x8x2x32xf32> to vector<2x8x8x1x32xf32>
    %59 = vector.shape_cast %58 : vector<2x8x8x1x32xf32> to vector<2x8x8x32xf32>
    %60 = vector.extract_strided_slice %57 {offsets = [0, 0, 0, 1, 0], sizes = [2, 8, 8, 1, 32], strides = [1, 1, 1, 1, 1]} : vector<2x8x8x2x32xf32> to vector<2x8x8x1x32xf32>
    %61 = vector.shape_cast %60 : vector<2x8x8x1x32xf32> to vector<2x8x8x32xf32>
    %62 = arith.maximumf %59, %61 : vector<2x8x8x32xf32>
    %cst_51 = arith.constant 0.000000e+00 : f32
    %63 = vector.broadcast %cst_51 : f32 to vector<2x8x8x288xf32>
    %c0_52 = arith.constant 0 : index
    %c0_53 = arith.constant 0 : index
    %c0_54 = arith.constant 0 : index
    %c0_55 = arith.constant 0 : index
    %64 = vector.load %arg17[%c0_52, %c0_53, %c0_54, %c0_55] : memref<2x8x8x288xf32, #tpu.memory_space<vmem>>, vector<2x8x8x288xf32>
    tpu.vector_store %arg17[%c0_52, %c0_53, %c0_54, %c0_55], %63 {strides = array<i32>} : memref<2x8x8x288xf32, #tpu.memory_space<vmem>>, vector<2x8x8x288xf32>,
    %65 = vector.extract_strided_slice %62 {offsets = [0, 0, 0, 0], sizes = [2, 7, 7, 32], strides = [1, 1, 1, 1]} : vector<2x8x8x32xf32> to vector<2x7x7x32xf32>
    %c0_56 = arith.constant 0 : index
    %c1_57 = arith.constant 1 : index
    %c1_58 = arith.constant 1 : index
    %c0_59 = arith.constant 0 : index
    %66 = vector.load %arg17[%c0_56, %c1_57, %c1_58, %c0_59] : memref<2x8x8x288xf32, #tpu.memory_space<vmem>>, vector<2x7x7x32xf32>
    tpu.vector_store %arg17[%c0_56, %c1_57, %c1_58, %c0_59], %65 {strides = array<i32>} : memref<2x8x8x288xf32, #tpu.memory_space<vmem>>, vector<2x7x7x32xf32>,
    %67 = vector.extract_strided_slice %62 {offsets = [0, 0, 0, 0], sizes = [2, 7, 8, 32], strides = [1, 1, 1, 1]} : vector<2x8x8x32xf32> to vector<2x7x8x32xf32>
    %c0_60 = arith.constant 0 : index
    %c1_61 = arith.constant 1 : index
    %c0_62 = arith.constant 0 : index
    %c32 = arith.constant 32 : index
    %68 = vector.load %arg17[%c0_60, %c1_61, %c0_62, %c32] : memref<2x8x8x288xf32, #tpu.memory_space<vmem>>, vector<2x7x8x32xf32>
    tpu.vector_store %arg17[%c0_60, %c1_61, %c0_62, %c32], %67 {strides = array<i32>} : memref<2x8x8x288xf32, #tpu.memory_space<vmem>>, vector<2x7x8x32xf32>,
    %69 = vector.extract_strided_slice %62 {offsets = [0, 0, 1, 0], sizes = [2, 7, 7, 32], strides = [1, 1, 1, 1]} : vector<2x8x8x32xf32> to vector<2x7x7x32xf32>
    %c0_63 = arith.constant 0 : index
    %c1_64 = arith.constant 1 : index
    %c0_65 = arith.constant 0 : index
    %c64 = arith.constant 64 : index
    %70 = vector.load %arg17[%c0_63, %c1_64, %c0_65, %c64] : memref<2x8x8x288xf32, #tpu.memory_space<vmem>>, vector<2x7x7x32xf32>
    tpu.vector_store %arg17[%c0_63, %c1_64, %c0_65, %c64], %69 {strides = array<i32>} : memref<2x8x8x288xf32, #tpu.memory_space<vmem>>, vector<2x7x7x32xf32>,
    %71 = vector.extract_strided_slice %62 {offsets = [0, 0, 0, 0], sizes = [2, 8, 7, 32], strides = [1, 1, 1, 1]} : vector<2x8x8x32xf32> to vector<2x8x7x32xf32>
    %c0_66 = arith.constant 0 : index
    %c0_67 = arith.constant 0 : index
    %c1_68 = arith.constant 1 : index
    %c96 = arith.constant 96 : index
    %72 = vector.load %arg17[%c0_66, %c0_67, %c1_68, %c96] : memref<2x8x8x288xf32, #tpu.memory_space<vmem>>, vector<2x8x7x32xf32>
    tpu.vector_store %arg17[%c0_66, %c0_67, %c1_68, %c96], %71 {strides = array<i32>} : memref<2x8x8x288xf32, #tpu.memory_space<vmem>>, vector<2x8x7x32xf32>,
    %c0_69 = arith.constant 0 : index
    %c0_70 = arith.constant 0 : index
    %c0_71 = arith.constant 0 : index
    %c128 = arith.constant 128 : index
    %73 = vector.load %arg17[%c0_69, %c0_70, %c0_71, %c128] : memref<2x8x8x288xf32, #tpu.memory_space<vmem>>, vector<2x8x8x32xf32>
    tpu.vector_store %arg17[%c0_69, %c0_70, %c0_71, %c128], %62 {strides = array<i32>} : memref<2x8x8x288xf32, #tpu.memory_space<vmem>>, vector<2x8x8x32xf32>,
    %74 = vector.extract_strided_slice %62 {offsets = [0, 0, 1, 0], sizes = [2, 8, 7, 32], strides = [1, 1, 1, 1]} : vector<2x8x8x32xf32> to vector<2x8x7x32xf32>
    %c0_72 = arith.constant 0 : index
    %c0_73 = arith.constant 0 : index
    %c0_74 = arith.constant 0 : index
    %c160 = arith.constant 160 : index
    %75 = vector.load %arg17[%c0_72, %c0_73, %c0_74, %c160] : memref<2x8x8x288xf32, #tpu.memory_space<vmem>>, vector<2x8x7x32xf32>
    tpu.vector_store %arg17[%c0_72, %c0_73, %c0_74, %c160], %74 {strides = array<i32>} : memref<2x8x8x288xf32, #tpu.memory_space<vmem>>, vector<2x8x7x32xf32>,
    %76 = vector.extract_strided_slice %62 {offsets = [0, 1, 0, 0], sizes = [2, 7, 7, 32], strides = [1, 1, 1, 1]} : vector<2x8x8x32xf32> to vector<2x7x7x32xf32>
    %c0_75 = arith.constant 0 : index
    %c0_76 = arith.constant 0 : index
    %c1_77 = arith.constant 1 : index
    %c192 = arith.constant 192 : index
    %77 = vector.load %arg17[%c0_75, %c0_76, %c1_77, %c192] : memref<2x8x8x288xf32, #tpu.memory_space<vmem>>, vector<2x7x7x32xf32>
    tpu.vector_store %arg17[%c0_75, %c0_76, %c1_77, %c192], %76 {strides = array<i32>} : memref<2x8x8x288xf32, #tpu.memory_space<vmem>>, vector<2x7x7x32xf32>,
    %78 = vector.extract_strided_slice %62 {offsets = [0, 1, 0, 0], sizes = [2, 7, 8, 32], strides = [1, 1, 1, 1]} : vector<2x8x8x32xf32> to vector<2x7x8x32xf32>
    %c0_78 = arith.constant 0 : index
    %c0_79 = arith.constant 0 : index
    %c0_80 = arith.constant 0 : index
    %c224 = arith.constant 224 : index
    %79 = vector.load %arg17[%c0_78, %c0_79, %c0_80, %c224] : memref<2x8x8x288xf32, #tpu.memory_space<vmem>>, vector<2x7x8x32xf32>
    tpu.vector_store %arg17[%c0_78, %c0_79, %c0_80, %c224], %78 {strides = array<i32>} : memref<2x8x8x288xf32, #tpu.memory_space<vmem>>, vector<2x7x8x32xf32>,
    %80 = vector.extract_strided_slice %62 {offsets = [0, 1, 1, 0], sizes = [2, 7, 7, 32], strides = [1, 1, 1, 1]} : vector<2x8x8x32xf32> to vector<2x7x7x32xf32>
    %c0_81 = arith.constant 0 : index
    %c0_82 = arith.constant 0 : index
    %c0_83 = arith.constant 0 : index
    %c256 = arith.constant 256 : index
    %81 = vector.load %arg17[%c0_81, %c0_82, %c0_83, %c256] : memref<2x8x8x288xf32, #tpu.memory_space<vmem>>, vector<2x7x7x32xf32>
    tpu.vector_store %arg17[%c0_81, %c0_82, %c0_83, %c256], %80 {strides = array<i32>} : memref<2x8x8x288xf32, #tpu.memory_space<vmem>>, vector<2x7x7x32xf32>,
    %c0_84 = arith.constant 0 : index
    %c0_85 = arith.constant 0 : index
    %c0_86 = arith.constant 0 : index
    %c0_87 = arith.constant 0 : index
    %82 = vector.load %arg17[%c0_84, %c0_85, %c0_86, %c0_87] : memref<2x8x8x288xf32, #tpu.memory_space<vmem>>, vector<2x8x8x288xf32>
    %83 = vector.shape_cast %82 : vector<2x8x8x288xf32> to vector<128x288xf32>
    %84 = arith.truncf %83 : vector<128x288xf32> to vector<128x288xbf16>
    %c0_88 = arith.constant 0 : index
    %c0_89 = arith.constant 0 : index
    %85 = vector.load %arg4[%c0_88, %c0_89] : memref<288x32xbf16, #tpu.memory_space<vmem>>, vector<288x32xbf16>
    %cst_90 = arith.constant dense<0.000000e+00> : vector<128x32xf32>
    %86 = tpu.matmul %84, %85, %cst_90 {dimension_numbers = #tpu.dot_dimension_numbers<[1], [0], [0], [1], [0, 0, 1, 1], [], []>} : vector<128x288xbf16>, vector<288x32xbf16>, vector<128x32xf32> -> vector<128x32xf32>
    %cst_91 = arith.constant dense<0.000000e+00> : vector<32xf32>
    %87 = vector.multi_reduction <add>, %86, %cst_91 [0] : vector<128x32xf32> to vector<32xf32>
    %88 = vector.shape_cast %87 : vector<32xf32> to vector<1x32xf32>
    %cst_92 = arith.constant 1.280000e+02 : f32
    %89 = vector.broadcast %cst_92 : f32 to vector<1x32xf32>
    %90 = arith.divf %88, %89 : vector<1x32xf32>
    %91 = arith.mulf %86, %86 : vector<128x32xf32>
    %cst_93 = arith.constant dense<0.000000e+00> : vector<32xf32>
    %92 = vector.multi_reduction <add>, %91, %cst_93 [0] : vector<128x32xf32> to vector<32xf32>
    %93 = vector.shape_cast %92 : vector<32xf32> to vector<1x32xf32>
    %cst_94 = arith.constant 1.280000e+02 : f32
    %94 = vector.broadcast %cst_94 : f32 to vector<1x32xf32>
    %95 = arith.divf %93, %94 : vector<1x32xf32>
    %96 = arith.mulf %90, %90 : vector<1x32xf32>
    %97 = arith.subf %95, %96 : vector<1x32xf32>
    %c0_95 = arith.constant 0 : index
    %c0_96 = arith.constant 0 : index
    %98 = vector.load %arg5[%c0_95, %c0_96] : memref<1x32xf32, #tpu.memory_space<vmem>>, vector<1x32xf32>
    %cst_97 = arith.constant 9.99999974E-6 : f32
    %99 = vector.broadcast %cst_97 : f32 to vector<1x32xf32>
    %100 = arith.addf %97, %99 : vector<1x32xf32>
    %101 = math.rsqrt %100 : vector<1x32xf32>
    %102 = arith.mulf %98, %101 : vector<1x32xf32>
    %c0_98 = arith.constant 0 : index
    %c0_99 = arith.constant 0 : index
    %103 = vector.load %arg6[%c0_98, %c0_99] : memref<1x32xf32, #tpu.memory_space<vmem>>, vector<1x32xf32>
    %104 = arith.mulf %90, %102 : vector<1x32xf32>
    %105 = arith.subf %103, %104 : vector<1x32xf32>
    %106 = vector.broadcast %102 : vector<1x32xf32> to vector<128x32xf32>
    %107 = arith.mulf %86, %106 : vector<128x32xf32>
    %108 = vector.broadcast %105 : vector<1x32xf32> to vector<128x32xf32>
    %109 = arith.addf %107, %108 : vector<128x32xf32>
    %cst_100 = arith.constant 0.000000e+00 : f32
    %110 = vector.broadcast %cst_100 : f32 to vector<128x32xf32>
    %111 = arith.maximumf %109, %110 : vector<128x32xf32>
    %112 = vector.shape_cast %111 : vector<128x32xf32> to vector<2x8x8x32xf32>
    %113 = vector.shape_cast %112 : vector<2x8x8x32xf32> to vector<2x4x2x8x32xf32>
    %114 = vector.extract_strided_slice %113 {offsets = [0, 0, 0, 0, 0], sizes = [2, 4, 1, 8, 32], strides = [1, 1, 1, 1, 1]} : vector<2x4x2x8x32xf32> to vector<2x4x1x8x32xf32>
    %115 = vector.shape_cast %114 : vector<2x4x1x8x32xf32> to vector<2x4x8x32xf32>
    %116 = vector.extract_strided_slice %113 {offsets = [0, 0, 1, 0, 0], sizes = [2, 4, 1, 8, 32], strides = [1, 1, 1, 1, 1]} : vector<2x4x2x8x32xf32> to vector<2x4x1x8x32xf32>
    %117 = vector.shape_cast %116 : vector<2x4x1x8x32xf32> to vector<2x4x8x32xf32>
    %118 = arith.maximumf %115, %117 : vector<2x4x8x32xf32>
    %119 = vector.shape_cast %118 : vector<2x4x8x32xf32> to vector<2x4x4x2x32xf32>
    %120 = vector.extract_strided_slice %119 {offsets = [0, 0, 0, 0, 0], sizes = [2, 4, 4, 1, 32], strides = [1, 1, 1, 1, 1]} : vector<2x4x4x2x32xf32> to vector<2x4x4x1x32xf32>
    %121 = vector.shape_cast %120 : vector<2x4x4x1x32xf32> to vector<2x4x4x32xf32>
    %122 = vector.extract_strided_slice %119 {offsets = [0, 0, 0, 1, 0], sizes = [2, 4, 4, 1, 32], strides = [1, 1, 1, 1, 1]} : vector<2x4x4x2x32xf32> to vector<2x4x4x1x32xf32>
    %123 = vector.shape_cast %122 : vector<2x4x4x1x32xf32> to vector<2x4x4x32xf32>
    %124 = arith.maximumf %121, %123 : vector<2x4x4x32xf32>
    %cst_101 = arith.constant 0.000000e+00 : f32
    %125 = vector.broadcast %cst_101 : f32 to vector<2x4x4x288xf32>
    %c0_102 = arith.constant 0 : index
    %c0_103 = arith.constant 0 : index
    %c0_104 = arith.constant 0 : index
    %c0_105 = arith.constant 0 : index
    %126 = vector.load %arg18[%c0_102, %c0_103, %c0_104, %c0_105] : memref<2x4x4x288xf32, #tpu.memory_space<vmem>>, vector<2x4x4x288xf32>
    tpu.vector_store %arg18[%c0_102, %c0_103, %c0_104, %c0_105], %125 {strides = array<i32>} : memref<2x4x4x288xf32, #tpu.memory_space<vmem>>, vector<2x4x4x288xf32>,
    %127 = vector.extract_strided_slice %124 {offsets = [0, 0, 0, 0], sizes = [2, 3, 3, 32], strides = [1, 1, 1, 1]} : vector<2x4x4x32xf32> to vector<2x3x3x32xf32>
    %c0_106 = arith.constant 0 : index
    %c1_107 = arith.constant 1 : index
    %c1_108 = arith.constant 1 : index
    %c0_109 = arith.constant 0 : index
    %128 = vector.load %arg18[%c0_106, %c1_107, %c1_108, %c0_109] : memref<2x4x4x288xf32, #tpu.memory_space<vmem>>, vector<2x3x3x32xf32>
    tpu.vector_store %arg18[%c0_106, %c1_107, %c1_108, %c0_109], %127 {strides = array<i32>} : memref<2x4x4x288xf32, #tpu.memory_space<vmem>>, vector<2x3x3x32xf32>,
    %129 = vector.extract_strided_slice %124 {offsets = [0, 0, 0, 0], sizes = [2, 3, 4, 32], strides = [1, 1, 1, 1]} : vector<2x4x4x32xf32> to vector<2x3x4x32xf32>
    %c0_110 = arith.constant 0 : index
    %c1_111 = arith.constant 1 : index
    %c0_112 = arith.constant 0 : index
    %c32_113 = arith.constant 32 : index
    %130 = vector.load %arg18[%c0_110, %c1_111, %c0_112, %c32_113] : memref<2x4x4x288xf32, #tpu.memory_space<vmem>>, vector<2x3x4x32xf32>
    tpu.vector_store %arg18[%c0_110, %c1_111, %c0_112, %c32_113], %129 {strides = array<i32>} : memref<2x4x4x288xf32, #tpu.memory_space<vmem>>, vector<2x3x4x32xf32>,
    %131 = vector.extract_strided_slice %124 {offsets = [0, 0, 1, 0], sizes = [2, 3, 3, 32], strides = [1, 1, 1, 1]} : vector<2x4x4x32xf32> to vector<2x3x3x32xf32>
    %c0_114 = arith.constant 0 : index
    %c1_115 = arith.constant 1 : index
    %c0_116 = arith.constant 0 : index
    %c64_117 = arith.constant 64 : index
    %132 = vector.load %arg18[%c0_114, %c1_115, %c0_116, %c64_117] : memref<2x4x4x288xf32, #tpu.memory_space<vmem>>, vector<2x3x3x32xf32>
    tpu.vector_store %arg18[%c0_114, %c1_115, %c0_116, %c64_117], %131 {strides = array<i32>} : memref<2x4x4x288xf32, #tpu.memory_space<vmem>>, vector<2x3x3x32xf32>,
    %133 = vector.extract_strided_slice %124 {offsets = [0, 0, 0, 0], sizes = [2, 4, 3, 32], strides = [1, 1, 1, 1]} : vector<2x4x4x32xf32> to vector<2x4x3x32xf32>
    %c0_118 = arith.constant 0 : index
    %c0_119 = arith.constant 0 : index
    %c1_120 = arith.constant 1 : index
    %c96_121 = arith.constant 96 : index
    %134 = vector.load %arg18[%c0_118, %c0_119, %c1_120, %c96_121] : memref<2x4x4x288xf32, #tpu.memory_space<vmem>>, vector<2x4x3x32xf32>
    tpu.vector_store %arg18[%c0_118, %c0_119, %c1_120, %c96_121], %133 {strides = array<i32>} : memref<2x4x4x288xf32, #tpu.memory_space<vmem>>, vector<2x4x3x32xf32>,
    %c0_122 = arith.constant 0 : index
    %c0_123 = arith.constant 0 : index
    %c0_124 = arith.constant 0 : index
    %c128_125 = arith.constant 128 : index
    %135 = vector.load %arg18[%c0_122, %c0_123, %c0_124, %c128_125] : memref<2x4x4x288xf32, #tpu.memory_space<vmem>>, vector<2x4x4x32xf32>
    tpu.vector_store %arg18[%c0_122, %c0_123, %c0_124, %c128_125], %124 {strides = array<i32>} : memref<2x4x4x288xf32, #tpu.memory_space<vmem>>, vector<2x4x4x32xf32>,
    %136 = vector.extract_strided_slice %124 {offsets = [0, 0, 1, 0], sizes = [2, 4, 3, 32], strides = [1, 1, 1, 1]} : vector<2x4x4x32xf32> to vector<2x4x3x32xf32>
    %c0_126 = arith.constant 0 : index
    %c0_127 = arith.constant 0 : index
    %c0_128 = arith.constant 0 : index
    %c160_129 = arith.constant 160 : index
    %137 = vector.load %arg18[%c0_126, %c0_127, %c0_128, %c160_129] : memref<2x4x4x288xf32, #tpu.memory_space<vmem>>, vector<2x4x3x32xf32>
    tpu.vector_store %arg18[%c0_126, %c0_127, %c0_128, %c160_129], %136 {strides = array<i32>} : memref<2x4x4x288xf32, #tpu.memory_space<vmem>>, vector<2x4x3x32xf32>,
    %138 = vector.extract_strided_slice %124 {offsets = [0, 1, 0, 0], sizes = [2, 3, 3, 32], strides = [1, 1, 1, 1]} : vector<2x4x4x32xf32> to vector<2x3x3x32xf32>
    %c0_130 = arith.constant 0 : index
    %c0_131 = arith.constant 0 : index
    %c1_132 = arith.constant 1 : index
    %c192_133 = arith.constant 192 : index
    %139 = vector.load %arg18[%c0_130, %c0_131, %c1_132, %c192_133] : memref<2x4x4x288xf32, #tpu.memory_space<vmem>>, vector<2x3x3x32xf32>
    tpu.vector_store %arg18[%c0_130, %c0_131, %c1_132, %c192_133], %138 {strides = array<i32>} : memref<2x4x4x288xf32, #tpu.memory_space<vmem>>, vector<2x3x3x32xf32>,
    %140 = vector.extract_strided_slice %124 {offsets = [0, 1, 0, 0], sizes = [2, 3, 4, 32], strides = [1, 1, 1, 1]} : vector<2x4x4x32xf32> to vector<2x3x4x32xf32>
    %c0_134 = arith.constant 0 : index
    %c0_135 = arith.constant 0 : index
    %c0_136 = arith.constant 0 : index
    %c224_137 = arith.constant 224 : index
    %141 = vector.load %arg18[%c0_134, %c0_135, %c0_136, %c224_137] : memref<2x4x4x288xf32, #tpu.memory_space<vmem>>, vector<2x3x4x32xf32>
    tpu.vector_store %arg18[%c0_134, %c0_135, %c0_136, %c224_137], %140 {strides = array<i32>} : memref<2x4x4x288xf32, #tpu.memory_space<vmem>>, vector<2x3x4x32xf32>,
    %142 = vector.extract_strided_slice %124 {offsets = [0, 1, 1, 0], sizes = [2, 3, 3, 32], strides = [1, 1, 1, 1]} : vector<2x4x4x32xf32> to vector<2x3x3x32xf32>
    %c0_138 = arith.constant 0 : index
    %c0_139 = arith.constant 0 : index
    %c0_140 = arith.constant 0 : index
    %c256_141 = arith.constant 256 : index
    %143 = vector.load %arg18[%c0_138, %c0_139, %c0_140, %c256_141] : memref<2x4x4x288xf32, #tpu.memory_space<vmem>>, vector<2x3x3x32xf32>
    tpu.vector_store %arg18[%c0_138, %c0_139, %c0_140, %c256_141], %142 {strides = array<i32>} : memref<2x4x4x288xf32, #tpu.memory_space<vmem>>, vector<2x3x3x32xf32>,
    %c0_142 = arith.constant 0 : index
    %c0_143 = arith.constant 0 : index
    %c0_144 = arith.constant 0 : index
    %c0_145 = arith.constant 0 : index
    %144 = vector.load %arg18[%c0_142, %c0_143, %c0_144, %c0_145] : memref<2x4x4x288xf32, #tpu.memory_space<vmem>>, vector<2x4x4x288xf32>
    %145 = vector.shape_cast %144 : vector<2x4x4x288xf32> to vector<32x288xf32>
    %146 = arith.truncf %145 : vector<32x288xf32> to vector<32x288xbf16>
    %c0_146 = arith.constant 0 : index
    %c0_147 = arith.constant 0 : index
    %147 = vector.load %arg7[%c0_146, %c0_147] : memref<288x32xbf16, #tpu.memory_space<vmem>>, vector<288x32xbf16>
    %cst_148 = arith.constant dense<0.000000e+00> : vector<32x32xf32>
    %148 = tpu.matmul %146, %147, %cst_148 {dimension_numbers = #tpu.dot_dimension_numbers<[1], [0], [0], [1], [0, 0, 1, 1], [], []>} : vector<32x288xbf16>, vector<288x32xbf16>, vector<32x32xf32> -> vector<32x32xf32>
    %cst_149 = arith.constant dense<0.000000e+00> : vector<32xf32>
    %149 = vector.multi_reduction <add>, %148, %cst_149 [0] : vector<32x32xf32> to vector<32xf32>
    %150 = vector.shape_cast %149 : vector<32xf32> to vector<1x32xf32>
    %cst_150 = arith.constant 3.200000e+01 : f32
    %151 = vector.broadcast %cst_150 : f32 to vector<1x32xf32>
    %152 = arith.divf %150, %151 : vector<1x32xf32>
    %153 = arith.mulf %148, %148 : vector<32x32xf32>
    %cst_151 = arith.constant dense<0.000000e+00> : vector<32xf32>
    %154 = vector.multi_reduction <add>, %153, %cst_151 [0] : vector<32x32xf32> to vector<32xf32>
    %155 = vector.shape_cast %154 : vector<32xf32> to vector<1x32xf32>
    %cst_152 = arith.constant 3.200000e+01 : f32
    %156 = vector.broadcast %cst_152 : f32 to vector<1x32xf32>
    %157 = arith.divf %155, %156 : vector<1x32xf32>
    %158 = arith.mulf %152, %152 : vector<1x32xf32>
    %159 = arith.subf %157, %158 : vector<1x32xf32>
    %c0_153 = arith.constant 0 : index
    %c0_154 = arith.constant 0 : index
    %160 = vector.load %arg8[%c0_153, %c0_154] : memref<1x32xf32, #tpu.memory_space<vmem>>, vector<1x32xf32>
    %cst_155 = arith.constant 9.99999974E-6 : f32
    %161 = vector.broadcast %cst_155 : f32 to vector<1x32xf32>
    %162 = arith.addf %159, %161 : vector<1x32xf32>
    %163 = math.rsqrt %162 : vector<1x32xf32>
    %164 = arith.mulf %160, %163 : vector<1x32xf32>
    %c0_156 = arith.constant 0 : index
    %c0_157 = arith.constant 0 : index
    %165 = vector.load %arg9[%c0_156, %c0_157] : memref<1x32xf32, #tpu.memory_space<vmem>>, vector<1x32xf32>
    %166 = arith.mulf %152, %164 : vector<1x32xf32>
    %167 = arith.subf %165, %166 : vector<1x32xf32>
    %168 = vector.broadcast %164 : vector<1x32xf32> to vector<32x32xf32>
    %169 = arith.mulf %148, %168 : vector<32x32xf32>
    %170 = vector.broadcast %167 : vector<1x32xf32> to vector<32x32xf32>
    %171 = arith.addf %169, %170 : vector<32x32xf32>
    %cst_158 = arith.constant 0.000000e+00 : f32
    %172 = vector.broadcast %cst_158 : f32 to vector<32x32xf32>
    %173 = arith.maximumf %171, %172 : vector<32x32xf32>
    %174 = vector.shape_cast %173 : vector<32x32xf32> to vector<2x4x4x32xf32>
    %175 = vector.shape_cast %174 : vector<2x4x4x32xf32> to vector<2x2x2x4x32xf32>
    %176 = vector.extract_strided_slice %175 {offsets = [0, 0, 0, 0, 0], sizes = [2, 2, 1, 4, 32], strides = [1, 1, 1, 1, 1]} : vector<2x2x2x4x32xf32> to vector<2x2x1x4x32xf32>
    %177 = vector.shape_cast %176 : vector<2x2x1x4x32xf32> to vector<2x2x4x32xf32>
    %178 = vector.extract_strided_slice %175 {offsets = [0, 0, 1, 0, 0], sizes = [2, 2, 1, 4, 32], strides = [1, 1, 1, 1, 1]} : vector<2x2x2x4x32xf32> to vector<2x2x1x4x32xf32>
    %179 = vector.shape_cast %178 : vector<2x2x1x4x32xf32> to vector<2x2x4x32xf32>
    %180 = arith.maximumf %177, %179 : vector<2x2x4x32xf32>
    %181 = vector.shape_cast %180 : vector<2x2x4x32xf32> to vector<2x2x2x2x32xf32>
    %182 = vector.extract_strided_slice %181 {offsets = [0, 0, 0, 0, 0], sizes = [2, 2, 2, 1, 32], strides = [1, 1, 1, 1, 1]} : vector<2x2x2x2x32xf32> to vector<2x2x2x1x32xf32>
    %183 = vector.shape_cast %182 : vector<2x2x2x1x32xf32> to vector<2x2x2x32xf32>
    %184 = vector.extract_strided_slice %181 {offsets = [0, 0, 0, 1, 0], sizes = [2, 2, 2, 1, 32], strides = [1, 1, 1, 1, 1]} : vector<2x2x2x2x32xf32> to vector<2x2x2x1x32xf32>
    %185 = vector.shape_cast %184 : vector<2x2x2x1x32xf32> to vector<2x2x2x32xf32>
    %186 = arith.maximumf %183, %185 : vector<2x2x2x32xf32>
    %cst_159 = arith.constant 0.000000e+00 : f32
    %187 = vector.broadcast %cst_159 : f32 to vector<2x2x2x288xf32>
    %c0_160 = arith.constant 0 : index
    %c0_161 = arith.constant 0 : index
    %c0_162 = arith.constant 0 : index
    %c0_163 = arith.constant 0 : index
    %188 = vector.load %arg19[%c0_160, %c0_161, %c0_162, %c0_163] : memref<2x2x2x288xf32, #tpu.memory_space<vmem>>, vector<2x2x2x288xf32>
    tpu.vector_store %arg19[%c0_160, %c0_161, %c0_162, %c0_163], %187 {strides = array<i32>} : memref<2x2x2x288xf32, #tpu.memory_space<vmem>>, vector<2x2x2x288xf32>,
    %189 = vector.extract_strided_slice %186 {offsets = [0, 0, 0, 0], sizes = [2, 1, 1, 32], strides = [1, 1, 1, 1]} : vector<2x2x2x32xf32> to vector<2x1x1x32xf32>
    %c0_164 = arith.constant 0 : index
    %c1_165 = arith.constant 1 : index
    %c1_166 = arith.constant 1 : index
    %c0_167 = arith.constant 0 : index
    %190 = vector.load %arg19[%c0_164, %c1_165, %c1_166, %c0_167] : memref<2x2x2x288xf32, #tpu.memory_space<vmem>>, vector<2x1x1x32xf32>
    tpu.vector_store %arg19[%c0_164, %c1_165, %c1_166, %c0_167], %189 {strides = array<i32>} : memref<2x2x2x288xf32, #tpu.memory_space<vmem>>, vector<2x1x1x32xf32>,
    %191 = vector.extract_strided_slice %186 {offsets = [0, 0, 0, 0], sizes = [2, 1, 2, 32], strides = [1, 1, 1, 1]} : vector<2x2x2x32xf32> to vector<2x1x2x32xf32>
    %c0_168 = arith.constant 0 : index
    %c1_169 = arith.constant 1 : index
    %c0_170 = arith.constant 0 : index
    %c32_171 = arith.constant 32 : index
    %192 = vector.load %arg19[%c0_168, %c1_169, %c0_170, %c32_171] : memref<2x2x2x288xf32, #tpu.memory_space<vmem>>, vector<2x1x2x32xf32>
    tpu.vector_store %arg19[%c0_168, %c1_169, %c0_170, %c32_171], %191 {strides = array<i32>} : memref<2x2x2x288xf32, #tpu.memory_space<vmem>>, vector<2x1x2x32xf32>,
    %193 = vector.extract_strided_slice %186 {offsets = [0, 0, 1, 0], sizes = [2, 1, 1, 32], strides = [1, 1, 1, 1]} : vector<2x2x2x32xf32> to vector<2x1x1x32xf32>
    %c0_172 = arith.constant 0 : index
    %c1_173 = arith.constant 1 : index
    %c0_174 = arith.constant 0 : index
    %c64_175 = arith.constant 64 : index
    %194 = vector.load %arg19[%c0_172, %c1_173, %c0_174, %c64_175] : memref<2x2x2x288xf32, #tpu.memory_space<vmem>>, vector<2x1x1x32xf32>
    tpu.vector_store %arg19[%c0_172, %c1_173, %c0_174, %c64_175], %193 {strides = array<i32>} : memref<2x2x2x288xf32, #tpu.memory_space<vmem>>, vector<2x1x1x32xf32>,
    %195 = vector.extract_strided_slice %186 {offsets = [0, 0, 0, 0], sizes = [2, 2, 1, 32], strides = [1, 1, 1, 1]} : vector<2x2x2x32xf32> to vector<2x2x1x32xf32>
    %c0_176 = arith.constant 0 : index
    %c0_177 = arith.constant 0 : index
    %c1_178 = arith.constant 1 : index
    %c96_179 = arith.constant 96 : index
    %196 = vector.load %arg19[%c0_176, %c0_177, %c1_178, %c96_179] : memref<2x2x2x288xf32, #tpu.memory_space<vmem>>, vector<2x2x1x32xf32>
    tpu.vector_store %arg19[%c0_176, %c0_177, %c1_178, %c96_179], %195 {strides = array<i32>} : memref<2x2x2x288xf32, #tpu.memory_space<vmem>>, vector<2x2x1x32xf32>,
    %c0_180 = arith.constant 0 : index
    %c0_181 = arith.constant 0 : index
    %c0_182 = arith.constant 0 : index
    %c128_183 = arith.constant 128 : index
    %197 = vector.load %arg19[%c0_180, %c0_181, %c0_182, %c128_183] : memref<2x2x2x288xf32, #tpu.memory_space<vmem>>, vector<2x2x2x32xf32>
    tpu.vector_store %arg19[%c0_180, %c0_181, %c0_182, %c128_183], %186 {strides = array<i32>} : memref<2x2x2x288xf32, #tpu.memory_space<vmem>>, vector<2x2x2x32xf32>,
    %198 = vector.extract_strided_slice %186 {offsets = [0, 0, 1, 0], sizes = [2, 2, 1, 32], strides = [1, 1, 1, 1]} : vector<2x2x2x32xf32> to vector<2x2x1x32xf32>
    %c0_184 = arith.constant 0 : index
    %c0_185 = arith.constant 0 : index
    %c0_186 = arith.constant 0 : index
    %c160_187 = arith.constant 160 : index
    %199 = vector.load %arg19[%c0_184, %c0_185, %c0_186, %c160_187] : memref<2x2x2x288xf32, #tpu.memory_space<vmem>>, vector<2x2x1x32xf32>
    tpu.vector_store %arg19[%c0_184, %c0_185, %c0_186, %c160_187], %198 {strides = array<i32>} : memref<2x2x2x288xf32, #tpu.memory_space<vmem>>, vector<2x2x1x32xf32>,
    %200 = vector.extract_strided_slice %186 {offsets = [0, 1, 0, 0], sizes = [2, 1, 1, 32], strides = [1, 1, 1, 1]} : vector<2x2x2x32xf32> to vector<2x1x1x32xf32>
    %c0_188 = arith.constant 0 : index
    %c0_189 = arith.constant 0 : index
    %c1_190 = arith.constant 1 : index
    %c192_191 = arith.constant 192 : index
    %201 = vector.load %arg19[%c0_188, %c0_189, %c1_190, %c192_191] : memref<2x2x2x288xf32, #tpu.memory_space<vmem>>, vector<2x1x1x32xf32>
    tpu.vector_store %arg19[%c0_188, %c0_189, %c1_190, %c192_191], %200 {strides = array<i32>} : memref<2x2x2x288xf32, #tpu.memory_space<vmem>>, vector<2x1x1x32xf32>,
    %202 = vector.extract_strided_slice %186 {offsets = [0, 1, 0, 0], sizes = [2, 1, 2, 32], strides = [1, 1, 1, 1]} : vector<2x2x2x32xf32> to vector<2x1x2x32xf32>
    %c0_192 = arith.constant 0 : index
    %c0_193 = arith.constant 0 : index
    %c0_194 = arith.constant 0 : index
    %c224_195 = arith.constant 224 : index
    %203 = vector.load %arg19[%c0_192, %c0_193, %c0_194, %c224_195] : memref<2x2x2x288xf32, #tpu.memory_space<vmem>>, vector<2x1x2x32xf32>
    tpu.vector_store %arg19[%c0_192, %c0_193, %c0_194, %c224_195], %202 {strides = array<i32>} : memref<2x2x2x288xf32, #tpu.memory_space<vmem>>, vector<2x1x2x32xf32>,
    %204 = vector.extract_strided_slice %186 {offsets = [0, 1, 1, 0], sizes = [2, 1, 1, 32], strides = [1, 1, 1, 1]} : vector<2x2x2x32xf32> to vector<2x1x1x32xf32>
    %c0_196 = arith.constant 0 : index
    %c0_197 = arith.constant 0 : index
    %c0_198 = arith.constant 0 : index
    %c256_199 = arith.constant 256 : index
    %205 = vector.load %arg19[%c0_196, %c0_197, %c0_198, %c256_199] : memref<2x2x2x288xf32, #tpu.memory_space<vmem>>, vector<2x1x1x32xf32>
    tpu.vector_store %arg19[%c0_196, %c0_197, %c0_198, %c256_199], %204 {strides = array<i32>} : memref<2x2x2x288xf32, #tpu.memory_space<vmem>>, vector<2x1x1x32xf32>,
    %c0_200 = arith.constant 0 : index
    %c0_201 = arith.constant 0 : index
    %c0_202 = arith.constant 0 : index
    %c0_203 = arith.constant 0 : index
    %206 = vector.load %arg19[%c0_200, %c0_201, %c0_202, %c0_203] : memref<2x2x2x288xf32, #tpu.memory_space<vmem>>, vector<2x2x2x288xf32>
    %207 = vector.shape_cast %206 : vector<2x2x2x288xf32> to vector<8x288xf32>
    %208 = arith.truncf %207 : vector<8x288xf32> to vector<8x288xbf16>
    %c0_204 = arith.constant 0 : index
    %c0_205 = arith.constant 0 : index
    %209 = vector.load %arg10[%c0_204, %c0_205] : memref<288x32xbf16, #tpu.memory_space<vmem>>, vector<288x32xbf16>
    %cst_206 = arith.constant dense<0.000000e+00> : vector<8x32xf32>
    %210 = tpu.matmul %208, %209, %cst_206 {dimension_numbers = #tpu.dot_dimension_numbers<[1], [0], [0], [1], [0, 0, 1, 1], [], []>} : vector<8x288xbf16>, vector<288x32xbf16>, vector<8x32xf32> -> vector<8x32xf32>
    %cst_207 = arith.constant dense<0.000000e+00> : vector<32xf32>
    %211 = vector.multi_reduction <add>, %210, %cst_207 [0] : vector<8x32xf32> to vector<32xf32>
    %212 = vector.shape_cast %211 : vector<32xf32> to vector<1x32xf32>
    %cst_208 = arith.constant 8.000000e+00 : f32
    %213 = vector.broadcast %cst_208 : f32 to vector<1x32xf32>
    %214 = arith.divf %212, %213 : vector<1x32xf32>
    %215 = arith.mulf %210, %210 : vector<8x32xf32>
    %cst_209 = arith.constant dense<0.000000e+00> : vector<32xf32>
    %216 = vector.multi_reduction <add>, %215, %cst_209 [0] : vector<8x32xf32> to vector<32xf32>
    %217 = vector.shape_cast %216 : vector<32xf32> to vector<1x32xf32>
    %cst_210 = arith.constant 8.000000e+00 : f32
    %218 = vector.broadcast %cst_210 : f32 to vector<1x32xf32>
    %219 = arith.divf %217, %218 : vector<1x32xf32>
    %220 = arith.mulf %214, %214 : vector<1x32xf32>
    %221 = arith.subf %219, %220 : vector<1x32xf32>
    %c0_211 = arith.constant 0 : index
    %c0_212 = arith.constant 0 : index
    %222 = vector.load %arg11[%c0_211, %c0_212] : memref<1x32xf32, #tpu.memory_space<vmem>>, vector<1x32xf32>
    %cst_213 = arith.constant 9.99999974E-6 : f32
    %223 = vector.broadcast %cst_213 : f32 to vector<1x32xf32>
    %224 = arith.addf %221, %223 : vector<1x32xf32>
    %225 = math.rsqrt %224 : vector<1x32xf32>
    %226 = arith.mulf %222, %225 : vector<1x32xf32>
    %c0_214 = arith.constant 0 : index
    %c0_215 = arith.constant 0 : index
    %227 = vector.load %arg12[%c0_214, %c0_215] : memref<1x32xf32, #tpu.memory_space<vmem>>, vector<1x32xf32>
    %228 = arith.mulf %214, %226 : vector<1x32xf32>
    %229 = arith.subf %227, %228 : vector<1x32xf32>
    %230 = vector.broadcast %226 : vector<1x32xf32> to vector<8x32xf32>
    %231 = arith.mulf %210, %230 : vector<8x32xf32>
    %232 = vector.broadcast %229 : vector<1x32xf32> to vector<8x32xf32>
    %233 = arith.addf %231, %232 : vector<8x32xf32>
    %cst_216 = arith.constant 0.000000e+00 : f32
    %234 = vector.broadcast %cst_216 : f32 to vector<8x32xf32>
    %235 = arith.maximumf %233, %234 : vector<8x32xf32>
    %236 = vector.shape_cast %235 : vector<8x32xf32> to vector<2x2x2x32xf32>
    %237 = vector.shape_cast %236 : vector<2x2x2x32xf32> to vector<2x1x2x2x32xf32>
    %238 = vector.extract_strided_slice %237 {offsets = [0, 0, 0, 0, 0], sizes = [2, 1, 1, 2, 32], strides = [1, 1, 1, 1, 1]} : vector<2x1x2x2x32xf32> to vector<2x1x1x2x32xf32>
    %239 = vector.shape_cast %238 : vector<2x1x1x2x32xf32> to vector<2x1x2x32xf32>
    %240 = vector.extract_strided_slice %237 {offsets = [0, 0, 1, 0, 0], sizes = [2, 1, 1, 2, 32], strides = [1, 1, 1, 1, 1]} : vector<2x1x2x2x32xf32> to vector<2x1x1x2x32xf32>
    %241 = vector.shape_cast %240 : vector<2x1x1x2x32xf32> to vector<2x1x2x32xf32>
    %242 = arith.maximumf %239, %241 : vector<2x1x2x32xf32>
    %243 = vector.shape_cast %242 : vector<2x1x2x32xf32> to vector<2x1x1x2x32xf32>
    %244 = vector.extract_strided_slice %243 {offsets = [0, 0, 0, 0, 0], sizes = [2, 1, 1, 1, 32], strides = [1, 1, 1, 1, 1]} : vector<2x1x1x2x32xf32> to vector<2x1x1x1x32xf32>
    %245 = vector.shape_cast %244 : vector<2x1x1x1x32xf32> to vector<2x1x1x32xf32>
    %246 = vector.extract_strided_slice %243 {offsets = [0, 0, 0, 1, 0], sizes = [2, 1, 1, 1, 32], strides = [1, 1, 1, 1, 1]} : vector<2x1x1x2x32xf32> to vector<2x1x1x1x32xf32>
    %247 = vector.shape_cast %246 : vector<2x1x1x1x32xf32> to vector<2x1x1x32xf32>
    %248 = arith.maximumf %245, %247 : vector<2x1x1x32xf32>
    %249 = vector.shape_cast %248 : vector<2x1x1x32xf32> to vector<2x32xf32>
    %250 = arith.truncf %249 : vector<2x32xf32> to vector<2x32xbf16>
    %c0_217 = arith.constant 0 : index
    %c0_218 = arith.constant 0 : index
    %251 = vector.load %arg13[%c0_217, %c0_218] : memref<32x5xbf16, #tpu.memory_space<vmem>>, vector<32x5xbf16>
    %cst_219 = arith.constant dense<0.000000e+00> : vector<2x5xf32>
    %252 = tpu.matmul %250, %251, %cst_219 {dimension_numbers = #tpu.dot_dimension_numbers<[1], [0], [0], [1], [0, 0, 1, 1], [], []>} : vector<2x32xbf16>, vector<32x5xbf16>, vector<2x5xf32> -> vector<2x5xf32>
    %c0_220 = arith.constant 0 : index
    %c0_221 = arith.constant 0 : index
    %253 = vector.load %arg14[%c0_220, %c0_221] : memref<1x5xf32, #tpu.memory_space<vmem>>, vector<1x5xf32>
    %254 = vector.broadcast %253 : vector<1x5xf32> to vector<2x5xf32>
    %255 = arith.addf %252, %254 : vector<2x5xf32>
    %c0_222 = arith.constant 0 : index
    %c0_223 = arith.constant 0 : index
    %256 = vector.load %arg15[%c0_222, %c0_223] : memref<2x5xf32, #tpu.memory_space<vmem>>, vector<2x5xf32>
    tpu.vector_store %arg15[%c0_222, %c0_223], %255 {strides = array<i32>} : memref<2x5xf32, #tpu.memory_space<vmem>>, vector<2x5xf32>,
    return
  }
}

</mosaic_0001>

<llo_original>
// kernel: metaconv_forward.1
$region0: #{metaconv_forward.1}
  #allocation0 [shape = 'u32[]', space=smem, size = 0x4, offset = 0x4, fixed_abs, tag = 'smem constant byte address 0x4 - core index']
  #allocation1 [shape = 'u32[144,128]{1,0:T(1,128)}', space=vmem, size = 0x12000, scoped, tag = 'internal scratch']
  #allocation2 [shape = 'f32[2,16,16,27]{3,2,1,0:T(8,128)}', space=vmem, size = 0x40000, scoped, tag = 'scratch operand']
  #allocation3 [shape = 'f32[2,8,8,288]{3,2,1,0:T(8,128)}', space=vmem, size = 0x30000, scoped, tag = 'scratch operand']
  #allocation4 [shape = 'f32[2,4,4,288]{3,2,1,0:T(4,128)}', space=vmem, size = 0xc000, scoped, tag = 'scratch operand']
  #allocation5 [shape = 'f32[2,2,2,288]{3,2,1,0:T(2,128)}', space=vmem, size = 0x3000, scoped, tag = 'scratch operand']
  %s0 = inlined_call_operand.vmem [shape: f32[2,16,16,3], index: 0, kind: input, shape index: {}]
  %s1 = inlined_call_operand.vmem [shape: bf16[27,32], index: 1, kind: input, shape index: {}]
  %s2 = inlined_call_operand.vmem [shape: f32[1,32], index: 2, kind: input, shape index: {}]
  %s3 = inlined_call_operand.vmem [shape: f32[1,32], index: 3, kind: input, shape index: {}]
  %s4 = inlined_call_operand.vmem [shape: bf16[288,32], index: 4, kind: input, shape index: {}]
  %s5 = inlined_call_operand.vmem [shape: f32[1,32], index: 5, kind: input, shape index: {}]
  %s6 = inlined_call_operand.vmem [shape: f32[1,32], index: 6, kind: input, shape index: {}]
  %s7 = inlined_call_operand.vmem [shape: bf16[288,32], index: 7, kind: input, shape index: {}]
  %s8 = inlined_call_operand.vmem [shape: f32[1,32], index: 8, kind: input, shape index: {}]
  %s9 = inlined_call_operand.vmem [shape: f32[1,32], index: 9, kind: input, shape index: {}]
  %s10 = inlined_call_operand.vmem [shape: bf16[288,32], index: 10, kind: input, shape index: {}]
  %s11 = inlined_call_operand.vmem [shape: f32[1,32], index: 11, kind: input, shape index: {}]
  %s12 = inlined_call_operand.vmem [shape: f32[1,32], index: 12, kind: input, shape index: {}]
  %s13 = inlined_call_operand.vmem [shape: bf16[32,5], index: 13, kind: input, shape index: {}]
  %s14 = inlined_call_operand.vmem [shape: f32[1,5], index: 14, kind: input, shape index: {}]
  %s15 = inlined_call_operand.hbm [shape: f32[2,5], index: 15, kind: output, shape index: {}]
  %s16 = sld [smem:[#allocation0]]
  $region70: #{metaconv_forward.1} parent=0
    _
  %s18 = ssub.s32 1, %s16
  %s19 = scalar_select 0, %s18, %s16
  $region1: #{metaconv_forward.1} parent=0
    #allocation6 [shape = 'u8[1024]{0}', space=vmem, size = 0x400, scoped, tag = 'output window, operand 0, single buffered']
    #allocation7 [shape = 's32[1]{0}', space=sflag, size = 0x4, scoped, tag = 'scoped memory for metaconv_forward.1']
    %20 = vsyncpa [#allocation7], 0
    // Predicated region
    $region2: #{metaconv_forward.1} parent=1 // pred_check
      _
    $region3: #{metaconv_forward.1} parent=1 // pred_check_branch
      %22 = sbr.rel (0) target = $region5
    $region4: #{metaconv_forward.1} parent=1 // pred_region
      _
    $region5: #{metaconv_forward.1} parent=1 // pred_fallthru
      _
    // Predicated region
    $region6: #{metaconv_forward.1} parent=1 // pred_check
      _
    $region7: #{metaconv_forward.1} parent=1 // pred_check_branch
      %24 = sbr.rel (0) target = $region9
    $region8: #{metaconv_forward.1} parent=1 // pred_region
      _
    $region9: #{metaconv_forward.1} parent=1 // pred_fallthru
      _
    // Predicated region
    $region10: #{metaconv_forward.1} parent=1 // pred_check
      _
    $region11: #{metaconv_forward.1} parent=1 // pred_check_branch
      %26 = sbr.rel (0) target = $region13
    $region12: #{metaconv_forward.1} parent=1 // pred_region
      _
    $region13: #{metaconv_forward.1} parent=1 // pred_fallthru
      _
    // Predicated region
    $region14: #{metaconv_forward.1} parent=1 // pred_check
      _
    $region15: #{metaconv_forward.1} parent=1 // pred_check_branch
      %28 = sbr.rel (0) target = $region17
    $region16: #{metaconv_forward.1} parent=1 // pred_region
      _
    $region17: #{metaconv_forward.1} parent=1 // pred_fallthru
      _
    // Predicated region
    $region18: #{metaconv_forward.1} parent=1 // pred_check
      _
    $region19: #{metaconv_forward.1} parent=1 // pred_check_branch
      %30 = sbr.rel (0) target = $region21
    $region20: #{metaconv_forward.1} parent=1 // pred_region
      _
    $region21: #{metaconv_forward.1} parent=1 // pred_fallthru
      _
    // Predicated region
    $region22: #{metaconv_forward.1} parent=1 // pred_check
      _
    $region23: #{metaconv_forward.1} parent=1 // pred_check_branch
      %32 = sbr.rel (0) target = $region25
    $region24: #{metaconv_forward.1} parent=1 // pred_region
      _
    $region25: #{metaconv_forward.1} parent=1 // pred_fallthru
      _
    // Predicated region
    $region26: #{metaconv_forward.1} parent=1 // pred_check
      _
    $region27: #{metaconv_forward.1} parent=1 // pred_check_branch
      %34 = sbr.rel (0) target = $region29
    $region28: #{metaconv_forward.1} parent=1 // pred_region
      _
    $region29: #{metaconv_forward.1} parent=1 // pred_fallthru
      _
    // Predicated region
    $region30: #{metaconv_forward.1} parent=1 // pred_check
      _
    $region31: #{metaconv_forward.1} parent=1 // pred_check_branch
      %36 = sbr.rel (0) target = $region33
    $region32: #{metaconv_forward.1} parent=1 // pred_region
      _
    $region33: #{metaconv_forward.1} parent=1 // pred_fallthru
      _
    // Predicated region
    $region34: #{metaconv_forward.1} parent=1 // pred_check
      _
    $region35: #{metaconv_forward.1} parent=1 // pred_check_branch
      %38 = sbr.rel (0) target = $region37
    $region36: #{metaconv_forward.1} parent=1 // pred_region
      _
    $region37: #{metaconv_forward.1} parent=1 // pred_fallthru
      _
    // Predicated region
    $region38: #{metaconv_forward.1} parent=1 // pred_check
      _
    $region39: #{metaconv_forward.1} parent=1 // pred_check_branch
      %40 = sbr.rel (0) target = $region41
    $region40: #{metaconv_forward.1} parent=1 // pred_region
      _
    $region41: #{metaconv_forward.1} parent=1 // pred_fallthru
      _
    // Predicated region
    $region42: #{metaconv_forward.1} parent=1 // pred_check
      _
    $region43: #{metaconv_forward.1} parent=1 // pred_check_branch
      %42 = sbr.rel (0) target = $region45
    $region44: #{metaconv_forward.1} parent=1 // pred_region
      _
    $region45: #{metaconv_forward.1} parent=1 // pred_fallthru
      _
    // Predicated region
    $region46: #{metaconv_forward.1} parent=1 // pred_check
      _
    $region47: #{metaconv_forward.1} parent=1 // pred_check_branch
      %44 = sbr.rel (0) target = $region49
    $region48: #{metaconv_forward.1} parent=1 // pred_region
      _
    $region49: #{metaconv_forward.1} parent=1 // pred_fallthru
      _
    // Predicated region
    $region50: #{metaconv_forward.1} parent=1 // pred_check
      _
    $region51: #{metaconv_forward.1} parent=1 // pred_check_branch
      %46 = sbr.rel (0) target = $region53
    $region52: #{metaconv_forward.1} parent=1 // pred_region
      _
    $region53: #{metaconv_forward.1} parent=1 // pred_fallthru
      _
    // Predicated region
    $region54: #{metaconv_forward.1} parent=1 // pred_check
      _
    $region55: #{metaconv_forward.1} parent=1 // pred_check_branch
      %48 = sbr.rel (0) target = $region57
    $region56: #{metaconv_forward.1} parent=1 // pred_region
      _
    $region57: #{metaconv_forward.1} parent=1 // pred_fallthru
      _
    // Predicated region
    $region58: #{metaconv_forward.1} parent=1 // pred_check
      _
    $region59: #{metaconv_forward.1} parent=1 // pred_check_branch
      %50 = sbr.rel (0) target = $region61
    $region60: #{metaconv_forward.1} parent=1 // pred_region
      _
    $region61: #{metaconv_forward.1} parent=1 // pred_fallthru
      _
    %v52 = vld [vmem:[%s0] sm:$0xff]
    %v53 = vld [vmem:[%s0 + $0x8] sm:$0xff]
    %v54 = vld [vmem:[%s0 + $0x10] sm:$0xff]
    %v55 = vld [vmem:[%s0 + $0x18] sm:$0xff]
    %v56 = vld [vmem:[%s0 + $0x20] sm:$0xff]
    %v57 = vld [vmem:[%s0 + $0x28] sm:$0xff]
    %v58 = vld [vmem:[%s0 + $0x30] sm:$0xff]
    %v59 = vld [vmem:[%s0 + $0x38] sm:$0xff]
    %v60 = vld [vmem:[%s0 + $0x40] sm:$0xff]
    %v61 = vld [vmem:[%s0 + $0x48] sm:$0xff]
    %v62 = vld [vmem:[%s0 + $0x50] sm:$0xff]
    %v63 = vld [vmem:[%s0 + $0x58] sm:$0xff]
    %v64 = vld [vmem:[%s0 + $0x60] sm:$0xff]
    %v65 = vld [vmem:[%s0 + $0x68] sm:$0xff]
    %v66 = vld [vmem:[%s0 + $0x70] sm:$0xff]
    %v67 = vld [vmem:[%s0 + $0x78] sm:$0xff]
    %v68 = vld [vmem:[%s0 + $0x80] sm:$0xff]
    %v69 = vld [vmem:[%s0 + $0x88] sm:$0xff]
    %v70 = vld [vmem:[%s0 + $0x90] sm:$0xff]
    %v71 = vld [vmem:[%s0 + $0x98] sm:$0xff]
    %v72 = vld [vmem:[%s0 + $0xa0] sm:$0xff]
    %v73 = vld [vmem:[%s0 + $0xa8] sm:$0xff]
    %v74 = vld [vmem:[%s0 + $0xb0] sm:$0xff]
    %v75 = vld [vmem:[%s0 + $0xb8] sm:$0xff]
    %v76 = vld [vmem:[%s0 + $0xc0] sm:$0xff]
    %v77 = vld [vmem:[%s0 + $0xc8] sm:$0xff]
    %v78 = vld [vmem:[%s0 + $0xd0] sm:$0xff]
    %v79 = vld [vmem:[%s0 + $0xd8] sm:$0xff]
    %v80 = vld [vmem:[%s0 + $0xe0] sm:$0xff]
    %v81 = vld [vmem:[%s0 + $0xe8] sm:$0xff]
    %v82 = vld [vmem:[%s0 + $0xf0] sm:$0xff]
    %v83 = vld [vmem:[%s0 + $0xf8] sm:$0xff]
    %v84 = vld [vmem:[%s0 + $0x100] sm:$0xff]
    %v85 = vld [vmem:[%s0 + $0x108] sm:$0xff]
    %v86 = vld [vmem:[%s0 + $0x110] sm:$0xff]
    %v87 = vld [vmem:[%s0 + $0x118] sm:$0xff]
    %v88 = vld [vmem:[%s0 + $0x120] sm:$0xff]
    %v89 = vld [vmem:[%s0 + $0x128] sm:$0xff]
    %v90 = vld [vmem:[%s0 + $0x130] sm:$0xff]
    %v91 = vld [vmem:[%s0 + $0x138] sm:$0xff]
    %v92 = vld [vmem:[%s0 + $0x140] sm:$0xff]
    %v93 = vld [vmem:[%s0 + $0x148] sm:$0xff]
    %v94 = vld [vmem:[%s0 + $0x150] sm:$0xff]
    %v95 = vld [vmem:[%s0 + $0x158] sm:$0xff]
    %v96 = vld [vmem:[%s0 + $0x160] sm:$0xff]
    %v97 = vld [vmem:[%s0 + $0x168] sm:$0xff]
    %v98 = vld [vmem:[%s0 + $0x170] sm:$0xff]
    %v99 = vld [vmem:[%s0 + $0x178] sm:$0xff]
    %v100 = vld [vmem:[%s0 + $0x180] sm:$0xff]
    %v101 = vld [vmem:[%s0 + $0x188] sm:$0xff]
    %v102 = vld [vmem:[%s0 + $0x190] sm:$0xff]
    %v103 = vld [vmem:[%s0 + $0x198] sm:$0xff]
    %v104 = vld [vmem:[%s0 + $0x1a0] sm:$0xff]
    %v105 = vld [vmem:[%s0 + $0x1a8] sm:$0xff]
    %v106 = vld [vmem:[%s0 + $0x1b0] sm:$0xff]
    %v107 = vld [vmem:[%s0 + $0x1b8] sm:$0xff]
    %v108 = vld [vmem:[%s0 + $0x1c0] sm:$0xff]
    %v109 = vld [vmem:[%s0 + $0x1c8] sm:$0xff]
    %v110 = vld [vmem:[%s0 + $0x1d0] sm:$0xff]
    %v111 = vld [vmem:[%s0 + $0x1d8] sm:$0xff]
    %v112 = vld [vmem:[%s0 + $0x1e0] sm:$0xff]
    %v113 = vld [vmem:[%s0 + $0x1e8] sm:$0xff]
    %v114 = vld [vmem:[%s0 + $0x1f0] sm:$0xff]
    %v115 = vld [vmem:[%s0 + $0x1f8] sm:$0xff]
    %vm116 = vcmask 220160
    %117 = vst.msk [vmem:[#allocation2] sm:$0xff] %vm116, 0.0
    %118 = vst.msk [vmem:[#allocation2 + $0x8] sm:$0xff] %vm116, 0.0
    %119 = vst.msk [vmem:[#allocation2 + $0x10] sm:$0xff] %vm116, 0.0
    %120 = vst.msk [vmem:[#allocation2 + $0x18] sm:$0xff] %vm116, 0.0
    %121 = vst.msk [vmem:[#allocation2 + $0x20] sm:$0xff] %vm116, 0.0
    %122 = vst.msk [vmem:[#allocation2 + $0x28] sm:$0xff] %vm116, 0.0
    %123 = vst.msk [vmem:[#allocation2 + $0x30] sm:$0xff] %vm116, 0.0
    %124 = vst.msk [vmem:[#allocation2 + $0x38] sm:$0xff] %vm116, 0.0
    %125 = vst.msk [vmem:[#allocation2 + $0x40] sm:$0xff] %vm116, 0.0
    %126 = vst.msk [vmem:[#allocation2 + $0x48] sm:$0xff] %vm116, 0.0
    %127 = vst.msk [vmem:[#allocation2 + $0x50] sm:$0xff] %vm116, 0.0
    %128 = vst.msk [vmem:[#allocation2 + $0x58] sm:$0xff] %vm116, 0.0
    %129 = vst.msk [vmem:[#allocation2 + $0x60] sm:$0xff] %vm116, 0.0
    %130 = vst.msk [vmem:[#allocation2 + $0x68] sm:$0xff] %vm116, 0.0
    %131 = vst.msk [vmem:[#allocation2 + $0x70] sm:$0xff] %vm116, 0.0
    %132 = vst.msk [vmem:[#allocation2 + $0x78] sm:$0xff] %vm116, 0.0
    %133 = vst.msk [vmem:[#allocation2 + $0x80] sm:$0xff] %vm116, 0.0
    %134 = vst.msk [vmem:[#allocation2 + $0x88] sm:$0xff] %vm116, 0.0
    %135 = vst.msk [vmem:[#allocation2 + $0x90] sm:$0xff] %vm116, 0.0
    %136 = vst.msk [vmem:[#allocation2 + $0x98] sm:$0xff] %vm116, 0.0
    %137 = vst.msk [vmem:[#allocation2 + $0xa0] sm:$0xff] %vm116, 0.0
    %138 = vst.msk [vmem:[#allocation2 + $0xa8] sm:$0xff] %vm116, 0.0
    %139 = vst.msk [vmem:[#allocation2 + $0xb0] sm:$0xff] %vm116, 0.0
    %140 = vst.msk [vmem:[#allocation2 + $0xb8] sm:$0xff] %vm116, 0.0
    %141 = vst.msk [vmem:[#allocation2 + $0xc0] sm:$0xff] %vm116, 0.0
    %142 = vst.msk [vmem:[#allocation2 + $0xc8] sm:$0xff] %vm116, 0.0
    %143 = vst.msk [vmem:[#allocation2 + $0xd0] sm:$0xff] %vm116, 0.0
    %144 = vst.msk [vmem:[#allocation2 + $0xd8] sm:$0xff] %vm116, 0.0
    %145 = vst.msk [vmem:[#allocation2 + $0xe0] sm:$0xff] %vm116, 0.0
    %146 = vst.msk [vmem:[#allocation2 + $0xe8] sm:$0xff] %vm116, 0.0
    %147 = vst.msk [vmem:[#allocation2 + $0xf0] sm:$0xff] %vm116, 0.0
    %148 = vst.msk [vmem:[#allocation2 + $0xf8] sm:$0xff] %vm116, 0.0
    %149 = vst.msk [vmem:[#allocation2 + $0x100] sm:$0xff] %vm116, 0.0
    %150 = vst.msk [vmem:[#allocation2 + $0x108] sm:$0xff] %vm116, 0.0
    %151 = vst.msk [vmem:[#allocation2 + $0x110] sm:$0xff] %vm116, 0.0
    %152 = vst.msk [vmem:[#allocation2 + $0x118] sm:$0xff] %vm116, 0.0
    %153 = vst.msk [vmem:[#allocation2 + $0x120] sm:$0xff] %vm116, 0.0
    %154 = vst.msk [vmem:[#allocation2 + $0x128] sm:$0xff] %vm116, 0.0
    %155 = vst.msk [vmem:[#allocation2 + $0x130] sm:$0xff] %vm116, 0.0
    %156 = vst.msk [vmem:[#allocation2 + $0x138] sm:$0xff] %vm116, 0.0
    %157 = vst.msk [vmem:[#allocation2 + $0x140] sm:$0xff] %vm116, 0.0
    %158 = vst.msk [vmem:[#allocation2 + $0x148] sm:$0xff] %vm116, 0.0
    %159 = vst.msk [vmem:[#allocation2 + $0x150] sm:$0xff] %vm116, 0.0
    %160 = vst.msk [vmem:[#allocation2 + $0x158] sm:$0xff] %vm116, 0.0
    %161 = vst.msk [vmem:[#allocation2 + $0x160] sm:$0xff] %vm116, 0.0
    %162 = vst.msk [vmem:[#allocation2 + $0x168] sm:$0xff] %vm116, 0.0
    %163 = vst.msk [vmem:[#allocation2 + $0x170] sm:$0xff] %vm116, 0.0
    %164 = vst.msk [vmem:[#allocation2 + $0x178] sm:$0xff] %vm116, 0.0
    %165 = vst.msk [vmem:[#allocation2 + $0x180] sm:$0xff] %vm116, 0.0
    %166 = vst.msk [vmem:[#allocation2 + $0x188] sm:$0xff] %vm116, 0.0
    %167 = vst.msk [vmem:[#allocation2 + $0x190] sm:$0xff] %vm116, 0.0
    %168 = vst.msk [vmem:[#allocation2 + $0x198] sm:$0xff] %vm116, 0.0
    %169 = vst.msk [vmem:[#allocation2 + $0x1a0] sm:$0xff] %vm116, 0.0
    %170 = vst.msk [vmem:[#allocation2 + $0x1a8] sm:$0xff] %vm116, 0.0
    %171 = vst.msk [vmem:[#allocation2 + $0x1b0] sm:$0xff] %vm116, 0.0
    %172 = vst.msk [vmem:[#allocation2 + $0x1b8] sm:$0xff] %vm116, 0.0
    %173 = vst.msk [vmem:[#allocation2 + $0x1c0] sm:$0xff] %vm116, 0.0
    %174 = vst.msk [vmem:[#allocation2 + $0x1c8] sm:$0xff] %vm116, 0.0
    %175 = vst.msk [vmem:[#allocation2 + $0x1d0] sm:$0xff] %vm116, 0.0
    %176 = vst.msk [vmem:[#allocation2 + $0x1d8] sm:$0xff] %vm116, 0.0
    %177 = vst.msk [vmem:[#allocation2 + $0x1e0] sm:$0xff] %vm116, 0.0
    %178 = vst.msk [vmem:[#allocation2 + $0x1e8] sm:$0xff] %vm116, 0.0
    %179 = vst.msk [vmem:[#allocation2 + $0x1f0] sm:$0xff] %vm116, 0.0
    %180 = vst.msk [vmem:[#allocation2 + $0x1f8] sm:$0xff] %vm116, 0.0
    %s181 = scalar_lea.vmem [#allocation2], 16
    %vm182 = vcmask 23552
    %183 = vst.msk [vmem:[%s181 + $0x1] sm:$0xff] %vm182, %v52
    %vm184 = vcmask 22528
    %185 = vst.msk [vmem:[%s181 + $0x9] sm:$0x7f] %vm184, %v53
    %186 = vst.msk [vmem:[%s181 + $0x11] sm:$0xff] %vm182, %v54
    %187 = vst.msk [vmem:[%s181 + $0x19] sm:$0x7f] %vm184, %v55
    %188 = vst.msk [vmem:[%s181 + $0x21] sm:$0xff] %vm182, %v56
    %189 = vst.msk [vmem:[%s181 + $0x29] sm:$0x7f] %vm184, %v57
    %190 = vst.msk [vmem:[%s181 + $0x31] sm:$0xff] %vm182, %v58
    %191 = vst.msk [vmem:[%s181 + $0x39] sm:$0x7f] %vm184, %v59
    %192 = vst.msk [vmem:[%s181 + $0x41] sm:$0xff] %vm182, %v60
    %193 = vst.msk [vmem:[%s181 + $0x49] sm:$0x7f] %vm184, %v61
    %194 = vst.msk [vmem:[%s181 + $0x51] sm:$0xff] %vm182, %v62
    %195 = vst.msk [vmem:[%s181 + $0x59] sm:$0x7f] %vm184, %v63
    %196 = vst.msk [vmem:[%s181 + $0x61] sm:$0xff] %vm182, %v64
    %197 = vst.msk [vmem:[%s181 + $0x69] sm:$0x7f] %vm184, %v65
    %198 = vst.msk [vmem:[%s181 + $0x71] sm:$0xff] %vm182, %v66
    %199 = vst.msk [vmem:[%s181 + $0x79] sm:$0x7f] %vm184, %v67
    %200 = vst.msk [vmem:[%s181 + $0x81] sm:$0xff] %vm182, %v68
    %201 = vst.msk [vmem:[%s181 + $0x89] sm:$0x7f] %vm184, %v69
    %202 = vst.msk [vmem:[%s181 + $0x91] sm:$0xff] %vm182, %v70
    %203 = vst.msk [vmem:[%s181 + $0x99] sm:$0x7f] %vm184, %v71
    %204 = vst.msk [vmem:[%s181 + $0xa1] sm:$0xff] %vm182, %v72
    %205 = vst.msk [vmem:[%s181 + $0xa9] sm:$0x7f] %vm184, %v73
    %206 = vst.msk [vmem:[%s181 + $0xb1] sm:$0xff] %vm182, %v74
    %207 = vst.msk [vmem:[%s181 + $0xb9] sm:$0x7f] %vm184, %v75
    %208 = vst.msk [vmem:[%s181 + $0xc1] sm:$0xff] %vm182, %v76
    %209 = vst.msk [vmem:[%s181 + $0xc9] sm:$0x7f] %vm184, %v77
    %210 = vst.msk [vmem:[%s181 + $0xd1] sm:$0xff] %vm182, %v78
    %211 = vst.msk [vmem:[%s181 + $0xd9] sm:$0x7f] %vm184, %v79
    %212 = vst.msk [vmem:[%s181 + $0xe1] sm:$0xff] %vm182, %v80
    %213 = vst.msk [vmem:[%s181 + $0xe9] sm:$0x7f] %vm184, %v81
    %214 = vst.msk [vmem:[%s181 + $0x101] sm:$0xff] %vm182, %v84
    %215 = vst.msk [vmem:[%s181 + $0x109] sm:$0x7f] %vm184, %v85
    %216 = vst.msk [vmem:[%s181 + $0x111] sm:$0xff] %vm182, %v86
    %217 = vst.msk [vmem:[%s181 + $0x119] sm:$0x7f] %vm184, %v87
    %218 = vst.msk [vmem:[%s181 + $0x121] sm:$0xff] %vm182, %v88
    %219 = vst.msk [vmem:[%s181 + $0x129] sm:$0x7f] %vm184, %v89
    %220 = vst.msk [vmem:[%s181 + $0x131] sm:$0xff] %vm182, %v90
    %221 = vst.msk [vmem:[%s181 + $0x139] sm:$0x7f] %vm184, %v91
    %222 = vst.msk [vmem:[%s181 + $0x141] sm:$0xff] %vm182, %v92
    %223 = vst.msk [vmem:[%s181 + $0x149] sm:$0x7f] %vm184, %v93
    %224 = vst.msk [vmem:[%s181 + $0x151] sm:$0xff] %vm182, %v94
    %225 = vst.msk [vmem:[%s181 + $0x159] sm:$0x7f] %vm184, %v95
    %226 = vst.msk [vmem:[%s181 + $0x161] sm:$0xff] %vm182, %v96
    %227 = vst.msk [vmem:[%s181 + $0x169] sm:$0x7f] %vm184, %v97
    %228 = vst.msk [vmem:[%s181 + $0x171] sm:$0xff] %vm182, %v98
    %229 = vst.msk [vmem:[%s181 + $0x179] sm:$0x7f] %vm184, %v99
    %230 = vst.msk [vmem:[%s181 + $0x181] sm:$0xff] %vm182, %v100
    %231 = vst.msk [vmem:[%s181 + $0x189] sm:$0x7f] %vm184, %v101
    %232 = vst.msk [vmem:[%s181 + $0x191] sm:$0xff] %vm182, %v102
    %233 = vst.msk [vmem:[%s181 + $0x199] sm:$0x7f] %vm184, %v103
    %234 = vst.msk [vmem:[%s181 + $0x1a1] sm:$0xff] %vm182, %v104
    %235 = vst.msk [vmem:[%s181 + $0x1a9] sm:$0x7f] %vm184, %v105
    %236 = vst.msk [vmem:[%s181 + $0x1b1] sm:$0xff] %vm182, %v106
    %237 = vst.msk [vmem:[%s181 + $0x1b9] sm:$0x7f] %vm184, %v107
    %238 = vst.msk [vmem:[%s181 + $0x1c1] sm:$0xff] %vm182, %v108
    %239 = vst.msk [vmem:[%s181 + $0x1c9] sm:$0x7f] %vm184, %v109
    %240 = vst.msk [vmem:[%s181 + $0x1d1] sm:$0xff] %vm182, %v110
    %241 = vst.msk [vmem:[%s181 + $0x1d9] sm:$0x7f] %vm184, %v111
    %242 = vst.msk [vmem:[%s181 + $0x1e1] sm:$0xff] %vm182, %v112
    %243 = vst.msk [vmem:[%s181 + $0x1e9] sm:$0x7f] %vm184, %v113
    %304 = vrot.lane.b32.xlu0 %v52, 3
    %v305 = vpop.permute.xlu0 %304
    %306 = vrot.lane.b32.xlu0 %v53, 3
    %v307 = vpop.permute.xlu0 %306
    %308 = vrot.lane.b32.xlu0 %v54, 3
    %v309 = vpop.permute.xlu0 %308
    %310 = vrot.lane.b32.xlu0 %v55, 3
    %v311 = vpop.permute.xlu0 %310
    %312 = vrot.lane.b32.xlu0 %v56, 3
    %v313 = vpop.permute.xlu0 %312
    %314 = vrot.lane.b32.xlu0 %v57, 3
    %v315 = vpop.permute.xlu0 %314
    %316 = vrot.lane.b32.xlu0 %v58, 3
    %v317 = vpop.permute.xlu0 %316
    %318 = vrot.lane.b32.xlu0 %v59, 3
    %v319 = vpop.permute.xlu0 %318
    %320 = vrot.lane.b32.xlu0 %v60, 3
    %v321 = vpop.permute.xlu0 %320
    %322 = vrot.lane.b32.xlu0 %v61, 3
    %v323 = vpop.permute.xlu0 %322
    %324 = vrot.lane.b32.xlu0 %v62, 3
    %v325 = vpop.permute.xlu0 %324
    %326 = vrot.lane.b32.xlu0 %v63, 3
    %v327 = vpop.permute.xlu0 %326
    %328 = vrot.lane.b32.xlu0 %v64, 3
    %v329 = vpop.permute.xlu0 %328
    %330 = vrot.lane.b32.xlu0 %v65, 3
    %v331 = vpop.permute.xlu0 %330
    %332 = vrot.lane.b32.xlu0 %v66, 3
    %v333 = vpop.permute.xlu0 %332
    %334 = vrot.lane.b32.xlu0 %v67, 3
    %v335 = vpop.permute.xlu0 %334
    %336 = vrot.lane.b32.xlu0 %v68, 3
    %v337 = vpop.permute.xlu0 %336
    %338 = vrot.lane.b32.xlu0 %v69, 3
    %v339 = vpop.permute.xlu0 %338
    %340 = vrot.lane.b32.xlu0 %v70, 3
    %v341 = vpop.permute.xlu0 %340
    %342 = vrot.lane.b32.xlu0 %v71, 3
    %v343 = vpop.permute.xlu0 %342
    %344 = vrot.lane.b32.xlu0 %v72, 3
    %v345 = vpop.permute.xlu0 %344
    %346 = vrot.lane.b32.xlu0 %v73, 3
    %v347 = vpop.permute.xlu0 %346
    %348 = vrot.lane.b32.xlu0 %v74, 3
    %v349 = vpop.permute.xlu0 %348
    %350 = vrot.lane.b32.xlu0 %v75, 3
    %v351 = vpop.permute.xlu0 %350
    %352 = vrot.lane.b32.xlu0 %v76, 3
    %v353 = vpop.permute.xlu0 %352
    %354 = vrot.lane.b32.xlu0 %v77, 3
    %v355 = vpop.permute.xlu0 %354
    %356 = vrot.lane.b32.xlu0 %v78, 3
    %v357 = vpop.permute.xlu0 %356
    %358 = vrot.lane.b32.xlu0 %v79, 3
    %v359 = vpop.permute.xlu0 %358
    %360 = vrot.lane.b32.xlu0 %v80, 3
    %v361 = vpop.permute.xlu0 %360
    %362 = vrot.lane.b32.xlu0 %v81, 3
    %v363 = vpop.permute.xlu0 %362
    %364 = vrot.lane.b32.xlu0 %v84, 3
    %v365 = vpop.permute.xlu0 %364
    %366 = vrot.lane.b32.xlu0 %v85, 3
    %v367 = vpop.permute.xlu0 %366
    %368 = vrot.lane.b32.xlu0 %v86, 3
    %v369 = vpop.permute.xlu0 %368
    %370 = vrot.lane.b32.xlu0 %v87, 3
    %v371 = vpop.permute.xlu0 %370
    %372 = vrot.lane.b32.xlu0 %v88, 3
    %v373 = vpop.permute.xlu0 %372
    %374 = vrot.lane.b32.xlu0 %v89, 3
    %v375 = vpop.permute.xlu0 %374
    %376 = vrot.lane.b32.xlu0 %v90, 3
    %v377 = vpop.permute.xlu0 %376
    %378 = vrot.lane.b32.xlu0 %v91, 3
    %v379 = vpop.permute.xlu0 %378
    %380 = vrot.lane.b32.xlu0 %v92, 3
    %v381 = vpop.permute.xlu0 %380
    %382 = vrot.lane.b32.xlu0 %v93, 3
    %v383 = vpop.permute.xlu0 %382
    %384 = vrot.lane.b32.xlu0 %v94, 3
    %v385 = vpop.permute.xlu0 %384
    %386 = vrot.lane.b32.xlu0 %v95, 3
    %v387 = vpop.permute.xlu0 %386
    %388 = vrot.lane.b32.xlu0 %v96, 3
    %v389 = vpop.permute.xlu0 %388
    %390 = vrot.lane.b32.xlu0 %v97, 3
    %v391 = vpop.permute.xlu0 %390
    %392 = vrot.lane.b32.xlu0 %v98, 3
    %v393 = vpop.permute.xlu0 %392
    %394 = vrot.lane.b32.xlu0 %v99, 3
    %v395 = vpop.permute.xlu0 %394
    %396 = vrot.lane.b32.xlu0 %v100, 3
    %v397 = vpop.permute.xlu0 %396
    %398 = vrot.lane.b32.xlu0 %v101, 3
    %v399 = vpop.permute.xlu0 %398
    %400 = vrot.lane.b32.xlu0 %v102, 3
    %v401 = vpop.permute.xlu0 %400
    %402 = vrot.lane.b32.xlu0 %v103, 3
    %v403 = vpop.permute.xlu0 %402
    %404 = vrot.lane.b32.xlu0 %v104, 3
    %v405 = vpop.permute.xlu0 %404
    %406 = vrot.lane.b32.xlu0 %v105, 3
    %v407 = vpop.permute.xlu0 %406
    %408 = vrot.lane.b32.xlu0 %v106, 3
    %v409 = vpop.permute.xlu0 %408
    %410 = vrot.lane.b32.xlu0 %v107, 3
    %v411 = vpop.permute.xlu0 %410
    %412 = vrot.lane.b32.xlu0 %v108, 3
    %v413 = vpop.permute.xlu0 %412
    %414 = vrot.lane.b32.xlu0 %v109, 3
    %v415 = vpop.permute.xlu0 %414
    %416 = vrot.lane.b32.xlu0 %v110, 3
    %v417 = vpop.permute.xlu0 %416
    %418 = vrot.lane.b32.xlu0 %v111, 3
    %v419 = vpop.permute.xlu0 %418
    %420 = vrot.lane.b32.xlu0 %v112, 3
    %v421 = vpop.permute.xlu0 %420
    %422 = vrot.lane.b32.xlu0 %v113, 3
    %v423 = vpop.permute.xlu0 %422
    %vm484 = vcmask 48152
    %485 = vst.msk [vmem:[%s181] sm:$0xff] %vm484, %v305
    %486 = vst.msk [vmem:[%s181 + $0x8] sm:$0xff] %vm484, %v307
    %487 = vst.msk [vmem:[%s181 + $0x10] sm:$0xff] %vm484, %v309
    %488 = vst.msk [vmem:[%s181 + $0x18] sm:$0xff] %vm484, %v311
    %489 = vst.msk [vmem:[%s181 + $0x20] sm:$0xff] %vm484, %v313
    %490 = vst.msk [vmem:[%s181 + $0x28] sm:$0xff] %vm484, %v315
    %491 = vst.msk [vmem:[%s181 + $0x30] sm:$0xff] %vm484, %v317
    %492 = vst.msk [vmem:[%s181 + $0x38] sm:$0xff] %vm484, %v319
    %493 = vst.msk [vmem:[%s181 + $0x40] sm:$0xff] %vm484, %v321
    %494 = vst.msk [vmem:[%s181 + $0x48] sm:$0xff] %vm484, %v323
    %495 = vst.msk [vmem:[%s181 + $0x50] sm:$0xff] %vm484, %v325
    %496 = vst.msk [vmem:[%s181 + $0x58] sm:$0xff] %vm484, %v327
    %497 = vst.msk [vmem:[%s181 + $0x60] sm:$0xff] %vm484, %v329
    %498 = vst.msk [vmem:[%s181 + $0x68] sm:$0xff] %vm484, %v331
    %499 = vst.msk [vmem:[%s181 + $0x70] sm:$0xff] %vm484, %v333
    %500 = vst.msk [vmem:[%s181 + $0x78] sm:$0xff] %vm484, %v335
    %501 = vst.msk [vmem:[%s181 + $0x80] sm:$0xff] %vm484, %v337
    %502 = vst.msk [vmem:[%s181 + $0x88] sm:$0xff] %vm484, %v339
    %503 = vst.msk [vmem:[%s181 + $0x90] sm:$0xff] %vm484, %v341
    %504 = vst.msk [vmem:[%s181 + $0x98] sm:$0xff] %vm484, %v343
    %505 = vst.msk [vmem:[%s181 + $0xa0] sm:$0xff] %vm484, %v345
    %506 = vst.msk [vmem:[%s181 + $0xa8] sm:$0xff] %vm484, %v347
    %507 = vst.msk [vmem:[%s181 + $0xb0] sm:$0xff] %vm484, %v349
    %508 = vst.msk [vmem:[%s181 + $0xb8] sm:$0xff] %vm484, %v351
    %509 = vst.msk [vmem:[%s181 + $0xc0] sm:$0xff] %vm484, %v353
    %510 = vst.msk [vmem:[%s181 + $0xc8] sm:$0xff] %vm484, %v355
    %511 = vst.msk [vmem:[%s181 + $0xd0] sm:$0xff] %vm484, %v357
    %512 = vst.msk [vmem:[%s181 + $0xd8] sm:$0xff] %vm484, %v359
    %513 = vst.msk [vmem:[%s181 + $0xe0] sm:$0xff] %vm484, %v361
    %514 = vst.msk [vmem:[%s181 + $0xe8] sm:$0xff] %vm484, %v363
    %515 = vst.msk [vmem:[%s181 + $0x100] sm:$0xff] %vm484, %v365
    %516 = vst.msk [vmem:[%s181 + $0x108] sm:$0xff] %vm484, %v367
    %517 = vst.msk [vmem:[%s181 + $0x110] sm:$0xff] %vm484, %v369
    %518 = vst.msk [vmem:[%s181 + $0x118] sm:$0xff] %vm484, %v371
    %519 = vst.msk [vmem:[%s181 + $0x120] sm:$0xff] %vm484, %v373
    %520 = vst.msk [vmem:[%s181 + $0x128] sm:$0xff] %vm484, %v375
    %521 = vst.msk [vmem:[%s181 + $0x130] sm:$0xff] %vm484, %v377
    %522 = vst.msk [vmem:[%s181 + $0x138] sm:$0xff] %vm484, %v379
    %523 = vst.msk [vmem:[%s181 + $0x140] sm:$0xff] %vm484, %v381
    %524 = vst.msk [vmem:[%s181 + $0x148] sm:$0xff] %vm484, %v383
    %525 = vst.msk [vmem:[%s181 + $0x150] sm:$0xff] %vm484, %v385
    %526 = vst.msk [vmem:[%s181 + $0x158] sm:$0xff] %vm484, %v387
    %527 = vst.msk [vmem:[%s181 + $0x160] sm:$0xff] %vm484, %v389
    %528 = vst.msk [vmem:[%s181 + $0x168] sm:$0xff] %vm484, %v391
    %529 = vst.msk [vmem:[%s181 + $0x170] sm:$0xff] %vm484, %v393
    %530 = vst.msk [vmem:[%s181 + $0x178] sm:$0xff] %vm484, %v395
    %531 = vst.msk [vmem:[%s181 + $0x180] sm:$0xff] %vm484, %v397
    %532 = vst.msk [vmem:[%s181 + $0x188] sm:$0xff] %vm484, %v399
    %533 = vst.msk [vmem:[%s181 + $0x190] sm:$0xff] %vm484, %v401
    %534 = vst.msk [vmem:[%s181 + $0x198] sm:$0xff] %vm484, %v403
    %535 = vst.msk [vmem:[%s181 + $0x1a0] sm:$0xff] %vm484, %v405
    %536 = vst.msk [vmem:[%s181 + $0x1a8] sm:$0xff] %vm484, %v407
    %537 = vst.msk [vmem:[%s181 + $0x1b0] sm:$0xff] %vm484, %v409
    %538 = vst.msk [vmem:[%s181 + $0x1b8] sm:$0xff] %vm484, %v411
    %539 = vst.msk [vmem:[%s181 + $0x1c0] sm:$0xff] %vm484, %v413
    %540 = vst.msk [vmem:[%s181 + $0x1c8] sm:$0xff] %vm484, %v415
    %541 = vst.msk [vmem:[%s181 + $0x1d0] sm:$0xff] %vm484, %v417
    %542 = vst.msk [vmem:[%s181 + $0x1d8] sm:$0xff] %vm484, %v419
    %543 = vst.msk [vmem:[%s181 + $0x1e0] sm:$0xff] %vm484, %v421
    %544 = vst.msk [vmem:[%s181 + $0x1e8] sm:$0xff] %vm484, %v423
    %545 = vrot.lane.b32.xlu0 %v52, 6
    %v546 = vpop.permute.xlu0 %545
    %547 = vrot.lane.b32.xlu0 %v53, 6
    %v548 = vpop.permute.xlu0 %547
    %549 = vrot.lane.b32.xlu0 %v54, 6
    %v550 = vpop.permute.xlu0 %549
    %551 = vrot.lane.b32.xlu0 %v55, 6
    %v552 = vpop.permute.xlu0 %551
    %553 = vrot.lane.b32.xlu0 %v56, 6
    %v554 = vpop.permute.xlu0 %553
    %555 = vrot.lane.b32.xlu0 %v57, 6
    %v556 = vpop.permute.xlu0 %555
    %557 = vrot.lane.b32.xlu0 %v58, 6
    %v558 = vpop.permute.xlu0 %557
    %559 = vrot.lane.b32.xlu0 %v59, 6
    %v560 = vpop.permute.xlu0 %559
    %561 = vrot.lane.b32.xlu0 %v60, 6
    %v562 = vpop.permute.xlu0 %561
    %563 = vrot.lane.b32.xlu0 %v61, 6
    %v564 = vpop.permute.xlu0 %563
    %565 = vrot.lane.b32.xlu0 %v62, 6
    %v566 = vpop.permute.xlu0 %565
    %567 = vrot.lane.b32.xlu0 %v63, 6
    %v568 = vpop.permute.xlu0 %567
    %569 = vrot.lane.b32.xlu0 %v64, 6
    %v570 = vpop.permute.xlu0 %569
    %571 = vrot.lane.b32.xlu0 %v65, 6
    %v572 = vpop.permute.xlu0 %571
    %573 = vrot.lane.b32.xlu0 %v66, 6
    %v574 = vpop.permute.xlu0 %573
    %575 = vrot.lane.b32.xlu0 %v67, 6
    %v576 = vpop.permute.xlu0 %575
    %577 = vrot.lane.b32.xlu0 %v68, 6
    %v578 = vpop.permute.xlu0 %577
    %579 = vrot.lane.b32.xlu0 %v69, 6
    %v580 = vpop.permute.xlu0 %579
    %581 = vrot.lane.b32.xlu0 %v70, 6
    %v582 = vpop.permute.xlu0 %581
    %583 = vrot.lane.b32.xlu0 %v71, 6
    %v584 = vpop.permute.xlu0 %583
    %585 = vrot.lane.b32.xlu0 %v72, 6
    %v586 = vpop.permute.xlu0 %585
    %587 = vrot.lane.b32.xlu0 %v73, 6
    %v588 = vpop.permute.xlu0 %587
    %589 = vrot.lane.b32.xlu0 %v74, 6
    %v590 = vpop.permute.xlu0 %589
    %591 = vrot.lane.b32.xlu0 %v75, 6
    %v592 = vpop.permute.xlu0 %591
    %593 = vrot.lane.b32.xlu0 %v76, 6
    %v594 = vpop.permute.xlu0 %593
    %595 = vrot.lane.b32.xlu0 %v77, 6
    %v596 = vpop.permute.xlu0 %595
    %597 = vrot.lane.b32.xlu0 %v78, 6
    %v598 = vpop.permute.xlu0 %597
    %599 = vrot.lane.b32.xlu0 %v79, 6
    %v600 = vpop.permute.xlu0 %599
    %601 = vrot.lane.b32.xlu0 %v80, 6
    %v602 = vpop.permute.xlu0 %601
    %603 = vrot.lane.b32.xlu0 %v81, 6
    %v604 = vpop.permute.xlu0 %603
    %605 = vrot.lane.b32.xlu0 %v84, 6
    %v606 = vpop.permute.xlu0 %605
    %607 = vrot.lane.b32.xlu0 %v85, 6
    %v608 = vpop.permute.xlu0 %607
    %609 = vrot.lane.b32.xlu0 %v86, 6
    %v610 = vpop.permute.xlu0 %609
    %611 = vrot.lane.b32.xlu0 %v87, 6
    %v612 = vpop.permute.xlu0 %611
    %613 = vrot.lane.b32.xlu0 %v88, 6
    %v614 = vpop.permute.xlu0 %613
    %615 = vrot.lane.b32.xlu0 %v89, 6
    %v616 = vpop.permute.xlu0 %615
    %617 = vrot.lane.b32.xlu0 %v90, 6
    %v618 = vpop.permute.xlu0 %617
    %619 = vrot.lane.b32.xlu0 %v91, 6
    %v620 = vpop.permute.xlu0 %619
    %621 = vrot.lane.b32.xlu0 %v92, 6
    %v622 = vpop.permute.xlu0 %621
    %623 = vrot.lane.b32.xlu0 %v93, 6
    %v624 = vpop.permute.xlu0 %623
    %625 = vrot.lane.b32.xlu0 %v94, 6
    %v626 = vpop.permute.xlu0 %625
    %627 = vrot.lane.b32.xlu0 %v95, 6
    %v628 = vpop.permute.xlu0 %627
    %629 = vrot.lane.b32.xlu0 %v96, 6
    %v630 = vpop.permute.xlu0 %629
    %631 = vrot.lane.b32.xlu0 %v97, 6
    %v632 = vpop.permute.xlu0 %631
    %633 = vrot.lane.b32.xlu0 %v98, 6
    %v634 = vpop.permute.xlu0 %633
    %635 = vrot.lane.b32.xlu0 %v99, 6
    %v636 = vpop.permute.xlu0 %635
    %637 = vrot.lane.b32.xlu0 %v100, 6
    %v638 = vpop.permute.xlu0 %637
    %639 = vrot.lane.b32.xlu0 %v101, 6
    %v640 = vpop.permute.xlu0 %639
    %641 = vrot.lane.b32.xlu0 %v102, 6
    %v642 = vpop.permute.xlu0 %641
    %643 = vrot.lane.b32.xlu0 %v103, 6
    %v644 = vpop.permute.xlu0 %643
    %645 = vrot.lane.b32.xlu0 %v104, 6
    %v646 = vpop.permute.xlu0 %645
    %647 = vrot.lane.b32.xlu0 %v105, 6
    %v648 = vpop.permute.xlu0 %647
    %649 = vrot.lane.b32.xlu0 %v106, 6
    %v650 = vpop.permute.xlu0 %649
    %651 = vrot.lane.b32.xlu0 %v107, 6
    %v652 = vpop.permute.xlu0 %651
    %653 = vrot.lane.b32.xlu0 %v108, 6
    %v654 = vpop.permute.xlu0 %653
    %655 = vrot.lane.b32.xlu0 %v109, 6
    %v656 = vpop.permute.xlu0 %655
    %657 = vrot.lane.b32.xlu0 %v110, 6
    %v658 = vpop.permute.xlu0 %657
    %659 = vrot.lane.b32.xlu0 %v111, 6
    %v660 = vpop.permute.xlu0 %659
    %661 = vrot.lane.b32.xlu0 %v112, 6
    %v662 = vpop.permute.xlu0 %661
    %663 = vrot.lane.b32.xlu0 %v113, 6
    %v664 = vpop.permute.xlu0 %663
    %vm725 = vcmask 72753
    %726 = vst.msk [vmem:[%s181 - $0x1] sm:$0xfe] %vm725, %v546
    %vm727 = vcmask 72752
    %728 = vst.msk [vmem:[%s181 + $0x7] sm:$0xff] %vm727, %v548
    %729 = vst.msk [vmem:[%s181 + $0xf] sm:$0xfe] %vm725, %v550
    %730 = vst.msk [vmem:[%s181 + $0x17] sm:$0xff] %vm727, %v552
    %731 = vst.msk [vmem:[%s181 + $0x1f] sm:$0xfe] %vm725, %v554
    %732 = vst.msk [vmem:[%s181 + $0x27] sm:$0xff] %vm727, %v556
    %733 = vst.msk [vmem:[%s181 + $0x2f] sm:$0xfe] %vm725, %v558
    %734 = vst.msk [vmem:[%s181 + $0x37] sm:$0xff] %vm727, %v560
    %735 = vst.msk [vmem:[%s181 + $0x3f] sm:$0xfe] %vm725, %v562
    %736 = vst.msk [vmem:[%s181 + $0x47] sm:$0xff] %vm727, %v564
    %737 = vst.msk [vmem:[%s181 + $0x4f] sm:$0xfe] %vm725, %v566
    %738 = vst.msk [vmem:[%s181 + $0x57] sm:$0xff] %vm727, %v568
    %739 = vst.msk [vmem:[%s181 + $0x5f] sm:$0xfe] %vm725, %v570
    %740 = vst.msk [vmem:[%s181 + $0x67] sm:$0xff] %vm727, %v572
    %741 = vst.msk [vmem:[%s181 + $0x6f] sm:$0xfe] %vm725, %v574
    %742 = vst.msk [vmem:[%s181 + $0x77] sm:$0xff] %vm727, %v576
    %743 = vst.msk [vmem:[%s181 + $0x7f] sm:$0xfe] %vm725, %v578
    %744 = vst.msk [vmem:[%s181 + $0x87] sm:$0xff] %vm727, %v580
    %745 = vst.msk [vmem:[%s181 + $0x8f] sm:$0xfe] %vm725, %v582
    %746 = vst.msk [vmem:[%s181 + $0x97] sm:$0xff] %vm727, %v584
    %747 = vst.msk [vmem:[%s181 + $0x9f] sm:$0xfe] %vm725, %v586
    %748 = vst.msk [vmem:[%s181 + $0xa7] sm:$0xff] %vm727, %v588
    %749 = vst.msk [vmem:[%s181 + $0xaf] sm:$0xfe] %vm725, %v590
    %750 = vst.msk [vmem:[%s181 + $0xb7] sm:$0xff] %vm727, %v592
    %751 = vst.msk [vmem:[%s181 + $0xbf] sm:$0xfe] %vm725, %v594
    %752 = vst.msk [vmem:[%s181 + $0xc7] sm:$0xff] %vm727, %v596
    %753 = vst.msk [vmem:[%s181 + $0xcf] sm:$0xfe] %vm725, %v598
    %754 = vst.msk [vmem:[%s181 + $0xd7] sm:$0xff] %vm727, %v600
    %755 = vst.msk [vmem:[%s181 + $0xdf] sm:$0xfe] %vm725, %v602
    %756 = vst.msk [vmem:[%s181 + $0xe7] sm:$0xff] %vm727, %v604
    %757 = vst.msk [vmem:[%s181 + $0xff] sm:$0xfe] %vm725, %v606
    %758 = vst.msk [vmem:[%s181 + $0x107] sm:$0xff] %vm727, %v608
    %759 = vst.msk [vmem:[%s181 + $0x10f] sm:$0xfe] %vm725, %v610
    %760 = vst.msk [vmem:[%s181 + $0x117] sm:$0xff] %vm727, %v612
    %761 = vst.msk [vmem:[%s181 + $0x11f] sm:$0xfe] %vm725, %v614
    %762 = vst.msk [vmem:[%s181 + $0x127] sm:$0xff] %vm727, %v616
    %763 = vst.msk [vmem:[%s181 + $0x12f] sm:$0xfe] %vm725, %v618
    %764 = vst.msk [vmem:[%s181 + $0x137] sm:$0xff] %vm727, %v620
    %765 = vst.msk [vmem:[%s181 + $0x13f] sm:$0xfe] %vm725, %v622
    %766 = vst.msk [vmem:[%s181 + $0x147] sm:$0xff] %vm727, %v624
    %767 = vst.msk [vmem:[%s181 + $0x14f] sm:$0xfe] %vm725, %v626
    %768 = vst.msk [vmem:[%s181 + $0x157] sm:$0xff] %vm727, %v628
    %769 = vst.msk [vmem:[%s181 + $0x15f] sm:$0xfe] %vm725, %v630
    %770 = vst.msk [vmem:[%s181 + $0x167] sm:$0xff] %vm727, %v632
    %771 = vst.msk [vmem:[%s181 + $0x16f] sm:$0xfe] %vm725, %v634
    %772 = vst.msk [vmem:[%s181 + $0x177] sm:$0xff] %vm727, %v636
    %773 = vst.msk [vmem:[%s181 + $0x17f] sm:$0xfe] %vm725, %v638
    %774 = vst.msk [vmem:[%s181 + $0x187] sm:$0xff] %vm727, %v640
    %775 = vst.msk [vmem:[%s181 + $0x18f] sm:$0xfe] %vm725, %v642
    %776 = vst.msk [vmem:[%s181 + $0x197] sm:$0xff] %vm727, %v644
    %777 = vst.msk [vmem:[%s181 + $0x19f] sm:$0xfe] %vm725, %v646
    %778 = vst.msk [vmem:[%s181 + $0x1a7] sm:$0xff] %vm727, %v648
    %779 = vst.msk [vmem:[%s181 + $0x1af] sm:$0xfe] %vm725, %v650
    %780 = vst.msk [vmem:[%s181 + $0x1b7] sm:$0xff] %vm727, %v652
    %781 = vst.msk [vmem:[%s181 + $0x1bf] sm:$0xfe] %vm725, %v654
    %782 = vst.msk [vmem:[%s181 + $0x1c7] sm:$0xff] %vm727, %v656
    %783 = vst.msk [vmem:[%s181 + $0x1cf] sm:$0xfe] %vm725, %v658
    %784 = vst.msk [vmem:[%s181 + $0x1d7] sm:$0xff] %vm727, %v660
    %785 = vst.msk [vmem:[%s181 + $0x1df] sm:$0xfe] %vm725, %v662
    %786 = vst.msk [vmem:[%s181 + $0x1e7] sm:$0xff] %vm727, %v664
    %791 = vrot.lane.b32.xlu0 %v52, 9
    %v792 = vpop.permute.xlu0 %791
    %793 = vrot.lane.b32.xlu0 %v53, 9
    %v794 = vpop.permute.xlu0 %793
    %795 = vrot.lane.b32.xlu0 %v54, 9
    %v796 = vpop.permute.xlu0 %795
    %797 = vrot.lane.b32.xlu0 %v55, 9
    %v798 = vpop.permute.xlu0 %797
    %799 = vrot.lane.b32.xlu0 %v56, 9
    %v800 = vpop.permute.xlu0 %799
    %801 = vrot.lane.b32.xlu0 %v57, 9
    %v802 = vpop.permute.xlu0 %801
    %803 = vrot.lane.b32.xlu0 %v58, 9
    %v804 = vpop.permute.xlu0 %803
    %805 = vrot.lane.b32.xlu0 %v59, 9
    %v806 = vpop.permute.xlu0 %805
    %807 = vrot.lane.b32.xlu0 %v60, 9
    %v808 = vpop.permute.xlu0 %807
    %809 = vrot.lane.b32.xlu0 %v61, 9
    %v810 = vpop.permute.xlu0 %809
    %811 = vrot.lane.b32.xlu0 %v62, 9
    %v812 = vpop.permute.xlu0 %811
    %813 = vrot.lane.b32.xlu0 %v63, 9
    %v814 = vpop.permute.xlu0 %813
    %815 = vrot.lane.b32.xlu0 %v64, 9
    %v816 = vpop.permute.xlu0 %815
    %817 = vrot.lane.b32.xlu0 %v65, 9
    %v818 = vpop.permute.xlu0 %817
    %819 = vrot.lane.b32.xlu0 %v66, 9
    %v820 = vpop.permute.xlu0 %819
    %821 = vrot.lane.b32.xlu0 %v67, 9
    %v822 = vpop.permute.xlu0 %821
    %823 = vrot.lane.b32.xlu0 %v68, 9
    %v824 = vpop.permute.xlu0 %823
    %825 = vrot.lane.b32.xlu0 %v69, 9
    %v826 = vpop.permute.xlu0 %825
    %827 = vrot.lane.b32.xlu0 %v70, 9
    %v828 = vpop.permute.xlu0 %827
    %829 = vrot.lane.b32.xlu0 %v71, 9
    %v830 = vpop.permute.xlu0 %829
    %831 = vrot.lane.b32.xlu0 %v72, 9
    %v832 = vpop.permute.xlu0 %831
    %833 = vrot.lane.b32.xlu0 %v73, 9
    %v834 = vpop.permute.xlu0 %833
    %835 = vrot.lane.b32.xlu0 %v74, 9
    %v836 = vpop.permute.xlu0 %835
    %837 = vrot.lane.b32.xlu0 %v75, 9
    %v838 = vpop.permute.xlu0 %837
    %839 = vrot.lane.b32.xlu0 %v76, 9
    %v840 = vpop.permute.xlu0 %839
    %841 = vrot.lane.b32.xlu0 %v77, 9
    %v842 = vpop.permute.xlu0 %841
    %843 = vrot.lane.b32.xlu0 %v78, 9
    %v844 = vpop.permute.xlu0 %843
    %845 = vrot.lane.b32.xlu0 %v79, 9
    %v846 = vpop.permute.xlu0 %845
    %847 = vrot.lane.b32.xlu0 %v80, 9
    %v848 = vpop.permute.xlu0 %847
    %849 = vrot.lane.b32.xlu0 %v81, 9
    %v850 = vpop.permute.xlu0 %849
    %851 = vrot.lane.b32.xlu0 %v82, 9
    %v852 = vpop.permute.xlu0 %851
    %853 = vrot.lane.b32.xlu0 %v83, 9
    %v854 = vpop.permute.xlu0 %853
    %855 = vrot.lane.b32.xlu0 %v84, 9
    %v856 = vpop.permute.xlu0 %855
    %857 = vrot.lane.b32.xlu0 %v85, 9
    %v858 = vpop.permute.xlu0 %857
    %859 = vrot.lane.b32.xlu0 %v86, 9
    %v860 = vpop.permute.xlu0 %859
    %861 = vrot.lane.b32.xlu0 %v87, 9
    %v862 = vpop.permute.xlu0 %861
    %863 = vrot.lane.b32.xlu0 %v88, 9
    %v864 = vpop.permute.xlu0 %863
    %865 = vrot.lane.b32.xlu0 %v89, 9
    %v866 = vpop.permute.xlu0 %865
    %867 = vrot.lane.b32.xlu0 %v90, 9
    %v868 = vpop.permute.xlu0 %867
    %869 = vrot.lane.b32.xlu0 %v91, 9
    %v870 = vpop.permute.xlu0 %869
    %871 = vrot.lane.b32.xlu0 %v92, 9
    %v872 = vpop.permute.xlu0 %871
    %873 = vrot.lane.b32.xlu0 %v93, 9
    %v874 = vpop.permute.xlu0 %873
    %875 = vrot.lane.b32.xlu0 %v94, 9
    %v876 = vpop.permute.xlu0 %875
    %877 = vrot.lane.b32.xlu0 %v95, 9
    %v878 = vpop.permute.xlu0 %877
    %879 = vrot.lane.b32.xlu0 %v96, 9
    %v880 = vpop.permute.xlu0 %879
    %881 = vrot.lane.b32.xlu0 %v97, 9
    %v882 = vpop.permute.xlu0 %881
    %883 = vrot.lane.b32.xlu0 %v98, 9
    %v884 = vpop.permute.xlu0 %883
    %885 = vrot.lane.b32.xlu0 %v99, 9
    %v886 = vpop.permute.xlu0 %885
    %887 = vrot.lane.b32.xlu0 %v100, 9
    %v888 = vpop.permute.xlu0 %887
    %889 = vrot.lane.b32.xlu0 %v101, 9
    %v890 = vpop.permute.xlu0 %889
    %891 = vrot.lane.b32.xlu0 %v102, 9
    %v892 = vpop.permute.xlu0 %891
    %893 = vrot.lane.b32.xlu0 %v103, 9
    %v894 = vpop.permute.xlu0 %893
    %895 = vrot.lane.b32.xlu0 %v104, 9
    %v896 = vpop.permute.xlu0 %895
    %897 = vrot.lane.b32.xlu0 %v105, 9
    %v898 = vpop.permute.xlu0 %897
    %899 = vrot.lane.b32.xlu0 %v106, 9
    %v900 = vpop.permute.xlu0 %899
    %901 = vrot.lane.b32.xlu0 %v107, 9
    %v902 = vpop.permute.xlu0 %901
    %903 = vrot.lane.b32.xlu0 %v108, 9
    %v904 = vpop.permute.xlu0 %903
    %905 = vrot.lane.b32.xlu0 %v109, 9
    %v906 = vpop.permute.xlu0 %905
    %907 = vrot.lane.b32.xlu0 %v110, 9
    %v908 = vpop.permute.xlu0 %907
    %909 = vrot.lane.b32.xlu0 %v111, 9
    %v910 = vpop.permute.xlu0 %909
    %911 = vrot.lane.b32.xlu0 %v112, 9
    %v912 = vpop.permute.xlu0 %911
    %913 = vrot.lane.b32.xlu0 %v113, 9
    %v914 = vpop.permute.xlu0 %913
    %915 = vrot.lane.b32.xlu0 %v114, 9
    %v916 = vpop.permute.xlu0 %915
    %917 = vrot.lane.b32.xlu0 %v115, 9
    %v918 = vpop.permute.xlu0 %917
    %vm983 = vcmask 97352
    %984 = vst.msk [vmem:[#allocation2 + $0x1] sm:$0xff] %vm983, %v792
    %vm985 = vcmask 96328
    %986 = vst.msk [vmem:[#allocation2 + $0x9] sm:$0x7f] %vm985, %v794
    %987 = vst.msk [vmem:[#allocation2 + $0x11] sm:$0xff] %vm983, %v796
    %988 = vst.msk [vmem:[#allocation2 + $0x19] sm:$0x7f] %vm985, %v798
    %989 = vst.msk [vmem:[#allocation2 + $0x21] sm:$0xff] %vm983, %v800
    %990 = vst.msk [vmem:[#allocation2 + $0x29] sm:$0x7f] %vm985, %v802
    %991 = vst.msk [vmem:[#allocation2 + $0x31] sm:$0xff] %vm983, %v804
    %992 = vst.msk [vmem:[#allocation2 + $0x39] sm:$0x7f] %vm985, %v806
    %993 = vst.msk [vmem:[#allocation2 + $0x41] sm:$0xff] %vm983, %v808
    %994 = vst.msk [vmem:[#allocation2 + $0x49] sm:$0x7f] %vm985, %v810
    %995 = vst.msk [vmem:[#allocation2 + $0x51] sm:$0xff] %vm983, %v812
    %996 = vst.msk [vmem:[#allocation2 + $0x59] sm:$0x7f] %vm985, %v814
    %997 = vst.msk [vmem:[#allocation2 + $0x61] sm:$0xff] %vm983, %v816
    %998 = vst.msk [vmem:[#allocation2 + $0x69] sm:$0x7f] %vm985, %v818
    %999 = vst.msk [vmem:[#allocation2 + $0x71] sm:$0xff] %vm983, %v820
    %1000 = vst.msk [vmem:[#allocation2 + $0x79] sm:$0x7f] %vm985, %v822
    %1001 = vst.msk [vmem:[#allocation2 + $0x81] sm:$0xff] %vm983, %v824
    %1002 = vst.msk [vmem:[#allocation2 + $0x89] sm:$0x7f] %vm985, %v826
    %1003 = vst.msk [vmem:[#allocation2 + $0x91] sm:$0xff] %vm983, %v828
    %1004 = vst.msk [vmem:[#allocation2 + $0x99] sm:$0x7f] %vm985, %v830
    %1005 = vst.msk [vmem:[#allocation2 + $0xa1] sm:$0xff] %vm983, %v832
    %1006 = vst.msk [vmem:[#allocation2 + $0xa9] sm:$0x7f] %vm985, %v834
    %1007 = vst.msk [vmem:[#allocation2 + $0xb1] sm:$0xff] %vm983, %v836
    %1008 = vst.msk [vmem:[#allocation2 + $0xb9] sm:$0x7f] %vm985, %v838
    %1009 = vst.msk [vmem:[#allocation2 + $0xc1] sm:$0xff] %vm983, %v840
    %1010 = vst.msk [vmem:[#allocation2 + $0xc9] sm:$0x7f] %vm985, %v842
    %1011 = vst.msk [vmem:[#allocation2 + $0xd1] sm:$0xff] %vm983, %v844
    %1012 = vst.msk [vmem:[#allocation2 + $0xd9] sm:$0x7f] %vm985, %v846
    %1013 = vst.msk [vmem:[#allocation2 + $0xe1] sm:$0xff] %vm983, %v848
    %1014 = vst.msk [vmem:[#allocation2 + $0xe9] sm:$0x7f] %vm985, %v850
    %1015 = vst.msk [vmem:[#allocation2 + $0xf1] sm:$0xff] %vm983, %v852
    %1016 = vst.msk [vmem:[#allocation2 + $0xf9] sm:$0x7f] %vm985, %v854
    %1017 = vst.msk [vmem:[#allocation2 + $0x101] sm:$0xff] %vm983, %v856
    %1018 = vst.msk [vmem:[#allocation2 + $0x109] sm:$0x7f] %vm985, %v858
    %1019 = vst.msk [vmem:[#allocation2 + $0x111] sm:$0xff] %vm983, %v860
    %1020 = vst.msk [vmem:[#allocation2 + $0x119] sm:$0x7f] %vm985, %v862
    %1021 = vst.msk [vmem:[#allocation2 + $0x121] sm:$0xff] %vm983, %v864
    %1022 = vst.msk [vmem:[#allocation2 + $0x129] sm:$0x7f] %vm985, %v866
    %1023 = vst.msk [vmem:[#allocation2 + $0x131] sm:$0xff] %vm983, %v868
    %1024 = vst.msk [vmem:[#allocation2 + $0x139] sm:$0x7f] %vm985, %v870
    %1025 = vst.msk [vmem:[#allocation2 + $0x141] sm:$0xff] %vm983, %v872
    %1026 = vst.msk [vmem:[#allocation2 + $0x149] sm:$0x7f] %vm985, %v874
    %1027 = vst.msk [vmem:[#allocation2 + $0x151] sm:$0xff] %vm983, %v876
    %1028 = vst.msk [vmem:[#allocation2 + $0x159] sm:$0x7f] %vm985, %v878
    %1029 = vst.msk [vmem:[#allocation2 + $0x161] sm:$0xff] %vm983, %v880
    %1030 = vst.msk [vmem:[#allocation2 + $0x169] sm:$0x7f] %vm985, %v882
    %1031 = vst.msk [vmem:[#allocation2 + $0x171] sm:$0xff] %vm983, %v884
    %1032 = vst.msk [vmem:[#allocation2 + $0x179] sm:$0x7f] %vm985, %v886
    %1033 = vst.msk [vmem:[#allocation2 + $0x181] sm:$0xff] %vm983, %v888
    %1034 = vst.msk [vmem:[#allocation2 + $0x189] sm:$0x7f] %vm985, %v890
    %1035 = vst.msk [vmem:[#allocation2 + $0x191] sm:$0xff] %vm983, %v892
    %1036 = vst.msk [vmem:[#allocation2 + $0x199] sm:$0x7f] %vm985, %v894
    %1037 = vst.msk [vmem:[#allocation2 + $0x1a1] sm:$0xff] %vm983, %v896
    %1038 = vst.msk [vmem:[#allocation2 + $0x1a9] sm:$0x7f] %vm985, %v898
    %1039 = vst.msk [vmem:[#allocation2 + $0x1b1] sm:$0xff] %vm983, %v900
    %1040 = vst.msk [vmem:[#allocation2 + $0x1b9] sm:$0x7f] %vm985, %v902
    %1041 = vst.msk [vmem:[#allocation2 + $0x1c1] sm:$0xff] %vm983, %v904
    %1042 = vst.msk [vmem:[#allocation2 + $0x1c9] sm:$0x7f] %vm985, %v906
    %1043 = vst.msk [vmem:[#allocation2 + $0x1d1] sm:$0xff] %vm983, %v908
    %1044 = vst.msk [vmem:[#allocation2 + $0x1d9] sm:$0x7f] %vm985, %v910
    %1045 = vst.msk [vmem:[#allocation2 + $0x1e1] sm:$0xff] %vm983, %v912
    %1046 = vst.msk [vmem:[#allocation2 + $0x1e9] sm:$0x7f] %vm985, %v914
    %1047 = vst.msk [vmem:[#allocation2 + $0x1f1] sm:$0xff] %vm983, %v916
    %1048 = vst.msk [vmem:[#allocation2 + $0x1f9] sm:$0x7f] %vm985, %v918
    %1049 = vrot.lane.b32.xlu0 %v52, 12
    %v1050 = vpop.permute.xlu0 %1049
    %1051 = vrot.lane.b32.xlu0 %v53, 12
    %v1052 = vpop.permute.xlu0 %1051
    %1053 = vrot.lane.b32.xlu0 %v54, 12
    %v1054 = vpop.permute.xlu0 %1053
    %1055 = vrot.lane.b32.xlu0 %v55, 12
    %v1056 = vpop.permute.xlu0 %1055
    %1057 = vrot.lane.b32.xlu0 %v56, 12
    %v1058 = vpop.permute.xlu0 %1057
    %1059 = vrot.lane.b32.xlu0 %v57, 12
    %v1060 = vpop.permute.xlu0 %1059
    %1061 = vrot.lane.b32.xlu0 %v58, 12
    %v1062 = vpop.permute.xlu0 %1061
    %1063 = vrot.lane.b32.xlu0 %v59, 12
    %v1064 = vpop.permute.xlu0 %1063
    %1065 = vrot.lane.b32.xlu0 %v60, 12
    %v1066 = vpop.permute.xlu0 %1065
    %1067 = vrot.lane.b32.xlu0 %v61, 12
    %v1068 = vpop.permute.xlu0 %1067
    %1069 = vrot.lane.b32.xlu0 %v62, 12
    %v1070 = vpop.permute.xlu0 %1069
    %1071 = vrot.lane.b32.xlu0 %v63, 12
    %v1072 = vpop.permute.xlu0 %1071
    %1073 = vrot.lane.b32.xlu0 %v64, 12
    %v1074 = vpop.permute.xlu0 %1073
    %1075 = vrot.lane.b32.xlu0 %v65, 12
    %v1076 = vpop.permute.xlu0 %1075
    %1077 = vrot.lane.b32.xlu0 %v66, 12
    %v1078 = vpop.permute.xlu0 %1077
    %1079 = vrot.lane.b32.xlu0 %v67, 12
    %v1080 = vpop.permute.xlu0 %1079
    %1081 = vrot.lane.b32.xlu0 %v68, 12
    %v1082 = vpop.permute.xlu0 %1081
    %1083 = vrot.lane.b32.xlu0 %v69, 12
    %v1084 = vpop.permute.xlu0 %1083
    %1085 = vrot.lane.b32.xlu0 %v70, 12
    %v1086 = vpop.permute.xlu0 %1085
    %1087 = vrot.lane.b32.xlu0 %v71, 12
    %v1088 = vpop.permute.xlu0 %1087
    %1089 = vrot.lane.b32.xlu0 %v72, 12
    %v1090 = vpop.permute.xlu0 %1089
    %1091 = vrot.lane.b32.xlu0 %v73, 12
    %v1092 = vpop.permute.xlu0 %1091
    %1093 = vrot.lane.b32.xlu0 %v74, 12
    %v1094 = vpop.permute.xlu0 %1093
    %1095 = vrot.lane.b32.xlu0 %v75, 12
    %v1096 = vpop.permute.xlu0 %1095
    %1097 = vrot.lane.b32.xlu0 %v76, 12
    %v1098 = vpop.permute.xlu0 %1097
    %1099 = vrot.lane.b32.xlu0 %v77, 12
    %v1100 = vpop.permute.xlu0 %1099
    %1101 = vrot.lane.b32.xlu0 %v78, 12
    %v1102 = vpop.permute.xlu0 %1101
    %1103 = vrot.lane.b32.xlu0 %v79, 12
    %v1104 = vpop.permute.xlu0 %1103
    %1105 = vrot.lane.b32.xlu0 %v80, 12
    %v1106 = vpop.permute.xlu0 %1105
    %1107 = vrot.lane.b32.xlu0 %v81, 12
    %v1108 = vpop.permute.xlu0 %1107
    %1109 = vrot.lane.b32.xlu0 %v82, 12
    %v1110 = vpop.permute.xlu0 %1109
    %1111 = vrot.lane.b32.xlu0 %v83, 12
    %v1112 = vpop.permute.xlu0 %1111
    %1113 = vrot.lane.b32.xlu0 %v84, 12
    %v1114 = vpop.permute.xlu0 %1113
    %1115 = vrot.lane.b32.xlu0 %v85, 12
    %v1116 = vpop.permute.xlu0 %1115
    %1117 = vrot.lane.b32.xlu0 %v86, 12
    %v1118 = vpop.permute.xlu0 %1117
    %1119 = vrot.lane.b32.xlu0 %v87, 12
    %v1120 = vpop.permute.xlu0 %1119
    %1121 = vrot.lane.b32.xlu0 %v88, 12
    %v1122 = vpop.permute.xlu0 %1121
    %1123 = vrot.lane.b32.xlu0 %v89, 12
    %v1124 = vpop.permute.xlu0 %1123
    %1125 = vrot.lane.b32.xlu0 %v90, 12
    %v1126 = vpop.permute.xlu0 %1125
    %1127 = vrot.lane.b32.xlu0 %v91, 12
    %v1128 = vpop.permute.xlu0 %1127
    %1129 = vrot.lane.b32.xlu0 %v92, 12
    %v1130 = vpop.permute.xlu0 %1129
    %1131 = vrot.lane.b32.xlu0 %v93, 12
    %v1132 = vpop.permute.xlu0 %1131
    %1133 = vrot.lane.b32.xlu0 %v94, 12
    %v1134 = vpop.permute.xlu0 %1133
    %1135 = vrot.lane.b32.xlu0 %v95, 12
    %v1136 = vpop.permute.xlu0 %1135
    %1137 = vrot.lane.b32.xlu0 %v96, 12
    %v1138 = vpop.permute.xlu0 %1137
    %1139 = vrot.lane.b32.xlu0 %v97, 12
    %v1140 = vpop.permute.xlu0 %1139
    %1141 = vrot.lane.b32.xlu0 %v98, 12
    %v1142 = vpop.permute.xlu0 %1141
    %1143 = vrot.lane.b32.xlu0 %v99, 12
    %v1144 = vpop.permute.xlu0 %1143
    %1145 = vrot.lane.b32.xlu0 %v100, 12
    %v1146 = vpop.permute.xlu0 %1145
    %1147 = vrot.lane.b32.xlu0 %v101, 12
    %v1148 = vpop.permute.xlu0 %1147
    %1149 = vrot.lane.b32.xlu0 %v102, 12
    %v1150 = vpop.permute.xlu0 %1149
    %1151 = vrot.lane.b32.xlu0 %v103, 12
    %v1152 = vpop.permute.xlu0 %1151
    %1153 = vrot.lane.b32.xlu0 %v104, 12
    %v1154 = vpop.permute.xlu0 %1153
    %1155 = vrot.lane.b32.xlu0 %v105, 12
    %v1156 = vpop.permute.xlu0 %1155
    %1157 = vrot.lane.b32.xlu0 %v106, 12
    %v1158 = vpop.permute.xlu0 %1157
    %1159 = vrot.lane.b32.xlu0 %v107, 12
    %v1160 = vpop.permute.xlu0 %1159
    %1161 = vrot.lane.b32.xlu0 %v108, 12
    %v1162 = vpop.permute.xlu0 %1161
    %1163 = vrot.lane.b32.xlu0 %v109, 12
    %v1164 = vpop.permute.xlu0 %1163
    %1165 = vrot.lane.b32.xlu0 %v110, 12
    %v1166 = vpop.permute.xlu0 %1165
    %1167 = vrot.lane.b32.xlu0 %v111, 12
    %v1168 = vpop.permute.xlu0 %1167
    %1169 = vrot.lane.b32.xlu0 %v112, 12
    %v1170 = vpop.permute.xlu0 %1169
    %1171 = vrot.lane.b32.xlu0 %v113, 12
    %v1172 = vpop.permute.xlu0 %1171
    %1173 = vrot.lane.b32.xlu0 %v114, 12
    %v1174 = vpop.permute.xlu0 %1173
    %1175 = vrot.lane.b32.xlu0 %v115, 12
    %v1176 = vpop.permute.xlu0 %1175
    %vm1241 = vcmask 121952
    %1242 = vst.msk [vmem:[#allocation2] sm:$0xff] %vm1241, %v1050
    %1243 = vst.msk [vmem:[#allocation2 + $0x8] sm:$0xff] %vm1241, %v1052
    %1244 = vst.msk [vmem:[#allocation2 + $0x10] sm:$0xff] %vm1241, %v1054
    %1245 = vst.msk [vmem:[#allocation2 + $0x18] sm:$0xff] %vm1241, %v1056
    %1246 = vst.msk [vmem:[#allocation2 + $0x20] sm:$0xff] %vm1241, %v1058
    %1247 = vst.msk [vmem:[#allocation2 + $0x28] sm:$0xff] %vm1241, %v1060
    %1248 = vst.msk [vmem:[#allocation2 + $0x30] sm:$0xff] %vm1241, %v1062
    %1249 = vst.msk [vmem:[#allocation2 + $0x38] sm:$0xff] %vm1241, %v1064
    %1250 = vst.msk [vmem:[#allocation2 + $0x40] sm:$0xff] %vm1241, %v1066
    %1251 = vst.msk [vmem:[#allocation2 + $0x48] sm:$0xff] %vm1241, %v1068
    %1252 = vst.msk [vmem:[#allocation2 + $0x50] sm:$0xff] %vm1241, %v1070
    %1253 = vst.msk [vmem:[#allocation2 + $0x58] sm:$0xff] %vm1241, %v1072
    %1254 = vst.msk [vmem:[#allocation2 + $0x60] sm:$0xff] %vm1241, %v1074
    %1255 = vst.msk [vmem:[#allocation2 + $0x68] sm:$0xff] %vm1241, %v1076
    %1256 = vst.msk [vmem:[#allocation2 + $0x70] sm:$0xff] %vm1241, %v1078
    %1257 = vst.msk [vmem:[#allocation2 + $0x78] sm:$0xff] %vm1241, %v1080
    %1258 = vst.msk [vmem:[#allocation2 + $0x80] sm:$0xff] %vm1241, %v1082
    %1259 = vst.msk [vmem:[#allocation2 + $0x88] sm:$0xff] %vm1241, %v1084
    %1260 = vst.msk [vmem:[#allocation2 + $0x90] sm:$0xff] %vm1241, %v1086
    %1261 = vst.msk [vmem:[#allocation2 + $0x98] sm:$0xff] %vm1241, %v1088
    %1262 = vst.msk [vmem:[#allocation2 + $0xa0] sm:$0xff] %vm1241, %v1090
    %1263 = vst.msk [vmem:[#allocation2 + $0xa8] sm:$0xff] %vm1241, %v1092
    %1264 = vst.msk [vmem:[#allocation2 + $0xb0] sm:$0xff] %vm1241, %v1094
    %1265 = vst.msk [vmem:[#allocation2 + $0xb8] sm:$0xff] %vm1241, %v1096
    %1266 = vst.msk [vmem:[#allocation2 + $0xc0] sm:$0xff] %vm1241, %v1098
    %1267 = vst.msk [vmem:[#allocation2 + $0xc8] sm:$0xff] %vm1241, %v1100
    %1268 = vst.msk [vmem:[#allocation2 + $0xd0] sm:$0xff] %vm1241, %v1102
    %1269 = vst.msk [vmem:[#allocation2 + $0xd8] sm:$0xff] %vm1241, %v1104
    %1270 = vst.msk [vmem:[#allocation2 + $0xe0] sm:$0xff] %vm1241, %v1106
    %1271 = vst.msk [vmem:[#allocation2 + $0xe8] sm:$0xff] %vm1241, %v1108
    %1272 = vst.msk [vmem:[#allocation2 + $0xf0] sm:$0xff] %vm1241, %v1110
    %1273 = vst.msk [vmem:[#allocation2 + $0xf8] sm:$0xff] %vm1241, %v1112
    %1274 = vst.msk [vmem:[#allocation2 + $0x100] sm:$0xff] %vm1241, %v1114
    %1275 = vst.msk [vmem:[#allocation2 + $0x108] sm:$0xff] %vm1241, %v1116
    %1276 = vst.msk [vmem:[#allocation2 + $0x110] sm:$0xff] %vm1241, %v1118
    %1277 = vst.msk [vmem:[#allocation2 + $0x118] sm:$0xff] %vm1241, %v1120
    %1278 = vst.msk [vmem:[#allocation2 + $0x120] sm:$0xff] %vm1241, %v1122
    %1279 = vst.msk [vmem:[#allocation2 + $0x128] sm:$0xff] %vm1241, %v1124
    %1280 = vst.msk [vmem:[#allocation2 + $0x130] sm:$0xff] %vm1241, %v1126
    %1281 = vst.msk [vmem:[#allocation2 + $0x138] sm:$0xff] %vm1241, %v1128
    %1282 = vst.msk [vmem:[#allocation2 + $0x140] sm:$0xff] %vm1241, %v1130
    %1283 = vst.msk [vmem:[#allocation2 + $0x148] sm:$0xff] %vm1241, %v1132
    %1284 = vst.msk [vmem:[#allocation2 + $0x150] sm:$0xff] %vm1241, %v1134
    %1285 = vst.msk [vmem:[#allocation2 + $0x158] sm:$0xff] %vm1241, %v1136
    %1286 = vst.msk [vmem:[#allocation2 + $0x160] sm:$0xff] %vm1241, %v1138
    %1287 = vst.msk [vmem:[#allocation2 + $0x168] sm:$0xff] %vm1241, %v1140
    %1288 = vst.msk [vmem:[#allocation2 + $0x170] sm:$0xff] %vm1241, %v1142
    %1289 = vst.msk [vmem:[#allocation2 + $0x178] sm:$0xff] %vm1241, %v1144
    %1290 = vst.msk [vmem:[#allocation2 + $0x180] sm:$0xff] %vm1241, %v1146
    %1291 = vst.msk [vmem:[#allocation2 + $0x188] sm:$0xff] %vm1241, %v1148
    %1292 = vst.msk [vmem:[#allocation2 + $0x190] sm:$0xff] %vm1241, %v1150
    %1293 = vst.msk [vmem:[#allocation2 + $0x198] sm:$0xff] %vm1241, %v1152
    %1294 = vst.msk [vmem:[#allocation2 + $0x1a0] sm:$0xff] %vm1241, %v1154
    %1295 = vst.msk [vmem:[#allocation2 + $0x1a8] sm:$0xff] %vm1241, %v1156
    %1296 = vst.msk [vmem:[#allocation2 + $0x1b0] sm:$0xff] %vm1241, %v1158
    %1297 = vst.msk [vmem:[#allocation2 + $0x1b8] sm:$0xff] %vm1241, %v1160
    %1298 = vst.msk [vmem:[#allocation2 + $0x1c0] sm:$0xff] %vm1241, %v1162
    %1299 = vst.msk [vmem:[#allocation2 + $0x1c8] sm:$0xff] %vm1241, %v1164
    %1300 = vst.msk [vmem:[#allocation2 + $0x1d0] sm:$0xff] %vm1241, %v1166
    %1301 = vst.msk [vmem:[#allocation2 + $0x1d8] sm:$0xff] %vm1241, %v1168
    %1302 = vst.msk [vmem:[#allocation2 + $0x1e0] sm:$0xff] %vm1241, %v1170
    %1303 = vst.msk [vmem:[#allocation2 + $0x1e8] sm:$0xff] %vm1241, %v1172
    %1304 = vst.msk [vmem:[#allocation2 + $0x1f0] sm:$0xff] %vm1241, %v1174
    %1305 = vst.msk [vmem:[#allocation2 + $0x1f8] sm:$0xff] %vm1241, %v1176
    %1306 = vrot.lane.b32.xlu0 %v52, 15
    %v1307 = vpop.permute.xlu0 %1306
    %1308 = vrot.lane.b32.xlu0 %v53, 15
    %v1309 = vpop.permute.xlu0 %1308
    %1310 = vrot.lane.b32.xlu0 %v54, 15
    %v1311 = vpop.permute.xlu0 %1310
    %1312 = vrot.lane.b32.xlu0 %v55, 15
    %v1313 = vpop.permute.xlu0 %1312
    %1314 = vrot.lane.b32.xlu0 %v56, 15
    %v1315 = vpop.permute.xlu0 %1314
    %1316 = vrot.lane.b32.xlu0 %v57, 15
    %v1317 = vpop.permute.xlu0 %1316
    %1318 = vrot.lane.b32.xlu0 %v58, 15
    %v1319 = vpop.permute.xlu0 %1318
    %1320 = vrot.lane.b32.xlu0 %v59, 15
    %v1321 = vpop.permute.xlu0 %1320
    %1322 = vrot.lane.b32.xlu0 %v60, 15
    %v1323 = vpop.permute.xlu0 %1322
    %1324 = vrot.lane.b32.xlu0 %v61, 15
    %v1325 = vpop.permute.xlu0 %1324
    %1326 = vrot.lane.b32.xlu0 %v62, 15
    %v1327 = vpop.permute.xlu0 %1326
    %1328 = vrot.lane.b32.xlu0 %v63, 15
    %v1329 = vpop.permute.xlu0 %1328
    %1330 = vrot.lane.b32.xlu0 %v64, 15
    %v1331 = vpop.permute.xlu0 %1330
    %1332 = vrot.lane.b32.xlu0 %v65, 15
    %v1333 = vpop.permute.xlu0 %1332
    %1334 = vrot.lane.b32.xlu0 %v66, 15
    %v1335 = vpop.permute.xlu0 %1334
    %1336 = vrot.lane.b32.xlu0 %v67, 15
    %v1337 = vpop.permute.xlu0 %1336
    %1338 = vrot.lane.b32.xlu0 %v68, 15
    %v1339 = vpop.permute.xlu0 %1338
    %1340 = vrot.lane.b32.xlu0 %v69, 15
    %v1341 = vpop.permute.xlu0 %1340
    %1342 = vrot.lane.b32.xlu0 %v70, 15
    %v1343 = vpop.permute.xlu0 %1342
    %1344 = vrot.lane.b32.xlu0 %v71, 15
    %v1345 = vpop.permute.xlu0 %1344
    %1346 = vrot.lane.b32.xlu0 %v72, 15
    %v1347 = vpop.permute.xlu0 %1346
    %1348 = vrot.lane.b32.xlu0 %v73, 15
    %v1349 = vpop.permute.xlu0 %1348
    %1350 = vrot.lane.b32.xlu0 %v74, 15
    %v1351 = vpop.permute.xlu0 %1350
    %1352 = vrot.lane.b32.xlu0 %v75, 15
    %v1353 = vpop.permute.xlu0 %1352
    %1354 = vrot.lane.b32.xlu0 %v76, 15
    %v1355 = vpop.permute.xlu0 %1354
    %1356 = vrot.lane.b32.xlu0 %v77, 15
    %v1357 = vpop.permute.xlu0 %1356
    %1358 = vrot.lane.b32.xlu0 %v78, 15
    %v1359 = vpop.permute.xlu0 %1358
    %1360 = vrot.lane.b32.xlu0 %v79, 15
    %v1361 = vpop.permute.xlu0 %1360
    %1362 = vrot.lane.b32.xlu0 %v80, 15
    %v1363 = vpop.permute.xlu0 %1362
    %1364 = vrot.lane.b32.xlu0 %v81, 15
    %v1365 = vpop.permute.xlu0 %1364
    %1366 = vrot.lane.b32.xlu0 %v82, 15
    %v1367 = vpop.permute.xlu0 %1366
    %1368 = vrot.lane.b32.xlu0 %v83, 15
    %v1369 = vpop.permute.xlu0 %1368
    %1370 = vrot.lane.b32.xlu0 %v84, 15
    %v1371 = vpop.permute.xlu0 %1370
    %1372 = vrot.lane.b32.xlu0 %v85, 15
    %v1373 = vpop.permute.xlu0 %1372
    %1374 = vrot.lane.b32.xlu0 %v86, 15
    %v1375 = vpop.permute.xlu0 %1374
    %1376 = vrot.lane.b32.xlu0 %v87, 15
    %v1377 = vpop.permute.xlu0 %1376
    %1378 = vrot.lane.b32.xlu0 %v88, 15
    %v1379 = vpop.permute.xlu0 %1378
    %1380 = vrot.lane.b32.xlu0 %v89, 15
    %v1381 = vpop.permute.xlu0 %1380
    %1382 = vrot.lane.b32.xlu0 %v90, 15
    %v1383 = vpop.permute.xlu0 %1382
    %1384 = vrot.lane.b32.xlu0 %v91, 15
    %v1385 = vpop.permute.xlu0 %1384
    %1386 = vrot.lane.b32.xlu0 %v92, 15
    %v1387 = vpop.permute.xlu0 %1386
    %1388 = vrot.lane.b32.xlu0 %v93, 15
    %v1389 = vpop.permute.xlu0 %1388
    %1390 = vrot.lane.b32.xlu0 %v94, 15
    %v1391 = vpop.permute.xlu0 %1390
    %1392 = vrot.lane.b32.xlu0 %v95, 15
    %v1393 = vpop.permute.xlu0 %1392
    %1394 = vrot.lane.b32.xlu0 %v96, 15
    %v1395 = vpop.permute.xlu0 %1394
    %1396 = vrot.lane.b32.xlu0 %v97, 15
    %v1397 = vpop.permute.xlu0 %1396
    %1398 = vrot.lane.b32.xlu0 %v98, 15
    %v1399 = vpop.permute.xlu0 %1398
    %1400 = vrot.lane.b32.xlu0 %v99, 15
    %v1401 = vpop.permute.xlu0 %1400
    %1402 = vrot.lane.b32.xlu0 %v100, 15
    %v1403 = vpop.permute.xlu0 %1402
    %1404 = vrot.lane.b32.xlu0 %v101, 15
    %v1405 = vpop.permute.xlu0 %1404
    %1406 = vrot.lane.b32.xlu0 %v102, 15
    %v1407 = vpop.permute.xlu0 %1406
    %1408 = vrot.lane.b32.xlu0 %v103, 15
    %v1409 = vpop.permute.xlu0 %1408
    %1410 = vrot.lane.b32.xlu0 %v104, 15
    %v1411 = vpop.permute.xlu0 %1410
    %1412 = vrot.lane.b32.xlu0 %v105, 15
    %v1413 = vpop.permute.xlu0 %1412
    %1414 = vrot.lane.b32.xlu0 %v106, 15
    %v1415 = vpop.permute.xlu0 %1414
    %1416 = vrot.lane.b32.xlu0 %v107, 15
    %v1417 = vpop.permute.xlu0 %1416
    %1418 = vrot.lane.b32.xlu0 %v108, 15
    %v1419 = vpop.permute.xlu0 %1418
    %1420 = vrot.lane.b32.xlu0 %v109, 15
    %v1421 = vpop.permute.xlu0 %1420
    %1422 = vrot.lane.b32.xlu0 %v110, 15
    %v1423 = vpop.permute.xlu0 %1422
    %1424 = vrot.lane.b32.xlu0 %v111, 15
    %v1425 = vpop.permute.xlu0 %1424
    %1426 = vrot.lane.b32.xlu0 %v112, 15
    %v1427 = vpop.permute.xlu0 %1426
    %1428 = vrot.lane.b32.xlu0 %v113, 15
    %v1429 = vpop.permute.xlu0 %1428
    %1430 = vrot.lane.b32.xlu0 %v114, 15
    %v1431 = vpop.permute.xlu0 %1430
    %1432 = vrot.lane.b32.xlu0 %v115, 15
    %v1433 = vpop.permute.xlu0 %1432
    %vm1498 = vcmask 146553
    %1499 = vst.msk [vmem:[#allocation2 - $0x1] sm:$0xfe] %vm1498, %v1307
    %vm1500 = vcmask 146552
    %1501 = vst.msk [vmem:[#allocation2 + $0x7] sm:$0xff] %vm1500, %v1309
    %1502 = vst.msk [vmem:[#allocation2 + $0xf] sm:$0xfe] %vm1498, %v1311
    %1503 = vst.msk [vmem:[#allocation2 + $0x17] sm:$0xff] %vm1500, %v1313
    %1504 = vst.msk [vmem:[#allocation2 + $0x1f] sm:$0xfe] %vm1498, %v1315
    %1505 = vst.msk [vmem:[#allocation2 + $0x27] sm:$0xff] %vm1500, %v1317
    %1506 = vst.msk [vmem:[#allocation2 + $0x2f] sm:$0xfe] %vm1498, %v1319
    %1507 = vst.msk [vmem:[#allocation2 + $0x37] sm:$0xff] %vm1500, %v1321
    %1508 = vst.msk [vmem:[#allocation2 + $0x3f] sm:$0xfe] %vm1498, %v1323
    %1509 = vst.msk [vmem:[#allocation2 + $0x47] sm:$0xff] %vm1500, %v1325
    %1510 = vst.msk [vmem:[#allocation2 + $0x4f] sm:$0xfe] %vm1498, %v1327
    %1511 = vst.msk [vmem:[#allocation2 + $0x57] sm:$0xff] %vm1500, %v1329
    %1512 = vst.msk [vmem:[#allocation2 + $0x5f] sm:$0xfe] %vm1498, %v1331
    %1513 = vst.msk [vmem:[#allocation2 + $0x67] sm:$0xff] %vm1500, %v1333
    %1514 = vst.msk [vmem:[#allocation2 + $0x6f] sm:$0xfe] %vm1498, %v1335
    %1515 = vst.msk [vmem:[#allocation2 + $0x77] sm:$0xff] %vm1500, %v1337
    %1516 = vst.msk [vmem:[#allocation2 + $0x7f] sm:$0xfe] %vm1498, %v1339
    %1517 = vst.msk [vmem:[#allocation2 + $0x87] sm:$0xff] %vm1500, %v1341
    %1518 = vst.msk [vmem:[#allocation2 + $0x8f] sm:$0xfe] %vm1498, %v1343
    %1519 = vst.msk [vmem:[#allocation2 + $0x97] sm:$0xff] %vm1500, %v1345
    %1520 = vst.msk [vmem:[#allocation2 + $0x9f] sm:$0xfe] %vm1498, %v1347
    %1521 = vst.msk [vmem:[#allocation2 + $0xa7] sm:$0xff] %vm1500, %v1349
    %1522 = vst.msk [vmem:[#allocation2 + $0xaf] sm:$0xfe] %vm1498, %v1351
    %1523 = vst.msk [vmem:[#allocation2 + $0xb7] sm:$0xff] %vm1500, %v1353
    %1524 = vst.msk [vmem:[#allocation2 + $0xbf] sm:$0xfe] %vm1498, %v1355
    %1525 = vst.msk [vmem:[#allocation2 + $0xc7] sm:$0xff] %vm1500, %v1357
    %1526 = vst.msk [vmem:[#allocation2 + $0xcf] sm:$0xfe] %vm1498, %v1359
    %1527 = vst.msk [vmem:[#allocation2 + $0xd7] sm:$0xff] %vm1500, %v1361
    %1528 = vst.msk [vmem:[#allocation2 + $0xdf] sm:$0xfe] %vm1498, %v1363
    %1529 = vst.msk [vmem:[#allocation2 + $0xe7] sm:$0xff] %vm1500, %v1365
    %1530 = vst.msk [vmem:[#allocation2 + $0xef] sm:$0xfe] %vm1498, %v1367
    %1531 = vst.msk [vmem:[#allocation2 + $0xf7] sm:$0xff] %vm1500, %v1369
    %1532 = vst.msk [vmem:[#allocation2 + $0xff] sm:$0xfe] %vm1498, %v1371
    %1533 = vst.msk [vmem:[#allocation2 + $0x107] sm:$0xff] %vm1500, %v1373
    %1534 = vst.msk [vmem:[#allocation2 + $0x10f] sm:$0xfe] %vm1498, %v1375
    %1535 = vst.msk [vmem:[#allocation2 + $0x117] sm:$0xff] %vm1500, %v1377
    %1536 = vst.msk [vmem:[#allocation2 + $0x11f] sm:$0xfe] %vm1498, %v1379
    %1537 = vst.msk [vmem:[#allocation2 + $0x127] sm:$0xff] %vm1500, %v1381
    %1538 = vst.msk [vmem:[#allocation2 + $0x12f] sm:$0xfe] %vm1498, %v1383
    %1539 = vst.msk [vmem:[#allocation2 + $0x137] sm:$0xff] %vm1500, %v1385
    %1540 = vst.msk [vmem:[#allocation2 + $0x13f] sm:$0xfe] %vm1498, %v1387
    %1541 = vst.msk [vmem:[#allocation2 + $0x147] sm:$0xff] %vm1500, %v1389
    %1542 = vst.msk [vmem:[#allocation2 + $0x14f] sm:$0xfe] %vm1498, %v1391
    %1543 = vst.msk [vmem:[#allocation2 + $0x157] sm:$0xff] %vm1500, %v1393
    %1544 = vst.msk [vmem:[#allocation2 + $0x15f] sm:$0xfe] %vm1498, %v1395
    %1545 = vst.msk [vmem:[#allocation2 + $0x167] sm:$0xff] %vm1500, %v1397
    %1546 = vst.msk [vmem:[#allocation2 + $0x16f] sm:$0xfe] %vm1498, %v1399
    %1547 = vst.msk [vmem:[#allocation2 + $0x177] sm:$0xff] %vm1500, %v1401
    %1548 = vst.msk [vmem:[#allocation2 + $0x17f] sm:$0xfe] %vm1498, %v1403
    %1549 = vst.msk [vmem:[#allocation2 + $0x187] sm:$0xff] %vm1500, %v1405
    %1550 = vst.msk [vmem:[#allocation2 + $0x18f] sm:$0xfe] %vm1498, %v1407
    %1551 = vst.msk [vmem:[#allocation2 + $0x197] sm:$0xff] %vm1500, %v1409
    %1552 = vst.msk [vmem:[#allocation2 + $0x19f] sm:$0xfe] %vm1498, %v1411
    %1553 = vst.msk [vmem:[#allocation2 + $0x1a7] sm:$0xff] %vm1500, %v1413
    %1554 = vst.msk [vmem:[#allocation2 + $0x1af] sm:$0xfe] %vm1498, %v1415
    %1555 = vst.msk [vmem:[#allocation2 + $0x1b7] sm:$0xff] %vm1500, %v1417
    %1556 = vst.msk [vmem:[#allocation2 + $0x1bf] sm:$0xfe] %vm1498, %v1419
    %1557 = vst.msk [vmem:[#allocation2 + $0x1c7] sm:$0xff] %vm1500, %v1421
    %1558 = vst.msk [vmem:[#allocation2 + $0x1cf] sm:$0xfe] %vm1498, %v1423
    %1559 = vst.msk [vmem:[#allocation2 + $0x1d7] sm:$0xff] %vm1500, %v1425
    %1560 = vst.msk [vmem:[#allocation2 + $0x1df] sm:$0xfe] %vm1498, %v1427
    %1561 = vst.msk [vmem:[#allocation2 + $0x1e7] sm:$0xff] %vm1500, %v1429
    %1562 = vst.msk [vmem:[#allocation2 + $0x1ef] sm:$0xfe] %vm1498, %v1431
    %1563 = vst.msk [vmem:[#allocation2 + $0x1f7] sm:$0xff] %vm1500, %v1433
    %1564 = vrot.lane.b32.xlu0 %v54, 18
    %v1565 = vpop.permute.xlu0 %1564
    %1566 = vrot.lane.b32.xlu0 %v55, 18
    %v1567 = vpop.permute.xlu0 %1566
    %1568 = vrot.lane.b32.xlu0 %v56, 18
    %v1569 = vpop.permute.xlu0 %1568
    %1570 = vrot.lane.b32.xlu0 %v57, 18
    %v1571 = vpop.permute.xlu0 %1570
    %1572 = vrot.lane.b32.xlu0 %v58, 18
    %v1573 = vpop.permute.xlu0 %1572
    %1574 = vrot.lane.b32.xlu0 %v59, 18
    %v1575 = vpop.permute.xlu0 %1574
    %1576 = vrot.lane.b32.xlu0 %v60, 18
    %v1577 = vpop.permute.xlu0 %1576
    %1578 = vrot.lane.b32.xlu0 %v61, 18
    %v1579 = vpop.permute.xlu0 %1578
    %1580 = vrot.lane.b32.xlu0 %v62, 18
    %v1581 = vpop.permute.xlu0 %1580
    %1582 = vrot.lane.b32.xlu0 %v63, 18
    %v1583 = vpop.permute.xlu0 %1582
    %1584 = vrot.lane.b32.xlu0 %v64, 18
    %v1585 = vpop.permute.xlu0 %1584
    %1586 = vrot.lane.b32.xlu0 %v65, 18
    %v1587 = vpop.permute.xlu0 %1586
    %1588 = vrot.lane.b32.xlu0 %v66, 18
    %v1589 = vpop.permute.xlu0 %1588
    %1590 = vrot.lane.b32.xlu0 %v67, 18
    %v1591 = vpop.permute.xlu0 %1590
    %1592 = vrot.lane.b32.xlu0 %v68, 18
    %v1593 = vpop.permute.xlu0 %1592
    %1594 = vrot.lane.b32.xlu0 %v69, 18
    %v1595 = vpop.permute.xlu0 %1594
    %1596 = vrot.lane.b32.xlu0 %v70, 18
    %v1597 = vpop.permute.xlu0 %1596
    %1598 = vrot.lane.b32.xlu0 %v71, 18
    %v1599 = vpop.permute.xlu0 %1598
    %1600 = vrot.lane.b32.xlu0 %v72, 18
    %v1601 = vpop.permute.xlu0 %1600
    %1602 = vrot.lane.b32.xlu0 %v73, 18
    %v1603 = vpop.permute.xlu0 %1602
    %1604 = vrot.lane.b32.xlu0 %v74, 18
    %v1605 = vpop.permute.xlu0 %1604
    %1606 = vrot.lane.b32.xlu0 %v75, 18
    %v1607 = vpop.permute.xlu0 %1606
    %1608 = vrot.lane.b32.xlu0 %v76, 18
    %v1609 = vpop.permute.xlu0 %1608
    %1610 = vrot.lane.b32.xlu0 %v77, 18
    %v1611 = vpop.permute.xlu0 %1610
    %1612 = vrot.lane.b32.xlu0 %v78, 18
    %v1613 = vpop.permute.xlu0 %1612
    %1614 = vrot.lane.b32.xlu0 %v79, 18
    %v1615 = vpop.permute.xlu0 %1614
    %1616 = vrot.lane.b32.xlu0 %v80, 18
    %v1617 = vpop.permute.xlu0 %1616
    %1618 = vrot.lane.b32.xlu0 %v81, 18
    %v1619 = vpop.permute.xlu0 %1618
    %1620 = vrot.lane.b32.xlu0 %v82, 18
    %v1621 = vpop.permute.xlu0 %1620
    %1622 = vrot.lane.b32.xlu0 %v83, 18
    %v1623 = vpop.permute.xlu0 %1622
    %1624 = vrot.lane.b32.xlu0 %v86, 18
    %v1625 = vpop.permute.xlu0 %1624
    %1626 = vrot.lane.b32.xlu0 %v87, 18
    %v1627 = vpop.permute.xlu0 %1626
    %1628 = vrot.lane.b32.xlu0 %v88, 18
    %v1629 = vpop.permute.xlu0 %1628
    %1630 = vrot.lane.b32.xlu0 %v89, 18
    %v1631 = vpop.permute.xlu0 %1630
    %1632 = vrot.lane.b32.xlu0 %v90, 18
    %v1633 = vpop.permute.xlu0 %1632
    %1634 = vrot.lane.b32.xlu0 %v91, 18
    %v1635 = vpop.permute.xlu0 %1634
    %1636 = vrot.lane.b32.xlu0 %v92, 18
    %v1637 = vpop.permute.xlu0 %1636
    %1638 = vrot.lane.b32.xlu0 %v93, 18
    %v1639 = vpop.permute.xlu0 %1638
    %1640 = vrot.lane.b32.xlu0 %v94, 18
    %v1641 = vpop.permute.xlu0 %1640
    %1642 = vrot.lane.b32.xlu0 %v95, 18
    %v1643 = vpop.permute.xlu0 %1642
    %1644 = vrot.lane.b32.xlu0 %v96, 18
    %v1645 = vpop.permute.xlu0 %1644
    %1646 = vrot.lane.b32.xlu0 %v97, 18
    %v1647 = vpop.permute.xlu0 %1646
    %1648 = vrot.lane.b32.xlu0 %v98, 18
    %v1649 = vpop.permute.xlu0 %1648
    %1650 = vrot.lane.b32.xlu0 %v99, 18
    %v1651 = vpop.permute.xlu0 %1650
    %1652 = vrot.lane.b32.xlu0 %v100, 18
    %v1653 = vpop.permute.xlu0 %1652
    %1654 = vrot.lane.b32.xlu0 %v101, 18
    %v1655 = vpop.permute.xlu0 %1654
    %1656 = vrot.lane.b32.xlu0 %v102, 18
    %v1657 = vpop.permute.xlu0 %1656
    %1658 = vrot.lane.b32.xlu0 %v103, 18
    %v1659 = vpop.permute.xlu0 %1658
    %1660 = vrot.lane.b32.xlu0 %v104, 18
    %v1661 = vpop.permute.xlu0 %1660
    %1662 = vrot.lane.b32.xlu0 %v105, 18
    %v1663 = vpop.permute.xlu0 %1662
    %1664 = vrot.lane.b32.xlu0 %v106, 18
    %v1665 = vpop.permute.xlu0 %1664
    %1666 = vrot.lane.b32.xlu0 %v107, 18
    %v1667 = vpop.permute.xlu0 %1666
    %1668 = vrot.lane.b32.xlu0 %v108, 18
    %v1669 = vpop.permute.xlu0 %1668
    %1670 = vrot.lane.b32.xlu0 %v109, 18
    %v1671 = vpop.permute.xlu0 %1670
    %1672 = vrot.lane.b32.xlu0 %v110, 18
    %v1673 = vpop.permute.xlu0 %1672
    %1674 = vrot.lane.b32.xlu0 %v111, 18
    %v1675 = vpop.permute.xlu0 %1674
    %1676 = vrot.lane.b32.xlu0 %v112, 18
    %v1677 = vpop.permute.xlu0 %1676
    %1678 = vrot.lane.b32.xlu0 %v113, 18
    %v1679 = vpop.permute.xlu0 %1678
    %1680 = vrot.lane.b32.xlu0 %v114, 18
    %v1681 = vpop.permute.xlu0 %1680
    %1682 = vrot.lane.b32.xlu0 %v115, 18
    %v1683 = vpop.permute.xlu0 %1682
    %vm1744 = vcmask 171152
    %1745 = vst.msk [vmem:[#allocation2 + $0x1] sm:$0xff] %vm1744, %v1565
    %vm1746 = vcmask 170128
    %1747 = vst.msk [vmem:[#allocation2 + $0x9] sm:$0x7f] %vm1746, %v1567
    %1748 = vst.msk [vmem:[#allocation2 + $0x11] sm:$0xff] %vm1744, %v1569
    %1749 = vst.msk [vmem:[#allocation2 + $0x19] sm:$0x7f] %vm1746, %v1571
    %1750 = vst.msk [vmem:[#allocation2 + $0x21] sm:$0xff] %vm1744, %v1573
    %1751 = vst.msk [vmem:[#allocation2 + $0x29] sm:$0x7f] %vm1746, %v1575
    %1752 = vst.msk [vmem:[#allocation2 + $0x31] sm:$0xff] %vm1744, %v1577
    %1753 = vst.msk [vmem:[#allocation2 + $0x39] sm:$0x7f] %vm1746, %v1579
    %1754 = vst.msk [vmem:[#allocation2 + $0x41] sm:$0xff] %vm1744, %v1581
    %1755 = vst.msk [vmem:[#allocation2 + $0x49] sm:$0x7f] %vm1746, %v1583
    %1756 = vst.msk [vmem:[#allocation2 + $0x51] sm:$0xff] %vm1744, %v1585
    %1757 = vst.msk [vmem:[#allocation2 + $0x59] sm:$0x7f] %vm1746, %v1587
    %1758 = vst.msk [vmem:[#allocation2 + $0x61] sm:$0xff] %vm1744, %v1589
    %1759 = vst.msk [vmem:[#allocation2 + $0x69] sm:$0x7f] %vm1746, %v1591
    %1760 = vst.msk [vmem:[#allocation2 + $0x71] sm:$0xff] %vm1744, %v1593
    %1761 = vst.msk [vmem:[#allocation2 + $0x79] sm:$0x7f] %vm1746, %v1595
    %1762 = vst.msk [vmem:[#allocation2 + $0x81] sm:$0xff] %vm1744, %v1597
    %1763 = vst.msk [vmem:[#allocation2 + $0x89] sm:$0x7f] %vm1746, %v1599
    %1764 = vst.msk [vmem:[#allocation2 + $0x91] sm:$0xff] %vm1744, %v1601
    %1765 = vst.msk [vmem:[#allocation2 + $0x99] sm:$0x7f] %vm1746, %v1603
    %1766 = vst.msk [vmem:[#allocation2 + $0xa1] sm:$0xff] %vm1744, %v1605
    %1767 = vst.msk [vmem:[#allocation2 + $0xa9] sm:$0x7f] %vm1746, %v1607
    %1768 = vst.msk [vmem:[#allocation2 + $0xb1] sm:$0xff] %vm1744, %v1609
    %1769 = vst.msk [vmem:[#allocation2 + $0xb9] sm:$0x7f] %vm1746, %v1611
    %1770 = vst.msk [vmem:[#allocation2 + $0xc1] sm:$0xff] %vm1744, %v1613
    %1771 = vst.msk [vmem:[#allocation2 + $0xc9] sm:$0x7f] %vm1746, %v1615
    %1772 = vst.msk [vmem:[#allocation2 + $0xd1] sm:$0xff] %vm1744, %v1617
    %1773 = vst.msk [vmem:[#allocation2 + $0xd9] sm:$0x7f] %vm1746, %v1619
    %1774 = vst.msk [vmem:[#allocation2 + $0xe1] sm:$0xff] %vm1744, %v1621
    %1775 = vst.msk [vmem:[#allocation2 + $0xe9] sm:$0x7f] %vm1746, %v1623
    %1776 = vst.msk [vmem:[#allocation2 + $0x101] sm:$0xff] %vm1744, %v1625
    %1777 = vst.msk [vmem:[#allocation2 + $0x109] sm:$0x7f] %vm1746, %v1627
    %1778 = vst.msk [vmem:[#allocation2 + $0x111] sm:$0xff] %vm1744, %v1629
    %1779 = vst.msk [vmem:[#allocation2 + $0x119] sm:$0x7f] %vm1746, %v1631
    %1780 = vst.msk [vmem:[#allocation2 + $0x121] sm:$0xff] %vm1744, %v1633
    %1781 = vst.msk [vmem:[#allocation2 + $0x129] sm:$0x7f] %vm1746, %v1635
    %1782 = vst.msk [vmem:[#allocation2 + $0x131] sm:$0xff] %vm1744, %v1637
    %1783 = vst.msk [vmem:[#allocation2 + $0x139] sm:$0x7f] %vm1746, %v1639
    %1784 = vst.msk [vmem:[#allocation2 + $0x141] sm:$0xff] %vm1744, %v1641
    %1785 = vst.msk [vmem:[#allocation2 + $0x149] sm:$0x7f] %vm1746, %v1643
    %1786 = vst.msk [vmem:[#allocation2 + $0x151] sm:$0xff] %vm1744, %v1645
    %1787 = vst.msk [vmem:[#allocation2 + $0x159] sm:$0x7f] %vm1746, %v1647
    %1788 = vst.msk [vmem:[#allocation2 + $0x161] sm:$0xff] %vm1744, %v1649
    %1789 = vst.msk [vmem:[#allocation2 + $0x169] sm:$0x7f] %vm1746, %v1651
    %1790 = vst.msk [vmem:[#allocation2 + $0x171] sm:$0xff] %vm1744, %v1653
    %1791 = vst.msk [vmem:[#allocation2 + $0x179] sm:$0x7f] %vm1746, %v1655
    %1792 = vst.msk [vmem:[#allocation2 + $0x181] sm:$0xff] %vm1744, %v1657
    %1793 = vst.msk [vmem:[#allocation2 + $0x189] sm:$0x7f] %vm1746, %v1659
    %1794 = vst.msk [vmem:[#allocation2 + $0x191] sm:$0xff] %vm1744, %v1661
    %1795 = vst.msk [vmem:[#allocation2 + $0x199] sm:$0x7f] %vm1746, %v1663
    %1796 = vst.msk [vmem:[#allocation2 + $0x1a1] sm:$0xff] %vm1744, %v1665
    %1797 = vst.msk [vmem:[#allocation2 + $0x1a9] sm:$0x7f] %vm1746, %v1667
    %1798 = vst.msk [vmem:[#allocation2 + $0x1b1] sm:$0xff] %vm1744, %v1669
    %1799 = vst.msk [vmem:[#allocation2 + $0x1b9] sm:$0x7f] %vm1746, %v1671
    %1800 = vst.msk [vmem:[#allocation2 + $0x1c1] sm:$0xff] %vm1744, %v1673
    %1801 = vst.msk [vmem:[#allocation2 + $0x1c9] sm:$0x7f] %vm1746, %v1675
    %1802 = vst.msk [vmem:[#allocation2 + $0x1d1] sm:$0xff] %vm1744, %v1677
    %1803 = vst.msk [vmem:[#allocation2 + $0x1d9] sm:$0x7f] %vm1746, %v1679
    %1804 = vst.msk [vmem:[#allocation2 + $0x1e1] sm:$0xff] %vm1744, %v1681
    %1805 = vst.msk [vmem:[#allocation2 + $0x1e9] sm:$0x7f] %vm1746, %v1683
    %1806 = vrot.lane.b32.xlu0 %v54, 21
    %v1807 = vpop.permute.xlu0 %1806
    %1808 = vrot.lane.b32.xlu0 %v55, 21
    %v1809 = vpop.permute.xlu0 %1808
    %1810 = vrot.lane.b32.xlu0 %v56, 21
    %v1811 = vpop.permute.xlu0 %1810
    %1812 = vrot.lane.b32.xlu0 %v57, 21
    %v1813 = vpop.permute.xlu0 %1812
    %1814 = vrot.lane.b32.xlu0 %v58, 21
    %v1815 = vpop.permute.xlu0 %1814
    %1816 = vrot.lane.b32.xlu0 %v59, 21
    %v1817 = vpop.permute.xlu0 %1816
    %1818 = vrot.lane.b32.xlu0 %v60, 21
    %v1819 = vpop.permute.xlu0 %1818
    %1820 = vrot.lane.b32.xlu0 %v61, 21
    %v1821 = vpop.permute.xlu0 %1820
    %1822 = vrot.lane.b32.xlu0 %v62, 21
    %v1823 = vpop.permute.xlu0 %1822
    %1824 = vrot.lane.b32.xlu0 %v63, 21
    %v1825 = vpop.permute.xlu0 %1824
    %1826 = vrot.lane.b32.xlu0 %v64, 21
    %v1827 = vpop.permute.xlu0 %1826
    %1828 = vrot.lane.b32.xlu0 %v65, 21
    %v1829 = vpop.permute.xlu0 %1828
    %1830 = vrot.lane.b32.xlu0 %v66, 21
    %v1831 = vpop.permute.xlu0 %1830
    %1832 = vrot.lane.b32.xlu0 %v67, 21
    %v1833 = vpop.permute.xlu0 %1832
    %1834 = vrot.lane.b32.xlu0 %v68, 21
    %v1835 = vpop.permute.xlu0 %1834
    %1836 = vrot.lane.b32.xlu0 %v69, 21
    %v1837 = vpop.permute.xlu0 %1836
    %1838 = vrot.lane.b32.xlu0 %v70, 21
    %v1839 = vpop.permute.xlu0 %1838
    %1840 = vrot.lane.b32.xlu0 %v71, 21
    %v1841 = vpop.permute.xlu0 %1840
    %1842 = vrot.lane.b32.xlu0 %v72, 21
    %v1843 = vpop.permute.xlu0 %1842
    %1844 = vrot.lane.b32.xlu0 %v73, 21
    %v1845 = vpop.permute.xlu0 %1844
    %1846 = vrot.lane.b32.xlu0 %v74, 21
    %v1847 = vpop.permute.xlu0 %1846
    %1848 = vrot.lane.b32.xlu0 %v75, 21
    %v1849 = vpop.permute.xlu0 %1848
    %1850 = vrot.lane.b32.xlu0 %v76, 21
    %v1851 = vpop.permute.xlu0 %1850
    %1852 = vrot.lane.b32.xlu0 %v77, 21
    %v1853 = vpop.permute.xlu0 %1852
    %1854 = vrot.lane.b32.xlu0 %v78, 21
    %v1855 = vpop.permute.xlu0 %1854
    %1856 = vrot.lane.b32.xlu0 %v79, 21
    %v1857 = vpop.permute.xlu0 %1856
    %1858 = vrot.lane.b32.xlu0 %v80, 21
    %v1859 = vpop.permute.xlu0 %1858
    %1860 = vrot.lane.b32.xlu0 %v81, 21
    %v1861 = vpop.permute.xlu0 %1860
    %1862 = vrot.lane.b32.xlu0 %v82, 21
    %v1863 = vpop.permute.xlu0 %1862
    %1864 = vrot.lane.b32.xlu0 %v83, 21
    %v1865 = vpop.permute.xlu0 %1864
    %1866 = vrot.lane.b32.xlu0 %v86, 21
    %v1867 = vpop.permute.xlu0 %1866
    %1868 = vrot.lane.b32.xlu0 %v87, 21
    %v1869 = vpop.permute.xlu0 %1868
    %1870 = vrot.lane.b32.xlu0 %v88, 21
    %v1871 = vpop.permute.xlu0 %1870
    %1872 = vrot.lane.b32.xlu0 %v89, 21
    %v1873 = vpop.permute.xlu0 %1872
    %1874 = vrot.lane.b32.xlu0 %v90, 21
    %v1875 = vpop.permute.xlu0 %1874
    %1876 = vrot.lane.b32.xlu0 %v91, 21
    %v1877 = vpop.permute.xlu0 %1876
    %1878 = vrot.lane.b32.xlu0 %v92, 21
    %v1879 = vpop.permute.xlu0 %1878
    %1880 = vrot.lane.b32.xlu0 %v93, 21
    %v1881 = vpop.permute.xlu0 %1880
    %1882 = vrot.lane.b32.xlu0 %v94, 21
    %v1883 = vpop.permute.xlu0 %1882
    %1884 = vrot.lane.b32.xlu0 %v95, 21
    %v1885 = vpop.permute.xlu0 %1884
    %1886 = vrot.lane.b32.xlu0 %v96, 21
    %v1887 = vpop.permute.xlu0 %1886
    %1888 = vrot.lane.b32.xlu0 %v97, 21
    %v1889 = vpop.permute.xlu0 %1888
    %1890 = vrot.lane.b32.xlu0 %v98, 21
    %v1891 = vpop.permute.xlu0 %1890
    %1892 = vrot.lane.b32.xlu0 %v99, 21
    %v1893 = vpop.permute.xlu0 %1892
    %1894 = vrot.lane.b32.xlu0 %v100, 21
    %v1895 = vpop.permute.xlu0 %1894
    %1896 = vrot.lane.b32.xlu0 %v101, 21
    %v1897 = vpop.permute.xlu0 %1896
    %1898 = vrot.lane.b32.xlu0 %v102, 21
    %v1899 = vpop.permute.xlu0 %1898
    %1900 = vrot.lane.b32.xlu0 %v103, 21
    %v1901 = vpop.permute.xlu0 %1900
    %1902 = vrot.lane.b32.xlu0 %v104, 21
    %v1903 = vpop.permute.xlu0 %1902
    %1904 = vrot.lane.b32.xlu0 %v105, 21
    %v1905 = vpop.permute.xlu0 %1904
    %1906 = vrot.lane.b32.xlu0 %v106, 21
    %v1907 = vpop.permute.xlu0 %1906
    %1908 = vrot.lane.b32.xlu0 %v107, 21
    %v1909 = vpop.permute.xlu0 %1908
    %1910 = vrot.lane.b32.xlu0 %v108, 21
    %v1911 = vpop.permute.xlu0 %1910
    %1912 = vrot.lane.b32.xlu0 %v109, 21
    %v1913 = vpop.permute.xlu0 %1912
    %1914 = vrot.lane.b32.xlu0 %v110, 21
    %v1915 = vpop.permute.xlu0 %1914
    %1916 = vrot.lane.b32.xlu0 %v111, 21
    %v1917 = vpop.permute.xlu0 %1916
    %1918 = vrot.lane.b32.xlu0 %v112, 21
    %v1919 = vpop.permute.xlu0 %1918
    %1920 = vrot.lane.b32.xlu0 %v113, 21
    %v1921 = vpop.permute.xlu0 %1920
    %1922 = vrot.lane.b32.xlu0 %v114, 21
    %v1923 = vpop.permute.xlu0 %1922
    %1924 = vrot.lane.b32.xlu0 %v115, 21
    %v1925 = vpop.permute.xlu0 %1924
    %vm1986 = vcmask 195752
    %1987 = vst.msk [vmem:[#allocation2] sm:$0xff] %vm1986, %v1807
    %1988 = vst.msk [vmem:[#allocation2 + $0x8] sm:$0xff] %vm1986, %v1809
    %1989 = vst.msk [vmem:[#allocation2 + $0x10] sm:$0xff] %vm1986, %v1811
    %1990 = vst.msk [vmem:[#allocation2 + $0x18] sm:$0xff] %vm1986, %v1813
    %1991 = vst.msk [vmem:[#allocation2 + $0x20] sm:$0xff] %vm1986, %v1815
    %1992 = vst.msk [vmem:[#allocation2 + $0x28] sm:$0xff] %vm1986, %v1817
    %1993 = vst.msk [vmem:[#allocation2 + $0x30] sm:$0xff] %vm1986, %v1819
    %1994 = vst.msk [vmem:[#allocation2 + $0x38] sm:$0xff] %vm1986, %v1821
    %1995 = vst.msk [vmem:[#allocation2 + $0x40] sm:$0xff] %vm1986, %v1823
    %1996 = vst.msk [vmem:[#allocation2 + $0x48] sm:$0xff] %vm1986, %v1825
    %1997 = vst.msk [vmem:[#allocation2 + $0x50] sm:$0xff] %vm1986, %v1827
    %1998 = vst.msk [vmem:[#allocation2 + $0x58] sm:$0xff] %vm1986, %v1829
    %1999 = vst.msk [vmem:[#allocation2 + $0x60] sm:$0xff] %vm1986, %v1831
    %2000 = vst.msk [vmem:[#allocation2 + $0x68] sm:$0xff] %vm1986, %v1833
    %2001 = vst.msk [vmem:[#allocation2 + $0x70] sm:$0xff] %vm1986, %v1835
    %2002 = vst.msk [vmem:[#allocation2 + $0x78] sm:$0xff] %vm1986, %v1837
    %2003 = vst.msk [vmem:[#allocation2 + $0x80] sm:$0xff] %vm1986, %v1839
    %2004 = vst.msk [vmem:[#allocation2 + $0x88] sm:$0xff] %vm1986, %v1841
    %2005 = vst.msk [vmem:[#allocation2 + $0x90] sm:$0xff] %vm1986, %v1843
    %2006 = vst.msk [vmem:[#allocation2 + $0x98] sm:$0xff] %vm1986, %v1845
    %2007 = vst.msk [vmem:[#allocation2 + $0xa0] sm:$0xff] %vm1986, %v1847
    %2008 = vst.msk [vmem:[#allocation2 + $0xa8] sm:$0xff] %vm1986, %v1849
    %2009 = vst.msk [vmem:[#allocation2 + $0xb0] sm:$0xff] %vm1986, %v1851
    %2010 = vst.msk [vmem:[#allocation2 + $0xb8] sm:$0xff] %vm1986, %v1853
    %2011 = vst.msk [vmem:[#allocation2 + $0xc0] sm:$0xff] %vm1986, %v1855
    %2012 = vst.msk [vmem:[#allocation2 + $0xc8] sm:$0xff] %vm1986, %v1857
    %2013 = vst.msk [vmem:[#allocation2 + $0xd0] sm:$0xff] %vm1986, %v1859
    %2014 = vst.msk [vmem:[#allocation2 + $0xd8] sm:$0xff] %vm1986, %v1861
    %2015 = vst.msk [vmem:[#allocation2 + $0xe0] sm:$0xff] %vm1986, %v1863
    %2016 = vst.msk [vmem:[#allocation2 + $0xe8] sm:$0xff] %vm1986, %v1865
    %2017 = vst.msk [vmem:[#allocation2 + $0x100] sm:$0xff] %vm1986, %v1867
    %2018 = vst.msk [vmem:[#allocation2 + $0x108] sm:$0xff] %vm1986, %v1869
    %2019 = vst.msk [vmem:[#allocation2 + $0x110] sm:$0xff] %vm1986, %v1871
    %2020 = vst.msk [vmem:[#allocation2 + $0x118] sm:$0xff] %vm1986, %v1873
    %2021 = vst.msk [vmem:[#allocation2 + $0x120] sm:$0xff] %vm1986, %v1875
    %2022 = vst.msk [vmem:[#allocation2 + $0x128] sm:$0xff] %vm1986, %v1877
    %2023 = vst.msk [vmem:[#allocation2 + $0x130] sm:$0xff] %vm1986, %v1879
    %2024 = vst.msk [vmem:[#allocation2 + $0x138] sm:$0xff] %vm1986, %v1881
    %2025 = vst.msk [vmem:[#allocation2 + $0x140] sm:$0xff] %vm1986, %v1883
    %2026 = vst.msk [vmem:[#allocation2 + $0x148] sm:$0xff] %vm1986, %v1885
    %2027 = vst.msk [vmem:[#allocation2 + $0x150] sm:$0xff] %vm1986, %v1887
    %2028 = vst.msk [vmem:[#allocation2 + $0x158] sm:$0xff] %vm1986, %v1889
    %2029 = vst.msk [vmem:[#allocation2 + $0x160] sm:$0xff] %vm1986, %v1891
    %2030 = vst.msk [vmem:[#allocation2 + $0x168] sm:$0xff] %vm1986, %v1893
    %2031 = vst.msk [vmem:[#allocation2 + $0x170] sm:$0xff] %vm1986, %v1895
    %2032 = vst.msk [vmem:[#allocation2 + $0x178] sm:$0xff] %vm1986, %v1897
    %2033 = vst.msk [vmem:[#allocation2 + $0x180] sm:$0xff] %vm1986, %v1899
    %2034 = vst.msk [vmem:[#allocation2 + $0x188] sm:$0xff] %vm1986, %v1901
    %2035 = vst.msk [vmem:[#allocation2 + $0x190] sm:$0xff] %vm1986, %v1903
    %2036 = vst.msk [vmem:[#allocation2 + $0x198] sm:$0xff] %vm1986, %v1905
    %2037 = vst.msk [vmem:[#allocation2 + $0x1a0] sm:$0xff] %vm1986, %v1907
    %2038 = vst.msk [vmem:[#allocation2 + $0x1a8] sm:$0xff] %vm1986, %v1909
    %2039 = vst.msk [vmem:[#allocation2 + $0x1b0] sm:$0xff] %vm1986, %v1911
    %2040 = vst.msk [vmem:[#allocation2 + $0x1b8] sm:$0xff] %vm1986, %v1913
    %2041 = vst.msk [vmem:[#allocation2 + $0x1c0] sm:$0xff] %vm1986, %v1915
    %2042 = vst.msk [vmem:[#allocation2 + $0x1c8] sm:$0xff] %vm1986, %v1917
    %2043 = vst.msk [vmem:[#allocation2 + $0x1d0] sm:$0xff] %vm1986, %v1919
    %2044 = vst.msk [vmem:[#allocation2 + $0x1d8] sm:$0xff] %vm1986, %v1921
    %2045 = vst.msk [vmem:[#allocation2 + $0x1e0] sm:$0xff] %vm1986, %v1923
    %2046 = vst.msk [vmem:[#allocation2 + $0x1e8] sm:$0xff] %vm1986, %v1925
    %2047 = vrot.lane.b32.xlu0 %v54, 24
    %v2048 = vpop.permute.xlu0 %2047
    %2049 = vrot.lane.b32.xlu0 %v55, 24
    %v2050 = vpop.permute.xlu0 %2049
    %2051 = vrot.lane.b32.xlu0 %v56, 24
    %v2052 = vpop.permute.xlu0 %2051
    %2053 = vrot.lane.b32.xlu0 %v57, 24
    %v2054 = vpop.permute.xlu0 %2053
    %2055 = vrot.lane.b32.xlu0 %v58, 24
    %v2056 = vpop.permute.xlu0 %2055
    %2057 = vrot.lane.b32.xlu0 %v59, 24
    %v2058 = vpop.permute.xlu0 %2057
    %2059 = vrot.lane.b32.xlu0 %v60, 24
    %v2060 = vpop.permute.xlu0 %2059
    %2061 = vrot.lane.b32.xlu0 %v61, 24
    %v2062 = vpop.permute.xlu0 %2061
    %2063 = vrot.lane.b32.xlu0 %v62, 24
    %v2064 = vpop.permute.xlu0 %2063
    %2065 = vrot.lane.b32.xlu0 %v63, 24
    %v2066 = vpop.permute.xlu0 %2065
    %2067 = vrot.lane.b32.xlu0 %v64, 24
    %v2068 = vpop.permute.xlu0 %2067
    %2069 = vrot.lane.b32.xlu0 %v65, 24
    %v2070 = vpop.permute.xlu0 %2069
    %2071 = vrot.lane.b32.xlu0 %v66, 24
    %v2072 = vpop.permute.xlu0 %2071
    %2073 = vrot.lane.b32.xlu0 %v67, 24
    %v2074 = vpop.permute.xlu0 %2073
    %2075 = vrot.lane.b32.xlu0 %v68, 24
    %v2076 = vpop.permute.xlu0 %2075
    %2077 = vrot.lane.b32.xlu0 %v69, 24
    %v2078 = vpop.permute.xlu0 %2077
    %2079 = vrot.lane.b32.xlu0 %v70, 24
    %v2080 = vpop.permute.xlu0 %2079
    %2081 = vrot.lane.b32.xlu0 %v71, 24
    %v2082 = vpop.permute.xlu0 %2081
    %2083 = vrot.lane.b32.xlu0 %v72, 24
    %v2084 = vpop.permute.xlu0 %2083
    %2085 = vrot.lane.b32.xlu0 %v73, 24
    %v2086 = vpop.permute.xlu0 %2085
    %2087 = vrot.lane.b32.xlu0 %v74, 24
    %v2088 = vpop.permute.xlu0 %2087
    %2089 = vrot.lane.b32.xlu0 %v75, 24
    %v2090 = vpop.permute.xlu0 %2089
    %2091 = vrot.lane.b32.xlu0 %v76, 24
    %v2092 = vpop.permute.xlu0 %2091
    %2093 = vrot.lane.b32.xlu0 %v77, 24
    %v2094 = vpop.permute.xlu0 %2093
    %2095 = vrot.lane.b32.xlu0 %v78, 24
    %v2096 = vpop.permute.xlu0 %2095
    %2097 = vrot.lane.b32.xlu0 %v79, 24
    %v2098 = vpop.permute.xlu0 %2097
    %2099 = vrot.lane.b32.xlu0 %v80, 24
    %v2100 = vpop.permute.xlu0 %2099
    %2101 = vrot.lane.b32.xlu0 %v81, 24
    %v2102 = vpop.permute.xlu0 %2101
    %2103 = vrot.lane.b32.xlu0 %v82, 24
    %v2104 = vpop.permute.xlu0 %2103
    %2105 = vrot.lane.b32.xlu0 %v83, 24
    %v2106 = vpop.permute.xlu0 %2105
    %2107 = vrot.lane.b32.xlu0 %v86, 24
    %v2108 = vpop.permute.xlu0 %2107
    %2109 = vrot.lane.b32.xlu0 %v87, 24
    %v2110 = vpop.permute.xlu0 %2109
    %2111 = vrot.lane.b32.xlu0 %v88, 24
    %v2112 = vpop.permute.xlu0 %2111
    %2113 = vrot.lane.b32.xlu0 %v89, 24
    %v2114 = vpop.permute.xlu0 %2113
    %2115 = vrot.lane.b32.xlu0 %v90, 24
    %v2116 = vpop.permute.xlu0 %2115
    %2117 = vrot.lane.b32.xlu0 %v91, 24
    %v2118 = vpop.permute.xlu0 %2117
    %2119 = vrot.lane.b32.xlu0 %v92, 24
    %v2120 = vpop.permute.xlu0 %2119
    %2121 = vrot.lane.b32.xlu0 %v93, 24
    %v2122 = vpop.permute.xlu0 %2121
    %2123 = vrot.lane.b32.xlu0 %v94, 24
    %v2124 = vpop.permute.xlu0 %2123
    %2125 = vrot.lane.b32.xlu0 %v95, 24
    %v2126 = vpop.permute.xlu0 %2125
    %2127 = vrot.lane.b32.xlu0 %v96, 24
    %v2128 = vpop.permute.xlu0 %2127
    %2129 = vrot.lane.b32.xlu0 %v97, 24
    %v2130 = vpop.permute.xlu0 %2129
    %2131 = vrot.lane.b32.xlu0 %v98, 24
    %v2132 = vpop.permute.xlu0 %2131
    %2133 = vrot.lane.b32.xlu0 %v99, 24
    %v2134 = vpop.permute.xlu0 %2133
    %2135 = vrot.lane.b32.xlu0 %v100, 24
    %v2136 = vpop.permute.xlu0 %2135
    %2137 = vrot.lane.b32.xlu0 %v101, 24
    %v2138 = vpop.permute.xlu0 %2137
    %2139 = vrot.lane.b32.xlu0 %v102, 24
    %v2140 = vpop.permute.xlu0 %2139
    %2141 = vrot.lane.b32.xlu0 %v103, 24
    %v2142 = vpop.permute.xlu0 %2141
    %2143 = vrot.lane.b32.xlu0 %v104, 24
    %v2144 = vpop.permute.xlu0 %2143
    %2145 = vrot.lane.b32.xlu0 %v105, 24
    %v2146 = vpop.permute.xlu0 %2145
    %2147 = vrot.lane.b32.xlu0 %v106, 24
    %v2148 = vpop.permute.xlu0 %2147
    %2149 = vrot.lane.b32.xlu0 %v107, 24
    %v2150 = vpop.permute.xlu0 %2149
    %2151 = vrot.lane.b32.xlu0 %v108, 24
    %v2152 = vpop.permute.xlu0 %2151
    %2153 = vrot.lane.b32.xlu0 %v109, 24
    %v2154 = vpop.permute.xlu0 %2153
    %2155 = vrot.lane.b32.xlu0 %v110, 24
    %v2156 = vpop.permute.xlu0 %2155
    %2157 = vrot.lane.b32.xlu0 %v111, 24
    %v2158 = vpop.permute.xlu0 %2157
    %2159 = vrot.lane.b32.xlu0 %v112, 24
    %v2160 = vpop.permute.xlu0 %2159
    %2161 = vrot.lane.b32.xlu0 %v113, 24
    %v2162 = vpop.permute.xlu0 %2161
    %2163 = vrot.lane.b32.xlu0 %v114, 24
    %v2164 = vpop.permute.xlu0 %2163
    %2165 = vrot.lane.b32.xlu0 %v115, 24
    %v2166 = vpop.permute.xlu0 %2165
    %vm2227 = vcmask 220353
    %2228 = vst.msk [vmem:[#allocation2 - $0x1] sm:$0xfe] %vm2227, %v2048
    %vm2229 = vcmask 220352
    %2230 = vst.msk [vmem:[#allocation2 + $0x7] sm:$0xff] %vm2229, %v2050
    %2231 = vst.msk [vmem:[#allocation2 + $0xf] sm:$0xfe] %vm2227, %v2052
    %2232 = vst.msk [vmem:[#allocation2 + $0x17] sm:$0xff] %vm2229, %v2054
    %2233 = vst.msk [vmem:[#allocation2 + $0x1f] sm:$0xfe] %vm2227, %v2056
    %2234 = vst.msk [vmem:[#allocation2 + $0x27] sm:$0xff] %vm2229, %v2058
    %2235 = vst.msk [vmem:[#allocation2 + $0x2f] sm:$0xfe] %vm2227, %v2060
    %2236 = vst.msk [vmem:[#allocation2 + $0x37] sm:$0xff] %vm2229, %v2062
    %2237 = vst.msk [vmem:[#allocation2 + $0x3f] sm:$0xfe] %vm2227, %v2064
    %2238 = vst.msk [vmem:[#allocation2 + $0x47] sm:$0xff] %vm2229, %v2066
    %2239 = vst.msk [vmem:[#allocation2 + $0x4f] sm:$0xfe] %vm2227, %v2068
    %2240 = vst.msk [vmem:[#allocation2 + $0x57] sm:$0xff] %vm2229, %v2070
    %2241 = vst.msk [vmem:[#allocation2 + $0x5f] sm:$0xfe] %vm2227, %v2072
    %2242 = vst.msk [vmem:[#allocation2 + $0x67] sm:$0xff] %vm2229, %v2074
    %2243 = vst.msk [vmem:[#allocation2 + $0x6f] sm:$0xfe] %vm2227, %v2076
    %2244 = vst.msk [vmem:[#allocation2 + $0x77] sm:$0xff] %vm2229, %v2078
    %2245 = vst.msk [vmem:[#allocation2 + $0x7f] sm:$0xfe] %vm2227, %v2080
    %2246 = vst.msk [vmem:[#allocation2 + $0x87] sm:$0xff] %vm2229, %v2082
    %2247 = vst.msk [vmem:[#allocation2 + $0x8f] sm:$0xfe] %vm2227, %v2084
    %2248 = vst.msk [vmem:[#allocation2 + $0x97] sm:$0xff] %vm2229, %v2086
    %2249 = vst.msk [vmem:[#allocation2 + $0x9f] sm:$0xfe] %vm2227, %v2088
    %2250 = vst.msk [vmem:[#allocation2 + $0xa7] sm:$0xff] %vm2229, %v2090
    %2251 = vst.msk [vmem:[#allocation2 + $0xaf] sm:$0xfe] %vm2227, %v2092
    %2252 = vst.msk [vmem:[#allocation2 + $0xb7] sm:$0xff] %vm2229, %v2094
    %2253 = vst.msk [vmem:[#allocation2 + $0xbf] sm:$0xfe] %vm2227, %v2096
    %2254 = vst.msk [vmem:[#allocation2 + $0xc7] sm:$0xff] %vm2229, %v2098
    %2255 = vst.msk [vmem:[#allocation2 + $0xcf] sm:$0xfe] %vm2227, %v2100
    %2256 = vst.msk [vmem:[#allocation2 + $0xd7] sm:$0xff] %vm2229, %v2102
    %2257 = vst.msk [vmem:[#allocation2 + $0xdf] sm:$0xfe] %vm2227, %v2104
    %2258 = vst.msk [vmem:[#allocation2 + $0xe7] sm:$0xff] %vm2229, %v2106
    %2259 = vst.msk [vmem:[#allocation2 + $0xff] sm:$0xfe] %vm2227, %v2108
    %2260 = vst.msk [vmem:[#allocation2 + $0x107] sm:$0xff] %vm2229, %v2110
    %2261 = vst.msk [vmem:[#allocation2 + $0x10f] sm:$0xfe] %vm2227, %v2112
    %2262 = vst.msk [vmem:[#allocation2 + $0x117] sm:$0xff] %vm2229, %v2114
    %2263 = vst.msk [vmem:[#allocation2 + $0x11f] sm:$0xfe] %vm2227, %v2116
    %2264 = vst.msk [vmem:[#allocation2 + $0x127] sm:$0xff] %vm2229, %v2118
    %2265 = vst.msk [vmem:[#allocation2 + $0x12f] sm:$0xfe] %vm2227, %v2120
    %2266 = vst.msk [vmem:[#allocation2 + $0x137] sm:$0xff] %vm2229, %v2122
    %2267 = vst.msk [vmem:[#allocation2 + $0x13f] sm:$0xfe] %vm2227, %v2124
    %2268 = vst.msk [vmem:[#allocation2 + $0x147] sm:$0xff] %vm2229, %v2126
    %2269 = vst.msk [vmem:[#allocation2 + $0x14f] sm:$0xfe] %vm2227, %v2128
    %2270 = vst.msk [vmem:[#allocation2 + $0x157] sm:$0xff] %vm2229, %v2130
    %2271 = vst.msk [vmem:[#allocation2 + $0x15f] sm:$0xfe] %vm2227, %v2132
    %2272 = vst.msk [vmem:[#allocation2 + $0x167] sm:$0xff] %vm2229, %v2134
    %2273 = vst.msk [vmem:[#allocation2 + $0x16f] sm:$0xfe] %vm2227, %v2136
    %2274 = vst.msk [vmem:[#allocation2 + $0x177] sm:$0xff] %vm2229, %v2138
    %2275 = vst.msk [vmem:[#allocation2 + $0x17f] sm:$0xfe] %vm2227, %v2140
    %2276 = vst.msk [vmem:[#allocation2 + $0x187] sm:$0xff] %vm2229, %v2142
    %2277 = vst.msk [vmem:[#allocation2 + $0x18f] sm:$0xfe] %vm2227, %v2144
    %2278 = vst.msk [vmem:[#allocation2 + $0x197] sm:$0xff] %vm2229, %v2146
    %2279 = vst.msk [vmem:[#allocation2 + $0x19f] sm:$0xfe] %vm2227, %v2148
    %2280 = vst.msk [vmem:[#allocation2 + $0x1a7] sm:$0xff] %vm2229, %v2150
    %2281 = vst.msk [vmem:[#allocation2 + $0x1af] sm:$0xfe] %vm2227, %v2152
    %2282 = vst.msk [vmem:[#allocation2 + $0x1b7] sm:$0xff] %vm2229, %v2154
    %2283 = vst.msk [vmem:[#allocation2 + $0x1bf] sm:$0xfe] %vm2227, %v2156
    %2284 = vst.msk [vmem:[#allocation2 + $0x1c7] sm:$0xff] %vm2229, %v2158
    %2285 = vst.msk [vmem:[#allocation2 + $0x1cf] sm:$0xfe] %vm2227, %v2160
    %2286 = vst.msk [vmem:[#allocation2 + $0x1d7] sm:$0xff] %vm2229, %v2162
    %2287 = vst.msk [vmem:[#allocation2 + $0x1df] sm:$0xfe] %vm2227, %v2164
    %2288 = vst.msk [vmem:[#allocation2 + $0x1e7] sm:$0xff] %vm2229, %v2166
    %v2289 = vld [vmem:[#allocation2] sm:$0xff]
    %v2290 = vld [vmem:[#allocation2 + $0x8] sm:$0xff]
    %v2291 = vld [vmem:[#allocation2 + $0x10] sm:$0xff]
    %v2292 = vld [vmem:[#allocation2 + $0x18] sm:$0xff]
    %v2293 = vld [vmem:[#allocation2 + $0x20] sm:$0xff]
    %v2294 = vld [vmem:[#allocation2 + $0x28] sm:$0xff]
    %v2295 = vld [vmem:[#allocation2 + $0x30] sm:$0xff]
    %v2296 = vld [vmem:[#allocation2 + $0x38] sm:$0xff]
    %v2297 = vld [vmem:[#allocation2 + $0x40] sm:$0xff]
    %v2298 = vld [vmem:[#allocation2 + $0x48] sm:$0xff]
    %v2299 = vld [vmem:[#allocation2 + $0x50] sm:$0xff]
    %v2300 = vld [vmem:[#allocation2 + $0x58] sm:$0xff]
    %v2301 = vld [vmem:[#allocation2 + $0x60] sm:$0xff]
    %v2302 = vld [vmem:[#allocation2 + $0x68] sm:$0xff]
    %v2303 = vld [vmem:[#allocation2 + $0x70] sm:$0xff]
    %v2304 = vld [vmem:[#allocation2 + $0x78] sm:$0xff]
    %v2305 = vld [vmem:[#allocation2 + $0x80] sm:$0xff]
    %v2306 = vld [vmem:[#allocation2 + $0x88] sm:$0xff]
    %v2307 = vld [vmem:[#allocation2 + $0x90] sm:$0xff]
    %v2308 = vld [vmem:[#allocation2 + $0x98] sm:$0xff]
    %v2309 = vld [vmem:[#allocation2 + $0xa0] sm:$0xff]
    %v2310 = vld [vmem:[#allocation2 + $0xa8] sm:$0xff]
    %v2311 = vld [vmem:[#allocation2 + $0xb0] sm:$0xff]
    %v2312 = vld [vmem:[#allocation2 + $0xb8] sm:$0xff]
    %v2313 = vld [vmem:[#allocation2 + $0xc0] sm:$0xff]
    %v2314 = vld [vmem:[#allocation2 + $0xc8] sm:$0xff]
    %v2315 = vld [vmem:[#allocation2 + $0xd0] sm:$0xff]
    %v2316 = vld [vmem:[#allocation2 + $0xd8] sm:$0xff]
    %v2317 = vld [vmem:[#allocation2 + $0xe0] sm:$0xff]
    %v2318 = vld [vmem:[#allocation2 + $0xe8] sm:$0xff]
    %v2319 = vld [vmem:[#allocation2 + $0xf0] sm:$0xff]
    %v2320 = vld [vmem:[#allocation2 + $0xf8] sm:$0xff]
    %v2321 = vld [vmem:[#allocation2 + $0x100] sm:$0xff]
    %v2322 = vld [vmem:[#allocation2 + $0x108] sm:$0xff]
    %v2323 = vld [vmem:[#allocation2 + $0x110] sm:$0xff]
    %v2324 = vld [vmem:[#allocation2 + $0x118] sm:$0xff]
    %v2325 = vld [vmem:[#allocation2 + $0x120] sm:$0xff]
    %v2326 = vld [vmem:[#allocation2 + $0x128] sm:$0xff]
    %v2327 = vld [vmem:[#allocation2 + $0x130] sm:$0xff]
    %v2328 = vld [vmem:[#allocation2 + $0x138] sm:$0xff]
    %v2329 = vld [vmem:[#allocation2 + $0x140] sm:$0xff]
    %v2330 = vld [vmem:[#allocation2 + $0x148] sm:$0xff]
    %v2331 = vld [vmem:[#allocation2 + $0x150] sm:$0xff]
    %v2332 = vld [vmem:[#allocation2 + $0x158] sm:$0xff]
    %v2333 = vld [vmem:[#allocation2 + $0x160] sm:$0xff]
    %v2334 = vld [vmem:[#allocation2 + $0x168] sm:$0xff]
    %v2335 = vld [vmem:[#allocation2 + $0x170] sm:$0xff]
    %v2336 = vld [vmem:[#allocation2 + $0x178] sm:$0xff]
    %v2337 = vld [vmem:[#allocation2 + $0x180] sm:$0xff]
    %v2338 = vld [vmem:[#allocation2 + $0x188] sm:$0xff]
    %v2339 = vld [vmem:[#allocation2 + $0x190] sm:$0xff]
    %v2340 = vld [vmem:[#allocation2 + $0x198] sm:$0xff]
    %v2341 = vld [vmem:[#allocation2 + $0x1a0] sm:$0xff]
    %v2342 = vld [vmem:[#allocation2 + $0x1a8] sm:$0xff]
    %v2343 = vld [vmem:[#allocation2 + $0x1b0] sm:$0xff]
    %v2344 = vld [vmem:[#allocation2 + $0x1b8] sm:$0xff]
    %v2345 = vld [vmem:[#allocation2 + $0x1c0] sm:$0xff]
    %v2346 = vld [vmem:[#allocation2 + $0x1c8] sm:$0xff]
    %v2347 = vld [vmem:[#allocation2 + $0x1d0] sm:$0xff]
    %v2348 = vld [vmem:[#allocation2 + $0x1d8] sm:$0xff]
    %v2349 = vld [vmem:[#allocation2 + $0x1e0] sm:$0xff]
    %v2350 = vld [vmem:[#allocation2 + $0x1e8] sm:$0xff]
    %v2351 = vld [vmem:[#allocation2 + $0x1f0] sm:$0xff]
    %v2352 = vld [vmem:[#allocation2 + $0x1f8] sm:$0xff]
    %v2353 = vpack.c.bf16 %v2290, %v2289
    %v2354 = vpack.c.bf16 %v2292, %v2291
    %v2355 = vpack.c.bf16 %v2294, %v2293
    %v2356 = vpack.c.bf16 %v2296, %v2295
    %v2357 = vpack.c.bf16 %v2298, %v2297
    %v2358 = vpack.c.bf16 %v2300, %v2299
    %v2359 = vpack.c.bf16 %v2302, %v2301
    %v2360 = vpack.c.bf16 %v2304, %v2303
    %v2361 = vpack.c.bf16 %v2306, %v2305
    %v2362 = vpack.c.bf16 %v2308, %v2307
    %v2363 = vpack.c.bf16 %v2310, %v2309
    %v2364 = vpack.c.bf16 %v2312, %v2311
    %v2365 = vpack.c.bf16 %v2314, %v2313
    %v2366 = vpack.c.bf16 %v2316, %v2315
    %v2367 = vpack.c.bf16 %v2318, %v2317
    %v2368 = vpack.c.bf16 %v2320, %v2319
    %v2369 = vpack.c.bf16 %v2322, %v2321
    %v2370 = vpack.c.bf16 %v2324, %v2323
    %v2371 = vpack.c.bf16 %v2326, %v2325
    %v2372 = vpack.c.bf16 %v2328, %v2327
    %v2373 = vpack.c.bf16 %v2330, %v2329
    %v2374 = vpack.c.bf16 %v2332, %v2331
    %v2375 = vpack.c.bf16 %v2334, %v2333
    %v2376 = vpack.c.bf16 %v2336, %v2335
    %v2377 = vpack.c.bf16 %v2338, %v2337
    %v2378 = vpack.c.bf16 %v2340, %v2339
    %v2379 = vpack.c.bf16 %v2342, %v2341
    %v2380 = vpack.c.bf16 %v2344, %v2343
    %v2381 = vpack.c.bf16 %v2346, %v2345
    %v2382 = vpack.c.bf16 %v2348, %v2347
    %v2383 = vpack.c.bf16 %v2350, %v2349
    %v2384 = vpack.c.bf16 %v2352, %v2351
    %v2385 = vld [vmem:[%s1] sm:$0xf]
    %v2386 = vld [vmem:[%s1 + $0x4] sm:$0xf]
    %v2387 = vld [vmem:[%s1 + $0x8] sm:$0xf]
    %v2388 = vld [vmem:[%s1 + $0xc] sm:$0x3]
    %v2393 = vunpack.c.l.b16 %v2385
    %v2394 = vunpack.c.l.b16 %v2386
    %v2395 = vunpack.c.l.b16 %v2387
    %v2396 = vunpack.c.l.b16 %v2388
    %v2397 = vpack.c.b16 %v2394, %v2393
    %v2398 = vpack.c.b16 %v2396, %v2395
    %v2401 = vsel %vm116, %v2353, 0
    %v2404 = vsel %vm116, %v2354, 0
    %v2407 = vsel %vm116, %v2355, 0
    %v2410 = vsel %vm116, %v2356, 0
    %v2413 = vsel %vm116, %v2357, 0
    %v2416 = vsel %vm116, %v2358, 0
    %v2419 = vsel %vm116, %v2359, 0
    %v2422 = vsel %vm116, %v2360, 0
    %v2425 = vsel %vm116, %v2361, 0
    %v2428 = vsel %vm116, %v2362, 0
    %v2431 = vsel %vm116, %v2363, 0
    %v2434 = vsel %vm116, %v2364, 0
    %v2437 = vsel %vm116, %v2365, 0
    %v2440 = vsel %vm116, %v2366, 0
    %v2443 = vsel %vm116, %v2367, 0
    %v2446 = vsel %vm116, %v2368, 0
    %v2449 = vsel %vm116, %v2369, 0
    %v2452 = vsel %vm116, %v2370, 0
    %v2455 = vsel %vm116, %v2371, 0
    %v2458 = vsel %vm116, %v2372, 0
    %v2461 = vsel %vm116, %v2373, 0
    %v2464 = vsel %vm116, %v2374, 0
    %v2467 = vsel %vm116, %v2375, 0
    %v2470 = vsel %vm116, %v2376, 0
    %v2473 = vsel %vm116, %v2377, 0
    %v2476 = vsel %vm116, %v2378, 0
    %v2479 = vsel %vm116, %v2379, 0
    %v2482 = vsel %vm116, %v2380, 0
    %v2485 = vsel %vm116, %v2381, 0
    %v2488 = vsel %vm116, %v2382, 0
    %v2491 = vsel %vm116, %v2383, 0
    %v2494 = vsel %vm116, %v2384, 0
    %vm2496 = vcmask 1044480
    %vm2497 = vcmask 1045504
    %v2498 = vsel %vm2496, 4294967295, 65535
    %v2499 = vsel %vm2497, %v2498, 0
    %v2501 = vand.u32 %v2398, %v2499
    %2503 = vmatprep.subr.bf16.mxu0 0
    %2504 = vmatpush1.bf16.msra.mxu0 0
    %2505 = vmatprep.subr.bf16.mxu0 0
    %2506 = vmatpush1.bf16.msra.mxu0 0
    %2507 = vmatprep.subr.bf16.mxu0 0
    %2508 = vmatpush1.bf16.msra.mxu0 0
    %2509 = vmatprep.subr.bf16.mxu0 0
    %2510 = vmatpush1.bf16.msra.mxu0 0
    %2511 = vmatprep.subr.bf16.mxu0 0
    %2512 = vmatpush1.bf16.msra.mxu0 0
    %2513 = vmatprep.subr.bf16.mxu0 0
    %2514 = vmatpush1.bf16.msra.mxu0 0
    %2515 = vmatprep.subr.bf16.mxu0 0
    %2516 = vmatpush1.bf16.msra.mxu0 %v2501
    %2517 = vmatprep.subr.bf16.mxu0 0
    %2518 = vmatpush1.bf16.msra.mxu0 %v2397
    %2519 = vmatprep.subr.bf16.mxu0 0
    %2520 = vmatpush2.bf16.msra.mxu0 0
    %2521 = vmatprep.subr.bf16.mxu0 0
    %2522 = vmatpush2.bf16.msra.mxu0 0
    %2523 = vmatprep.subr.bf16.mxu0 0
    %2524 = vmatpush2.bf16.msra.mxu0 0
    %2525 = vmatprep.subr.bf16.mxu0 0
    %2526 = vmatpush2.bf16.msra.mxu0 0
    %2527 = vmatprep.subr.bf16.mxu0 0
    %2528 = vmatpush2.bf16.msra.mxu0 0
    %2529 = vmatprep.subr.bf16.mxu0 0
    %2530 = vmatpush2.bf16.msra.mxu0 0
    %2531 = vmatprep.subr.bf16.mxu0 0
    %2532 = vmatpush2.bf16.msra.mxu0 0
    %2533 = vmatprep.subr.bf16.mxu0 0
    %2534 = vmatpush2.bf16.msra.mxu0 0
    %2535 = vmatprep.mubr.bf16.mxu0 0
    %2536 = vmatmul.mubr.bf16.gmra.mxu0 %v2401
    %v2537 = vpop.f32.mrf.mxu0
    %v2538 = vadd.f32 0.0, %v2537
    %v2539 = vpop.f32.mrf.mxu0
    %v2540 = vpop.f32.mrf.mxu0
    %v2541 = vadd.f32 0.0, %v2540
    %v2542 = vpop.f32.mrf.mxu0
    %2543 = vmatprep.mubr.bf16.mxu0 0
    %2544 = vmatmul.mubr.bf16.gmra.mxu0 %v2404
    %v2545 = vpop.f32.mrf.mxu0
    %v2546 = vadd.f32 0.0, %v2545
    %v2547 = vpop.f32.mrf.mxu0
    %v2548 = vpop.f32.mrf.mxu0
    %v2549 = vadd.f32 0.0, %v2548
    %v2550 = vpop.f32.mrf.mxu0
    %2551 = vmatprep.mubr.bf16.mxu0 0
    %2552 = vmatmul.mubr.bf16.gmra.mxu0 %v2407
    %v2553 = vpop.f32.mrf.mxu0
    %v2554 = vadd.f32 0.0, %v2553
    %v2555 = vpop.f32.mrf.mxu0
    %v2556 = vpop.f32.mrf.mxu0
    %v2557 = vadd.f32 0.0, %v2556
    %v2558 = vpop.f32.mrf.mxu0
    %2559 = vmatprep.mubr.bf16.mxu0 0
    %2560 = vmatmul.mubr.bf16.gmra.mxu0 %v2410
    %v2561 = vpop.f32.mrf.mxu0
    %v2562 = vadd.f32 0.0, %v2561
    %v2563 = vpop.f32.mrf.mxu0
    %v2564 = vpop.f32.mrf.mxu0
    %v2565 = vadd.f32 0.0, %v2564
    %v2566 = vpop.f32.mrf.mxu0
    %2567 = vmatprep.mubr.bf16.mxu0 0
    %2568 = vmatmul.mubr.bf16.gmra.mxu0 %v2413
    %v2569 = vpop.f32.mrf.mxu0
    %v2570 = vadd.f32 0.0, %v2569
    %v2571 = vpop.f32.mrf.mxu0
    %v2572 = vpop.f32.mrf.mxu0
    %v2573 = vadd.f32 0.0, %v2572
    %v2574 = vpop.f32.mrf.mxu0
    %2575 = vmatprep.mubr.bf16.mxu0 0
    %2576 = vmatmul.mubr.bf16.gmra.mxu0 %v2416
    %v2577 = vpop.f32.mrf.mxu0
    %v2578 = vadd.f32 0.0, %v2577
    %v2579 = vpop.f32.mrf.mxu0
    %v2580 = vpop.f32.mrf.mxu0
    %v2581 = vadd.f32 0.0, %v2580
    %v2582 = vpop.f32.mrf.mxu0
    %2583 = vmatprep.mubr.bf16.mxu0 0
    %2584 = vmatmul.mubr.bf16.gmra.mxu0 %v2419
    %v2585 = vpop.f32.mrf.mxu0
    %v2586 = vadd.f32 0.0, %v2585
    %v2587 = vpop.f32.mrf.mxu0
    %v2588 = vpop.f32.mrf.mxu0
    %v2589 = vadd.f32 0.0, %v2588
    %v2590 = vpop.f32.mrf.mxu0
    %2591 = vmatprep.mubr.bf16.mxu0 0
    %2592 = vmatmul.mubr.bf16.gmra.mxu0 %v2422
    %v2593 = vpop.f32.mrf.mxu0
    %v2594 = vadd.f32 0.0, %v2593
    %v2595 = vpop.f32.mrf.mxu0
    %v2596 = vpop.f32.mrf.mxu0
    %v2597 = vadd.f32 0.0, %v2596
    %v2598 = vpop.f32.mrf.mxu0
    %2599 = vmatprep.mubr.bf16.mxu0 0
    %2600 = vmatmul.mubr.bf16.gmra.mxu0 %v2425
    %v2601 = vpop.f32.mrf.mxu0
    %v2602 = vadd.f32 0.0, %v2601
    %v2603 = vpop.f32.mrf.mxu0
    %v2604 = vpop.f32.mrf.mxu0
    %v2605 = vadd.f32 0.0, %v2604
    %v2606 = vpop.f32.mrf.mxu0
    %2607 = vmatprep.mubr.bf16.mxu0 0
    %2608 = vmatmul.mubr.bf16.gmra.mxu0 %v2428
    %v2609 = vpop.f32.mrf.mxu0
    %v2610 = vadd.f32 0.0, %v2609
    %v2611 = vpop.f32.mrf.mxu0
    %v2612 = vpop.f32.mrf.mxu0
    %v2613 = vadd.f32 0.0, %v2612
    %v2614 = vpop.f32.mrf.mxu0
    %2615 = vmatprep.mubr.bf16.mxu0 0
    %2616 = vmatmul.mubr.bf16.gmra.mxu0 %v2431
    %v2617 = vpop.f32.mrf.mxu0
    %v2618 = vadd.f32 0.0, %v2617
    %v2619 = vpop.f32.mrf.mxu0
    %v2620 = vpop.f32.mrf.mxu0
    %v2621 = vadd.f32 0.0, %v2620
    %v2622 = vpop.f32.mrf.mxu0
    %2623 = vmatprep.mubr.bf16.mxu0 0
    %2624 = vmatmul.mubr.bf16.gmra.mxu0 %v2434
    %v2625 = vpop.f32.mrf.mxu0
    %v2626 = vadd.f32 0.0, %v2625
    %v2627 = vpop.f32.mrf.mxu0
    %v2628 = vpop.f32.mrf.mxu0
    %v2629 = vadd.f32 0.0, %v2628
    %v2630 = vpop.f32.mrf.mxu0
    %2631 = vmatprep.mubr.bf16.mxu0 0
    %2632 = vmatmul.mubr.bf16.gmra.mxu0 %v2437
    %v2633 = vpop.f32.mrf.mxu0
    %v2634 = vadd.f32 0.0, %v2633
    %v2635 = vpop.f32.mrf.mxu0
    %v2636 = vpop.f32.mrf.mxu0
    %v2637 = vadd.f32 0.0, %v2636
    %v2638 = vpop.f32.mrf.mxu0
    %2639 = vmatprep.mubr.bf16.mxu0 0
    %2640 = vmatmul.mubr.bf16.gmra.mxu0 %v2440
    %v2641 = vpop.f32.mrf.mxu0
    %v2642 = vadd.f32 0.0, %v2641
    %v2643 = vpop.f32.mrf.mxu0
    %v2644 = vpop.f32.mrf.mxu0
    %v2645 = vadd.f32 0.0, %v2644
    %v2646 = vpop.f32.mrf.mxu0
    %2647 = vmatprep.mubr.bf16.mxu0 0
    %2648 = vmatmul.mubr.bf16.gmra.mxu0 %v2443
    %v2649 = vpop.f32.mrf.mxu0
    %v2650 = vadd.f32 0.0, %v2649
    %v2651 = vpop.f32.mrf.mxu0
    %v2652 = vpop.f32.mrf.mxu0
    %v2653 = vadd.f32 0.0, %v2652
    %v2654 = vpop.f32.mrf.mxu0
    %2655 = vmatprep.mubr.bf16.mxu0 0
    %2656 = vmatmul.mubr.bf16.gmra.mxu0 %v2446
    %v2657 = vpop.f32.mrf.mxu0
    %v2658 = vadd.f32 0.0, %v2657
    %v2659 = vpop.f32.mrf.mxu0
    %v2660 = vpop.f32.mrf.mxu0
    %v2661 = vadd.f32 0.0, %v2660
    %v2662 = vpop.f32.mrf.mxu0
    %2663 = vmatprep.mubr.bf16.mxu0 0
    %2664 = vmatmul.mubr.bf16.gmra.mxu0 %v2449
    %v2665 = vpop.f32.mrf.mxu0
    %v2666 = vadd.f32 0.0, %v2665
    %v2667 = vpop.f32.mrf.mxu0
    %v2668 = vpop.f32.mrf.mxu0
    %v2669 = vadd.f32 0.0, %v2668
    %v2670 = vpop.f32.mrf.mxu0
    %2671 = vmatprep.mubr.bf16.mxu0 0
    %2672 = vmatmul.mubr.bf16.gmra.mxu0 %v2452
    %v2673 = vpop.f32.mrf.mxu0
    %v2674 = vadd.f32 0.0, %v2673
    %v2675 = vpop.f32.mrf.mxu0
    %v2676 = vpop.f32.mrf.mxu0
    %v2677 = vadd.f32 0.0, %v2676
    %v2678 = vpop.f32.mrf.mxu0
    %2679 = vmatprep.mubr.bf16.mxu0 0
    %2680 = vmatmul.mubr.bf16.gmra.mxu0 %v2455
    %v2681 = vpop.f32.mrf.mxu0
    %v2682 = vadd.f32 0.0, %v2681
    %v2683 = vpop.f32.mrf.mxu0
    %v2684 = vpop.f32.mrf.mxu0
    %v2685 = vadd.f32 0.0, %v2684
    %v2686 = vpop.f32.mrf.mxu0
    %2687 = vmatprep.mubr.bf16.mxu0 0
    %2688 = vmatmul.mubr.bf16.gmra.mxu0 %v2458
    %v2689 = vpop.f32.mrf.mxu0
    %v2690 = vadd.f32 0.0, %v2689
    %v2691 = vpop.f32.mrf.mxu0
    %v2692 = vpop.f32.mrf.mxu0
    %v2693 = vadd.f32 0.0, %v2692
    %v2694 = vpop.f32.mrf.mxu0
    %2695 = vmatprep.mubr.bf16.mxu0 0
    %2696 = vmatmul.mubr.bf16.gmra.mxu0 %v2461
    %v2697 = vpop.f32.mrf.mxu0
    %v2698 = vadd.f32 0.0, %v2697
    %v2699 = vpop.f32.mrf.mxu0
    %v2700 = vpop.f32.mrf.mxu0
    %v2701 = vadd.f32 0.0, %v2700
    %v2702 = vpop.f32.mrf.mxu0
    %2703 = vmatprep.mubr.bf16.mxu0 0
    %2704 = vmatmul.mubr.bf16.gmra.mxu0 %v2464
    %v2705 = vpop.f32.mrf.mxu0
    %v2706 = vadd.f32 0.0, %v2705
    %v2707 = vpop.f32.mrf.mxu0
    %v2708 = vpop.f32.mrf.mxu0
    %v2709 = vadd.f32 0.0, %v2708
    %v2710 = vpop.f32.mrf.mxu0
    %2711 = vmatprep.mubr.bf16.mxu0 0
    %2712 = vmatmul.mubr.bf16.gmra.mxu0 %v2467
    %v2713 = vpop.f32.mrf.mxu0
    %v2714 = vadd.f32 0.0, %v2713
    %v2715 = vpop.f32.mrf.mxu0
    %v2716 = vpop.f32.mrf.mxu0
    %v2717 = vadd.f32 0.0, %v2716
    %v2718 = vpop.f32.mrf.mxu0
    %2719 = vmatprep.mubr.bf16.mxu0 0
    %2720 = vmatmul.mubr.bf16.gmra.mxu0 %v2470
    %v2721 = vpop.f32.mrf.mxu0
    %v2722 = vadd.f32 0.0, %v2721
    %v2723 = vpop.f32.mrf.mxu0
    %v2724 = vpop.f32.mrf.mxu0
    %v2725 = vadd.f32 0.0, %v2724
    %v2726 = vpop.f32.mrf.mxu0
    %2727 = vmatprep.mubr.bf16.mxu0 0
    %2728 = vmatmul.mubr.bf16.gmra.mxu0 %v2473
    %v2729 = vpop.f32.mrf.mxu0
    %v2730 = vadd.f32 0.0, %v2729
    %v2731 = vpop.f32.mrf.mxu0
    %v2732 = vpop.f32.mrf.mxu0
    %v2733 = vadd.f32 0.0, %v2732
    %v2734 = vpop.f32.mrf.mxu0
    %2735 = vmatprep.mubr.bf16.mxu0 0
    %2736 = vmatmul.mubr.bf16.gmra.mxu0 %v2476
    %v2737 = vpop.f32.mrf.mxu0
    %v2738 = vadd.f32 0.0, %v2737
    %v2739 = vpop.f32.mrf.mxu0
    %v2740 = vpop.f32.mrf.mxu0
    %v2741 = vadd.f32 0.0, %v2740
    %v2742 = vpop.f32.mrf.mxu0
    %2743 = vmatprep.mubr.bf16.mxu0 0
    %2744 = vmatmul.mubr.bf16.gmra.mxu0 %v2479
    %v2745 = vpop.f32.mrf.mxu0
    %v2746 = vadd.f32 0.0, %v2745
    %v2747 = vpop.f32.mrf.mxu0
    %v2748 = vpop.f32.mrf.mxu0
    %v2749 = vadd.f32 0.0, %v2748
    %v2750 = vpop.f32.mrf.mxu0
    %2751 = vmatprep.mubr.bf16.mxu0 0
    %2752 = vmatmul.mubr.bf16.gmra.mxu0 %v2482
    %v2753 = vpop.f32.mrf.mxu0
    %v2754 = vadd.f32 0.0, %v2753
    %v2755 = vpop.f32.mrf.mxu0
    %v2756 = vpop.f32.mrf.mxu0
    %v2757 = vadd.f32 0.0, %v2756
    %v2758 = vpop.f32.mrf.mxu0
    %2759 = vmatprep.mubr.bf16.mxu0 0
    %2760 = vmatmul.mubr.bf16.gmra.mxu0 %v2485
    %v2761 = vpop.f32.mrf.mxu0
    %v2762 = vadd.f32 0.0, %v2761
    %v2763 = vpop.f32.mrf.mxu0
    %v2764 = vpop.f32.mrf.mxu0
    %v2765 = vadd.f32 0.0, %v2764
    %v2766 = vpop.f32.mrf.mxu0
    %2767 = vmatprep.mubr.bf16.mxu0 0
    %2768 = vmatmul.mubr.bf16.gmra.mxu0 %v2488
    %v2769 = vpop.f32.mrf.mxu0
    %v2770 = vadd.f32 0.0, %v2769
    %v2771 = vpop.f32.mrf.mxu0
    %v2772 = vpop.f32.mrf.mxu0
    %v2773 = vadd.f32 0.0, %v2772
    %v2774 = vpop.f32.mrf.mxu0
    %2775 = vmatprep.mubr.bf16.mxu0 0
    %2776 = vmatmul.mubr.bf16.gmra.mxu0 %v2491
    %v2777 = vpop.f32.mrf.mxu0
    %v2778 = vadd.f32 0.0, %v2777
    %v2779 = vpop.f32.mrf.mxu0
    %v2780 = vpop.f32.mrf.mxu0
    %v2781 = vadd.f32 0.0, %v2780
    %v2782 = vpop.f32.mrf.mxu0
    %2783 = vmatprep.mubr.bf16.mxu0 0
    %2784 = vmatmul.mubr.bf16.gmra.mxu0 %v2494
    %v2785 = vpop.f32.mrf.mxu0
    %v2786 = vadd.f32 0.0, %v2785
    %v2787 = vpop.f32.mrf.mxu0
    %v2788 = vpop.f32.mrf.mxu0
    %v2789 = vadd.f32 0.0, %v2788
    %v2790 = vpop.f32.mrf.mxu0
    %2791 = vdwg.mxu0
    %vm2792 = vcmask 261120
    %v2793 = vsel %vm2792, %v2538, 0.0
    %v2794 = vsel %vm2792, %v2541, 0.0
    %v2795 = vadd.f32 %v2793, %v2794
    %v2796 = vsel %vm2792, %v2546, 0.0
    %v2797 = vadd.f32 %v2795, %v2796
    %v2798 = vsel %vm2792, %v2549, 0.0
    %v2799 = vadd.f32 %v2797, %v2798
    %v2800 = vsel %vm2792, %v2554, 0.0
    %v2801 = vadd.f32 %v2799, %v2800
    %v2802 = vsel %vm2792, %v2557, 0.0
    %v2803 = vadd.f32 %v2801, %v2802
    %v2804 = vsel %vm2792, %v2562, 0.0
    %v2805 = vadd.f32 %v2803, %v2804
    %v2806 = vsel %vm2792, %v2565, 0.0
    %v2807 = vadd.f32 %v2805, %v2806
    %v2808 = vsel %vm2792, %v2570, 0.0
    %v2809 = vadd.f32 %v2807, %v2808
    %v2810 = vsel %vm2792, %v2573, 0.0
    %v2811 = vadd.f32 %v2809, %v2810
    %v2812 = vsel %vm2792, %v2578, 0.0
    %v2813 = vadd.f32 %v2811, %v2812
    %v2814 = vsel %vm2792, %v2581, 0.0
    %v2815 = vadd.f32 %v2813, %v2814
    %v2816 = vsel %vm2792, %v2586, 0.0
    %v2817 = vadd.f32 %v2815, %v2816
    %v2818 = vsel %vm2792, %v2589, 0.0
    %v2819 = vadd.f32 %v2817, %v2818
    %v2820 = vsel %vm2792, %v2594, 0.0
    %v2821 = vadd.f32 %v2819, %v2820
    %v2822 = vsel %vm2792, %v2597, 0.0
    %v2823 = vadd.f32 %v2821, %v2822
    %v2824 = vsel %vm2792, %v2602, 0.0
    %v2825 = vadd.f32 %v2823, %v2824
    %v2826 = vsel %vm2792, %v2605, 0.0
    %v2827 = vadd.f32 %v2825, %v2826
    %v2828 = vsel %vm2792, %v2610, 0.0
    %v2829 = vadd.f32 %v2827, %v2828
    %v2830 = vsel %vm2792, %v2613, 0.0
    %v2831 = vadd.f32 %v2829, %v2830
    %v2832 = vsel %vm2792, %v2618, 0.0
    %v2833 = vadd.f32 %v2831, %v2832
    %v2834 = vsel %vm2792, %v2621, 0.0
    %v2835 = vadd.f32 %v2833, %v2834
    %v2836 = vsel %vm2792, %v2626, 0.0
    %v2837 = vadd.f32 %v2835, %v2836
    %v2838 = vsel %vm2792, %v2629, 0.0
    %v2839 = vadd.f32 %v2837, %v2838
    %v2840 = vsel %vm2792, %v2634, 0.0
    %v2841 = vadd.f32 %v2839, %v2840
    %v2842 = vsel %vm2792, %v2637, 0.0
    %v2843 = vadd.f32 %v2841, %v2842
    %v2844 = vsel %vm2792, %v2642, 0.0
    %v2845 = vadd.f32 %v2843, %v2844
    %v2846 = vsel %vm2792, %v2645, 0.0
    %v2847 = vadd.f32 %v2845, %v2846
    %v2848 = vsel %vm2792, %v2650, 0.0
    %v2849 = vadd.f32 %v2847, %v2848
    %v2850 = vsel %vm2792, %v2653, 0.0
    %v2851 = vadd.f32 %v2849, %v2850
    %v2852 = vsel %vm2792, %v2658, 0.0
    %v2853 = vadd.f32 %v2851, %v2852
    %v2854 = vsel %vm2792, %v2661, 0.0
    %v2855 = vadd.f32 %v2853, %v2854
    %v2856 = vsel %vm2792, %v2666, 0.0
    %v2857 = vadd.f32 %v2855, %v2856
    %v2858 = vsel %vm2792, %v2669, 0.0
    %v2859 = vadd.f32 %v2857, %v2858
    %v2860 = vsel %vm2792, %v2674, 0.0
    %v2861 = vadd.f32 %v2859, %v2860
    %v2862 = vsel %vm2792, %v2677, 0.0
    %v2863 = vadd.f32 %v2861, %v2862
    %v2864 = vsel %vm2792, %v2682, 0.0
    %v2865 = vadd.f32 %v2863, %v2864
    %v2866 = vsel %vm2792, %v2685, 0.0
    %v2867 = vadd.f32 %v2865, %v2866
    %v2868 = vsel %vm2792, %v2690, 0.0
    %v2869 = vadd.f32 %v2867, %v2868
    %v2870 = vsel %vm2792, %v2693, 0.0
    %v2871 = vadd.f32 %v2869, %v2870
    %v2872 = vsel %vm2792, %v2698, 0.0
    %v2873 = vadd.f32 %v2871, %v2872
    %v2874 = vsel %vm2792, %v2701, 0.0
    %v2875 = vadd.f32 %v2873, %v2874
    %v2876 = vsel %vm2792, %v2706, 0.0
    %v2877 = vadd.f32 %v2875, %v2876
    %v2878 = vsel %vm2792, %v2709, 0.0
    %v2879 = vadd.f32 %v2877, %v2878
    %v2880 = vsel %vm2792, %v2714, 0.0
    %v2881 = vadd.f32 %v2879, %v2880
    %v2882 = vsel %vm2792, %v2717, 0.0
    %v2883 = vadd.f32 %v2881, %v2882
    %v2884 = vsel %vm2792, %v2722, 0.0
    %v2885 = vadd.f32 %v2883, %v2884
    %v2886 = vsel %vm2792, %v2725, 0.0
    %v2887 = vadd.f32 %v2885, %v2886
    %v2888 = vsel %vm2792, %v2730, 0.0
    %v2889 = vadd.f32 %v2887, %v2888
    %v2890 = vsel %vm2792, %v2733, 0.0
    %v2891 = vadd.f32 %v2889, %v2890
    %v2892 = vsel %vm2792, %v2738, 0.0
    %v2893 = vadd.f32 %v2891, %v2892
    %v2894 = vsel %vm2792, %v2741, 0.0
    %v2895 = vadd.f32 %v2893, %v2894
    %v2896 = vsel %vm2792, %v2746, 0.0
    %v2897 = vadd.f32 %v2895, %v2896
    %v2898 = vsel %vm2792, %v2749, 0.0
    %v2899 = vadd.f32 %v2897, %v2898
    %v2900 = vsel %vm2792, %v2754, 0.0
    %v2901 = vadd.f32 %v2899, %v2900
    %v2902 = vsel %vm2792, %v2757, 0.0
    %v2903 = vadd.f32 %v2901, %v2902
    %v2904 = vsel %vm2792, %v2762, 0.0
    %v2905 = vadd.f32 %v2903, %v2904
    %v2906 = vsel %vm2792, %v2765, 0.0
    %v2907 = vadd.f32 %v2905, %v2906
    %v2908 = vsel %vm2792, %v2770, 0.0
    %v2909 = vadd.f32 %v2907, %v2908
    %v2910 = vsel %vm2792, %v2773, 0.0
    %v2911 = vadd.f32 %v2909, %v2910
    %v2912 = vsel %vm2792, %v2778, 0.0
    %v2913 = vadd.f32 %v2911, %v2912
    %v2914 = vsel %vm2792, %v2781, 0.0
    %v2915 = vadd.f32 %v2913, %v2914
    %v2916 = vsel %vm2792, %v2786, 0.0
    %v2917 = vadd.f32 %v2915, %v2916
    %v2918 = vsel %vm2792, %v2789, 0.0
    %v2919 = vadd.f32 %v2917, %v2918
    %v2920 = vrot.slane %v2919, 4
    %v2921 = vadd.f32 %v2919, %v2920
    %v2922 = vrot.slane %v2921, 2
    %v2923 = vadd.f32 %v2921, %v2922
    %v2924 = vrot.slane %v2923, 1
    %v2925 = vadd.f32 %v2923, %v2924
    %v2926 = vrcp.pop 512.0
    %v2927 = vmul.f32 %v2925, %v2926
    %v2928 = vmul.f32 %v2538, %v2538
    %v2929 = vmul.f32 %v2541, %v2541
    %v2930 = vmul.f32 %v2546, %v2546
    %v2931 = vmul.f32 %v2549, %v2549
    %v2932 = vmul.f32 %v2554, %v2554
    %v2933 = vmul.f32 %v2557, %v2557
    %v2934 = vmul.f32 %v2562, %v2562
    %v2935 = vmul.f32 %v2565, %v2565
    %v2936 = vmul.f32 %v2570, %v2570
    %v2937 = vmul.f32 %v2573, %v2573
    %v2938 = vmul.f32 %v2578, %v2578
    %v2939 = vmul.f32 %v2581, %v2581
    %v2940 = vmul.f32 %v2586, %v2586
    %v2941 = vmul.f32 %v2589, %v2589
    %v2942 = vmul.f32 %v2594, %v2594
    %v2943 = vmul.f32 %v2597, %v2597
    %v2944 = vmul.f32 %v2602, %v2602
    %v2945 = vmul.f32 %v2605, %v2605
    %v2946 = vmul.f32 %v2610, %v2610
    %v2947 = vmul.f32 %v2613, %v2613
    %v2948 = vmul.f32 %v2618, %v2618
    %v2949 = vmul.f32 %v2621, %v2621
    %v2950 = vmul.f32 %v2626, %v2626
    %v2951 = vmul.f32 %v2629, %v2629
    %v2952 = vmul.f32 %v2634, %v2634
    %v2953 = vmul.f32 %v2637, %v2637
    %v2954 = vmul.f32 %v2642, %v2642
    %v2955 = vmul.f32 %v2645, %v2645
    %v2956 = vmul.f32 %v2650, %v2650
    %v2957 = vmul.f32 %v2653, %v2653
    %v2958 = vmul.f32 %v2658, %v2658
    %v2959 = vmul.f32 %v2661, %v2661
    %v2960 = vmul.f32 %v2666, %v2666
    %v2961 = vmul.f32 %v2669, %v2669
    %v2962 = vmul.f32 %v2674, %v2674
    %v2963 = vmul.f32 %v2677, %v2677
    %v2964 = vmul.f32 %v2682, %v2682
    %v2965 = vmul.f32 %v2685, %v2685
    %v2966 = vmul.f32 %v2690, %v2690
    %v2967 = vmul.f32 %v2693, %v2693
    %v2968 = vmul.f32 %v2698, %v2698
    %v2969 = vmul.f32 %v2701, %v2701
    %v2970 = vmul.f32 %v2706, %v2706
    %v2971 = vmul.f32 %v2709, %v2709
    %v2972 = vmul.f32 %v2714, %v2714
    %v2973 = vmul.f32 %v2717, %v2717
    %v2974 = vmul.f32 %v2722, %v2722
    %v2975 = vmul.f32 %v2725, %v2725
    %v2976 = vmul.f32 %v2730, %v2730
    %v2977 = vmul.f32 %v2733, %v2733
    %v2978 = vmul.f32 %v2738, %v2738
    %v2979 = vmul.f32 %v2741, %v2741
    %v2980 = vmul.f32 %v2746, %v2746
    %v2981 = vmul.f32 %v2749, %v2749
    %v2982 = vmul.f32 %v2754, %v2754
    %v2983 = vmul.f32 %v2757, %v2757
    %v2984 = vmul.f32 %v2762, %v2762
    %v2985 = vmul.f32 %v2765, %v2765
    %v2986 = vmul.f32 %v2770, %v2770
    %v2987 = vmul.f32 %v2773, %v2773
    %v2988 = vmul.f32 %v2778, %v2778
    %v2989 = vmul.f32 %v2781, %v2781
    %v2990 = vmul.f32 %v2786, %v2786
    %v2991 = vmul.f32 %v2789, %v2789
    %v2992 = vsel %vm2792, %v2928, 0.0
    %v2993 = vsel %vm2792, %v2929, 0.0
    %v2994 = vadd.f32 %v2992, %v2993
    %v2995 = vsel %vm2792, %v2930, 0.0
    %v2996 = vadd.f32 %v2994, %v2995
    %v2997 = vsel %vm2792, %v2931, 0.0
    %v2998 = vadd.f32 %v2996, %v2997
    %v2999 = vsel %vm2792, %v2932, 0.0
    %v3000 = vadd.f32 %v2998, %v2999
    %v3001 = vsel %vm2792, %v2933, 0.0
    %v3002 = vadd.f32 %v3000, %v3001
    %v3003 = vsel %vm2792, %v2934, 0.0
    %v3004 = vadd.f32 %v3002, %v3003
    %v3005 = vsel %vm2792, %v2935, 0.0
    %v3006 = vadd.f32 %v3004, %v3005
    %v3007 = vsel %vm2792, %v2936, 0.0
    %v3008 = vadd.f32 %v3006, %v3007
    %v3009 = vsel %vm2792, %v2937, 0.0
    %v3010 = vadd.f32 %v3008, %v3009
    %v3011 = vsel %vm2792, %v2938, 0.0
    %v3012 = vadd.f32 %v3010, %v3011
    %v3013 = vsel %vm2792, %v2939, 0.0
    %v3014 = vadd.f32 %v3012, %v3013
    %v3015 = vsel %vm2792, %v2940, 0.0
    %v3016 = vadd.f32 %v3014, %v3015
    %v3017 = vsel %vm2792, %v2941, 0.0
    %v3018 = vadd.f32 %v3016, %v3017
    %v3019 = vsel %vm2792, %v2942, 0.0
    %v3020 = vadd.f32 %v3018, %v3019
    %v3021 = vsel %vm2792, %v2943, 0.0
    %v3022 = vadd.f32 %v3020, %v3021
    %v3023 = vsel %vm2792, %v2944, 0.0
    %v3024 = vadd.f32 %v3022, %v3023
    %v3025 = vsel %vm2792, %v2945, 0.0
    %v3026 = vadd.f32 %v3024, %v3025
    %v3027 = vsel %vm2792, %v2946, 0.0
    %v3028 = vadd.f32 %v3026, %v3027
    %v3029 = vsel %vm2792, %v2947, 0.0
    %v3030 = vadd.f32 %v3028, %v3029
    %v3031 = vsel %vm2792, %v2948, 0.0
    %v3032 = vadd.f32 %v3030, %v3031
    %v3033 = vsel %vm2792, %v2949, 0.0
    %v3034 = vadd.f32 %v3032, %v3033
    %v3035 = vsel %vm2792, %v2950, 0.0
    %v3036 = vadd.f32 %v3034, %v3035
    %v3037 = vsel %vm2792, %v2951, 0.0
    %v3038 = vadd.f32 %v3036, %v3037
    %v3039 = vsel %vm2792, %v2952, 0.0
    %v3040 = vadd.f32 %v3038, %v3039
    %v3041 = vsel %vm2792, %v2953, 0.0
    %v3042 = vadd.f32 %v3040, %v3041
    %v3043 = vsel %vm2792, %v2954, 0.0
    %v3044 = vadd.f32 %v3042, %v3043
    %v3045 = vsel %vm2792, %v2955, 0.0
    %v3046 = vadd.f32 %v3044, %v3045
    %v3047 = vsel %vm2792, %v2956, 0.0
    %v3048 = vadd.f32 %v3046, %v3047
    %v3049 = vsel %vm2792, %v2957, 0.0
    %v3050 = vadd.f32 %v3048, %v3049
    %v3051 = vsel %vm2792, %v2958, 0.0
    %v3052 = vadd.f32 %v3050, %v3051
    %v3053 = vsel %vm2792, %v2959, 0.0
    %v3054 = vadd.f32 %v3052, %v3053
    %v3055 = vsel %vm2792, %v2960, 0.0
    %v3056 = vadd.f32 %v3054, %v3055
    %v3057 = vsel %vm2792, %v2961, 0.0
    %v3058 = vadd.f32 %v3056, %v3057
    %v3059 = vsel %vm2792, %v2962, 0.0
    %v3060 = vadd.f32 %v3058, %v3059
    %v3061 = vsel %vm2792, %v2963, 0.0
    %v3062 = vadd.f32 %v3060, %v3061
    %v3063 = vsel %vm2792, %v2964, 0.0
    %v3064 = vadd.f32 %v3062, %v3063
    %v3065 = vsel %vm2792, %v2965, 0.0
    %v3066 = vadd.f32 %v3064, %v3065
    %v3067 = vsel %vm2792, %v2966, 0.0
    %v3068 = vadd.f32 %v3066, %v3067
    %v3069 = vsel %vm2792, %v2967, 0.0
    %v3070 = vadd.f32 %v3068, %v3069
    %v3071 = vsel %vm2792, %v2968, 0.0
    %v3072 = vadd.f32 %v3070, %v3071
    %v3073 = vsel %vm2792, %v2969, 0.0
    %v3074 = vadd.f32 %v3072, %v3073
    %v3075 = vsel %vm2792, %v2970, 0.0
    %v3076 = vadd.f32 %v3074, %v3075
    %v3077 = vsel %vm2792, %v2971, 0.0
    %v3078 = vadd.f32 %v3076, %v3077
    %v3079 = vsel %vm2792, %v2972, 0.0
    %v3080 = vadd.f32 %v3078, %v3079
    %v3081 = vsel %vm2792, %v2973, 0.0
    %v3082 = vadd.f32 %v3080, %v3081
    %v3083 = vsel %vm2792, %v2974, 0.0
    %v3084 = vadd.f32 %v3082, %v3083
    %v3085 = vsel %vm2792, %v2975, 0.0
    %v3086 = vadd.f32 %v3084, %v3085
    %v3087 = vsel %vm2792, %v2976, 0.0
    %v3088 = vadd.f32 %v3086, %v3087
    %v3089 = vsel %vm2792, %v2977, 0.0
    %v3090 = vadd.f32 %v3088, %v3089
    %v3091 = vsel %vm2792, %v2978, 0.0
    %v3092 = vadd.f32 %v3090, %v3091
    %v3093 = vsel %vm2792, %v2979, 0.0
    %v3094 = vadd.f32 %v3092, %v3093
    %v3095 = vsel %vm2792, %v2980, 0.0
    %v3096 = vadd.f32 %v3094, %v3095
    %v3097 = vsel %vm2792, %v2981, 0.0
    %v3098 = vadd.f32 %v3096, %v3097
    %v3099 = vsel %vm2792, %v2982, 0.0
    %v3100 = vadd.f32 %v3098, %v3099
    %v3101 = vsel %vm2792, %v2983, 0.0
    %v3102 = vadd.f32 %v3100, %v3101
    %v3103 = vsel %vm2792, %v2984, 0.0
    %v3104 = vadd.f32 %v3102, %v3103
    %v3105 = vsel %vm2792, %v2985, 0.0
    %v3106 = vadd.f32 %v3104, %v3105
    %v3107 = vsel %vm2792, %v2986, 0.0
    %v3108 = vadd.f32 %v3106, %v3107
    %v3109 = vsel %vm2792, %v2987, 0.0
    %v3110 = vadd.f32 %v3108, %v3109
    %v3111 = vsel %vm2792, %v2988, 0.0
    %v3112 = vadd.f32 %v3110, %v3111
    %v3113 = vsel %vm2792, %v2989, 0.0
    %v3114 = vadd.f32 %v3112, %v3113
    %v3115 = vsel %vm2792, %v2990, 0.0
    %v3116 = vadd.f32 %v3114, %v3115
    %v3117 = vsel %vm2792, %v2991, 0.0
    %v3118 = vadd.f32 %v3116, %v3117
    %v3119 = vrot.slane %v3118, 4
    %v3120 = vadd.f32 %v3118, %v3119
    %v3121 = vrot.slane %v3120, 2
    %v3122 = vadd.f32 %v3120, %v3121
    %v3123 = vrot.slane %v3122, 1
    %v3124 = vadd.f32 %v3122, %v3123
    %v3125 = vmul.f32 %v3124, %v2926
    %v3126 = vmul.f32 %v2927, %v2927
    %v3127 = vsub.f32 %v3125, %v3126
    %v3128 = vld [vmem:[%s2] sm:$0x1]
    %v3129 = vadd.f32 %v3127, 1e-05
    %v3130 = vrsqrt.pop %v3129
    %v3131 = vmul.f32 %v3128, %v3130
    %v3132 = vld [vmem:[%s3] sm:$0x1]
    %v3133 = vmul.f32 %v2927, %v3131
    %v3134 = vsub.f32 %v3132, %v3133
    %v3136 = vlaneseq
    %v3137 = vshrl.u32 %v3136, 7
    %v3138 = vsub.s32 0, %v3137
    %v3139 = vrot.slane %v3131, %v3138
    %v3141 = vmul.f32 %v2538, %v3139
    %v3142 = vmul.f32 %v2541, %v3139
    %v3143 = vmul.f32 %v2546, %v3139
    %v3144 = vmul.f32 %v2549, %v3139
    %v3145 = vmul.f32 %v2554, %v3139
    %v3146 = vmul.f32 %v2557, %v3139
    %v3147 = vmul.f32 %v2562, %v3139
    %v3148 = vmul.f32 %v2565, %v3139
    %v3149 = vmul.f32 %v2570, %v3139
    %v3150 = vmul.f32 %v2573, %v3139
    %v3151 = vmul.f32 %v2578, %v3139
    %v3152 = vmul.f32 %v2581, %v3139
    %v3153 = vmul.f32 %v2586, %v3139
    %v3154 = vmul.f32 %v2589, %v3139
    %v3155 = vmul.f32 %v2594, %v3139
    %v3156 = vmul.f32 %v2597, %v3139
    %v3157 = vmul.f32 %v2602, %v3139
    %v3158 = vmul.f32 %v2605, %v3139
    %v3159 = vmul.f32 %v2610, %v3139
    %v3160 = vmul.f32 %v2613, %v3139
    %v3161 = vmul.f32 %v2618, %v3139
    %v3162 = vmul.f32 %v2621, %v3139
    %v3163 = vmul.f32 %v2626, %v3139
    %v3164 = vmul.f32 %v2629, %v3139
    %v3165 = vmul.f32 %v2634, %v3139
    %v3166 = vmul.f32 %v2637, %v3139
    %v3167 = vmul.f32 %v2642, %v3139
    %v3168 = vmul.f32 %v2645, %v3139
    %v3169 = vmul.f32 %v2650, %v3139
    %v3170 = vmul.f32 %v2653, %v3139
    %v3171 = vmul.f32 %v2658, %v3139
    %v3172 = vmul.f32 %v2661, %v3139
    %v3173 = vmul.f32 %v2666, %v3139
    %v3174 = vmul.f32 %v2669, %v3139
    %v3175 = vmul.f32 %v2674, %v3139
    %v3176 = vmul.f32 %v2677, %v3139
    %v3177 = vmul.f32 %v2682, %v3139
    %v3178 = vmul.f32 %v2685, %v3139
    %v3179 = vmul.f32 %v2690, %v3139
    %v3180 = vmul.f32 %v2693, %v3139
    %v3181 = vmul.f32 %v2698, %v3139
    %v3182 = vmul.f32 %v2701, %v3139
    %v3183 = vmul.f32 %v2706, %v3139
    %v3184 = vmul.f32 %v2709, %v3139
    %v3185 = vmul.f32 %v2714, %v3139
    %v3186 = vmul.f32 %v2717, %v3139
    %v3187 = vmul.f32 %v2722, %v3139
    %v3188 = vmul.f32 %v2725, %v3139
    %v3189 = vmul.f32 %v2730, %v3139
    %v3190 = vmul.f32 %v2733, %v3139
    %v3191 = vmul.f32 %v2738, %v3139
    %v3192 = vmul.f32 %v2741, %v3139
    %v3193 = vmul.f32 %v2746, %v3139
    %v3194 = vmul.f32 %v2749, %v3139
    %v3195 = vmul.f32 %v2754, %v3139
    %v3196 = vmul.f32 %v2757, %v3139
    %v3197 = vmul.f32 %v2762, %v3139
    %v3198 = vmul.f32 %v2765, %v3139
    %v3199 = vmul.f32 %v2770, %v3139
    %v3200 = vmul.f32 %v2773, %v3139
    %v3201 = vmul.f32 %v2778, %v3139
    %v3202 = vmul.f32 %v2781, %v3139
    %v3203 = vmul.f32 %v2786, %v3139
    %v3204 = vmul.f32 %v2789, %v3139
    %v3206 = vlaneseq
    %v3207 = vshrl.u32 %v3206, 7
    %v3208 = vsub.s32 0, %v3207
    %v3209 = vrot.slane %v3134, %v3208
    %v3211 = vadd.f32 %v3141, %v3209
    %v3212 = vadd.f32 %v3142, %v3209
    %v3213 = vadd.f32 %v3143, %v3209
    %v3214 = vadd.f32 %v3144, %v3209
    %v3215 = vadd.f32 %v3145, %v3209
    %v3216 = vadd.f32 %v3146, %v3209
    %v3217 = vadd.f32 %v3147, %v3209
    %v3218 = vadd.f32 %v3148, %v3209
    %v3219 = vadd.f32 %v3149, %v3209
    %v3220 = vadd.f32 %v3150, %v3209
    %v3221 = vadd.f32 %v3151, %v3209
    %v3222 = vadd.f32 %v3152, %v3209
    %v3223 = vadd.f32 %v3153, %v3209
    %v3224 = vadd.f32 %v3154, %v3209
    %v3225 = vadd.f32 %v3155, %v3209
    %v3226 = vadd.f32 %v3156, %v3209
    %v3227 = vadd.f32 %v3157, %v3209
    %v3228 = vadd.f32 %v3158, %v3209
    %v3229 = vadd.f32 %v3159, %v3209
    %v3230 = vadd.f32 %v3160, %v3209
    %v3231 = vadd.f32 %v3161, %v3209
    %v3232 = vadd.f32 %v3162, %v3209
    %v3233 = vadd.f32 %v3163, %v3209
    %v3234 = vadd.f32 %v3164, %v3209
    %v3235 = vadd.f32 %v3165, %v3209
    %v3236 = vadd.f32 %v3166, %v3209
    %v3237 = vadd.f32 %v3167, %v3209
    %v3238 = vadd.f32 %v3168, %v3209
    %v3239 = vadd.f32 %v3169, %v3209
    %v3240 = vadd.f32 %v3170, %v3209
    %v3241 = vadd.f32 %v3171, %v3209
    %v3242 = vadd.f32 %v3172, %v3209
    %v3243 = vadd.f32 %v3173, %v3209
    %v3244 = vadd.f32 %v3174, %v3209
    %v3245 = vadd.f32 %v3175, %v3209
    %v3246 = vadd.f32 %v3176, %v3209
    %v3247 = vadd.f32 %v3177, %v3209
    %v3248 = vadd.f32 %v3178, %v3209
    %v3249 = vadd.f32 %v3179, %v3209
    %v3250 = vadd.f32 %v3180, %v3209
    %v3251 = vadd.f32 %v3181, %v3209
    %v3252 = vadd.f32 %v3182, %v3209
    %v3253 = vadd.f32 %v3183, %v3209
    %v3254 = vadd.f32 %v3184, %v3209
    %v3255 = vadd.f32 %v3185, %v3209
    %v3256 = vadd.f32 %v3186, %v3209
    %v3257 = vadd.f32 %v3187, %v3209
    %v3258 = vadd.f32 %v3188, %v3209
    %v3259 = vadd.f32 %v3189, %v3209
    %v3260 = vadd.f32 %v3190, %v3209
    %v3261 = vadd.f32 %v3191, %v3209
    %v3262 = vadd.f32 %v3192, %v3209
    %v3263 = vadd.f32 %v3193, %v3209
    %v3264 = vadd.f32 %v3194, %v3209
    %v3265 = vadd.f32 %v3195, %v3209
    %v3266 = vadd.f32 %v3196, %v3209
    %v3267 = vadd.f32 %v3197, %v3209
    %v3268 = vadd.f32 %v3198, %v3209
    %v3269 = vadd.f32 %v3199, %v3209
    %v3270 = vadd.f32 %v3200, %v3209
    %v3271 = vadd.f32 %v3201, %v3209
    %v3272 = vadd.f32 %v3202, %v3209
    %v3273 = vadd.f32 %v3203, %v3209
    %v3274 = vadd.f32 %v3204, %v3209
    %v3275 = vmax.f32 %v3211, 0.0
    %v3276 = vmax.f32 %v3212, 0.0
    %v3277 = vmax.f32 %v3213, 0.0
    %v3278 = vmax.f32 %v3214, 0.0
    %v3279 = vmax.f32 %v3215, 0.0
    %v3280 = vmax.f32 %v3216, 0.0
    %v3281 = vmax.f32 %v3217, 0.0
    %v3282 = vmax.f32 %v3218, 0.0
    %v3283 = vmax.f32 %v3219, 0.0
    %v3284 = vmax.f32 %v3220, 0.0
    %v3285 = vmax.f32 %v3221, 0.0
    %v3286 = vmax.f32 %v3222, 0.0
    %v3287 = vmax.f32 %v3223, 0.0
    %v3288 = vmax.f32 %v3224, 0.0
    %v3289 = vmax.f32 %v3225, 0.0
    %v3290 = vmax.f32 %v3226, 0.0
    %v3291 = vmax.f32 %v3227, 0.0
    %v3292 = vmax.f32 %v3228, 0.0
    %v3293 = vmax.f32 %v3229, 0.0
    %v3294 = vmax.f32 %v3230, 0.0
    %v3295 = vmax.f32 %v3231, 0.0
    %v3296 = vmax.f32 %v3232, 0.0
    %v3297 = vmax.f32 %v3233, 0.0
    %v3298 = vmax.f32 %v3234, 0.0
    %v3299 = vmax.f32 %v3235, 0.0
    %v3300 = vmax.f32 %v3236, 0.0
    %v3301 = vmax.f32 %v3237, 0.0
    %v3302 = vmax.f32 %v3238, 0.0
    %v3303 = vmax.f32 %v3239, 0.0
    %v3304 = vmax.f32 %v3240, 0.0
    %v3305 = vmax.f32 %v3241, 0.0
    %v3306 = vmax.f32 %v3242, 0.0
    %v3307 = vmax.f32 %v3243, 0.0
    %v3308 = vmax.f32 %v3244, 0.0
    %v3309 = vmax.f32 %v3245, 0.0
    %v3310 = vmax.f32 %v3246, 0.0
    %v3311 = vmax.f32 %v3247, 0.0
    %v3312 = vmax.f32 %v3248, 0.0
    %v3313 = vmax.f32 %v3249, 0.0
    %v3314 = vmax.f32 %v3250, 0.0
    %v3315 = vmax.f32 %v3251, 0.0
    %v3316 = vmax.f32 %v3252, 0.0
    %v3317 = vmax.f32 %v3253, 0.0
    %v3318 = vmax.f32 %v3254, 0.0
    %v3319 = vmax.f32 %v3255, 0.0
    %v3320 = vmax.f32 %v3256, 0.0
    %v3321 = vmax.f32 %v3257, 0.0
    %v3322 = vmax.f32 %v3258, 0.0
    %v3323 = vmax.f32 %v3259, 0.0
    %v3324 = vmax.f32 %v3260, 0.0
    %v3325 = vmax.f32 %v3261, 0.0
    %v3326 = vmax.f32 %v3262, 0.0
    %v3327 = vmax.f32 %v3263, 0.0
    %v3328 = vmax.f32 %v3264, 0.0
    %v3329 = vmax.f32 %v3265, 0.0
    %v3330 = vmax.f32 %v3266, 0.0
    %v3331 = vmax.f32 %v3267, 0.0
    %v3332 = vmax.f32 %v3268, 0.0
    %v3333 = vmax.f32 %v3269, 0.0
    %v3334 = vmax.f32 %v3270, 0.0
    %v3335 = vmax.f32 %v3271, 0.0
    %v3336 = vmax.f32 %v3272, 0.0
    %v3337 = vmax.f32 %v3273, 0.0
    %v3338 = vmax.f32 %v3274, 0.0
    %v3339 = vmax.f32 %v3275, %v3277
    %v3340 = vmax.f32 %v3276, %v3278
    %v3341 = vmax.f32 %v3279, %v3281
    %v3342 = vmax.f32 %v3280, %v3282
    %v3343 = vmax.f32 %v3283, %v3285
    %v3344 = vmax.f32 %v3284, %v3286
    %v3345 = vmax.f32 %v3287, %v3289
    %v3346 = vmax.f32 %v3288, %v3290
    %v3347 = vmax.f32 %v3291, %v3293
    %v3348 = vmax.f32 %v3292, %v3294
    %v3349 = vmax.f32 %v3295, %v3297
    %v3350 = vmax.f32 %v3296, %v3298
    %v3351 = vmax.f32 %v3299, %v3301
    %v3352 = vmax.f32 %v3300, %v3302
    %v3353 = vmax.f32 %v3303, %v3305
    %v3354 = vmax.f32 %v3304, %v3306
    %v3355 = vmax.f32 %v3307, %v3309
    %v3356 = vmax.f32 %v3308, %v3310
    %v3357 = vmax.f32 %v3311, %v3313
    %v3358 = vmax.f32 %v3312, %v3314
    %v3359 = vmax.f32 %v3315, %v3317
    %v3360 = vmax.f32 %v3316, %v3318
    %v3361 = vmax.f32 %v3319, %v3321
    %v3362 = vmax.f32 %v3320, %v3322
    %v3363 = vmax.f32 %v3323, %v3325
    %v3364 = vmax.f32 %v3324, %v3326
    %v3365 = vmax.f32 %v3327, %v3329
    %v3366 = vmax.f32 %v3328, %v3330
    %v3367 = vmax.f32 %v3331, %v3333
    %v3368 = vmax.f32 %v3332, %v3334
    %v3369 = vmax.f32 %v3335, %v3337
    %v3370 = vmax.f32 %v3336, %v3338
    %v3403 = vcombine.high %v3339, %v3339
    %v3405 = vunpack.c.l.s4 1983009808
    %v3406 = vunpack.c.0.s8 %v3405
    %v3407 = vlaneseq
    %v3408 = vshrl.u32 %v3407, 7
    %v3409 = vsub.s32 %v3406, %v3408
    %v3410 = vrot.slane %v3339, %v3409
    %v3412 = vunpack.c.l.s4 1983009808
    %v3413 = vunpack.c.0.s8 %v3412
    %v3414 = vlaneseq
    %v3415 = vshrl.u32 %v3414, 7
    %v3416 = vsub.s32 %v3413, %v3415
    %v3417 = vrot.slane %v3403, %v3416
    %v3418 = vcombine.high %v3410, %v3410
    %v3419 = vcombine.high %v3417, %v3417
    %v3420 = vcombine.high %v3340, %v3340
    %v3422 = vunpack.c.l.s4 1983009808
    %v3423 = vunpack.c.0.s8 %v3422
    %v3424 = vlaneseq
    %v3425 = vshrl.u32 %v3424, 7
    %v3426 = vsub.s32 %v3423, %v3425
    %v3427 = vrot.slane %v3340, %v3426
    %v3429 = vunpack.c.l.s4 1983009808
    %v3430 = vunpack.c.0.s8 %v3429
    %v3431 = vlaneseq
    %v3432 = vshrl.u32 %v3431, 7
    %v3433 = vsub.s32 %v3430, %v3432
    %v3434 = vrot.slane %v3420, %v3433
    %v3435 = vcombine.high %v3427, %v3427
    %v3436 = vcombine.high %v3434, %v3434
    %v3437 = vcombine.high %v3341, %v3341
    %v3439 = vunpack.c.l.s4 1983009808
    %v3440 = vunpack.c.0.s8 %v3439
    %v3441 = vlaneseq
    %v3442 = vshrl.u32 %v3441, 7
    %v3443 = vsub.s32 %v3440, %v3442
    %v3444 = vrot.slane %v3341, %v3443
    %v3446 = vunpack.c.l.s4 1983009808
    %v3447 = vunpack.c.0.s8 %v3446
    %v3448 = vlaneseq
    %v3449 = vshrl.u32 %v3448, 7
    %v3450 = vsub.s32 %v3447, %v3449
    %v3451 = vrot.slane %v3437, %v3450
    %v3452 = vcombine.high %v3444, %v3444
    %v3453 = vcombine.high %v3451, %v3451
    %v3454 = vcombine.high %v3342, %v3342
    %v3456 = vunpack.c.l.s4 1983009808
    %v3457 = vunpack.c.0.s8 %v3456
    %v3458 = vlaneseq
    %v3459 = vshrl.u32 %v3458, 7
    %v3460 = vsub.s32 %v3457, %v3459
    %v3461 = vrot.slane %v3342, %v3460
    %v3463 = vunpack.c.l.s4 1983009808
    %v3464 = vunpack.c.0.s8 %v3463
    %v3465 = vlaneseq
    %v3466 = vshrl.u32 %v3465, 7
    %v3467 = vsub.s32 %v3464, %v3466
    %v3468 = vrot.slane %v3454, %v3467
    %v3469 = vcombine.high %v3461, %v3461
    %v3470 = vcombine.high %v3468, %v3468
    %v3471 = vcombine.high %v3343, %v3343
    %v3473 = vunpack.c.l.s4 1983009808
    %v3474 = vunpack.c.0.s8 %v3473
    %v3475 = vlaneseq
    %v3476 = vshrl.u32 %v3475, 7
    %v3477 = vsub.s32 %v3474, %v3476
    %v3478 = vrot.slane %v3343, %v3477
    %v3480 = vunpack.c.l.s4 1983009808
    %v3481 = vunpack.c.0.s8 %v3480
    %v3482 = vlaneseq
    %v3483 = vshrl.u32 %v3482, 7
    %v3484 = vsub.s32 %v3481, %v3483
    %v3485 = vrot.slane %v3471, %v3484
    %v3486 = vcombine.high %v3478, %v3478
    %v3487 = vcombine.high %v3485, %v3485
    %v3488 = vcombine.high %v3344, %v3344
    %v3490 = vunpack.c.l.s4 1983009808
    %v3491 = vunpack.c.0.s8 %v3490
    %v3492 = vlaneseq
    %v3493 = vshrl.u32 %v3492, 7
    %v3494 = vsub.s32 %v3491, %v3493
    %v3495 = vrot.slane %v3344, %v3494
    %v3497 = vunpack.c.l.s4 1983009808
    %v3498 = vunpack.c.0.s8 %v3497
    %v3499 = vlaneseq
    %v3500 = vshrl.u32 %v3499, 7
    %v3501 = vsub.s32 %v3498, %v3500
    %v3502 = vrot.slane %v3488, %v3501
    %v3503 = vcombine.high %v3495, %v3495
    %v3504 = vcombine.high %v3502, %v3502
    %v3505 = vcombine.high %v3345, %v3345
    %v3507 = vunpack.c.l.s4 1983009808
    %v3508 = vunpack.c.0.s8 %v3507
    %v3509 = vlaneseq
    %v3510 = vshrl.u32 %v3509, 7
    %v3511 = vsub.s32 %v3508, %v3510
    %v3512 = vrot.slane %v3345, %v3511
    %v3514 = vunpack.c.l.s4 1983009808
    %v3515 = vunpack.c.0.s8 %v3514
    %v3516 = vlaneseq
    %v3517 = vshrl.u32 %v3516, 7
    %v3518 = vsub.s32 %v3515, %v3517
    %v3519 = vrot.slane %v3505, %v3518
    %v3520 = vcombine.high %v3512, %v3512
    %v3521 = vcombine.high %v3519, %v3519
    %v3522 = vcombine.high %v3346, %v3346
    %v3524 = vunpack.c.l.s4 1983009808
    %v3525 = vunpack.c.0.s8 %v3524
    %v3526 = vlaneseq
    %v3527 = vshrl.u32 %v3526, 7
    %v3528 = vsub.s32 %v3525, %v3527
    %v3529 = vrot.slane %v3346, %v3528
    %v3531 = vunpack.c.l.s4 1983009808
    %v3532 = vunpack.c.0.s8 %v3531
    %v3533 = vlaneseq
    %v3534 = vshrl.u32 %v3533, 7
    %v3535 = vsub.s32 %v3532, %v3534
    %v3536 = vrot.slane %v3522, %v3535
    %v3537 = vcombine.high %v3529, %v3529
    %v3538 = vcombine.high %v3536, %v3536
    %v3539 = vcombine.high %v3347, %v3347
    %v3541 = vunpack.c.l.s4 1983009808
    %v3542 = vunpack.c.0.s8 %v3541
    %v3543 = vlaneseq
    %v3544 = vshrl.u32 %v3543, 7
    %v3545 = vsub.s32 %v3542, %v3544
    %v3546 = vrot.slane %v3347, %v3545
    %v3548 = vunpack.c.l.s4 1983009808
    %v3549 = vunpack.c.0.s8 %v3548
    %v3550 = vlaneseq
    %v3551 = vshrl.u32 %v3550, 7
    %v3552 = vsub.s32 %v3549, %v3551
    %v3553 = vrot.slane %v3539, %v3552
    %v3554 = vcombine.high %v3546, %v3546
    %v3555 = vcombine.high %v3553, %v3553
    %v3556 = vcombine.high %v3348, %v3348
    %v3558 = vunpack.c.l.s4 1983009808
    %v3559 = vunpack.c.0.s8 %v3558
    %v3560 = vlaneseq
    %v3561 = vshrl.u32 %v3560, 7
    %v3562 = vsub.s32 %v3559, %v3561
    %v3563 = vrot.slane %v3348, %v3562
    %v3565 = vunpack.c.l.s4 1983009808
    %v3566 = vunpack.c.0.s8 %v3565
    %v3567 = vlaneseq
    %v3568 = vshrl.u32 %v3567, 7
    %v3569 = vsub.s32 %v3566, %v3568
    %v3570 = vrot.slane %v3556, %v3569
    %v3571 = vcombine.high %v3563, %v3563
    %v3572 = vcombine.high %v3570, %v3570
    %v3573 = vcombine.high %v3349, %v3349
    %v3575 = vunpack.c.l.s4 1983009808
    %v3576 = vunpack.c.0.s8 %v3575
    %v3577 = vlaneseq
    %v3578 = vshrl.u32 %v3577, 7
    %v3579 = vsub.s32 %v3576, %v3578
    %v3580 = vrot.slane %v3349, %v3579
    %v3582 = vunpack.c.l.s4 1983009808
    %v3583 = vunpack.c.0.s8 %v3582
    %v3584 = vlaneseq
    %v3585 = vshrl.u32 %v3584, 7
    %v3586 = vsub.s32 %v3583, %v3585
    %v3587 = vrot.slane %v3573, %v3586
    %v3588 = vcombine.high %v3580, %v3580
    %v3589 = vcombine.high %v3587, %v3587
    %v3590 = vcombine.high %v3350, %v3350
    %v3592 = vunpack.c.l.s4 1983009808
    %v3593 = vunpack.c.0.s8 %v3592
    %v3594 = vlaneseq
    %v3595 = vshrl.u32 %v3594, 7
    %v3596 = vsub.s32 %v3593, %v3595
    %v3597 = vrot.slane %v3350, %v3596
    %v3599 = vunpack.c.l.s4 1983009808
    %v3600 = vunpack.c.0.s8 %v3599
    %v3601 = vlaneseq
    %v3602 = vshrl.u32 %v3601, 7
    %v3603 = vsub.s32 %v3600, %v3602
    %v3604 = vrot.slane %v3590, %v3603
    %v3605 = vcombine.high %v3597, %v3597
    %v3606 = vcombine.high %v3604, %v3604
    %v3607 = vcombine.high %v3351, %v3351
    %v3609 = vunpack.c.l.s4 1983009808
    %v3610 = vunpack.c.0.s8 %v3609
    %v3611 = vlaneseq
    %v3612 = vshrl.u32 %v3611, 7
    %v3613 = vsub.s32 %v3610, %v3612
    %v3614 = vrot.slane %v3351, %v3613
    %v3616 = vunpack.c.l.s4 1983009808
    %v3617 = vunpack.c.0.s8 %v3616
    %v3618 = vlaneseq
    %v3619 = vshrl.u32 %v3618, 7
    %v3620 = vsub.s32 %v3617, %v3619
    %v3621 = vrot.slane %v3607, %v3620
    %v3622 = vcombine.high %v3614, %v3614
    %v3623 = vcombine.high %v3621, %v3621
    %v3624 = vcombine.high %v3352, %v3352
    %v3626 = vunpack.c.l.s4 1983009808
    %v3627 = vunpack.c.0.s8 %v3626
    %v3628 = vlaneseq
    %v3629 = vshrl.u32 %v3628, 7
    %v3630 = vsub.s32 %v3627, %v3629
    %v3631 = vrot.slane %v3352, %v3630
    %v3633 = vunpack.c.l.s4 1983009808
    %v3634 = vunpack.c.0.s8 %v3633
    %v3635 = vlaneseq
    %v3636 = vshrl.u32 %v3635, 7
    %v3637 = vsub.s32 %v3634, %v3636
    %v3638 = vrot.slane %v3624, %v3637
    %v3639 = vcombine.high %v3631, %v3631
    %v3640 = vcombine.high %v3638, %v3638
    %v3641 = vcombine.high %v3353, %v3353
    %v3643 = vunpack.c.l.s4 1983009808
    %v3644 = vunpack.c.0.s8 %v3643
    %v3645 = vlaneseq
    %v3646 = vshrl.u32 %v3645, 7
    %v3647 = vsub.s32 %v3644, %v3646
    %v3648 = vrot.slane %v3353, %v3647
    %v3650 = vunpack.c.l.s4 1983009808
    %v3651 = vunpack.c.0.s8 %v3650
    %v3652 = vlaneseq
    %v3653 = vshrl.u32 %v3652, 7
    %v3654 = vsub.s32 %v3651, %v3653
    %v3655 = vrot.slane %v3641, %v3654
    %v3656 = vcombine.high %v3648, %v3648
    %v3657 = vcombine.high %v3655, %v3655
    %v3658 = vcombine.high %v3354, %v3354
    %v3660 = vunpack.c.l.s4 1983009808
    %v3661 = vunpack.c.0.s8 %v3660
    %v3662 = vlaneseq
    %v3663 = vshrl.u32 %v3662, 7
    %v3664 = vsub.s32 %v3661, %v3663
    %v3665 = vrot.slane %v3354, %v3664
    %v3667 = vunpack.c.l.s4 1983009808
    %v3668 = vunpack.c.0.s8 %v3667
    %v3669 = vlaneseq
    %v3670 = vshrl.u32 %v3669, 7
    %v3671 = vsub.s32 %v3668, %v3670
    %v3672 = vrot.slane %v3658, %v3671
    %v3673 = vcombine.high %v3665, %v3665
    %v3674 = vcombine.high %v3672, %v3672
    %v3675 = vcombine.high %v3355, %v3355
    %v3677 = vunpack.c.l.s4 1983009808
    %v3678 = vunpack.c.0.s8 %v3677
    %v3679 = vlaneseq
    %v3680 = vshrl.u32 %v3679, 7
    %v3681 = vsub.s32 %v3678, %v3680
    %v3682 = vrot.slane %v3355, %v3681
    %v3684 = vunpack.c.l.s4 1983009808
    %v3685 = vunpack.c.0.s8 %v3684
    %v3686 = vlaneseq
    %v3687 = vshrl.u32 %v3686, 7
    %v3688 = vsub.s32 %v3685, %v3687
    %v3689 = vrot.slane %v3675, %v3688
    %v3690 = vcombine.high %v3682, %v3682
    %v3691 = vcombine.high %v3689, %v3689
    %v3692 = vcombine.high %v3356, %v3356
    %v3694 = vunpack.c.l.s4 1983009808
    %v3695 = vunpack.c.0.s8 %v3694
    %v3696 = vlaneseq
    %v3697 = vshrl.u32 %v3696, 7
    %v3698 = vsub.s32 %v3695, %v3697
    %v3699 = vrot.slane %v3356, %v3698
    %v3701 = vunpack.c.l.s4 1983009808
    %v3702 = vunpack.c.0.s8 %v3701
    %v3703 = vlaneseq
    %v3704 = vshrl.u32 %v3703, 7
    %v3705 = vsub.s32 %v3702, %v3704
    %v3706 = vrot.slane %v3692, %v3705
    %v3707 = vcombine.high %v3699, %v3699
    %v3708 = vcombine.high %v3706, %v3706
    %v3709 = vcombine.high %v3357, %v3357
    %v3711 = vunpack.c.l.s4 1983009808
    %v3712 = vunpack.c.0.s8 %v3711
    %v3713 = vlaneseq
    %v3714 = vshrl.u32 %v3713, 7
    %v3715 = vsub.s32 %v3712, %v3714
    %v3716 = vrot.slane %v3357, %v3715
    %v3718 = vunpack.c.l.s4 1983009808
    %v3719 = vunpack.c.0.s8 %v3718
    %v3720 = vlaneseq
    %v3721 = vshrl.u32 %v3720, 7
    %v3722 = vsub.s32 %v3719, %v3721
    %v3723 = vrot.slane %v3709, %v3722
    %v3724 = vcombine.high %v3716, %v3716
    %v3725 = vcombine.high %v3723, %v3723
    %v3726 = vcombine.high %v3358, %v3358
    %v3728 = vunpack.c.l.s4 1983009808
    %v3729 = vunpack.c.0.s8 %v3728
    %v3730 = vlaneseq
    %v3731 = vshrl.u32 %v3730, 7
    %v3732 = vsub.s32 %v3729, %v3731
    %v3733 = vrot.slane %v3358, %v3732
    %v3735 = vunpack.c.l.s4 1983009808
    %v3736 = vunpack.c.0.s8 %v3735
    %v3737 = vlaneseq
    %v3738 = vshrl.u32 %v3737, 7
    %v3739 = vsub.s32 %v3736, %v3738
    %v3740 = vrot.slane %v3726, %v3739
    %v3741 = vcombine.high %v3733, %v3733
    %v3742 = vcombine.high %v3740, %v3740
    %v3743 = vcombine.high %v3359, %v3359
    %v3745 = vunpack.c.l.s4 1983009808
    %v3746 = vunpack.c.0.s8 %v3745
    %v3747 = vlaneseq
    %v3748 = vshrl.u32 %v3747, 7
    %v3749 = vsub.s32 %v3746, %v3748
    %v3750 = vrot.slane %v3359, %v3749
    %v3752 = vunpack.c.l.s4 1983009808
    %v3753 = vunpack.c.0.s8 %v3752
    %v3754 = vlaneseq
    %v3755 = vshrl.u32 %v3754, 7
    %v3756 = vsub.s32 %v3753, %v3755
    %v3757 = vrot.slane %v3743, %v3756
    %v3758 = vcombine.high %v3750, %v3750
    %v3759 = vcombine.high %v3757, %v3757
    %v3760 = vcombine.high %v3360, %v3360
    %v3762 = vunpack.c.l.s4 1983009808
    %v3763 = vunpack.c.0.s8 %v3762
    %v3764 = vlaneseq
    %v3765 = vshrl.u32 %v3764, 7
    %v3766 = vsub.s32 %v3763, %v3765
    %v3767 = vrot.slane %v3360, %v3766
    %v3769 = vunpack.c.l.s4 1983009808
    %v3770 = vunpack.c.0.s8 %v3769
    %v3771 = vlaneseq
    %v3772 = vshrl.u32 %v3771, 7
    %v3773 = vsub.s32 %v3770, %v3772
    %v3774 = vrot.slane %v3760, %v3773
    %v3775 = vcombine.high %v3767, %v3767
    %v3776 = vcombine.high %v3774, %v3774
    %v3777 = vcombine.high %v3361, %v3361
    %v3779 = vunpack.c.l.s4 1983009808
    %v3780 = vunpack.c.0.s8 %v3779
    %v3781 = vlaneseq
    %v3782 = vshrl.u32 %v3781, 7
    %v3783 = vsub.s32 %v3780, %v3782
    %v3784 = vrot.slane %v3361, %v3783
    %v3786 = vunpack.c.l.s4 1983009808
    %v3787 = vunpack.c.0.s8 %v3786
    %v3788 = vlaneseq
    %v3789 = vshrl.u32 %v3788, 7
    %v3790 = vsub.s32 %v3787, %v3789
    %v3791 = vrot.slane %v3777, %v3790
    %v3792 = vcombine.high %v3784, %v3784
    %v3793 = vcombine.high %v3791, %v3791
    %v3794 = vcombine.high %v3362, %v3362
    %v3796 = vunpack.c.l.s4 1983009808
    %v3797 = vunpack.c.0.s8 %v3796
    %v3798 = vlaneseq
    %v3799 = vshrl.u32 %v3798, 7
    %v3800 = vsub.s32 %v3797, %v3799
    %v3801 = vrot.slane %v3362, %v3800
    %v3803 = vunpack.c.l.s4 1983009808
    %v3804 = vunpack.c.0.s8 %v3803
    %v3805 = vlaneseq
    %v3806 = vshrl.u32 %v3805, 7
    %v3807 = vsub.s32 %v3804, %v3806
    %v3808 = vrot.slane %v3794, %v3807
    %v3809 = vcombine.high %v3801, %v3801
    %v3810 = vcombine.high %v3808, %v3808
    %v3811 = vcombine.high %v3363, %v3363
    %v3813 = vunpack.c.l.s4 1983009808
    %v3814 = vunpack.c.0.s8 %v3813
    %v3815 = vlaneseq
    %v3816 = vshrl.u32 %v3815, 7
    %v3817 = vsub.s32 %v3814, %v3816
    %v3818 = vrot.slane %v3363, %v3817
    %v3820 = vunpack.c.l.s4 1983009808
    %v3821 = vunpack.c.0.s8 %v3820
    %v3822 = vlaneseq
    %v3823 = vshrl.u32 %v3822, 7
    %v3824 = vsub.s32 %v3821, %v3823
    %v3825 = vrot.slane %v3811, %v3824
    %v3826 = vcombine.high %v3818, %v3818
    %v3827 = vcombine.high %v3825, %v3825
    %v3828 = vcombine.high %v3364, %v3364
    %v3830 = vunpack.c.l.s4 1983009808
    %v3831 = vunpack.c.0.s8 %v3830
    %v3832 = vlaneseq
    %v3833 = vshrl.u32 %v3832, 7
    %v3834 = vsub.s32 %v3831, %v3833
    %v3835 = vrot.slane %v3364, %v3834
    %v3837 = vunpack.c.l.s4 1983009808
    %v3838 = vunpack.c.0.s8 %v3837
    %v3839 = vlaneseq
    %v3840 = vshrl.u32 %v3839, 7
    %v3841 = vsub.s32 %v3838, %v3840
    %v3842 = vrot.slane %v3828, %v3841
    %v3843 = vcombine.high %v3835, %v3835
    %v3844 = vcombine.high %v3842, %v3842
    %v3845 = vcombine.high %v3365, %v3365
    %v3847 = vunpack.c.l.s4 1983009808
    %v3848 = vunpack.c.0.s8 %v3847
    %v3849 = vlaneseq
    %v3850 = vshrl.u32 %v3849, 7
    %v3851 = vsub.s32 %v3848, %v3850
    %v3852 = vrot.slane %v3365, %v3851
    %v3854 = vunpack.c.l.s4 1983009808
    %v3855 = vunpack.c.0.s8 %v3854
    %v3856 = vlaneseq
    %v3857 = vshrl.u32 %v3856, 7
    %v3858 = vsub.s32 %v3855, %v3857
    %v3859 = vrot.slane %v3845, %v3858
    %v3860 = vcombine.high %v3852, %v3852
    %v3861 = vcombine.high %v3859, %v3859
    %v3862 = vcombine.high %v3366, %v3366
    %v3864 = vunpack.c.l.s4 1983009808
    %v3865 = vunpack.c.0.s8 %v3864
    %v3866 = vlaneseq
    %v3867 = vshrl.u32 %v3866, 7
    %v3868 = vsub.s32 %v3865, %v3867
    %v3869 = vrot.slane %v3366, %v3868
    %v3871 = vunpack.c.l.s4 1983009808
    %v3872 = vunpack.c.0.s8 %v3871
    %v3873 = vlaneseq
    %v3874 = vshrl.u32 %v3873, 7
    %v3875 = vsub.s32 %v3872, %v3874
    %v3876 = vrot.slane %v3862, %v3875
    %v3877 = vcombine.high %v3869, %v3869
    %v3878 = vcombine.high %v3876, %v3876
    %v3879 = vcombine.high %v3367, %v3367
    %v3881 = vunpack.c.l.s4 1983009808
    %v3882 = vunpack.c.0.s8 %v3881
    %v3883 = vlaneseq
    %v3884 = vshrl.u32 %v3883, 7
    %v3885 = vsub.s32 %v3882, %v3884
    %v3886 = vrot.slane %v3367, %v3885
    %v3888 = vunpack.c.l.s4 1983009808
    %v3889 = vunpack.c.0.s8 %v3888
    %v3890 = vlaneseq
    %v3891 = vshrl.u32 %v3890, 7
    %v3892 = vsub.s32 %v3889, %v3891
    %v3893 = vrot.slane %v3879, %v3892
    %v3894 = vcombine.high %v3886, %v3886
    %v3895 = vcombine.high %v3893, %v3893
    %v3896 = vcombine.high %v3368, %v3368
    %v3898 = vunpack.c.l.s4 1983009808
    %v3899 = vunpack.c.0.s8 %v3898
    %v3900 = vlaneseq
    %v3901 = vshrl.u32 %v3900, 7
    %v3902 = vsub.s32 %v3899, %v3901
    %v3903 = vrot.slane %v3368, %v3902
    %v3905 = vunpack.c.l.s4 1983009808
    %v3906 = vunpack.c.0.s8 %v3905
    %v3907 = vlaneseq
    %v3908 = vshrl.u32 %v3907, 7
    %v3909 = vsub.s32 %v3906, %v3908
    %v3910 = vrot.slane %v3896, %v3909
    %v3911 = vcombine.high %v3903, %v3903
    %v3912 = vcombine.high %v3910, %v3910
    %v3913 = vcombine.high %v3369, %v3369
    %v3915 = vunpack.c.l.s4 1983009808
    %v3916 = vunpack.c.0.s8 %v3915
    %v3917 = vlaneseq
    %v3918 = vshrl.u32 %v3917, 7
    %v3919 = vsub.s32 %v3916, %v3918
    %v3920 = vrot.slane %v3369, %v3919
    %v3922 = vunpack.c.l.s4 1983009808
    %v3923 = vunpack.c.0.s8 %v3922
    %v3924 = vlaneseq
    %v3925 = vshrl.u32 %v3924, 7
    %v3926 = vsub.s32 %v3923, %v3925
    %v3927 = vrot.slane %v3913, %v3926
    %v3928 = vcombine.high %v3920, %v3920
    %v3929 = vcombine.high %v3927, %v3927
    %v3930 = vcombine.high %v3370, %v3370
    %v3932 = vunpack.c.l.s4 1983009808
    %v3933 = vunpack.c.0.s8 %v3932
    %v3934 = vlaneseq
    %v3935 = vshrl.u32 %v3934, 7
    %v3936 = vsub.s32 %v3933, %v3935
    %v3937 = vrot.slane %v3370, %v3936
    %v3939 = vunpack.c.l.s4 1983009808
    %v3940 = vunpack.c.0.s8 %v3939
    %v3941 = vlaneseq
    %v3942 = vshrl.u32 %v3941, 7
    %v3943 = vsub.s32 %v3940, %v3942
    %v3944 = vrot.slane %v3930, %v3943
    %v3945 = vcombine.high %v3937, %v3937
    %v3946 = vcombine.high %v3944, %v3944
    %v4075 = vrot.slane %v3410, 7
    %v4076 = vrot.slane %v4075, 2
    %v4077 = vrot.slane %v3418, 7
    %v4078 = vrot.slane %v4077, 2
    %v4079 = vrot.slane %v3417, 7
    %v4080 = vrot.slane %v4079, 2
    %v4081 = vrot.slane %v3419, 7
    %v4082 = vrot.slane %v4081, 2
    %v4083 = vrot.slane %v3427, 7
    %v4084 = vrot.slane %v4083, 2
    %v4085 = vrot.slane %v3435, 7
    %v4086 = vrot.slane %v4085, 2
    %v4087 = vrot.slane %v3434, 7
    %v4088 = vrot.slane %v4087, 2
    %v4089 = vrot.slane %v3436, 7
    %v4090 = vrot.slane %v4089, 2
    %v4091 = vrot.slane %v3444, 7
    %v4092 = vrot.slane %v4091, 2
    %v4093 = vrot.slane %v3452, 7
    %v4094 = vrot.slane %v4093, 2
    %v4095 = vrot.slane %v3451, 7
    %v4096 = vrot.slane %v4095, 2
    %v4097 = vrot.slane %v3453, 7
    %v4098 = vrot.slane %v4097, 2
    %v4099 = vrot.slane %v3461, 7
    %v4100 = vrot.slane %v4099, 2
    %v4101 = vrot.slane %v3469, 7
    %v4102 = vrot.slane %v4101, 2
    %v4103 = vrot.slane %v3468, 7
    %v4104 = vrot.slane %v4103, 2
    %v4105 = vrot.slane %v3470, 7
    %v4106 = vrot.slane %v4105, 2
    %v4107 = vrot.slane %v3478, 7
    %v4108 = vrot.slane %v4107, 2
    %v4109 = vrot.slane %v3486, 7
    %v4110 = vrot.slane %v4109, 2
    %v4111 = vrot.slane %v3485, 7
    %v4112 = vrot.slane %v4111, 2
    %v4113 = vrot.slane %v3487, 7
    %v4114 = vrot.slane %v4113, 2
    %v4115 = vrot.slane %v3495, 7
    %v4116 = vrot.slane %v4115, 2
    %v4117 = vrot.slane %v3503, 7
    %v4118 = vrot.slane %v4117, 2
    %v4119 = vrot.slane %v3502, 7
    %v4120 = vrot.slane %v4119, 2
    %v4121 = vrot.slane %v3504, 7
    %v4122 = vrot.slane %v4121, 2
    %v4123 = vrot.slane %v3512, 7
    %v4124 = vrot.slane %v4123, 2
    %v4125 = vrot.slane %v3520, 7
    %v4126 = vrot.slane %v4125, 2
    %v4127 = vrot.slane %v3519, 7
    %v4128 = vrot.slane %v4127, 2
    %v4129 = vrot.slane %v3521, 7
    %v4130 = vrot.slane %v4129, 2
    %v4131 = vrot.slane %v3529, 7
    %v4132 = vrot.slane %v4131, 2
    %v4133 = vrot.slane %v3537, 7
    %v4134 = vrot.slane %v4133, 2
    %v4135 = vrot.slane %v3536, 7
    %v4136 = vrot.slane %v4135, 2
    %v4137 = vrot.slane %v3538, 7
    %v4138 = vrot.slane %v4137, 2
    %v4139 = vrot.slane %v3546, 7
    %v4140 = vrot.slane %v4139, 2
    %v4141 = vrot.slane %v3554, 7
    %v4142 = vrot.slane %v4141, 2
    %v4143 = vrot.slane %v3553, 7
    %v4144 = vrot.slane %v4143, 2
    %v4145 = vrot.slane %v3555, 7
    %v4146 = vrot.slane %v4145, 2
    %v4147 = vrot.slane %v3563, 7
    %v4148 = vrot.slane %v4147, 2
    %v4149 = vrot.slane %v3571, 7
    %v4150 = vrot.slane %v4149, 2
    %v4151 = vrot.slane %v3570, 7
    %v4152 = vrot.slane %v4151, 2
    %v4153 = vrot.slane %v3572, 7
    %v4154 = vrot.slane %v4153, 2
    %v4155 = vrot.slane %v3580, 7
    %v4156 = vrot.slane %v4155, 2
    %v4157 = vrot.slane %v3588, 7
    %v4158 = vrot.slane %v4157, 2
    %v4159 = vrot.slane %v3587, 7
    %v4160 = vrot.slane %v4159, 2
    %v4161 = vrot.slane %v3589, 7
    %v4162 = vrot.slane %v4161, 2
    %v4163 = vrot.slane %v3597, 7
    %v4164 = vrot.slane %v4163, 2
    %v4165 = vrot.slane %v3605, 7
    %v4166 = vrot.slane %v4165, 2
    %v4167 = vrot.slane %v3604, 7
    %v4168 = vrot.slane %v4167, 2
    %v4169 = vrot.slane %v3606, 7
    %v4170 = vrot.slane %v4169, 2
    %v4171 = vrot.slane %v3614, 7
    %v4172 = vrot.slane %v4171, 2
    %v4173 = vrot.slane %v3622, 7
    %v4174 = vrot.slane %v4173, 2
    %v4175 = vrot.slane %v3621, 7
    %v4176 = vrot.slane %v4175, 2
    %v4177 = vrot.slane %v3623, 7
    %v4178 = vrot.slane %v4177, 2
    %v4179 = vrot.slane %v3631, 7
    %v4180 = vrot.slane %v4179, 2
    %v4181 = vrot.slane %v3639, 7
    %v4182 = vrot.slane %v4181, 2
    %v4183 = vrot.slane %v3638, 7
    %v4184 = vrot.slane %v4183, 2
    %v4185 = vrot.slane %v3640, 7
    %v4186 = vrot.slane %v4185, 2
    %v4187 = vrot.slane %v3648, 7
    %v4188 = vrot.slane %v4187, 2
    %v4189 = vrot.slane %v3656, 7
    %v4190 = vrot.slane %v4189, 2
    %v4191 = vrot.slane %v3655, 7
    %v4192 = vrot.slane %v4191, 2
    %v4193 = vrot.slane %v3657, 7
    %v4194 = vrot.slane %v4193, 2
    %v4195 = vrot.slane %v3665, 7
    %v4196 = vrot.slane %v4195, 2
    %v4197 = vrot.slane %v3673, 7
    %v4198 = vrot.slane %v4197, 2
    %v4199 = vrot.slane %v3672, 7
    %v4200 = vrot.slane %v4199, 2
    %v4201 = vrot.slane %v3674, 7
    %v4202 = vrot.slane %v4201, 2
    %v4203 = vrot.slane %v3682, 7
    %v4204 = vrot.slane %v4203, 2
    %v4205 = vrot.slane %v3690, 7
    %v4206 = vrot.slane %v4205, 2
    %v4207 = vrot.slane %v3689, 7
    %v4208 = vrot.slane %v4207, 2
    %v4209 = vrot.slane %v3691, 7
    %v4210 = vrot.slane %v4209, 2
    %v4211 = vrot.slane %v3699, 7
    %v4212 = vrot.slane %v4211, 2
    %v4213 = vrot.slane %v3707, 7
    %v4214 = vrot.slane %v4213, 2
    %v4215 = vrot.slane %v3706, 7
    %v4216 = vrot.slane %v4215, 2
    %v4217 = vrot.slane %v3708, 7
    %v4218 = vrot.slane %v4217, 2
    %v4219 = vrot.slane %v3716, 7
    %v4220 = vrot.slane %v4219, 2
    %v4221 = vrot.slane %v3724, 7
    %v4222 = vrot.slane %v4221, 2
    %v4223 = vrot.slane %v3723, 7
    %v4224 = vrot.slane %v4223, 2
    %v4225 = vrot.slane %v3725, 7
    %v4226 = vrot.slane %v4225, 2
    %v4227 = vrot.slane %v3733, 7
    %v4228 = vrot.slane %v4227, 2
    %v4229 = vrot.slane %v3741, 7
    %v4230 = vrot.slane %v4229, 2
    %v4231 = vrot.slane %v3740, 7
    %v4232 = vrot.slane %v4231, 2
    %v4233 = vrot.slane %v3742, 7
    %v4234 = vrot.slane %v4233, 2
    %v4235 = vrot.slane %v3750, 7
    %v4236 = vrot.slane %v4235, 2
    %v4237 = vrot.slane %v3758, 7
    %v4238 = vrot.slane %v4237, 2
    %v4239 = vrot.slane %v3757, 7
    %v4240 = vrot.slane %v4239, 2
    %v4241 = vrot.slane %v3759, 7
    %v4242 = vrot.slane %v4241, 2
    %v4243 = vrot.slane %v3767, 7
    %v4244 = vrot.slane %v4243, 2
    %v4245 = vrot.slane %v3775, 7
    %v4246 = vrot.slane %v4245, 2
    %v4247 = vrot.slane %v3774, 7
    %v4248 = vrot.slane %v4247, 2
    %v4249 = vrot.slane %v3776, 7
    %v4250 = vrot.slane %v4249, 2
    %v4251 = vrot.slane %v3784, 7
    %v4252 = vrot.slane %v4251, 2
    %v4253 = vrot.slane %v3792, 7
    %v4254 = vrot.slane %v4253, 2
    %v4255 = vrot.slane %v3791, 7
    %v4256 = vrot.slane %v4255, 2
    %v4257 = vrot.slane %v3793, 7
    %v4258 = vrot.slane %v4257, 2
    %v4259 = vrot.slane %v3801, 7
    %v4260 = vrot.slane %v4259, 2
    %v4261 = vrot.slane %v3809, 7
    %v4262 = vrot.slane %v4261, 2
    %v4263 = vrot.slane %v3808, 7
    %v4264 = vrot.slane %v4263, 2
    %v4265 = vrot.slane %v3810, 7
    %v4266 = vrot.slane %v4265, 2
    %v4267 = vrot.slane %v3818, 7
    %v4268 = vrot.slane %v4267, 2
    %v4269 = vrot.slane %v3826, 7
    %v4270 = vrot.slane %v4269, 2
    %v4271 = vrot.slane %v3825, 7
    %v4272 = vrot.slane %v4271, 2
    %v4273 = vrot.slane %v3827, 7
    %v4274 = vrot.slane %v4273, 2
    %v4275 = vrot.slane %v3835, 7
    %v4276 = vrot.slane %v4275, 2
    %v4277 = vrot.slane %v3843, 7
    %v4278 = vrot.slane %v4277, 2
    %v4279 = vrot.slane %v3842, 7
    %v4280 = vrot.slane %v4279, 2
    %v4281 = vrot.slane %v3844, 7
    %v4282 = vrot.slane %v4281, 2
    %v4283 = vrot.slane %v3852, 7
    %v4284 = vrot.slane %v4283, 2
    %v4285 = vrot.slane %v3860, 7
    %v4286 = vrot.slane %v4285, 2
    %v4287 = vrot.slane %v3859, 7
    %v4288 = vrot.slane %v4287, 2
    %v4289 = vrot.slane %v3861, 7
    %v4290 = vrot.slane %v4289, 2
    %v4291 = vrot.slane %v3869, 7
    %v4292 = vrot.slane %v4291, 2
    %v4293 = vrot.slane %v3877, 7
    %v4294 = vrot.slane %v4293, 2
    %v4295 = vrot.slane %v3876, 7
    %v4296 = vrot.slane %v4295, 2
    %v4297 = vrot.slane %v3878, 7
    %v4298 = vrot.slane %v4297, 2
    %v4299 = vrot.slane %v3886, 7
    %v4300 = vrot.slane %v4299, 2
    %v4301 = vrot.slane %v3894, 7
    %v4302 = vrot.slane %v4301, 2
    %v4303 = vrot.slane %v3893, 7
    %v4304 = vrot.slane %v4303, 2
    %v4305 = vrot.slane %v3895, 7
    %v4306 = vrot.slane %v4305, 2
    %v4307 = vrot.slane %v3903, 7
    %v4308 = vrot.slane %v4307, 2
    %v4309 = vrot.slane %v3911, 7
    %v4310 = vrot.slane %v4309, 2
    %v4311 = vrot.slane %v3910, 7
    %v4312 = vrot.slane %v4311, 2
    %v4313 = vrot.slane %v3912, 7
    %v4314 = vrot.slane %v4313, 2
    %v4315 = vrot.slane %v3920, 7
    %v4316 = vrot.slane %v4315, 2
    %v4317 = vrot.slane %v3928, 7
    %v4318 = vrot.slane %v4317, 2
    %v4319 = vrot.slane %v3927, 7
    %v4320 = vrot.slane %v4319, 2
    %v4321 = vrot.slane %v3929, 7
    %v4322 = vrot.slane %v4321, 2
    %v4323 = vrot.slane %v3937, 7
    %v4324 = vrot.slane %v4323, 2
    %v4325 = vrot.slane %v3945, 7
    %v4326 = vrot.slane %v4325, 2
    %v4327 = vrot.slane %v3944, 7
    %v4328 = vrot.slane %v4327, 2
    %v4329 = vrot.slane %v3946, 7
    %v4330 = vrot.slane %v4329, 2
    %v4459 = vmax.f32 %v3410, %v4076
    %v4460 = vmax.f32 %v3418, %v4078
    %v4461 = vmax.f32 %v3417, %v4080
    %v4462 = vmax.f32 %v3419, %v4082
    %v4463 = vmax.f32 %v3427, %v4084
    %v4464 = vmax.f32 %v3435, %v4086
    %v4465 = vmax.f32 %v3434, %v4088
    %v4466 = vmax.f32 %v3436, %v4090
    %v4467 = vmax.f32 %v3444, %v4092
    %v4468 = vmax.f32 %v3452, %v4094
    %v4469 = vmax.f32 %v3451, %v4096
    %v4470 = vmax.f32 %v3453, %v4098
    %v4471 = vmax.f32 %v3461, %v4100
    %v4472 = vmax.f32 %v3469, %v4102
    %v4473 = vmax.f32 %v3468, %v4104
    %v4474 = vmax.f32 %v3470, %v4106
    %v4475 = vmax.f32 %v3478, %v4108
    %v4476 = vmax.f32 %v3486, %v4110
    %v4477 = vmax.f32 %v3485, %v4112
    %v4478 = vmax.f32 %v3487, %v4114
    %v4479 = vmax.f32 %v3495, %v4116
    %v4480 = vmax.f32 %v3503, %v4118
    %v4481 = vmax.f32 %v3502, %v4120
    %v4482 = vmax.f32 %v3504, %v4122
    %v4483 = vmax.f32 %v3512, %v4124
    %v4484 = vmax.f32 %v3520, %v4126
    %v4485 = vmax.f32 %v3519, %v4128
    %v4486 = vmax.f32 %v3521, %v4130
    %v4487 = vmax.f32 %v3529, %v4132
    %v4488 = vmax.f32 %v3537, %v4134
    %v4489 = vmax.f32 %v3536, %v4136
    %v4490 = vmax.f32 %v3538, %v4138
    %v4491 = vmax.f32 %v3546, %v4140
    %v4492 = vmax.f32 %v3554, %v4142
    %v4493 = vmax.f32 %v3553, %v4144
    %v4494 = vmax.f32 %v3555, %v4146
    %v4495 = vmax.f32 %v3563, %v4148
    %v4496 = vmax.f32 %v3571, %v4150
    %v4497 = vmax.f32 %v3570, %v4152
    %v4498 = vmax.f32 %v3572, %v4154
    %v4499 = vmax.f32 %v3580, %v4156
    %v4500 = vmax.f32 %v3588, %v4158
    %v4501 = vmax.f32 %v3587, %v4160
    %v4502 = vmax.f32 %v3589, %v4162
    %v4503 = vmax.f32 %v3597, %v4164
    %v4504 = vmax.f32 %v3605, %v4166
    %v4505 = vmax.f32 %v3604, %v4168
    %v4506 = vmax.f32 %v3606, %v4170
    %v4507 = vmax.f32 %v3614, %v4172
    %v4508 = vmax.f32 %v3622, %v4174
    %v4509 = vmax.f32 %v3621, %v4176
    %v4510 = vmax.f32 %v3623, %v4178
    %v4511 = vmax.f32 %v3631, %v4180
    %v4512 = vmax.f32 %v3639, %v4182
    %v4513 = vmax.f32 %v3638, %v4184
    %v4514 = vmax.f32 %v3640, %v4186
    %v4515 = vmax.f32 %v3648, %v4188
    %v4516 = vmax.f32 %v3656, %v4190
    %v4517 = vmax.f32 %v3655, %v4192
    %v4518 = vmax.f32 %v3657, %v4194
    %v4519 = vmax.f32 %v3665, %v4196
    %v4520 = vmax.f32 %v3673, %v4198
    %v4521 = vmax.f32 %v3672, %v4200
    %v4522 = vmax.f32 %v3674, %v4202
    %v4523 = vmax.f32 %v3682, %v4204
    %v4524 = vmax.f32 %v3690, %v4206
    %v4525 = vmax.f32 %v3689, %v4208
    %v4526 = vmax.f32 %v3691, %v4210
    %v4527 = vmax.f32 %v3699, %v4212
    %v4528 = vmax.f32 %v3707, %v4214
    %v4529 = vmax.f32 %v3706, %v4216
    %v4530 = vmax.f32 %v3708, %v4218
    %v4531 = vmax.f32 %v3716, %v4220
    %v4532 = vmax.f32 %v3724, %v4222
    %v4533 = vmax.f32 %v3723, %v4224
    %v4534 = vmax.f32 %v3725, %v4226
    %v4535 = vmax.f32 %v3733, %v4228
    %v4536 = vmax.f32 %v3741, %v4230
    %v4537 = vmax.f32 %v3740, %v4232
    %v4538 = vmax.f32 %v3742, %v4234
    %v4539 = vmax.f32 %v3750, %v4236
    %v4540 = vmax.f32 %v3758, %v4238
    %v4541 = vmax.f32 %v3757, %v4240
    %v4542 = vmax.f32 %v3759, %v4242
    %v4543 = vmax.f32 %v3767, %v4244
    %v4544 = vmax.f32 %v3775, %v4246
    %v4545 = vmax.f32 %v3774, %v4248
    %v4546 = vmax.f32 %v3776, %v4250
    %v4547 = vmax.f32 %v3784, %v4252
    %v4548 = vmax.f32 %v3792, %v4254
    %v4549 = vmax.f32 %v3791, %v4256
    %v4550 = vmax.f32 %v3793, %v4258
    %v4551 = vmax.f32 %v3801, %v4260
    %v4552 = vmax.f32 %v3809, %v4262
    %v4553 = vmax.f32 %v3808, %v4264
    %v4554 = vmax.f32 %v3810, %v4266
    %v4555 = vmax.f32 %v3818, %v4268
    %v4556 = vmax.f32 %v3826, %v4270
    %v4557 = vmax.f32 %v3825, %v4272
    %v4558 = vmax.f32 %v3827, %v4274
    %v4559 = vmax.f32 %v3835, %v4276
    %v4560 = vmax.f32 %v3843, %v4278
    %v4561 = vmax.f32 %v3842, %v4280
    %v4562 = vmax.f32 %v3844, %v4282
    %v4563 = vmax.f32 %v3852, %v4284
    %v4564 = vmax.f32 %v3860, %v4286
    %v4565 = vmax.f32 %v3859, %v4288
    %v4566 = vmax.f32 %v3861, %v4290
    %v4567 = vmax.f32 %v3869, %v4292
    %v4568 = vmax.f32 %v3877, %v4294
    %v4569 = vmax.f32 %v3876, %v4296
    %v4570 = vmax.f32 %v3878, %v4298
    %v4571 = vmax.f32 %v3886, %v4300
    %v4572 = vmax.f32 %v3894, %v4302
    %v4573 = vmax.f32 %v3893, %v4304
    %v4574 = vmax.f32 %v3895, %v4306
    %v4575 = vmax.f32 %v3903, %v4308
    %v4576 = vmax.f32 %v3911, %v4310
    %v4577 = vmax.f32 %v3910, %v4312
    %v4578 = vmax.f32 %v3912, %v4314
    %v4579 = vmax.f32 %v3920, %v4316
    %v4580 = vmax.f32 %v3928, %v4318
    %v4581 = vmax.f32 %v3927, %v4320
    %v4582 = vmax.f32 %v3929, %v4322
    %v4583 = vmax.f32 %v3937, %v4324
    %v4584 = vmax.f32 %v3945, %v4326
    %v4585 = vmax.f32 %v3944, %v4328
    %v4586 = vmax.f32 %v3946, %v4330
    %4587 = vst [vmem:[#allocation3] sm:$0xff] 0.0
    %4588 = vst [vmem:[#allocation3 + $0x8] sm:$0xff] 0.0
    %4589 = vst.msk [vmem:[#allocation3 + $0x10] sm:$0xff] %vm2792, 0.0
    %4590 = vst [vmem:[#allocation3 + $0x18] sm:$0xff] 0.0
    %4591 = vst [vmem:[#allocation3 + $0x20] sm:$0xff] 0.0
    %4592 = vst.msk [vmem:[#allocation3 + $0x28] sm:$0xff] %vm2792, 0.0
    %4593 = vst [vmem:[#allocation3 + $0x30] sm:$0xff] 0.0
    %4594 = vst [vmem:[#allocation3 + $0x38] sm:$0xff] 0.0
    %4595 = vst.msk [vmem:[#allocation3 + $0x40] sm:$0xff] %vm2792, 0.0
    %4596 = vst [vmem:[#allocation3 + $0x48] sm:$0xff] 0.0
    %4597 = vst [vmem:[#allocation3 + $0x50] sm:$0xff] 0.0
    %4598 = vst.msk [vmem:[#allocation3 + $0x58] sm:$0xff] %vm2792, 0.0
    %4599 = vst [vmem:[#allocation3 + $0x60] sm:$0xff] 0.0
    %4600 = vst [vmem:[#allocation3 + $0x68] sm:$0xff] 0.0
    %4601 = vst.msk [vmem:[#allocation3 + $0x70] sm:$0xff] %vm2792, 0.0
    %4602 = vst [vmem:[#allocation3 + $0x78] sm:$0xff] 0.0
    %4603 = vst [vmem:[#allocation3 + $0x80] sm:$0xff] 0.0
    %4604 = vst.msk [vmem:[#allocation3 + $0x88] sm:$0xff] %vm2792, 0.0
    %4605 = vst [vmem:[#allocation3 + $0x90] sm:$0xff] 0.0
    %4606 = vst [vmem:[#allocation3 + $0x98] sm:$0xff] 0.0
    %4607 = vst.msk [vmem:[#allocation3 + $0xa0] sm:$0xff] %vm2792, 0.0
    %4608 = vst [vmem:[#allocation3 + $0xa8] sm:$0xff] 0.0
    %4609 = vst [vmem:[#allocation3 + $0xb0] sm:$0xff] 0.0
    %4610 = vst.msk [vmem:[#allocation3 + $0xb8] sm:$0xff] %vm2792, 0.0
    %4611 = vst [vmem:[#allocation3 + $0xc0] sm:$0xff] 0.0
    %4612 = vst [vmem:[#allocation3 + $0xc8] sm:$0xff] 0.0
    %4613 = vst.msk [vmem:[#allocation3 + $0xd0] sm:$0xff] %vm2792, 0.0
    %4614 = vst [vmem:[#allocation3 + $0xd8] sm:$0xff] 0.0
    %4615 = vst [vmem:[#allocation3 + $0xe0] sm:$0xff] 0.0
    %4616 = vst.msk [vmem:[#allocation3 + $0xe8] sm:$0xff] %vm2792, 0.0
    %4617 = vst [vmem:[#allocation3 + $0xf0] sm:$0xff] 0.0
    %4618 = vst [vmem:[#allocation3 + $0xf8] sm:$0xff] 0.0
    %4619 = vst.msk [vmem:[#allocation3 + $0x100] sm:$0xff] %vm2792, 0.0
    %4620 = vst [vmem:[#allocation3 + $0x108] sm:$0xff] 0.0
    %4621 = vst [vmem:[#allocation3 + $0x110] sm:$0xff] 0.0
    %4622 = vst.msk [vmem:[#allocation3 + $0x118] sm:$0xff] %vm2792, 0.0
    %4623 = vst [vmem:[#allocation3 + $0x120] sm:$0xff] 0.0
    %4624 = vst [vmem:[#allocation3 + $0x128] sm:$0xff] 0.0
    %4625 = vst.msk [vmem:[#allocation3 + $0x130] sm:$0xff] %vm2792, 0.0
    %4626 = vst [vmem:[#allocation3 + $0x138] sm:$0xff] 0.0
    %4627 = vst [vmem:[#allocation3 + $0x140] sm:$0xff] 0.0
    %4628 = vst.msk [vmem:[#allocation3 + $0x148] sm:$0xff] %vm2792, 0.0
    %4629 = vst [vmem:[#allocation3 + $0x150] sm:$0xff] 0.0
    %4630 = vst [vmem:[#allocation3 + $0x158] sm:$0xff] 0.0
    %4631 = vst.msk [vmem:[#allocation3 + $0x160] sm:$0xff] %vm2792, 0.0
    %4632 = vst [vmem:[#allocation3 + $0x168] sm:$0xff] 0.0
    %4633 = vst [vmem:[#allocation3 + $0x170] sm:$0xff] 0.0
    %4634 = vst.msk [vmem:[#allocation3 + $0x178] sm:$0xff] %vm2792, 0.0
    %v4733 = vlaneseq
    %v4734 = vshrl.u32 %v4733, 7
    %v4735 = vsub.s32 0, %v4734
    %v4736 = vrot.slane %v4459, %v4735
    %v4737 = vlaneseq
    %v4738 = vshrl.u32 %v4737, 7
    %v4739 = vsub.s32 0, %v4738
    %v4740 = vrot.slane %v4460, %v4739
    %v4741 = vlaneseq
    %v4742 = vshrl.u32 %v4741, 7
    %v4743 = vsub.s32 0, %v4742
    %v4744 = vrot.slane %v4461, %v4743
    %v4745 = vlaneseq
    %v4746 = vshrl.u32 %v4745, 7
    %v4747 = vsub.s32 0, %v4746
    %v4748 = vrot.slane %v4462, %v4747
    %v4749 = vlaneseq
    %v4750 = vshrl.u32 %v4749, 7
    %v4751 = vsub.s32 0, %v4750
    %v4752 = vrot.slane %v4463, %v4751
    %v4753 = vlaneseq
    %v4754 = vshrl.u32 %v4753, 7
    %v4755 = vsub.s32 0, %v4754
    %v4756 = vrot.slane %v4464, %v4755
    %v4757 = vlaneseq
    %v4758 = vshrl.u32 %v4757, 7
    %v4759 = vsub.s32 0, %v4758
    %v4760 = vrot.slane %v4465, %v4759
    %v4761 = vlaneseq
    %v4762 = vshrl.u32 %v4761, 7
    %v4763 = vsub.s32 0, %v4762
    %v4764 = vrot.slane %v4467, %v4763
    %v4765 = vlaneseq
    %v4766 = vshrl.u32 %v4765, 7
    %v4767 = vsub.s32 0, %v4766
    %v4768 = vrot.slane %v4468, %v4767
    %v4769 = vlaneseq
    %v4770 = vshrl.u32 %v4769, 7
    %v4771 = vsub.s32 0, %v4770
    %v4772 = vrot.slane %v4469, %v4771
    %v4773 = vlaneseq
    %v4774 = vshrl.u32 %v4773, 7
    %v4775 = vsub.s32 0, %v4774
    %v4776 = vrot.slane %v4470, %v4775
    %v4777 = vlaneseq
    %v4778 = vshrl.u32 %v4777, 7
    %v4779 = vsub.s32 0, %v4778
    %v4780 = vrot.slane %v4471, %v4779
    %v4781 = vlaneseq
    %v4782 = vshrl.u32 %v4781, 7
    %v4783 = vsub.s32 0, %v4782
    %v4784 = vrot.slane %v4472, %v4783
    %v4785 = vlaneseq
    %v4786 = vshrl.u32 %v4785, 7
    %v4787 = vsub.s32 0, %v4786
    %v4788 = vrot.slane %v4473, %v4787
    %v4789 = vlaneseq
    %v4790 = vshrl.u32 %v4789, 7
    %v4791 = vsub.s32 0, %v4790
    %v4792 = vrot.slane %v4475, %v4791
    %v4793 = vlaneseq
    %v4794 = vshrl.u32 %v4793, 7
    %v4795 = vsub.s32 0, %v4794
    %v4796 = vrot.slane %v4476, %v4795
    %v4797 = vlaneseq
    %v4798 = vshrl.u32 %v4797, 7
    %v4799 = vsub.s32 0, %v4798
    %v4800 = vrot.slane %v4477, %v4799
    %v4801 = vlaneseq
    %v4802 = vshrl.u32 %v4801, 7
    %v4803 = vsub.s32 0, %v4802
    %v4804 = vrot.slane %v4478, %v4803
    %v4805 = vlaneseq
    %v4806 = vshrl.u32 %v4805, 7
    %v4807 = vsub.s32 0, %v4806
    %v4808 = vrot.slane %v4479, %v4807
    %v4809 = vlaneseq
    %v4810 = vshrl.u32 %v4809, 7
    %v4811 = vsub.s32 0, %v4810
    %v4812 = vrot.slane %v4480, %v4811
    %v4813 = vlaneseq
    %v4814 = vshrl.u32 %v4813, 7
    %v4815 = vsub.s32 0, %v4814
    %v4816 = vrot.slane %v4481, %v4815
    %v4817 = vlaneseq
    %v4818 = vshrl.u32 %v4817, 7
    %v4819 = vsub.s32 0, %v4818
    %v4820 = vrot.slane %v4483, %v4819
    %v4821 = vlaneseq
    %v4822 = vshrl.u32 %v4821, 7
    %v4823 = vsub.s32 0, %v4822
    %v4824 = vrot.slane %v4484, %v4823
    %v4825 = vlaneseq
    %v4826 = vshrl.u32 %v4825, 7
    %v4827 = vsub.s32 0, %v4826
    %v4828 = vrot.slane %v4485, %v4827
    %v4829 = vlaneseq
    %v4830 = vshrl.u32 %v4829, 7
    %v4831 = vsub.s32 0, %v4830
    %v4832 = vrot.slane %v4486, %v4831
    %v4833 = vlaneseq
    %v4834 = vshrl.u32 %v4833, 7
    %v4835 = vsub.s32 0, %v4834
    %v4836 = vrot.slane %v4487, %v4835
    %v4837 = vlaneseq
    %v4838 = vshrl.u32 %v4837, 7
    %v4839 = vsub.s32 0, %v4838
    %v4840 = vrot.slane %v4488, %v4839
    %v4841 = vlaneseq
    %v4842 = vshrl.u32 %v4841, 7
    %v4843 = vsub.s32 0, %v4842
    %v4844 = vrot.slane %v4489, %v4843
    %v4845 = vlaneseq
    %v4846 = vshrl.u32 %v4845, 7
    %v4847 = vsub.s32 0, %v4846
    %v4848 = vrot.slane %v4491, %v4847
    %v4849 = vlaneseq
    %v4850 = vshrl.u32 %v4849, 7
    %v4851 = vsub.s32 0, %v4850
    %v4852 = vrot.slane %v4492, %v4851
    %v4853 = vlaneseq
    %v4854 = vshrl.u32 %v4853, 7
    %v4855 = vsub.s32 0, %v4854
    %v4856 = vrot.slane %v4493, %v4855
    %v4857 = vlaneseq
    %v4858 = vshrl.u32 %v4857, 7
    %v4859 = vsub.s32 0, %v4858
    %v4860 = vrot.slane %v4494, %v4859
    %v4861 = vlaneseq
    %v4862 = vshrl.u32 %v4861, 7
    %v4863 = vsub.s32 0, %v4862
    %v4864 = vrot.slane %v4495, %v4863
    %v4865 = vlaneseq
    %v4866 = vshrl.u32 %v4865, 7
    %v4867 = vsub.s32 0, %v4866
    %v4868 = vrot.slane %v4496, %v4867
    %v4869 = vlaneseq
    %v4870 = vshrl.u32 %v4869, 7
    %v4871 = vsub.s32 0, %v4870
    %v4872 = vrot.slane %v4497, %v4871
    %v4873 = vlaneseq
    %v4874 = vshrl.u32 %v4873, 7
    %v4875 = vsub.s32 0, %v4874
    %v4876 = vrot.slane %v4499, %v4875
    %v4877 = vlaneseq
    %v4878 = vshrl.u32 %v4877, 7
    %v4879 = vsub.s32 0, %v4878
    %v4880 = vrot.slane %v4500, %v4879
    %v4881 = vlaneseq
    %v4882 = vshrl.u32 %v4881, 7
    %v4883 = vsub.s32 0, %v4882
    %v4884 = vrot.slane %v4501, %v4883
    %v4885 = vlaneseq
    %v4886 = vshrl.u32 %v4885, 7
    %v4887 = vsub.s32 0, %v4886
    %v4888 = vrot.slane %v4502, %v4887
    %v4889 = vlaneseq
    %v4890 = vshrl.u32 %v4889, 7
    %v4891 = vsub.s32 0, %v4890
    %v4892 = vrot.slane %v4503, %v4891
    %v4893 = vlaneseq
    %v4894 = vshrl.u32 %v4893, 7
    %v4895 = vsub.s32 0, %v4894
    %v4896 = vrot.slane %v4504, %v4895
    %v4897 = vlaneseq
    %v4898 = vshrl.u32 %v4897, 7
    %v4899 = vsub.s32 0, %v4898
    %v4900 = vrot.slane %v4505, %v4899
    %v4901 = vlaneseq
    %v4902 = vshrl.u32 %v4901, 7
    %v4903 = vsub.s32 0, %v4902
    %v4904 = vrot.slane %v4507, %v4903
    %v4905 = vlaneseq
    %v4906 = vshrl.u32 %v4905, 7
    %v4907 = vsub.s32 0, %v4906
    %v4908 = vrot.slane %v4508, %v4907
    %v4909 = vlaneseq
    %v4910 = vshrl.u32 %v4909, 7
    %v4911 = vsub.s32 0, %v4910
    %v4912 = vrot.slane %v4509, %v4911
    %v4913 = vlaneseq
    %v4914 = vshrl.u32 %v4913, 7
    %v4915 = vsub.s32 0, %v4914
    %v4916 = vrot.slane %v4510, %v4915
    %v4917 = vlaneseq
    %v4918 = vshrl.u32 %v4917, 7
    %v4919 = vsub.s32 0, %v4918
    %v4920 = vrot.slane %v4511, %v4919
    %v4921 = vlaneseq
    %v4922 = vshrl.u32 %v4921, 7
    %v4923 = vsub.s32 0, %v4922
    %v4924 = vrot.slane %v4512, %v4923
    %v4925 = vlaneseq
    %v4926 = vshrl.u32 %v4925, 7
    %v4927 = vsub.s32 0, %v4926
    %v4928 = vrot.slane %v4513, %v4927
    %v4929 = vlaneseq
    %v4930 = vshrl.u32 %v4929, 7
    %v4931 = vsub.s32 0, %v4930
    %v4932 = vrot.slane %v4523, %v4931
    %v4933 = vlaneseq
    %v4934 = vshrl.u32 %v4933, 7
    %v4935 = vsub.s32 0, %v4934
    %v4936 = vrot.slane %v4524, %v4935
    %v4937 = vlaneseq
    %v4938 = vshrl.u32 %v4937, 7
    %v4939 = vsub.s32 0, %v4938
    %v4940 = vrot.slane %v4525, %v4939
    %v4941 = vlaneseq
    %v4942 = vshrl.u32 %v4941, 7
    %v4943 = vsub.s32 0, %v4942
    %v4944 = vrot.slane %v4526, %v4943
    %v4945 = vlaneseq
    %v4946 = vshrl.u32 %v4945, 7
    %v4947 = vsub.s32 0, %v4946
    %v4948 = vrot.slane %v4527, %v4947
    %v4949 = vlaneseq
    %v4950 = vshrl.u32 %v4949, 7
    %v4951 = vsub.s32 0, %v4950
    %v4952 = vrot.slane %v4528, %v4951
    %v4953 = vlaneseq
    %v4954 = vshrl.u32 %v4953, 7
    %v4955 = vsub.s32 0, %v4954
    %v4956 = vrot.slane %v4529, %v4955
    %v4957 = vlaneseq
    %v4958 = vshrl.u32 %v4957, 7
    %v4959 = vsub.s32 0, %v4958
    %v4960 = vrot.slane %v4531, %v4959
    %v4961 = vlaneseq
    %v4962 = vshrl.u32 %v4961, 7
    %v4963 = vsub.s32 0, %v4962
    %v4964 = vrot.slane %v4532, %v4963
    %v4965 = vlaneseq
    %v4966 = vshrl.u32 %v4965, 7
    %v4967 = vsub.s32 0, %v4966
    %v4968 = vrot.slane %v4533, %v4967
    %v4969 = vlaneseq
    %v4970 = vshrl.u32 %v4969, 7
    %v4971 = vsub.s32 0, %v4970
    %v4972 = vrot.slane %v4534, %v4971
    %v4973 = vlaneseq
    %v4974 = vshrl.u32 %v4973, 7
    %v4975 = vsub.s32 0, %v4974
    %v4976 = vrot.slane %v4535, %v4975
    %v4977 = vlaneseq
    %v4978 = vshrl.u32 %v4977, 7
    %v4979 = vsub.s32 0, %v4978
    %v4980 = vrot.slane %v4536, %v4979
    %v4981 = vlaneseq
    %v4982 = vshrl.u32 %v4981, 7
    %v4983 = vsub.s32 0, %v4982
    %v4984 = vrot.slane %v4537, %v4983
    %v4985 = vlaneseq
    %v4986 = vshrl.u32 %v4985, 7
    %v4987 = vsub.s32 0, %v4986
    %v4988 = vrot.slane %v4539, %v4987
    %v4989 = vlaneseq
    %v4990 = vshrl.u32 %v4989, 7
    %v4991 = vsub.s32 0, %v4990
    %v4992 = vrot.slane %v4540, %v4991
    %v4993 = vlaneseq
    %v4994 = vshrl.u32 %v4993, 7
    %v4995 = vsub.s32 0, %v4994
    %v4996 = vrot.slane %v4541, %v4995
    %v4997 = vlaneseq
    %v4998 = vshrl.u32 %v4997, 7
    %v4999 = vsub.s32 0, %v4998
    %v5000 = vrot.slane %v4542, %v4999
    %v5001 = vlaneseq
    %v5002 = vshrl.u32 %v5001, 7
    %v5003 = vsub.s32 0, %v5002
    %v5004 = vrot.slane %v4543, %v5003
    %v5005 = vlaneseq
    %v5006 = vshrl.u32 %v5005, 7
    %v5007 = vsub.s32 0, %v5006
    %v5008 = vrot.slane %v4544, %v5007
    %v5009 = vlaneseq
    %v5010 = vshrl.u32 %v5009, 7
    %v5011 = vsub.s32 0, %v5010
    %v5012 = vrot.slane %v4545, %v5011
    %v5013 = vlaneseq
    %v5014 = vshrl.u32 %v5013, 7
    %v5015 = vsub.s32 0, %v5014
    %v5016 = vrot.slane %v4547, %v5015
    %v5017 = vlaneseq
    %v5018 = vshrl.u32 %v5017, 7
    %v5019 = vsub.s32 0, %v5018
    %v5020 = vrot.slane %v4548, %v5019
    %v5021 = vlaneseq
    %v5022 = vshrl.u32 %v5021, 7
    %v5023 = vsub.s32 0, %v5022
    %v5024 = vrot.slane %v4549, %v5023
    %v5025 = vlaneseq
    %v5026 = vshrl.u32 %v5025, 7
    %v5027 = vsub.s32 0, %v5026
    %v5028 = vrot.slane %v4550, %v5027
    %v5029 = vlaneseq
    %v5030 = vshrl.u32 %v5029, 7
    %v5031 = vsub.s32 0, %v5030
    %v5032 = vrot.slane %v4551, %v5031
    %v5033 = vlaneseq
    %v5034 = vshrl.u32 %v5033, 7
    %v5035 = vsub.s32 0, %v5034
    %v5036 = vrot.slane %v4552, %v5035
    %v5037 = vlaneseq
    %v5038 = vshrl.u32 %v5037, 7
    %v5039 = vsub.s32 0, %v5038
    %v5040 = vrot.slane %v4553, %v5039
    %v5041 = vlaneseq
    %v5042 = vshrl.u32 %v5041, 7
    %v5043 = vsub.s32 0, %v5042
    %v5044 = vrot.slane %v4555, %v5043
    %v5045 = vlaneseq
    %v5046 = vshrl.u32 %v5045, 7
    %v5047 = vsub.s32 0, %v5046
    %v5048 = vrot.slane %v4556, %v5047
    %v5049 = vlaneseq
    %v5050 = vshrl.u32 %v5049, 7
    %v5051 = vsub.s32 0, %v5050
    %v5052 = vrot.slane %v4557, %v5051
    %v5053 = vlaneseq
    %v5054 = vshrl.u32 %v5053, 7
    %v5055 = vsub.s32 0, %v5054
    %v5056 = vrot.slane %v4558, %v5055
    %v5057 = vlaneseq
    %v5058 = vshrl.u32 %v5057, 7
    %v5059 = vsub.s32 0, %v5058
    %v5060 = vrot.slane %v4559, %v5059
    %v5061 = vlaneseq
    %v5062 = vshrl.u32 %v5061, 7
    %v5063 = vsub.s32 0, %v5062
    %v5064 = vrot.slane %v4560, %v5063
    %v5065 = vlaneseq
    %v5066 = vshrl.u32 %v5065, 7
    %v5067 = vsub.s32 0, %v5066
    %v5068 = vrot.slane %v4561, %v5067
    %v5069 = vlaneseq
    %v5070 = vshrl.u32 %v5069, 7
    %v5071 = vsub.s32 0, %v5070
    %v5072 = vrot.slane %v4563, %v5071
    %v5073 = vlaneseq
    %v5074 = vshrl.u32 %v5073, 7
    %v5075 = vsub.s32 0, %v5074
    %v5076 = vrot.slane %v4564, %v5075
    %v5077 = vlaneseq
    %v5078 = vshrl.u32 %v5077, 7
    %v5079 = vsub.s32 0, %v5078
    %v5080 = vrot.slane %v4565, %v5079
    %v5081 = vlaneseq
    %v5082 = vshrl.u32 %v5081, 7
    %v5083 = vsub.s32 0, %v5082
    %v5084 = vrot.slane %v4566, %v5083
    %v5085 = vlaneseq
    %v5086 = vshrl.u32 %v5085, 7
    %v5087 = vsub.s32 0, %v5086
    %v5088 = vrot.slane %v4567, %v5087
    %v5089 = vlaneseq
    %v5090 = vshrl.u32 %v5089, 7
    %v5091 = vsub.s32 0, %v5090
    %v5092 = vrot.slane %v4568, %v5091
    %v5093 = vlaneseq
    %v5094 = vshrl.u32 %v5093, 7
    %v5095 = vsub.s32 0, %v5094
    %v5096 = vrot.slane %v4569, %v5095
    %v5097 = vlaneseq
    %v5098 = vshrl.u32 %v5097, 7
    %v5099 = vsub.s32 0, %v5098
    %v5100 = vrot.slane %v4571, %v5099
    %v5101 = vlaneseq
    %v5102 = vshrl.u32 %v5101, 7
    %v5103 = vsub.s32 0, %v5102
    %v5104 = vrot.slane %v4572, %v5103
    %v5105 = vlaneseq
    %v5106 = vshrl.u32 %v5105, 7
    %v5107 = vsub.s32 0, %v5106
    %v5108 = vrot.slane %v4573, %v5107
    %v5109 = vlaneseq
    %v5110 = vshrl.u32 %v5109, 7
    %v5111 = vsub.s32 0, %v5110
    %v5112 = vrot.slane %v4574, %v5111
    %v5113 = vlaneseq
    %v5114 = vshrl.u32 %v5113, 7
    %v5115 = vsub.s32 0, %v5114
    %v5116 = vrot.slane %v4575, %v5115
    %v5117 = vlaneseq
    %v5118 = vshrl.u32 %v5117, 7
    %v5119 = vsub.s32 0, %v5118
    %v5120 = vrot.slane %v4576, %v5119
    %v5121 = vlaneseq
    %v5122 = vshrl.u32 %v5121, 7
    %v5123 = vsub.s32 0, %v5122
    %v5124 = vrot.slane %v4577, %v5123
    %vm5125 = vcmask 1042434
    %v5126 = vsel %vm5125, %v4740, %v4736
    %vm5127 = vcmask 1043459
    %v5128 = vsel %vm5127, %v4744, %v5126
    %vm5129 = vcmask 1044484
    %v5130 = vsel %vm5129, %v4748, %v5128
    %vm5131 = vcmask 1045509
    %v5132 = vsel %vm5131, %v4752, %v5130
    %vm5133 = vcmask 1046534
    %v5134 = vsel %vm5133, %v4756, %v5132
    %vm5135 = vcmask 1047559
    %v5136 = vsel %vm5135, %v4760, %v5134
    %v5137 = vsel %vm5125, %v4768, %v4764
    %v5138 = vsel %vm5127, %v4772, %v5137
    %v5139 = vsel %vm5129, %v4776, %v5138
    %v5140 = vsel %vm5131, %v4780, %v5139
    %v5141 = vsel %vm5133, %v4784, %v5140
    %v5142 = vsel %vm5135, %v4788, %v5141
    %v5143 = vsel %vm5125, %v4796, %v4792
    %v5144 = vsel %vm5127, %v4800, %v5143
    %v5145 = vsel %vm5129, %v4804, %v5144
    %v5146 = vsel %vm5131, %v4808, %v5145
    %v5147 = vsel %vm5133, %v4812, %v5146
    %v5148 = vsel %vm5135, %v4816, %v5147
    %v5149 = vsel %vm5125, %v4824, %v4820
    %v5150 = vsel %vm5127, %v4828, %v5149
    %v5151 = vsel %vm5129, %v4832, %v5150
    %v5152 = vsel %vm5131, %v4836, %v5151
    %v5153 = vsel %vm5133, %v4840, %v5152
    %v5154 = vsel %vm5135, %v4844, %v5153
    %v5155 = vsel %vm5125, %v4852, %v4848
    %v5156 = vsel %vm5127, %v4856, %v5155
    %v5157 = vsel %vm5129, %v4860, %v5156
    %v5158 = vsel %vm5131, %v4864, %v5157
    %v5159 = vsel %vm5133, %v4868, %v5158
    %v5160 = vsel %vm5135, %v4872, %v5159
    %v5161 = vsel %vm5125, %v4880, %v4876
    %v5162 = vsel %vm5127, %v4884, %v5161
    %v5163 = vsel %vm5129, %v4888, %v5162
    %v5164 = vsel %vm5131, %v4892, %v5163
    %v5165 = vsel %vm5133, %v4896, %v5164
    %v5166 = vsel %vm5135, %v4900, %v5165
    %v5167 = vsel %vm5125, %v4908, %v4904
    %v5168 = vsel %vm5127, %v4912, %v5167
    %v5169 = vsel %vm5129, %v4916, %v5168
    %v5170 = vsel %vm5131, %v4920, %v5169
    %v5171 = vsel %vm5133, %v4924, %v5170
    %v5172 = vsel %vm5135, %v4928, %v5171
    %v5173 = vsel %vm5125, %v4936, %v4932
    %v5174 = vsel %vm5127, %v4940, %v5173
    %v5175 = vsel %vm5129, %v4944, %v5174
    %v5176 = vsel %vm5131, %v4948, %v5175
    %v5177 = vsel %vm5133, %v4952, %v5176
    %v5178 = vsel %vm5135, %v4956, %v5177
    %v5179 = vsel %vm5125, %v4964, %v4960
    %v5180 = vsel %vm5127, %v4968, %v5179
    %v5181 = vsel %vm5129, %v4972, %v5180
    %v5182 = vsel %vm5131, %v4976, %v5181
    %v5183 = vsel %vm5133, %v4980, %v5182
    %v5184 = vsel %vm5135, %v4984, %v5183
    %v5185 = vsel %vm5125, %v4992, %v4988
    %v5186 = vsel %vm5127, %v4996, %v5185
    %v5187 = vsel %vm5129, %v5000, %v5186
    %v5188 = vsel %vm5131, %v5004, %v5187
    %v5189 = vsel %vm5133, %v5008, %v5188
    %v5190 = vsel %vm5135, %v5012, %v5189
    %v5191 = vsel %vm5125, %v5020, %v5016
    %v5192 = vsel %vm5127, %v5024, %v5191
    %v5193 = vsel %vm5129, %v5028, %v5192
    %v5194 = vsel %vm5131, %v5032, %v5193
    %v5195 = vsel %vm5133, %v5036, %v5194
    %v5196 = vsel %vm5135, %v5040, %v5195
    %v5197 = vsel %vm5125, %v5048, %v5044
    %v5198 = vsel %vm5127, %v5052, %v5197
    %v5199 = vsel %vm5129, %v5056, %v5198
    %v5200 = vsel %vm5131, %v5060, %v5199
    %v5201 = vsel %vm5133, %v5064, %v5200
    %v5202 = vsel %vm5135, %v5068, %v5201
    %v5203 = vsel %vm5125, %v5076, %v5072
    %v5204 = vsel %vm5127, %v5080, %v5203
    %v5205 = vsel %vm5129, %v5084, %v5204
    %v5206 = vsel %vm5131, %v5088, %v5205
    %v5207 = vsel %vm5133, %v5092, %v5206
    %v5208 = vsel %vm5135, %v5096, %v5207
    %v5209 = vsel %vm5125, %v5104, %v5100
    %v5210 = vsel %vm5127, %v5108, %v5209
    %v5211 = vsel %vm5129, %v5112, %v5210
    %v5212 = vsel %vm5131, %v5116, %v5211
    %v5213 = vsel %vm5133, %v5120, %v5212
    %v5214 = vsel %vm5135, %v5124, %v5213
    %s5229 = scalar_lea.vmem [#allocation3], 24
    %vm5230 = vcmask 261121
    %5231 = vst.msk [vmem:[%s5229] sm:$0xfe] %vm5230, %v5136
    %5232 = vst.msk [vmem:[%s5229 + $0x18] sm:$0xfe] %vm5230, %v5142
    %5233 = vst.msk [vmem:[%s5229 + $0x30] sm:$0xfe] %vm5230, %v5148
    %5234 = vst.msk [vmem:[%s5229 + $0x48] sm:$0xfe] %vm5230, %v5154
    %5235 = vst.msk [vmem:[%s5229 + $0x60] sm:$0xfe] %vm5230, %v5160
    %5236 = vst.msk [vmem:[%s5229 + $0x78] sm:$0xfe] %vm5230, %v5166
    %5237 = vst.msk [vmem:[%s5229 + $0x90] sm:$0xfe] %vm5230, %v5172
    %5238 = vst.msk [vmem:[%s5229 + $0xc0] sm:$0xfe] %vm5230, %v5178
    %5239 = vst.msk [vmem:[%s5229 + $0xd8] sm:$0xfe] %vm5230, %v5184
    %5240 = vst.msk [vmem:[%s5229 + $0xf0] sm:$0xfe] %vm5230, %v5190
    %5241 = vst.msk [vmem:[%s5229 + $0x108] sm:$0xfe] %vm5230, %v5196
    %5242 = vst.msk [vmem:[%s5229 + $0x120] sm:$0xfe] %vm5230, %v5202
    %5243 = vst.msk [vmem:[%s5229 + $0x138] sm:$0xfe] %vm5230, %v5208
    %5244 = vst.msk [vmem:[%s5229 + $0x150] sm:$0xfe] %vm5230, %v5214
    %v5259 = vlaneseq
    %v5260 = vshrl.u32 %v5259, 7
    %v5261 = vsub.s32 0, %v5260
    %v5262 = vrot.slane %v4466, %v5261
    %v5263 = vlaneseq
    %v5264 = vshrl.u32 %v5263, 7
    %v5265 = vsub.s32 0, %v5264
    %v5266 = vrot.slane %v4474, %v5265
    %v5267 = vlaneseq
    %v5268 = vshrl.u32 %v5267, 7
    %v5269 = vsub.s32 0, %v5268
    %v5270 = vrot.slane %v4482, %v5269
    %v5271 = vlaneseq
    %v5272 = vshrl.u32 %v5271, 7
    %v5273 = vsub.s32 0, %v5272
    %v5274 = vrot.slane %v4490, %v5273
    %v5275 = vlaneseq
    %v5276 = vshrl.u32 %v5275, 7
    %v5277 = vsub.s32 0, %v5276
    %v5278 = vrot.slane %v4498, %v5277
    %v5279 = vlaneseq
    %v5280 = vshrl.u32 %v5279, 7
    %v5281 = vsub.s32 0, %v5280
    %v5282 = vrot.slane %v4506, %v5281
    %v5283 = vlaneseq
    %v5284 = vshrl.u32 %v5283, 7
    %v5285 = vsub.s32 0, %v5284
    %v5286 = vrot.slane %v4514, %v5285
    %v5287 = vlaneseq
    %v5288 = vshrl.u32 %v5287, 7
    %v5289 = vsub.s32 0, %v5288
    %v5290 = vrot.slane %v4530, %v5289
    %v5291 = vlaneseq
    %v5292 = vshrl.u32 %v5291, 7
    %v5293 = vsub.s32 0, %v5292
    %v5294 = vrot.slane %v4538, %v5293
    %v5295 = vlaneseq
    %v5296 = vshrl.u32 %v5295, 7
    %v5297 = vsub.s32 0, %v5296
    %v5298 = vrot.slane %v4546, %v5297
    %v5299 = vlaneseq
    %v5300 = vshrl.u32 %v5299, 7
    %v5301 = vsub.s32 0, %v5300
    %v5302 = vrot.slane %v4554, %v5301
    %v5303 = vlaneseq
    %v5304 = vshrl.u32 %v5303, 7
    %v5305 = vsub.s32 0, %v5304
    %v5306 = vrot.slane %v4562, %v5305
    %v5307 = vlaneseq
    %v5308 = vshrl.u32 %v5307, 7
    %v5309 = vsub.s32 0, %v5308
    %v5310 = vrot.slane %v4570, %v5309
    %v5311 = vlaneseq
    %v5312 = vshrl.u32 %v5311, 7
    %v5313 = vsub.s32 0, %v5312
    %v5314 = vrot.slane %v4578, %v5313
    %vm5315 = vcmask 1041409
    %v5316 = vsel %vm5315, %v4740, %v4736
    %v5317 = vsel %vm5125, %v4744, %v5316
    %v5318 = vsel %vm5127, %v4748, %v5317
    %v5319 = vsel %vm5129, %v4752, %v5318
    %v5320 = vsel %vm5131, %v4756, %v5319
    %v5321 = vsel %vm5133, %v4760, %v5320
    %v5322 = vsel %vm5135, %v5262, %v5321
    %v5323 = vsel %vm5315, %v4768, %v4764
    %v5324 = vsel %vm5125, %v4772, %v5323
    %v5325 = vsel %vm5127, %v4776, %v5324
    %v5326 = vsel %vm5129, %v4780, %v5325
    %v5327 = vsel %vm5131, %v4784, %v5326
    %v5328 = vsel %vm5133, %v4788, %v5327
    %v5329 = vsel %vm5135, %v5266, %v5328
    %v5330 = vsel %vm5315, %v4796, %v4792
    %v5331 = vsel %vm5125, %v4800, %v5330
    %v5332 = vsel %vm5127, %v4804, %v5331
    %v5333 = vsel %vm5129, %v4808, %v5332
    %v5334 = vsel %vm5131, %v4812, %v5333
    %v5335 = vsel %vm5133, %v4816, %v5334
    %v5336 = vsel %vm5135, %v5270, %v5335
    %v5337 = vsel %vm5315, %v4824, %v4820
    %v5338 = vsel %vm5125, %v4828, %v5337
    %v5339 = vsel %vm5127, %v4832, %v5338
    %v5340 = vsel %vm5129, %v4836, %v5339
    %v5341 = vsel %vm5131, %v4840, %v5340
    %v5342 = vsel %vm5133, %v4844, %v5341
    %v5343 = vsel %vm5135, %v5274, %v5342
    %v5344 = vsel %vm5315, %v4852, %v4848
    %v5345 = vsel %vm5125, %v4856, %v5344
    %v5346 = vsel %vm5127, %v4860, %v5345
    %v5347 = vsel %vm5129, %v4864, %v5346
    %v5348 = vsel %vm5131, %v4868, %v5347
    %v5349 = vsel %vm5133, %v4872, %v5348
    %v5350 = vsel %vm5135, %v5278, %v5349
    %v5351 = vsel %vm5315, %v4880, %v4876
    %v5352 = vsel %vm5125, %v4884, %v5351
    %v5353 = vsel %vm5127, %v4888, %v5352
    %v5354 = vsel %vm5129, %v4892, %v5353
    %v5355 = vsel %vm5131, %v4896, %v5354
    %v5356 = vsel %vm5133, %v4900, %v5355
    %v5357 = vsel %vm5135, %v5282, %v5356
    %v5358 = vsel %vm5315, %v4908, %v4904
    %v5359 = vsel %vm5125, %v4912, %v5358
    %v5360 = vsel %vm5127, %v4916, %v5359
    %v5361 = vsel %vm5129, %v4920, %v5360
    %v5362 = vsel %vm5131, %v4924, %v5361
    %v5363 = vsel %vm5133, %v4928, %v5362
    %v5364 = vsel %vm5135, %v5286, %v5363
    %v5365 = vsel %vm5315, %v4936, %v4932
    %v5366 = vsel %vm5125, %v4940, %v5365
    %v5367 = vsel %vm5127, %v4944, %v5366
    %v5368 = vsel %vm5129, %v4948, %v5367
    %v5369 = vsel %vm5131, %v4952, %v5368
    %v5370 = vsel %vm5133, %v4956, %v5369
    %v5371 = vsel %vm5135, %v5290, %v5370
    %v5372 = vsel %vm5315, %v4964, %v4960
    %v5373 = vsel %vm5125, %v4968, %v5372
    %v5374 = vsel %vm5127, %v4972, %v5373
    %v5375 = vsel %vm5129, %v4976, %v5374
    %v5376 = vsel %vm5131, %v4980, %v5375
    %v5377 = vsel %vm5133, %v4984, %v5376
    %v5378 = vsel %vm5135, %v5294, %v5377
    %v5379 = vsel %vm5315, %v4992, %v4988
    %v5380 = vsel %vm5125, %v4996, %v5379
    %v5381 = vsel %vm5127, %v5000, %v5380
    %v5382 = vsel %vm5129, %v5004, %v5381
    %v5383 = vsel %vm5131, %v5008, %v5382
    %v5384 = vsel %vm5133, %v5012, %v5383
    %v5385 = vsel %vm5135, %v5298, %v5384
    %v5386 = vsel %vm5315, %v5020, %v5016
    %v5387 = vsel %vm5125, %v5024, %v5386
    %v5388 = vsel %vm5127, %v5028, %v5387
    %v5389 = vsel %vm5129, %v5032, %v5388
    %v5390 = vsel %vm5131, %v5036, %v5389
    %v5391 = vsel %vm5133, %v5040, %v5390
    %v5392 = vsel %vm5135, %v5302, %v5391
    %v5393 = vsel %vm5315, %v5048, %v5044
    %v5394 = vsel %vm5125, %v5052, %v5393
    %v5395 = vsel %vm5127, %v5056, %v5394
    %v5396 = vsel %vm5129, %v5060, %v5395
    %v5397 = vsel %vm5131, %v5064, %v5396
    %v5398 = vsel %vm5133, %v5068, %v5397
    %v5399 = vsel %vm5135, %v5306, %v5398
    %v5400 = vsel %vm5315, %v5076, %v5072
    %v5401 = vsel %vm5125, %v5080, %v5400
    %v5402 = vsel %vm5127, %v5084, %v5401
    %v5403 = vsel %vm5129, %v5088, %v5402
    %v5404 = vsel %vm5131, %v5092, %v5403
    %v5405 = vsel %vm5133, %v5096, %v5404
    %v5406 = vsel %vm5135, %v5310, %v5405
    %v5407 = vsel %vm5315, %v5104, %v5100
    %v5408 = vsel %vm5125, %v5108, %v5407
    %v5409 = vsel %vm5127, %v5112, %v5408
    %v5410 = vsel %vm5129, %v5116, %v5409
    %v5411 = vsel %vm5131, %v5120, %v5410
    %v5412 = vsel %vm5133, %v5124, %v5411
    %v5413 = vsel %vm5135, %v5314, %v5412
    %5414 = vrot.lane.b32.xlu0 %v5322, 32
    %v5415 = vpop.permute.xlu0 %5414
    %5416 = vrot.lane.b32.xlu0 %v5329, 32
    %v5417 = vpop.permute.xlu0 %5416
    %5418 = vrot.lane.b32.xlu0 %v5336, 32
    %v5419 = vpop.permute.xlu0 %5418
    %5420 = vrot.lane.b32.xlu0 %v5343, 32
    %v5421 = vpop.permute.xlu0 %5420
    %5422 = vrot.lane.b32.xlu0 %v5350, 32
    %v5423 = vpop.permute.xlu0 %5422
    %5424 = vrot.lane.b32.xlu0 %v5357, 32
    %v5425 = vpop.permute.xlu0 %5424
    %5426 = vrot.lane.b32.xlu0 %v5364, 32
    %v5427 = vpop.permute.xlu0 %5426
    %5428 = vrot.lane.b32.xlu0 %v5371, 32
    %v5429 = vpop.permute.xlu0 %5428
    %5430 = vrot.lane.b32.xlu0 %v5378, 32
    %v5431 = vpop.permute.xlu0 %5430
    %5432 = vrot.lane.b32.xlu0 %v5385, 32
    %v5433 = vpop.permute.xlu0 %5432
    %5434 = vrot.lane.b32.xlu0 %v5392, 32
    %v5435 = vpop.permute.xlu0 %5434
    %5436 = vrot.lane.b32.xlu0 %v5399, 32
    %v5437 = vpop.permute.xlu0 %5436
    %5438 = vrot.lane.b32.xlu0 %v5406, 32
    %v5439 = vpop.permute.xlu0 %5438
    %5440 = vrot.lane.b32.xlu0 %v5413, 32
    %v5441 = vpop.permute.xlu0 %5440
    %vm5456 = vcmask 523520
    %5457 = vst.msk [vmem:[%s5229] sm:$0xff] %vm5456, %v5415
    %5458 = vst.msk [vmem:[%s5229 + $0x18] sm:$0xff] %vm5456, %v5417
    %5459 = vst.msk [vmem:[%s5229 + $0x30] sm:$0xff] %vm5456, %v5419
    %5460 = vst.msk [vmem:[%s5229 + $0x48] sm:$0xff] %vm5456, %v5421
    %5461 = vst.msk [vmem:[%s5229 + $0x60] sm:$0xff] %vm5456, %v5423
    %5462 = vst.msk [vmem:[%s5229 + $0x78] sm:$0xff] %vm5456, %v5425
    %5463 = vst.msk [vmem:[%s5229 + $0x90] sm:$0xff] %vm5456, %v5427
    %5464 = vst.msk [vmem:[%s5229 + $0xc0] sm:$0xff] %vm5456, %v5429
    %5465 = vst.msk [vmem:[%s5229 + $0xd8] sm:$0xff] %vm5456, %v5431
    %5466 = vst.msk [vmem:[%s5229 + $0xf0] sm:$0xff] %vm5456, %v5433
    %5467 = vst.msk [vmem:[%s5229 + $0x108] sm:$0xff] %vm5456, %v5435
    %5468 = vst.msk [vmem:[%s5229 + $0x120] sm:$0xff] %vm5456, %v5437
    %5469 = vst.msk [vmem:[%s5229 + $0x138] sm:$0xff] %vm5456, %v5439
    %5470 = vst.msk [vmem:[%s5229 + $0x150] sm:$0xff] %vm5456, %v5441
    %v5471 = vsel %vm5315, %v4744, %v4740
    %v5472 = vsel %vm5125, %v4748, %v5471
    %v5473 = vsel %vm5127, %v4752, %v5472
    %v5474 = vsel %vm5129, %v4756, %v5473
    %v5475 = vsel %vm5131, %v4760, %v5474
    %v5476 = vsel %vm5133, %v5262, %v5475
    %v5477 = vsel %vm5315, %v4772, %v4768
    %v5478 = vsel %vm5125, %v4776, %v5477
    %v5479 = vsel %vm5127, %v4780, %v5478
    %v5480 = vsel %vm5129, %v4784, %v5479
    %v5481 = vsel %vm5131, %v4788, %v5480
    %v5482 = vsel %vm5133, %v5266, %v5481
    %v5483 = vsel %vm5315, %v4800, %v4796
    %v5484 = vsel %vm5125, %v4804, %v5483
    %v5485 = vsel %vm5127, %v4808, %v5484
    %v5486 = vsel %vm5129, %v4812, %v5485
    %v5487 = vsel %vm5131, %v4816, %v5486
    %v5488 = vsel %vm5133, %v5270, %v5487
    %v5489 = vsel %vm5315, %v4828, %v4824
    %v5490 = vsel %vm5125, %v4832, %v5489
    %v5491 = vsel %vm5127, %v4836, %v5490
    %v5492 = vsel %vm5129, %v4840, %v5491
    %v5493 = vsel %vm5131, %v4844, %v5492
    %v5494 = vsel %vm5133, %v5274, %v5493
    %v5495 = vsel %vm5315, %v4856, %v4852
    %v5496 = vsel %vm5125, %v4860, %v5495
    %v5497 = vsel %vm5127, %v4864, %v5496
    %v5498 = vsel %vm5129, %v4868, %v5497
    %v5499 = vsel %vm5131, %v4872, %v5498
    %v5500 = vsel %vm5133, %v5278, %v5499
    %v5501 = vsel %vm5315, %v4884, %v4880
    %v5502 = vsel %vm5125, %v4888, %v5501
    %v5503 = vsel %vm5127, %v4892, %v5502
    %v5504 = vsel %vm5129, %v4896, %v5503
    %v5505 = vsel %vm5131, %v4900, %v5504
    %v5506 = vsel %vm5133, %v5282, %v5505
    %v5507 = vsel %vm5315, %v4912, %v4908
    %v5508 = vsel %vm5125, %v4916, %v5507
    %v5509 = vsel %vm5127, %v4920, %v5508
    %v5510 = vsel %vm5129, %v4924, %v5509
    %v5511 = vsel %vm5131, %v4928, %v5510
    %v5512 = vsel %vm5133, %v5286, %v5511
    %v5513 = vsel %vm5315, %v4940, %v4936
    %v5514 = vsel %vm5125, %v4944, %v5513
    %v5515 = vsel %vm5127, %v4948, %v5514
    %v5516 = vsel %vm5129, %v4952, %v5515
    %v5517 = vsel %vm5131, %v4956, %v5516
    %v5518 = vsel %vm5133, %v5290, %v5517
    %v5519 = vsel %vm5315, %v4968, %v4964
    %v5520 = vsel %vm5125, %v4972, %v5519
    %v5521 = vsel %vm5127, %v4976, %v5520
    %v5522 = vsel %vm5129, %v4980, %v5521
    %v5523 = vsel %vm5131, %v4984, %v5522
    %v5524 = vsel %vm5133, %v5294, %v5523
    %v5525 = vsel %vm5315, %v4996, %v4992
    %v5526 = vsel %vm5125, %v5000, %v5525
    %v5527 = vsel %vm5127, %v5004, %v5526
    %v5528 = vsel %vm5129, %v5008, %v5527
    %v5529 = vsel %vm5131, %v5012, %v5528
    %v5530 = vsel %vm5133, %v5298, %v5529
    %v5531 = vsel %vm5315, %v5024, %v5020
    %v5532 = vsel %vm5125, %v5028, %v5531
    %v5533 = vsel %vm5127, %v5032, %v5532
    %v5534 = vsel %vm5129, %v5036, %v5533
    %v5535 = vsel %vm5131, %v5040, %v5534
    %v5536 = vsel %vm5133, %v5302, %v5535
    %v5537 = vsel %vm5315, %v5052, %v5048
    %v5538 = vsel %vm5125, %v5056, %v5537
    %v5539 = vsel %vm5127, %v5060, %v5538
    %v5540 = vsel %vm5129, %v5064, %v5539
    %v5541 = vsel %vm5131, %v5068, %v5540
    %v5542 = vsel %vm5133, %v5306, %v5541
    %v5543 = vsel %vm5315, %v5080, %v5076
    %v5544 = vsel %vm5125, %v5084, %v5543
    %v5545 = vsel %vm5127, %v5088, %v5544
    %v5546 = vsel %vm5129, %v5092, %v5545
    %v5547 = vsel %vm5131, %v5096, %v5546
    %v5548 = vsel %vm5133, %v5310, %v5547
    %v5549 = vsel %vm5315, %v5108, %v5104
    %v5550 = vsel %vm5125, %v5112, %v5549
    %v5551 = vsel %vm5127, %v5116, %v5550
    %v5552 = vsel %vm5129, %v5120, %v5551
    %v5553 = vsel %vm5131, %v5124, %v5552
    %v5554 = vsel %vm5133, %v5314, %v5553
    %5555 = vrot.lane.b32.xlu0 %v5476, 64
    %v5556 = vpop.permute.xlu0 %5555
    %5557 = vrot.lane.b32.xlu0 %v5482, 64
    %v5558 = vpop.permute.xlu0 %5557
    %5559 = vrot.lane.b32.xlu0 %v5488, 64
    %v5560 = vpop.permute.xlu0 %5559
    %5561 = vrot.lane.b32.xlu0 %v5494, 64
    %v5562 = vpop.permute.xlu0 %5561
    %5563 = vrot.lane.b32.xlu0 %v5500, 64
    %v5564 = vpop.permute.xlu0 %5563
    %5565 = vrot.lane.b32.xlu0 %v5506, 64
    %v5566 = vpop.permute.xlu0 %5565
    %5567 = vrot.lane.b32.xlu0 %v5512, 64
    %v5568 = vpop.permute.xlu0 %5567
    %5569 = vrot.lane.b32.xlu0 %v5518, 64
    %v5570 = vpop.permute.xlu0 %5569
    %5571 = vrot.lane.b32.xlu0 %v5524, 64
    %v5572 = vpop.permute.xlu0 %5571
    %5573 = vrot.lane.b32.xlu0 %v5530, 64
    %v5574 = vpop.permute.xlu0 %5573
    %5575 = vrot.lane.b32.xlu0 %v5536, 64
    %v5576 = vpop.permute.xlu0 %5575
    %5577 = vrot.lane.b32.xlu0 %v5542, 64
    %v5578 = vpop.permute.xlu0 %5577
    %5579 = vrot.lane.b32.xlu0 %v5548, 64
    %v5580 = vpop.permute.xlu0 %5579
    %5581 = vrot.lane.b32.xlu0 %v5554, 64
    %v5582 = vpop.permute.xlu0 %5581
    %vm5597 = vcmask 784896
    %5598 = vst.msk [vmem:[%s5229] sm:$0x7f] %vm5597, %v5556
    %5599 = vst.msk [vmem:[%s5229 + $0x18] sm:$0x7f] %vm5597, %v5558
    %5600 = vst.msk [vmem:[%s5229 + $0x30] sm:$0x7f] %vm5597, %v5560
    %5601 = vst.msk [vmem:[%s5229 + $0x48] sm:$0x7f] %vm5597, %v5562
    %5602 = vst.msk [vmem:[%s5229 + $0x60] sm:$0x7f] %vm5597, %v5564
    %5603 = vst.msk [vmem:[%s5229 + $0x78] sm:$0x7f] %vm5597, %v5566
    %5604 = vst.msk [vmem:[%s5229 + $0x90] sm:$0x7f] %vm5597, %v5568
    %5605 = vst.msk [vmem:[%s5229 + $0xc0] sm:$0x7f] %vm5597, %v5570
    %5606 = vst.msk [vmem:[%s5229 + $0xd8] sm:$0x7f] %vm5597, %v5572
    %5607 = vst.msk [vmem:[%s5229 + $0xf0] sm:$0x7f] %vm5597, %v5574
    %5608 = vst.msk [vmem:[%s5229 + $0x108] sm:$0x7f] %vm5597, %v5576
    %5609 = vst.msk [vmem:[%s5229 + $0x120] sm:$0x7f] %vm5597, %v5578
    %5610 = vst.msk [vmem:[%s5229 + $0x138] sm:$0x7f] %vm5597, %v5580
    %5611 = vst.msk [vmem:[%s5229 + $0x150] sm:$0x7f] %vm5597, %v5582
    %v5626 = vlaneseq
    %v5627 = vshrl.u32 %v5626, 7
    %v5628 = vsub.s32 0, %v5627
    %v5629 = vrot.slane %v4515, %v5628
    %v5630 = vlaneseq
    %v5631 = vshrl.u32 %v5630, 7
    %v5632 = vsub.s32 0, %v5631
    %v5633 = vrot.slane %v4516, %v5632
    %v5634 = vlaneseq
    %v5635 = vshrl.u32 %v5634, 7
    %v5636 = vsub.s32 0, %v5635
    %v5637 = vrot.slane %v4517, %v5636
    %v5638 = vlaneseq
    %v5639 = vshrl.u32 %v5638, 7
    %v5640 = vsub.s32 0, %v5639
    %v5641 = vrot.slane %v4518, %v5640
    %v5642 = vlaneseq
    %v5643 = vshrl.u32 %v5642, 7
    %v5644 = vsub.s32 0, %v5643
    %v5645 = vrot.slane %v4519, %v5644
    %v5646 = vlaneseq
    %v5647 = vshrl.u32 %v5646, 7
    %v5648 = vsub.s32 0, %v5647
    %v5649 = vrot.slane %v4520, %v5648
    %v5650 = vlaneseq
    %v5651 = vshrl.u32 %v5650, 7
    %v5652 = vsub.s32 0, %v5651
    %v5653 = vrot.slane %v4521, %v5652
    %v5654 = vlaneseq
    %v5655 = vshrl.u32 %v5654, 7
    %v5656 = vsub.s32 0, %v5655
    %v5657 = vrot.slane %v4579, %v5656
    %v5658 = vlaneseq
    %v5659 = vshrl.u32 %v5658, 7
    %v5660 = vsub.s32 0, %v5659
    %v5661 = vrot.slane %v4580, %v5660
    %v5662 = vlaneseq
    %v5663 = vshrl.u32 %v5662, 7
    %v5664 = vsub.s32 0, %v5663
    %v5665 = vrot.slane %v4581, %v5664
    %v5666 = vlaneseq
    %v5667 = vshrl.u32 %v5666, 7
    %v5668 = vsub.s32 0, %v5667
    %v5669 = vrot.slane %v4582, %v5668
    %v5670 = vlaneseq
    %v5671 = vshrl.u32 %v5670, 7
    %v5672 = vsub.s32 0, %v5671
    %v5673 = vrot.slane %v4583, %v5672
    %v5674 = vlaneseq
    %v5675 = vshrl.u32 %v5674, 7
    %v5676 = vsub.s32 0, %v5675
    %v5677 = vrot.slane %v4584, %v5676
    %v5678 = vlaneseq
    %v5679 = vshrl.u32 %v5678, 7
    %v5680 = vsub.s32 0, %v5679
    %v5681 = vrot.slane %v4585, %v5680
    %v5682 = vsel %vm5125, %v5633, %v5629
    %v5683 = vsel %vm5127, %v5637, %v5682
    %v5684 = vsel %vm5129, %v5641, %v5683
    %v5685 = vsel %vm5131, %v5645, %v5684
    %v5686 = vsel %vm5133, %v5649, %v5685
    %v5687 = vsel %vm5135, %v5653, %v5686
    %v5688 = vsel %vm5125, %v5661, %v5657
    %v5689 = vsel %vm5127, %v5665, %v5688
    %v5690 = vsel %vm5129, %v5669, %v5689
    %v5691 = vsel %vm5131, %v5673, %v5690
    %v5692 = vsel %vm5133, %v5677, %v5691
    %v5693 = vsel %vm5135, %v5681, %v5692
    %5694 = vrot.lane.b32.xlu0 %v5136, 96
    %v5695 = vpop.permute.xlu0 %5694
    %5696 = vrot.lane.b32.xlu0 %v5142, 96
    %v5697 = vpop.permute.xlu0 %5696
    %5698 = vrot.lane.b32.xlu0 %v5148, 96
    %v5699 = vpop.permute.xlu0 %5698
    %5700 = vrot.lane.b32.xlu0 %v5154, 96
    %v5701 = vpop.permute.xlu0 %5700
    %5702 = vrot.lane.b32.xlu0 %v5160, 96
    %v5703 = vpop.permute.xlu0 %5702
    %5704 = vrot.lane.b32.xlu0 %v5166, 96
    %v5705 = vpop.permute.xlu0 %5704
    %5706 = vrot.lane.b32.xlu0 %v5172, 96
    %v5707 = vpop.permute.xlu0 %5706
    %5708 = vrot.lane.b32.xlu0 %v5687, 96
    %v5709 = vpop.permute.xlu0 %5708
    %5710 = vrot.lane.b32.xlu0 %v5178, 96
    %v5711 = vpop.permute.xlu0 %5710
    %5712 = vrot.lane.b32.xlu0 %v5184, 96
    %v5713 = vpop.permute.xlu0 %5712
    %5714 = vrot.lane.b32.xlu0 %v5190, 96
    %v5715 = vpop.permute.xlu0 %5714
    %5716 = vrot.lane.b32.xlu0 %v5196, 96
    %v5717 = vpop.permute.xlu0 %5716
    %5718 = vrot.lane.b32.xlu0 %v5202, 96
    %v5719 = vpop.permute.xlu0 %5718
    %5720 = vrot.lane.b32.xlu0 %v5208, 96
    %v5721 = vpop.permute.xlu0 %5720
    %5722 = vrot.lane.b32.xlu0 %v5214, 96
    %v5723 = vpop.permute.xlu0 %5722
    %5724 = vrot.lane.b32.xlu0 %v5693, 96
    %v5725 = vpop.permute.xlu0 %5724
    %vm5742 = vcmask 1048321
    %5743 = vst.msk [vmem:[#allocation3] sm:$0xfe] %vm5742, %v5695
    %5744 = vst.msk [vmem:[#allocation3 + $0x18] sm:$0xfe] %vm5742, %v5697
    %5745 = vst.msk [vmem:[#allocation3 + $0x30] sm:$0xfe] %vm5742, %v5699
    %5746 = vst.msk [vmem:[#allocation3 + $0x48] sm:$0xfe] %vm5742, %v5701
    %5747 = vst.msk [vmem:[#allocation3 + $0x60] sm:$0xfe] %vm5742, %v5703
    %5748 = vst.msk [vmem:[#allocation3 + $0x78] sm:$0xfe] %vm5742, %v5705
    %5749 = vst.msk [vmem:[#allocation3 + $0x90] sm:$0xfe] %vm5742, %v5707
    %5750 = vst.msk [vmem:[#allocation3 + $0xa8] sm:$0xfe] %vm5742, %v5709
    %5751 = vst.msk [vmem:[#allocation3 + $0xc0] sm:$0xfe] %vm5742, %v5711
    %5752 = vst.msk [vmem:[#allocation3 + $0xd8] sm:$0xfe] %vm5742, %v5713
    %5753 = vst.msk [vmem:[#allocation3 + $0xf0] sm:$0xfe] %vm5742, %v5715
    %5754 = vst.msk [vmem:[#allocation3 + $0x108] sm:$0xfe] %vm5742, %v5717
    %5755 = vst.msk [vmem:[#allocation3 + $0x120] sm:$0xfe] %vm5742, %v5719
    %5756 = vst.msk [vmem:[#allocation3 + $0x138] sm:$0xfe] %vm5742, %v5721
    %5757 = vst.msk [vmem:[#allocation3 + $0x150] sm:$0xfe] %vm5742, %v5723
    %5758 = vst.msk [vmem:[#allocation3 + $0x168] sm:$0xfe] %vm5742, %v5725
    %v5761 = vlaneseq
    %v5762 = vshrl.u32 %v5761, 7
    %v5763 = vsub.s32 0, %v5762
    %v5764 = vrot.slane %v4522, %v5763
    %v5765 = vlaneseq
    %v5766 = vshrl.u32 %v5765, 7
    %v5767 = vsub.s32 0, %v5766
    %v5768 = vrot.slane %v4586, %v5767
    %v5769 = vsel %vm5315, %v5633, %v5629
    %v5770 = vsel %vm5125, %v5637, %v5769
    %v5771 = vsel %vm5127, %v5641, %v5770
    %v5772 = vsel %vm5129, %v5645, %v5771
    %v5773 = vsel %vm5131, %v5649, %v5772
    %v5774 = vsel %vm5133, %v5653, %v5773
    %v5775 = vsel %vm5135, %v5764, %v5774
    %v5776 = vsel %vm5315, %v5661, %v5657
    %v5777 = vsel %vm5125, %v5665, %v5776
    %v5778 = vsel %vm5127, %v5669, %v5777
    %v5779 = vsel %vm5129, %v5673, %v5778
    %v5780 = vsel %vm5131, %v5677, %v5779
    %v5781 = vsel %vm5133, %v5681, %v5780
    %v5782 = vsel %vm5135, %v5768, %v5781
    %5799 = vst.msk [vmem:[#allocation3 + $0x8] sm:$0xff] %vm2792, %v5322
    %5800 = vst.msk [vmem:[#allocation3 + $0x20] sm:$0xff] %vm2792, %v5329
    %5801 = vst.msk [vmem:[#allocation3 + $0x38] sm:$0xff] %vm2792, %v5336
    %5802 = vst.msk [vmem:[#allocation3 + $0x50] sm:$0xff] %vm2792, %v5343
    %5803 = vst.msk [vmem:[#allocation3 + $0x68] sm:$0xff] %vm2792, %v5350
    %5804 = vst.msk [vmem:[#allocation3 + $0x80] sm:$0xff] %vm2792, %v5357
    %5805 = vst.msk [vmem:[#allocation3 + $0x98] sm:$0xff] %vm2792, %v5364
    %5806 = vst.msk [vmem:[#allocation3 + $0xb0] sm:$0xff] %vm2792, %v5775
    %5807 = vst.msk [vmem:[#allocation3 + $0xc8] sm:$0xff] %vm2792, %v5371
    %5808 = vst.msk [vmem:[#allocation3 + $0xe0] sm:$0xff] %vm2792, %v5378
    %5809 = vst.msk [vmem:[#allocation3 + $0xf8] sm:$0xff] %vm2792, %v5385
    %5810 = vst.msk [vmem:[#allocation3 + $0x110] sm:$0xff] %vm2792, %v5392
    %5811 = vst.msk [vmem:[#allocation3 + $0x128] sm:$0xff] %vm2792, %v5399
    %5812 = vst.msk [vmem:[#allocation3 + $0x140] sm:$0xff] %vm2792, %v5406
    %5813 = vst.msk [vmem:[#allocation3 + $0x158] sm:$0xff] %vm2792, %v5413
    %5814 = vst.msk [vmem:[#allocation3 + $0x170] sm:$0xff] %vm2792, %v5782
    %v5815 = vsel %vm5315, %v5637, %v5633
    %v5816 = vsel %vm5125, %v5641, %v5815
    %v5817 = vsel %vm5127, %v5645, %v5816
    %v5818 = vsel %vm5129, %v5649, %v5817
    %v5819 = vsel %vm5131, %v5653, %v5818
    %v5820 = vsel %vm5133, %v5764, %v5819
    %v5821 = vsel %vm5315, %v5665, %v5661
    %v5822 = vsel %vm5125, %v5669, %v5821
    %v5823 = vsel %vm5127, %v5673, %v5822
    %v5824 = vsel %vm5129, %v5677, %v5823
    %v5825 = vsel %vm5131, %v5681, %v5824
    %v5826 = vsel %vm5133, %v5768, %v5825
    %5827 = vrot.lane.b32.xlu0 %v5476, 32
    %v5828 = vpop.permute.xlu0 %5827
    %5829 = vrot.lane.b32.xlu0 %v5482, 32
    %v5830 = vpop.permute.xlu0 %5829
    %5831 = vrot.lane.b32.xlu0 %v5488, 32
    %v5832 = vpop.permute.xlu0 %5831
    %5833 = vrot.lane.b32.xlu0 %v5494, 32
    %v5834 = vpop.permute.xlu0 %5833
    %5835 = vrot.lane.b32.xlu0 %v5500, 32
    %v5836 = vpop.permute.xlu0 %5835
    %5837 = vrot.lane.b32.xlu0 %v5506, 32
    %v5838 = vpop.permute.xlu0 %5837
    %5839 = vrot.lane.b32.xlu0 %v5512, 32
    %v5840 = vpop.permute.xlu0 %5839
    %5841 = vrot.lane.b32.xlu0 %v5820, 32
    %v5842 = vpop.permute.xlu0 %5841
    %5843 = vrot.lane.b32.xlu0 %v5518, 32
    %v5844 = vpop.permute.xlu0 %5843
    %5845 = vrot.lane.b32.xlu0 %v5524, 32
    %v5846 = vpop.permute.xlu0 %5845
    %5847 = vrot.lane.b32.xlu0 %v5530, 32
    %v5848 = vpop.permute.xlu0 %5847
    %5849 = vrot.lane.b32.xlu0 %v5536, 32
    %v5850 = vpop.permute.xlu0 %5849
    %5851 = vrot.lane.b32.xlu0 %v5542, 32
    %v5852 = vpop.permute.xlu0 %5851
    %5853 = vrot.lane.b32.xlu0 %v5548, 32
    %v5854 = vpop.permute.xlu0 %5853
    %5855 = vrot.lane.b32.xlu0 %v5554, 32
    %v5856 = vpop.permute.xlu0 %5855
    %5857 = vrot.lane.b32.xlu0 %v5826, 32
    %v5858 = vpop.permute.xlu0 %5857
    %vm5875 = vcmask 522496
    %5876 = vst.msk [vmem:[#allocation3 + $0x8] sm:$0x7f] %vm5875, %v5828
    %5877 = vst.msk [vmem:[#allocation3 + $0x20] sm:$0x7f] %vm5875, %v5830
    %5878 = vst.msk [vmem:[#allocation3 + $0x38] sm:$0x7f] %vm5875, %v5832
    %5879 = vst.msk [vmem:[#allocation3 + $0x50] sm:$0x7f] %vm5875, %v5834
    %5880 = vst.msk [vmem:[#allocation3 + $0x68] sm:$0x7f] %vm5875, %v5836
    %5881 = vst.msk [vmem:[#allocation3 + $0x80] sm:$0x7f] %vm5875, %v5838
    %5882 = vst.msk [vmem:[#allocation3 + $0x98] sm:$0x7f] %vm5875, %v5840
    %5883 = vst.msk [vmem:[#allocation3 + $0xb0] sm:$0x7f] %vm5875, %v5842
    %5884 = vst.msk [vmem:[#allocation3 + $0xc8] sm:$0x7f] %vm5875, %v5844
    %5885 = vst.msk [vmem:[#allocation3 + $0xe0] sm:$0x7f] %vm5875, %v5846
    %5886 = vst.msk [vmem:[#allocation3 + $0xf8] sm:$0x7f] %vm5875, %v5848
    %5887 = vst.msk [vmem:[#allocation3 + $0x110] sm:$0x7f] %vm5875, %v5850
    %5888 = vst.msk [vmem:[#allocation3 + $0x128] sm:$0x7f] %vm5875, %v5852
    %5889 = vst.msk [vmem:[#allocation3 + $0x140] sm:$0x7f] %vm5875, %v5854
    %5890 = vst.msk [vmem:[#allocation3 + $0x158] sm:$0x7f] %vm5875, %v5856
    %5891 = vst.msk [vmem:[#allocation3 + $0x170] sm:$0x7f] %vm5875, %v5858
    %5892 = vrot.lane.b32.xlu0 %v5142, 64
    %v5893 = vpop.permute.xlu0 %5892
    %5894 = vrot.lane.b32.xlu0 %v5148, 64
    %v5895 = vpop.permute.xlu0 %5894
    %5896 = vrot.lane.b32.xlu0 %v5154, 64
    %v5897 = vpop.permute.xlu0 %5896
    %5898 = vrot.lane.b32.xlu0 %v5160, 64
    %v5899 = vpop.permute.xlu0 %5898
    %5900 = vrot.lane.b32.xlu0 %v5166, 64
    %v5901 = vpop.permute.xlu0 %5900
    %5902 = vrot.lane.b32.xlu0 %v5172, 64
    %v5903 = vpop.permute.xlu0 %5902
    %5904 = vrot.lane.b32.xlu0 %v5687, 64
    %v5905 = vpop.permute.xlu0 %5904
    %5906 = vrot.lane.b32.xlu0 %v5184, 64
    %v5907 = vpop.permute.xlu0 %5906
    %5908 = vrot.lane.b32.xlu0 %v5190, 64
    %v5909 = vpop.permute.xlu0 %5908
    %5910 = vrot.lane.b32.xlu0 %v5196, 64
    %v5911 = vpop.permute.xlu0 %5910
    %5912 = vrot.lane.b32.xlu0 %v5202, 64
    %v5913 = vpop.permute.xlu0 %5912
    %5914 = vrot.lane.b32.xlu0 %v5208, 64
    %v5915 = vpop.permute.xlu0 %5914
    %5916 = vrot.lane.b32.xlu0 %v5214, 64
    %v5917 = vpop.permute.xlu0 %5916
    %5918 = vrot.lane.b32.xlu0 %v5693, 64
    %v5919 = vpop.permute.xlu0 %5918
    %vm5934 = vcmask 785921
    %5935 = vst.msk [vmem:[#allocation3 + $0x8] sm:$0xfe] %vm5934, %v5893
    %5936 = vst.msk [vmem:[#allocation3 + $0x20] sm:$0xfe] %vm5934, %v5895
    %5937 = vst.msk [vmem:[#allocation3 + $0x38] sm:$0xfe] %vm5934, %v5897
    %5938 = vst.msk [vmem:[#allocation3 + $0x50] sm:$0xfe] %vm5934, %v5899
    %5939 = vst.msk [vmem:[#allocation3 + $0x68] sm:$0xfe] %vm5934, %v5901
    %5940 = vst.msk [vmem:[#allocation3 + $0x80] sm:$0xfe] %vm5934, %v5903
    %5941 = vst.msk [vmem:[#allocation3 + $0x98] sm:$0xfe] %vm5934, %v5905
    %5942 = vst.msk [vmem:[#allocation3 + $0xc8] sm:$0xfe] %vm5934, %v5907
    %5943 = vst.msk [vmem:[#allocation3 + $0xe0] sm:$0xfe] %vm5934, %v5909
    %5944 = vst.msk [vmem:[#allocation3 + $0xf8] sm:$0xfe] %vm5934, %v5911
    %5945 = vst.msk [vmem:[#allocation3 + $0x110] sm:$0xfe] %vm5934, %v5913
    %5946 = vst.msk [vmem:[#allocation3 + $0x128] sm:$0xfe] %vm5934, %v5915
    %5947 = vst.msk [vmem:[#allocation3 + $0x140] sm:$0xfe] %vm5934, %v5917
    %5948 = vst.msk [vmem:[#allocation3 + $0x158] sm:$0xfe] %vm5934, %v5919
    %5949 = vrot.lane.b32.xlu0 %v5329, 96
    %v5950 = vpop.permute.xlu0 %5949
    %5951 = vrot.lane.b32.xlu0 %v5336, 96
    %v5952 = vpop.permute.xlu0 %5951
    %5953 = vrot.lane.b32.xlu0 %v5343, 96
    %v5954 = vpop.permute.xlu0 %5953
    %5955 = vrot.lane.b32.xlu0 %v5350, 96
    %v5956 = vpop.permute.xlu0 %5955
    %5957 = vrot.lane.b32.xlu0 %v5357, 96
    %v5958 = vpop.permute.xlu0 %5957
    %5959 = vrot.lane.b32.xlu0 %v5364, 96
    %v5960 = vpop.permute.xlu0 %5959
    %5961 = vrot.lane.b32.xlu0 %v5775, 96
    %v5962 = vpop.permute.xlu0 %5961
    %5963 = vrot.lane.b32.xlu0 %v5378, 96
    %v5964 = vpop.permute.xlu0 %5963
    %5965 = vrot.lane.b32.xlu0 %v5385, 96
    %v5966 = vpop.permute.xlu0 %5965
    %5967 = vrot.lane.b32.xlu0 %v5392, 96
    %v5968 = vpop.permute.xlu0 %5967
    %5969 = vrot.lane.b32.xlu0 %v5399, 96
    %v5970 = vpop.permute.xlu0 %5969
    %5971 = vrot.lane.b32.xlu0 %v5406, 96
    %v5972 = vpop.permute.xlu0 %5971
    %5973 = vrot.lane.b32.xlu0 %v5413, 96
    %v5974 = vpop.permute.xlu0 %5973
    %5975 = vrot.lane.b32.xlu0 %v5782, 96
    %v5976 = vpop.permute.xlu0 %5975
    %vm5991 = vcmask 1048320
    %5992 = vst.msk [vmem:[#allocation3 + $0x8] sm:$0xff] %vm5991, %v5950
    %5993 = vst.msk [vmem:[#allocation3 + $0x20] sm:$0xff] %vm5991, %v5952
    %5994 = vst.msk [vmem:[#allocation3 + $0x38] sm:$0xff] %vm5991, %v5954
    %5995 = vst.msk [vmem:[#allocation3 + $0x50] sm:$0xff] %vm5991, %v5956
    %5996 = vst.msk [vmem:[#allocation3 + $0x68] sm:$0xff] %vm5991, %v5958
    %5997 = vst.msk [vmem:[#allocation3 + $0x80] sm:$0xff] %vm5991, %v5960
    %5998 = vst.msk [vmem:[#allocation3 + $0x98] sm:$0xff] %vm5991, %v5962
    %5999 = vst.msk [vmem:[#allocation3 + $0xc8] sm:$0xff] %vm5991, %v5964
    %6000 = vst.msk [vmem:[#allocation3 + $0xe0] sm:$0xff] %vm5991, %v5966
    %6001 = vst.msk [vmem:[#allocation3 + $0xf8] sm:$0xff] %vm5991, %v5968
    %6002 = vst.msk [vmem:[#allocation3 + $0x110] sm:$0xff] %vm5991, %v5970
    %6003 = vst.msk [vmem:[#allocation3 + $0x128] sm:$0xff] %vm5991, %v5972
    %6004 = vst.msk [vmem:[#allocation3 + $0x140] sm:$0xff] %vm5991, %v5974
    %6005 = vst.msk [vmem:[#allocation3 + $0x158] sm:$0xff] %vm5991, %v5976
    %vm6020 = vcmask 260096
    %6021 = vst.msk [vmem:[#allocation3 + $0x10] sm:$0x7f] %vm6020, %v5482
    %6022 = vst.msk [vmem:[#allocation3 + $0x28] sm:$0x7f] %vm6020, %v5488
    %6023 = vst.msk [vmem:[#allocation3 + $0x40] sm:$0x7f] %vm6020, %v5494
    %6024 = vst.msk [vmem:[#allocation3 + $0x58] sm:$0x7f] %vm6020, %v5500
    %6025 = vst.msk [vmem:[#allocation3 + $0x70] sm:$0x7f] %vm6020, %v5506
    %6026 = vst.msk [vmem:[#allocation3 + $0x88] sm:$0x7f] %vm6020, %v5512
    %6027 = vst.msk [vmem:[#allocation3 + $0xa0] sm:$0x7f] %vm6020, %v5820
    %6028 = vst.msk [vmem:[#allocation3 + $0xd0] sm:$0x7f] %vm6020, %v5524
    %6029 = vst.msk [vmem:[#allocation3 + $0xe8] sm:$0x7f] %vm6020, %v5530
    %6030 = vst.msk [vmem:[#allocation3 + $0x100] sm:$0x7f] %vm6020, %v5536
    %6031 = vst.msk [vmem:[#allocation3 + $0x118] sm:$0x7f] %vm6020, %v5542
    %6032 = vst.msk [vmem:[#allocation3 + $0x130] sm:$0x7f] %vm6020, %v5548
    %6033 = vst.msk [vmem:[#allocation3 + $0x148] sm:$0x7f] %vm6020, %v5554
    %6034 = vst.msk [vmem:[#allocation3 + $0x160] sm:$0x7f] %vm6020, %v5826
    %v6035 = vld [vmem:[#allocation3] sm:$0xff]
    %v6036 = vld [vmem:[#allocation3 + $0x8] sm:$0xff]
    %v6037 = vld [vmem:[#allocation3 + $0x10] sm:$0xff]
    %v6038 = vld [vmem:[#allocation3 + $0x18] sm:$0xff]
    %v6039 = vld [vmem:[#allocation3 + $0x20] sm:$0xff]
    %v6040 = vld [vmem:[#allocation3 + $0x28] sm:$0xff]
    %v6041 = vld [vmem:[#allocation3 + $0x30] sm:$0xff]
    %v6042 = vld [vmem:[#allocation3 + $0x38] sm:$0xff]
    %v6043 = vld [vmem:[#allocation3 + $0x40] sm:$0xff]
    %v6044 = vld [vmem:[#allocation3 + $0x48] sm:$0xff]
    %v6045 = vld [vmem:[#allocation3 + $0x50] sm:$0xff]
    %v6046 = vld [vmem:[#allocation3 + $0x58] sm:$0xff]
    %v6047 = vld [vmem:[#allocation3 + $0x60] sm:$0xff]
    %v6048 = vld [vmem:[#allocation3 + $0x68] sm:$0xff]
    %v6049 = vld [vmem:[#allocation3 + $0x70] sm:$0xff]
    %v6050 = vld [vmem:[#allocation3 + $0x78] sm:$0xff]
    %v6051 = vld [vmem:[#allocation3 + $0x80] sm:$0xff]
    %v6052 = vld [vmem:[#allocation3 + $0x88] sm:$0xff]
    %v6053 = vld [vmem:[#allocation3 + $0x90] sm:$0xff]
    %v6054 = vld [vmem:[#allocation3 + $0x98] sm:$0xff]
    %v6055 = vld [vmem:[#allocation3 + $0xa0] sm:$0xff]
    %v6056 = vld [vmem:[#allocation3 + $0xa8] sm:$0xff]
    %v6057 = vld [vmem:[#allocation3 + $0xb0] sm:$0xff]
    %v6058 = vld [vmem:[#allocation3 + $0xb8] sm:$0xff]
    %v6059 = vld [vmem:[#allocation3 + $0xc0] sm:$0xff]
    %v6060 = vld [vmem:[#allocation3 + $0xc8] sm:$0xff]
    %v6061 = vld [vmem:[#allocation3 + $0xd0] sm:$0xff]
    %v6062 = vld [vmem:[#allocation3 + $0xd8] sm:$0xff]
    %v6063 = vld [vmem:[#allocation3 + $0xe0] sm:$0xff]
    %v6064 = vld [vmem:[#allocation3 + $0xe8] sm:$0xff]
    %v6065 = vld [vmem:[#allocation3 + $0xf0] sm:$0xff]
    %v6066 = vld [vmem:[#allocation3 + $0xf8] sm:$0xff]
    %v6067 = vld [vmem:[#allocation3 + $0x100] sm:$0xff]
    %v6068 = vld [vmem:[#allocation3 + $0x108] sm:$0xff]
    %v6069 = vld [vmem:[#allocation3 + $0x110] sm:$0xff]
    %v6070 = vld [vmem:[#allocation3 + $0x118] sm:$0xff]
    %v6071 = vld [vmem:[#allocation3 + $0x120] sm:$0xff]
    %v6072 = vld [vmem:[#allocation3 + $0x128] sm:$0xff]
    %v6073 = vld [vmem:[#allocation3 + $0x130] sm:$0xff]
    %v6074 = vld [vmem:[#allocation3 + $0x138] sm:$0xff]
    %v6075 = vld [vmem:[#allocation3 + $0x140] sm:$0xff]
    %v6076 = vld [vmem:[#allocation3 + $0x148] sm:$0xff]
    %v6077 = vld [vmem:[#allocation3 + $0x150] sm:$0xff]
    %v6078 = vld [vmem:[#allocation3 + $0x158] sm:$0xff]
    %v6079 = vld [vmem:[#allocation3 + $0x160] sm:$0xff]
    %v6080 = vld [vmem:[#allocation3 + $0x168] sm:$0xff]
    %v6081 = vld [vmem:[#allocation3 + $0x170] sm:$0xff]
    %v6082 = vld [vmem:[#allocation3 + $0x178] sm:$0xff]
    %v6083 = vpack.c.bf16 %v6038, %v6035
    %v6084 = vpack.c.bf16 %v6039, %v6036
    %v6085 = vpack.c.bf16 %v6040, %v6037
    %v6086 = vpack.c.bf16 %v6044, %v6041
    %v6087 = vpack.c.bf16 %v6045, %v6042
    %v6088 = vpack.c.bf16 %v6046, %v6043
    %v6089 = vpack.c.bf16 %v6050, %v6047
    %v6090 = vpack.c.bf16 %v6051, %v6048
    %v6091 = vpack.c.bf16 %v6052, %v6049
    %v6092 = vpack.c.bf16 %v6056, %v6053
    %v6093 = vpack.c.bf16 %v6057, %v6054
    %v6094 = vpack.c.bf16 %v6058, %v6055
    %v6095 = vpack.c.bf16 %v6062, %v6059
    %v6096 = vpack.c.bf16 %v6063, %v6060
    %v6097 = vpack.c.bf16 %v6064, %v6061
    %v6098 = vpack.c.bf16 %v6068, %v6065
    %v6099 = vpack.c.bf16 %v6069, %v6066
    %v6100 = vpack.c.bf16 %v6070, %v6067
    %v6101 = vpack.c.bf16 %v6074, %v6071
    %v6102 = vpack.c.bf16 %v6075, %v6072
    %v6103 = vpack.c.bf16 %v6076, %v6073
    %v6104 = vpack.c.bf16 %v6080, %v6077
    %v6105 = vpack.c.bf16 %v6081, %v6078
    %v6106 = vpack.c.bf16 %v6082, %v6079
    %v6107 = vld [vmem:[%s4] sm:$0xf]
    %v6108 = vld [vmem:[%s4 + $0x4] sm:$0xf]
    %v6109 = vld [vmem:[%s4 + $0x8] sm:$0xf]
    %v6110 = vld [vmem:[%s4 + $0xc] sm:$0xf]
    %v6111 = vld [vmem:[%s4 + $0x10] sm:$0xf]
    %v6112 = vld [vmem:[%s4 + $0x14] sm:$0xf]
    %v6113 = vld [vmem:[%s4 + $0x18] sm:$0xf]
    %v6114 = vld [vmem:[%s4 + $0x1c] sm:$0xf]
    %v6115 = vld [vmem:[%s4 + $0x20] sm:$0xf]
    %v6116 = vld [vmem:[%s4 + $0x24] sm:$0xf]
    %v6117 = vld [vmem:[%s4 + $0x28] sm:$0xf]
    %v6118 = vld [vmem:[%s4 + $0x2c] sm:$0xf]
    %v6119 = vld [vmem:[%s4 + $0x30] sm:$0xf]
    %v6120 = vld [vmem:[%s4 + $0x34] sm:$0xf]
    %v6121 = vld [vmem:[%s4 + $0x38] sm:$0xf]
    %v6122 = vld [vmem:[%s4 + $0x3c] sm:$0xf]
    %v6123 = vld [vmem:[%s4 + $0x40] sm:$0xf]
    %v6124 = vld [vmem:[%s4 + $0x44] sm:$0xf]
    %v6125 = vld [vmem:[%s4 + $0x48] sm:$0xf]
    %v6126 = vld [vmem:[%s4 + $0x4c] sm:$0xf]
    %v6127 = vld [vmem:[%s4 + $0x50] sm:$0xf]
    %v6128 = vld [vmem:[%s4 + $0x54] sm:$0xf]
    %v6129 = vld [vmem:[%s4 + $0x58] sm:$0xf]
    %v6130 = vld [vmem:[%s4 + $0x5c] sm:$0xf]
    %v6131 = vld [vmem:[%s4 + $0x60] sm:$0xf]
    %v6132 = vld [vmem:[%s4 + $0x64] sm:$0xf]
    %v6133 = vld [vmem:[%s4 + $0x68] sm:$0xf]
    %v6134 = vld [vmem:[%s4 + $0x6c] sm:$0xf]
    %v6135 = vld [vmem:[%s4 + $0x70] sm:$0xf]
    %v6136 = vld [vmem:[%s4 + $0x74] sm:$0xf]
    %v6137 = vld [vmem:[%s4 + $0x78] sm:$0xf]
    %v6138 = vld [vmem:[%s4 + $0x7c] sm:$0xf]
    %v6139 = vld [vmem:[%s4 + $0x80] sm:$0xf]
    %v6140 = vld [vmem:[%s4 + $0x84] sm:$0xf]
    %v6141 = vld [vmem:[%s4 + $0x88] sm:$0xf]
    %v6142 = vld [vmem:[%s4 + $0x8c] sm:$0xf]
    %v6179 = vunpack.c.l.b16 %v6107
    %v6180 = vunpack.c.l.b16 %v6108
    %v6181 = vunpack.c.l.b16 %v6109
    %v6182 = vunpack.c.l.b16 %v6110
    %v6183 = vunpack.c.l.b16 %v6111
    %v6184 = vunpack.c.l.b16 %v6112
    %v6185 = vunpack.c.l.b16 %v6113
    %v6186 = vunpack.c.l.b16 %v6114
    %v6187 = vunpack.c.l.b16 %v6115
    %v6188 = vunpack.c.l.b16 %v6116
    %v6189 = vunpack.c.l.b16 %v6117
    %v6190 = vunpack.c.l.b16 %v6118
    %v6191 = vunpack.c.l.b16 %v6119
    %v6192 = vunpack.c.l.b16 %v6120
    %v6193 = vunpack.c.l.b16 %v6121
    %v6194 = vunpack.c.l.b16 %v6122
    %v6195 = vunpack.c.l.b16 %v6123
    %v6196 = vunpack.c.l.b16 %v6124
    %v6197 = vunpack.c.l.b16 %v6125
    %v6198 = vunpack.c.l.b16 %v6126
    %v6199 = vunpack.c.l.b16 %v6127
    %v6200 = vunpack.c.l.b16 %v6128
    %v6201 = vunpack.c.l.b16 %v6129
    %v6202 = vunpack.c.l.b16 %v6130
    %v6203 = vunpack.c.l.b16 %v6131
    %v6204 = vunpack.c.l.b16 %v6132
    %v6205 = vunpack.c.l.b16 %v6133
    %v6206 = vunpack.c.l.b16 %v6134
    %v6207 = vunpack.c.l.b16 %v6135
    %v6208 = vunpack.c.l.b16 %v6136
    %v6209 = vunpack.c.l.b16 %v6137
    %v6210 = vunpack.c.l.b16 %v6138
    %v6211 = vunpack.c.l.b16 %v6139
    %v6212 = vunpack.c.l.b16 %v6140
    %v6213 = vunpack.c.l.b16 %v6141
    %v6214 = vunpack.c.l.b16 %v6142
    %v6215 = vpack.c.b16 %v6180, %v6179
    %v6216 = vpack.c.b16 %v6182, %v6181
    %v6217 = vpack.c.b16 %v6184, %v6183
    %v6218 = vpack.c.b16 %v6186, %v6185
    %v6219 = vpack.c.b16 %v6188, %v6187
    %v6220 = vpack.c.b16 %v6190, %v6189
    %v6221 = vpack.c.b16 %v6192, %v6191
    %v6222 = vpack.c.b16 %v6194, %v6193
    %v6223 = vpack.c.b16 %v6196, %v6195
    %v6224 = vpack.c.b16 %v6198, %v6197
    %v6225 = vpack.c.b16 %v6200, %v6199
    %v6226 = vpack.c.b16 %v6202, %v6201
    %v6227 = vpack.c.b16 %v6204, %v6203
    %v6228 = vpack.c.b16 %v6206, %v6205
    %v6229 = vpack.c.b16 %v6208, %v6207
    %v6230 = vpack.c.b16 %v6210, %v6209
    %v6231 = vpack.c.b16 %v6212, %v6211
    %v6232 = vpack.c.b16 %v6214, %v6213
    %v6252 = vsel %vm2792, %v6085, 0
    %v6255 = vsel %vm2792, %v6088, 0
    %v6258 = vsel %vm2792, %v6091, 0
    %v6261 = vsel %vm2792, %v6094, 0
    %v6264 = vsel %vm2792, %v6097, 0
    %v6267 = vsel %vm2792, %v6100, 0
    %v6270 = vsel %vm2792, %v6103, 0
    %v6273 = vsel %vm2792, %v6106, 0
    %6275 = vmatprep.subr.bf16.mxu0 0
    %6276 = vmatpush1.bf16.msra.mxu0 %v6222
    %6277 = vmatprep.subr.bf16.mxu0 0
    %6278 = vmatpush1.bf16.msra.mxu0 %v6221
    %6279 = vmatprep.subr.bf16.mxu0 0
    %6280 = vmatpush1.bf16.msra.mxu0 %v6220
    %6281 = vmatprep.subr.bf16.mxu0 0
    %6282 = vmatpush1.bf16.msra.mxu0 %v6219
    %6283 = vmatprep.subr.bf16.mxu0 0
    %6284 = vmatpush1.bf16.msra.mxu0 %v6218
    %6285 = vmatprep.subr.bf16.mxu0 0
    %6286 = vmatpush1.bf16.msra.mxu0 %v6217
    %6287 = vmatprep.subr.bf16.mxu0 0
    %6288 = vmatpush1.bf16.msra.mxu0 %v6216
    %6289 = vmatprep.subr.bf16.mxu0 0
    %6290 = vmatpush1.bf16.msra.mxu0 %v6215
    %6291 = vmatprep.subr.bf16.mxu0 0
    %6292 = vmatpush2.bf16.msra.mxu0 %v6230
    %6293 = vmatprep.subr.bf16.mxu0 0
    %6294 = vmatpush2.bf16.msra.mxu0 %v6229
    %6295 = vmatprep.subr.bf16.mxu0 0
    %6296 = vmatpush2.bf16.msra.mxu0 %v6228
    %6297 = vmatprep.subr.bf16.mxu0 0
    %6298 = vmatpush2.bf16.msra.mxu0 %v6227
    %6299 = vmatprep.subr.bf16.mxu0 0
    %6300 = vmatpush2.bf16.msra.mxu0 %v6226
    %6301 = vmatprep.subr.bf16.mxu0 0
    %6302 = vmatpush2.bf16.msra.mxu0 %v6225
    %6303 = vmatprep.subr.bf16.mxu0 0
    %6304 = vmatpush2.bf16.msra.mxu0 %v6224
    %6305 = vmatprep.subr.bf16.mxu0 0
    %6306 = vmatpush2.bf16.msra.mxu0 %v6223
    %6307 = vmatprep.mubr.bf16.mxu0 %v6084
    %6308 = vmatmul.mubr.bf16.gmra.mxu0 %v6083
    %v6309 = vpop.f32.mrf.mxu0
    %v6310 = vadd.f32 0.0, %v6309
    %v6311 = vpop.f32.mrf.mxu0
    %v6312 = vpop.f32.mrf.mxu0
    %v6313 = vadd.f32 0.0, %v6312
    %v6314 = vpop.f32.mrf.mxu0
    %6315 = vmatprep.mubr.bf16.mxu0 %v6087
    %6316 = vmatmul.mubr.bf16.gmra.mxu0 %v6086
    %v6317 = vpop.f32.mrf.mxu0
    %v6318 = vadd.f32 0.0, %v6317
    %v6319 = vpop.f32.mrf.mxu0
    %v6320 = vpop.f32.mrf.mxu0
    %v6321 = vadd.f32 0.0, %v6320
    %v6322 = vpop.f32.mrf.mxu0
    %6323 = vmatprep.mubr.bf16.mxu0 %v6090
    %6324 = vmatmul.mubr.bf16.gmra.mxu0 %v6089
    %v6325 = vpop.f32.mrf.mxu0
    %v6326 = vadd.f32 0.0, %v6325
    %v6327 = vpop.f32.mrf.mxu0
    %v6328 = vpop.f32.mrf.mxu0
    %v6329 = vadd.f32 0.0, %v6328
    %v6330 = vpop.f32.mrf.mxu0
    %6331 = vmatprep.mubr.bf16.mxu0 %v6093
    %6332 = vmatmul.mubr.bf16.gmra.mxu0 %v6092
    %v6333 = vpop.f32.mrf.mxu0
    %v6334 = vadd.f32 0.0, %v6333
    %v6335 = vpop.f32.mrf.mxu0
    %v6336 = vpop.f32.mrf.mxu0
    %v6337 = vadd.f32 0.0, %v6336
    %v6338 = vpop.f32.mrf.mxu0
    %6339 = vmatprep.mubr.bf16.mxu0 %v6096
    %6340 = vmatmul.mubr.bf16.gmra.mxu0 %v6095
    %v6341 = vpop.f32.mrf.mxu0
    %v6342 = vadd.f32 0.0, %v6341
    %v6343 = vpop.f32.mrf.mxu0
    %v6344 = vpop.f32.mrf.mxu0
    %v6345 = vadd.f32 0.0, %v6344
    %v6346 = vpop.f32.mrf.mxu0
    %6347 = vmatprep.mubr.bf16.mxu0 %v6099
    %6348 = vmatmul.mubr.bf16.gmra.mxu0 %v6098
    %v6349 = vpop.f32.mrf.mxu0
    %v6350 = vadd.f32 0.0, %v6349
    %v6351 = vpop.f32.mrf.mxu0
    %v6352 = vpop.f32.mrf.mxu0
    %v6353 = vadd.f32 0.0, %v6352
    %v6354 = vpop.f32.mrf.mxu0
    %6355 = vmatprep.mubr.bf16.mxu0 %v6102
    %6356 = vmatmul.mubr.bf16.gmra.mxu0 %v6101
    %v6357 = vpop.f32.mrf.mxu0
    %v6358 = vadd.f32 0.0, %v6357
    %v6359 = vpop.f32.mrf.mxu0
    %v6360 = vpop.f32.mrf.mxu0
    %v6361 = vadd.f32 0.0, %v6360
    %v6362 = vpop.f32.mrf.mxu0
    %6363 = vmatprep.mubr.bf16.mxu0 %v6105
    %6364 = vmatmul.mubr.bf16.gmra.mxu0 %v6104
    %v6365 = vpop.f32.mrf.mxu0
    %v6366 = vadd.f32 0.0, %v6365
    %v6367 = vpop.f32.mrf.mxu0
    %v6368 = vpop.f32.mrf.mxu0
    %v6369 = vadd.f32 0.0, %v6368
    %v6370 = vpop.f32.mrf.mxu0
    %6371 = vdwg.mxu0
    %6372 = vmatprep.subr.bf16.mxu0 0
    %6373 = vmatpush1.bf16.msra.mxu0 0
    %6374 = vmatprep.subr.bf16.mxu0 0
    %6375 = vmatpush1.bf16.msra.mxu0 0
    %6376 = vmatprep.subr.bf16.mxu0 0
    %6377 = vmatpush1.bf16.msra.mxu0 0
    %6378 = vmatprep.subr.bf16.mxu0 0
    %6379 = vmatpush1.bf16.msra.mxu0 0
    %6380 = vmatprep.subr.bf16.mxu0 0
    %6381 = vmatpush1.bf16.msra.mxu0 0
    %6382 = vmatprep.subr.bf16.mxu0 0
    %6383 = vmatpush1.bf16.msra.mxu0 0
    %6384 = vmatprep.subr.bf16.mxu0 0
    %6385 = vmatpush1.bf16.msra.mxu0 %v6232
    %6386 = vmatprep.subr.bf16.mxu0 0
    %6387 = vmatpush1.bf16.msra.mxu0 %v6231
    %6388 = vmatprep.subr.bf16.mxu0 0
    %6389 = vmatpush2.bf16.msra.mxu0 0
    %6390 = vmatprep.subr.bf16.mxu0 0
    %6391 = vmatpush2.bf16.msra.mxu0 0
    %6392 = vmatprep.subr.bf16.mxu0 0
    %6393 = vmatpush2.bf16.msra.mxu0 0
    %6394 = vmatprep.subr.bf16.mxu0 0
    %6395 = vmatpush2.bf16.msra.mxu0 0
    %6396 = vmatprep.subr.bf16.mxu0 0
    %6397 = vmatpush2.bf16.msra.mxu0 0
    %6398 = vmatprep.subr.bf16.mxu0 0
    %6399 = vmatpush2.bf16.msra.mxu0 0
    %6400 = vmatprep.subr.bf16.mxu0 0
    %6401 = vmatpush2.bf16.msra.mxu0 0
    %6402 = vmatprep.subr.bf16.mxu0 0
    %6403 = vmatpush2.bf16.msra.mxu0 0
    %6404 = vmatprep.mubr.bf16.mxu0 0
    %6405 = vmatmul.mubr.bf16.gmra.mxu0 %v6252
    %v6406 = vpop.f32.mrf.mxu0
    %v6407 = vadd.f32 %v6310, %v6406
    %v6408 = vpop.f32.mrf.mxu0
    %v6409 = vpop.f32.mrf.mxu0
    %v6410 = vadd.f32 %v6313, %v6409
    %v6411 = vpop.f32.mrf.mxu0
    %6412 = vmatprep.mubr.bf16.mxu0 0
    %6413 = vmatmul.mubr.bf16.gmra.mxu0 %v6255
    %v6414 = vpop.f32.mrf.mxu0
    %v6415 = vadd.f32 %v6318, %v6414
    %v6416 = vpop.f32.mrf.mxu0
    %v6417 = vpop.f32.mrf.mxu0
    %v6418 = vadd.f32 %v6321, %v6417
    %v6419 = vpop.f32.mrf.mxu0
    %6420 = vmatprep.mubr.bf16.mxu0 0
    %6421 = vmatmul.mubr.bf16.gmra.mxu0 %v6258
    %v6422 = vpop.f32.mrf.mxu0
    %v6423 = vadd.f32 %v6326, %v6422
    %v6424 = vpop.f32.mrf.mxu0
    %v6425 = vpop.f32.mrf.mxu0
    %v6426 = vadd.f32 %v6329, %v6425
    %v6427 = vpop.f32.mrf.mxu0
    %6428 = vmatprep.mubr.bf16.mxu0 0
    %6429 = vmatmul.mubr.bf16.gmra.mxu0 %v6261
    %v6430 = vpop.f32.mrf.mxu0
    %v6431 = vadd.f32 %v6334, %v6430
    %v6432 = vpop.f32.mrf.mxu0
    %v6433 = vpop.f32.mrf.mxu0
    %v6434 = vadd.f32 %v6337, %v6433
    %v6435 = vpop.f32.mrf.mxu0
    %6436 = vmatprep.mubr.bf16.mxu0 0
    %6437 = vmatmul.mubr.bf16.gmra.mxu0 %v6264
    %v6438 = vpop.f32.mrf.mxu0
    %v6439 = vadd.f32 %v6342, %v6438
    %v6440 = vpop.f32.mrf.mxu0
    %v6441 = vpop.f32.mrf.mxu0
    %v6442 = vadd.f32 %v6345, %v6441
    %v6443 = vpop.f32.mrf.mxu0
    %6444 = vmatprep.mubr.bf16.mxu0 0
    %6445 = vmatmul.mubr.bf16.gmra.mxu0 %v6267
    %v6446 = vpop.f32.mrf.mxu0
    %v6447 = vadd.f32 %v6350, %v6446
    %v6448 = vpop.f32.mrf.mxu0
    %v6449 = vpop.f32.mrf.mxu0
    %v6450 = vadd.f32 %v6353, %v6449
    %v6451 = vpop.f32.mrf.mxu0
    %6452 = vmatprep.mubr.bf16.mxu0 0
    %6453 = vmatmul.mubr.bf16.gmra.mxu0 %v6270
    %v6454 = vpop.f32.mrf.mxu0
    %v6455 = vadd.f32 %v6358, %v6454
    %v6456 = vpop.f32.mrf.mxu0
    %v6457 = vpop.f32.mrf.mxu0
    %v6458 = vadd.f32 %v6361, %v6457
    %v6459 = vpop.f32.mrf.mxu0
    %6460 = vmatprep.mubr.bf16.mxu0 0
    %6461 = vmatmul.mubr.bf16.gmra.mxu0 %v6273
    %v6462 = vpop.f32.mrf.mxu0
    %v6463 = vadd.f32 %v6366, %v6462
    %v6464 = vpop.f32.mrf.mxu0
    %v6465 = vpop.f32.mrf.mxu0
    %v6466 = vadd.f32 %v6369, %v6465
    %v6467 = vpop.f32.mrf.mxu0
    %6468 = vdwg.mxu0
    %v6469 = vsel %vm2792, %v6407, 0.0
    %v6470 = vsel %vm2792, %v6410, 0.0
    %v6471 = vadd.f32 %v6469, %v6470
    %v6472 = vsel %vm2792, %v6415, 0.0
    %v6473 = vadd.f32 %v6471, %v6472
    %v6474 = vsel %vm2792, %v6418, 0.0
    %v6475 = vadd.f32 %v6473, %v6474
    %v6476 = vsel %vm2792, %v6423, 0.0
    %v6477 = vadd.f32 %v6475, %v6476
    %v6478 = vsel %vm2792, %v6426, 0.0
    %v6479 = vadd.f32 %v6477, %v6478
    %v6480 = vsel %vm2792, %v6431, 0.0
    %v6481 = vadd.f32 %v6479, %v6480
    %v6482 = vsel %vm2792, %v6434, 0.0
    %v6483 = vadd.f32 %v6481, %v6482
    %v6484 = vsel %vm2792, %v6439, 0.0
    %v6485 = vadd.f32 %v6483, %v6484
    %v6486 = vsel %vm2792, %v6442, 0.0
    %v6487 = vadd.f32 %v6485, %v6486
    %v6488 = vsel %vm2792, %v6447, 0.0
    %v6489 = vadd.f32 %v6487, %v6488
    %v6490 = vsel %vm2792, %v6450, 0.0
    %v6491 = vadd.f32 %v6489, %v6490
    %v6492 = vsel %vm2792, %v6455, 0.0
    %v6493 = vadd.f32 %v6491, %v6492
    %v6494 = vsel %vm2792, %v6458, 0.0
    %v6495 = vadd.f32 %v6493, %v6494
    %v6496 = vsel %vm2792, %v6463, 0.0
    %v6497 = vadd.f32 %v6495, %v6496
    %v6498 = vsel %vm2792, %v6466, 0.0
    %v6499 = vadd.f32 %v6497, %v6498
    %v6500 = vrot.slane %v6499, 4
    %v6501 = vadd.f32 %v6499, %v6500
    %v6502 = vrot.slane %v6501, 2
    %v6503 = vadd.f32 %v6501, %v6502
    %v6504 = vrot.slane %v6503, 1
    %v6505 = vadd.f32 %v6503, %v6504
    %v6506 = vrcp.pop 128.0
    %v6507 = vmul.f32 %v6505, %v6506
    %v6508 = vmul.f32 %v6407, %v6407
    %v6509 = vmul.f32 %v6410, %v6410
    %v6510 = vmul.f32 %v6415, %v6415
    %v6511 = vmul.f32 %v6418, %v6418
    %v6512 = vmul.f32 %v6423, %v6423
    %v6513 = vmul.f32 %v6426, %v6426
    %v6514 = vmul.f32 %v6431, %v6431
    %v6515 = vmul.f32 %v6434, %v6434
    %v6516 = vmul.f32 %v6439, %v6439
    %v6517 = vmul.f32 %v6442, %v6442
    %v6518 = vmul.f32 %v6447, %v6447
    %v6519 = vmul.f32 %v6450, %v6450
    %v6520 = vmul.f32 %v6455, %v6455
    %v6521 = vmul.f32 %v6458, %v6458
    %v6522 = vmul.f32 %v6463, %v6463
    %v6523 = vmul.f32 %v6466, %v6466
    %v6524 = vsel %vm2792, %v6508, 0.0
    %v6525 = vsel %vm2792, %v6509, 0.0
    %v6526 = vadd.f32 %v6524, %v6525
    %v6527 = vsel %vm2792, %v6510, 0.0
    %v6528 = vadd.f32 %v6526, %v6527
    %v6529 = vsel %vm2792, %v6511, 0.0
    %v6530 = vadd.f32 %v6528, %v6529
    %v6531 = vsel %vm2792, %v6512, 0.0
    %v6532 = vadd.f32 %v6530, %v6531
    %v6533 = vsel %vm2792, %v6513, 0.0
    %v6534 = vadd.f32 %v6532, %v6533
    %v6535 = vsel %vm2792, %v6514, 0.0
    %v6536 = vadd.f32 %v6534, %v6535
    %v6537 = vsel %vm2792, %v6515, 0.0
    %v6538 = vadd.f32 %v6536, %v6537
    %v6539 = vsel %vm2792, %v6516, 0.0
    %v6540 = vadd.f32 %v6538, %v6539
    %v6541 = vsel %vm2792, %v6517, 0.0
    %v6542 = vadd.f32 %v6540, %v6541
    %v6543 = vsel %vm2792, %v6518, 0.0
    %v6544 = vadd.f32 %v6542, %v6543
    %v6545 = vsel %vm2792, %v6519, 0.0
    %v6546 = vadd.f32 %v6544, %v6545
    %v6547 = vsel %vm2792, %v6520, 0.0
    %v6548 = vadd.f32 %v6546, %v6547
    %v6549 = vsel %vm2792, %v6521, 0.0
    %v6550 = vadd.f32 %v6548, %v6549
    %v6551 = vsel %vm2792, %v6522, 0.0
    %v6552 = vadd.f32 %v6550, %v6551
    %v6553 = vsel %vm2792, %v6523, 0.0
    %v6554 = vadd.f32 %v6552, %v6553
    %v6555 = vrot.slane %v6554, 4
    %v6556 = vadd.f32 %v6554, %v6555
    %v6557 = vrot.slane %v6556, 2
    %v6558 = vadd.f32 %v6556, %v6557
    %v6559 = vrot.slane %v6558, 1
    %v6560 = vadd.f32 %v6558, %v6559
    %v6561 = vmul.f32 %v6560, %v6506
    %v6562 = vmul.f32 %v6507, %v6507
    %v6563 = vsub.f32 %v6561, %v6562
    %v6564 = vld [vmem:[%s5] sm:$0x1]
    %v6565 = vadd.f32 %v6563, 1e-05
    %v6566 = vrsqrt.pop %v6565
    %v6567 = vmul.f32 %v6564, %v6566
    %v6568 = vld [vmem:[%s6] sm:$0x1]
    %v6569 = vmul.f32 %v6507, %v6567
    %v6570 = vsub.f32 %v6568, %v6569
    %v6572 = vlaneseq
    %v6573 = vshrl.u32 %v6572, 7
    %v6574 = vsub.s32 0, %v6573
    %v6575 = vrot.slane %v6567, %v6574
    %v6577 = vmul.f32 %v6407, %v6575
    %v6578 = vmul.f32 %v6410, %v6575
    %v6579 = vmul.f32 %v6415, %v6575
    %v6580 = vmul.f32 %v6418, %v6575
    %v6581 = vmul.f32 %v6423, %v6575
    %v6582 = vmul.f32 %v6426, %v6575
    %v6583 = vmul.f32 %v6431, %v6575
    %v6584 = vmul.f32 %v6434, %v6575
    %v6585 = vmul.f32 %v6439, %v6575
    %v6586 = vmul.f32 %v6442, %v6575
    %v6587 = vmul.f32 %v6447, %v6575
    %v6588 = vmul.f32 %v6450, %v6575
    %v6589 = vmul.f32 %v6455, %v6575
    %v6590 = vmul.f32 %v6458, %v6575
    %v6591 = vmul.f32 %v6463, %v6575
    %v6592 = vmul.f32 %v6466, %v6575
    %v6594 = vlaneseq
    %v6595 = vshrl.u32 %v6594, 7
    %v6596 = vsub.s32 0, %v6595
    %v6597 = vrot.slane %v6570, %v6596
    %v6599 = vadd.f32 %v6577, %v6597
    %v6600 = vadd.f32 %v6578, %v6597
    %v6601 = vadd.f32 %v6579, %v6597
    %v6602 = vadd.f32 %v6580, %v6597
    %v6603 = vadd.f32 %v6581, %v6597
    %v6604 = vadd.f32 %v6582, %v6597
    %v6605 = vadd.f32 %v6583, %v6597
    %v6606 = vadd.f32 %v6584, %v6597
    %v6607 = vadd.f32 %v6585, %v6597
    %v6608 = vadd.f32 %v6586, %v6597
    %v6609 = vadd.f32 %v6587, %v6597
    %v6610 = vadd.f32 %v6588, %v6597
    %v6611 = vadd.f32 %v6589, %v6597
    %v6612 = vadd.f32 %v6590, %v6597
    %v6613 = vadd.f32 %v6591, %v6597
    %v6614 = vadd.f32 %v6592, %v6597
    %v6615 = vmax.f32 %v6599, 0.0
    %v6616 = vmax.f32 %v6600, 0.0
    %v6617 = vmax.f32 %v6601, 0.0
    %v6618 = vmax.f32 %v6602, 0.0
    %v6619 = vmax.f32 %v6603, 0.0
    %v6620 = vmax.f32 %v6604, 0.0
    %v6621 = vmax.f32 %v6605, 0.0
    %v6622 = vmax.f32 %v6606, 0.0
    %v6623 = vmax.f32 %v6607, 0.0
    %v6624 = vmax.f32 %v6608, 0.0
    %v6625 = vmax.f32 %v6609, 0.0
    %v6626 = vmax.f32 %v6610, 0.0
    %v6627 = vmax.f32 %v6611, 0.0
    %v6628 = vmax.f32 %v6612, 0.0
    %v6629 = vmax.f32 %v6613, 0.0
    %v6630 = vmax.f32 %v6614, 0.0
    %v6631 = vmax.f32 %v6615, %v6616
    %v6632 = vmax.f32 %v6617, %v6618
    %v6633 = vmax.f32 %v6619, %v6620
    %v6634 = vmax.f32 %v6621, %v6622
    %v6635 = vmax.f32 %v6623, %v6624
    %v6636 = vmax.f32 %v6625, %v6626
    %v6637 = vmax.f32 %v6627, %v6628
    %v6638 = vmax.f32 %v6629, %v6630
    %v6647 = vcombine.high %v6631, %v6631
    %v6649 = vunpack.c.l.s4 1983009808
    %v6650 = vunpack.c.0.s8 %v6649
    %v6651 = vlaneseq
    %v6652 = vshrl.u32 %v6651, 7
    %v6653 = vsub.s32 %v6650, %v6652
    %v6654 = vrot.slane %v6631, %v6653
    %v6656 = vunpack.c.l.s4 1983009808
    %v6657 = vunpack.c.0.s8 %v6656
    %v6658 = vlaneseq
    %v6659 = vshrl.u32 %v6658, 7
    %v6660 = vsub.s32 %v6657, %v6659
    %v6661 = vrot.slane %v6647, %v6660
    %v6662 = vcombine.high %v6654, %v6654
    %v6663 = vcombine.high %v6661, %v6661
    %v6664 = vcombine.high %v6632, %v6632
    %v6666 = vunpack.c.l.s4 1983009808
    %v6667 = vunpack.c.0.s8 %v6666
    %v6668 = vlaneseq
    %v6669 = vshrl.u32 %v6668, 7
    %v6670 = vsub.s32 %v6667, %v6669
    %v6671 = vrot.slane %v6632, %v6670
    %v6673 = vunpack.c.l.s4 1983009808
    %v6674 = vunpack.c.0.s8 %v6673
    %v6675 = vlaneseq
    %v6676 = vshrl.u32 %v6675, 7
    %v6677 = vsub.s32 %v6674, %v6676
    %v6678 = vrot.slane %v6664, %v6677
    %v6679 = vcombine.high %v6671, %v6671
    %v6680 = vcombine.high %v6678, %v6678
    %v6681 = vcombine.high %v6633, %v6633
    %v6683 = vunpack.c.l.s4 1983009808
    %v6684 = vunpack.c.0.s8 %v6683
    %v6685 = vlaneseq
    %v6686 = vshrl.u32 %v6685, 7
    %v6687 = vsub.s32 %v6684, %v6686
    %v6688 = vrot.slane %v6633, %v6687
    %v6690 = vunpack.c.l.s4 1983009808
    %v6691 = vunpack.c.0.s8 %v6690
    %v6692 = vlaneseq
    %v6693 = vshrl.u32 %v6692, 7
    %v6694 = vsub.s32 %v6691, %v6693
    %v6695 = vrot.slane %v6681, %v6694
    %v6696 = vcombine.high %v6688, %v6688
    %v6697 = vcombine.high %v6695, %v6695
    %v6698 = vcombine.high %v6634, %v6634
    %v6700 = vunpack.c.l.s4 1983009808
    %v6701 = vunpack.c.0.s8 %v6700
    %v6702 = vlaneseq
    %v6703 = vshrl.u32 %v6702, 7
    %v6704 = vsub.s32 %v6701, %v6703
    %v6705 = vrot.slane %v6634, %v6704
    %v6707 = vunpack.c.l.s4 1983009808
    %v6708 = vunpack.c.0.s8 %v6707
    %v6709 = vlaneseq
    %v6710 = vshrl.u32 %v6709, 7
    %v6711 = vsub.s32 %v6708, %v6710
    %v6712 = vrot.slane %v6698, %v6711
    %v6713 = vcombine.high %v6705, %v6705
    %v6714 = vcombine.high %v6712, %v6712
    %v6715 = vcombine.high %v6635, %v6635
    %v6717 = vunpack.c.l.s4 1983009808
    %v6718 = vunpack.c.0.s8 %v6717
    %v6719 = vlaneseq
    %v6720 = vshrl.u32 %v6719, 7
    %v6721 = vsub.s32 %v6718, %v6720
    %v6722 = vrot.slane %v6635, %v6721
    %v6724 = vunpack.c.l.s4 1983009808
    %v6725 = vunpack.c.0.s8 %v6724
    %v6726 = vlaneseq
    %v6727 = vshrl.u32 %v6726, 7
    %v6728 = vsub.s32 %v6725, %v6727
    %v6729 = vrot.slane %v6715, %v6728
    %v6730 = vcombine.high %v6722, %v6722
    %v6731 = vcombine.high %v6729, %v6729
    %v6732 = vcombine.high %v6636, %v6636
    %v6734 = vunpack.c.l.s4 1983009808
    %v6735 = vunpack.c.0.s8 %v6734
    %v6736 = vlaneseq
    %v6737 = vshrl.u32 %v6736, 7
    %v6738 = vsub.s32 %v6735, %v6737
    %v6739 = vrot.slane %v6636, %v6738
    %v6741 = vunpack.c.l.s4 1983009808
    %v6742 = vunpack.c.0.s8 %v6741
    %v6743 = vlaneseq
    %v6744 = vshrl.u32 %v6743, 7
    %v6745 = vsub.s32 %v6742, %v6744
    %v6746 = vrot.slane %v6732, %v6745
    %v6747 = vcombine.high %v6739, %v6739
    %v6748 = vcombine.high %v6746, %v6746
    %v6749 = vcombine.high %v6637, %v6637
    %v6751 = vunpack.c.l.s4 1983009808
    %v6752 = vunpack.c.0.s8 %v6751
    %v6753 = vlaneseq
    %v6754 = vshrl.u32 %v6753, 7
    %v6755 = vsub.s32 %v6752, %v6754
    %v6756 = vrot.slane %v6637, %v6755
    %v6758 = vunpack.c.l.s4 1983009808
    %v6759 = vunpack.c.0.s8 %v6758
    %v6760 = vlaneseq
    %v6761 = vshrl.u32 %v6760, 7
    %v6762 = vsub.s32 %v6759, %v6761
    %v6763 = vrot.slane %v6749, %v6762
    %v6764 = vcombine.high %v6756, %v6756
    %v6765 = vcombine.high %v6763, %v6763
    %v6766 = vcombine.high %v6638, %v6638
    %v6768 = vunpack.c.l.s4 1983009808
    %v6769 = vunpack.c.0.s8 %v6768
    %v6770 = vlaneseq
    %v6771 = vshrl.u32 %v6770, 7
    %v6772 = vsub.s32 %v6769, %v6771
    %v6773 = vrot.slane %v6638, %v6772
    %v6775 = vunpack.c.l.s4 1983009808
    %v6776 = vunpack.c.0.s8 %v6775
    %v6777 = vlaneseq
    %v6778 = vshrl.u32 %v6777, 7
    %v6779 = vsub.s32 %v6776, %v6778
    %v6780 = vrot.slane %v6766, %v6779
    %v6781 = vcombine.high %v6773, %v6773
    %v6782 = vcombine.high %v6780, %v6780
    %v6815 = vrot.slane %v6654, 7
    %v6816 = vrot.slane %v6815, 2
    %v6817 = vrot.slane %v6662, 7
    %v6818 = vrot.slane %v6817, 2
    %v6819 = vrot.slane %v6661, 7
    %v6820 = vrot.slane %v6819, 2
    %v6821 = vrot.slane %v6663, 7
    %v6822 = vrot.slane %v6821, 2
    %v6823 = vrot.slane %v6671, 7
    %v6824 = vrot.slane %v6823, 2
    %v6825 = vrot.slane %v6679, 7
    %v6826 = vrot.slane %v6825, 2
    %v6827 = vrot.slane %v6678, 7
    %v6828 = vrot.slane %v6827, 2
    %v6829 = vrot.slane %v6680, 7
    %v6830 = vrot.slane %v6829, 2
    %v6831 = vrot.slane %v6688, 7
    %v6832 = vrot.slane %v6831, 2
    %v6833 = vrot.slane %v6696, 7
    %v6834 = vrot.slane %v6833, 2
    %v6835 = vrot.slane %v6695, 7
    %v6836 = vrot.slane %v6835, 2
    %v6837 = vrot.slane %v6697, 7
    %v6838 = vrot.slane %v6837, 2
    %v6839 = vrot.slane %v6705, 7
    %v6840 = vrot.slane %v6839, 2
    %v6841 = vrot.slane %v6713, 7
    %v6842 = vrot.slane %v6841, 2
    %v6843 = vrot.slane %v6712, 7
    %v6844 = vrot.slane %v6843, 2
    %v6845 = vrot.slane %v6714, 7
    %v6846 = vrot.slane %v6845, 2
    %v6847 = vrot.slane %v6722, 7
    %v6848 = vrot.slane %v6847, 2
    %v6849 = vrot.slane %v6730, 7
    %v6850 = vrot.slane %v6849, 2
    %v6851 = vrot.slane %v6729, 7
    %v6852 = vrot.slane %v6851, 2
    %v6853 = vrot.slane %v6731, 7
    %v6854 = vrot.slane %v6853, 2
    %v6855 = vrot.slane %v6739, 7
    %v6856 = vrot.slane %v6855, 2
    %v6857 = vrot.slane %v6747, 7
    %v6858 = vrot.slane %v6857, 2
    %v6859 = vrot.slane %v6746, 7
    %v6860 = vrot.slane %v6859, 2
    %v6861 = vrot.slane %v6748, 7
    %v6862 = vrot.slane %v6861, 2
    %v6863 = vrot.slane %v6756, 7
    %v6864 = vrot.slane %v6863, 2
    %v6865 = vrot.slane %v6764, 7
    %v6866 = vrot.slane %v6865, 2
    %v6867 = vrot.slane %v6763, 7
    %v6868 = vrot.slane %v6867, 2
    %v6869 = vrot.slane %v6765, 7
    %v6870 = vrot.slane %v6869, 2
    %v6871 = vrot.slane %v6773, 7
    %v6872 = vrot.slane %v6871, 2
    %v6873 = vrot.slane %v6781, 7
    %v6874 = vrot.slane %v6873, 2
    %v6875 = vrot.slane %v6780, 7
    %v6876 = vrot.slane %v6875, 2
    %v6877 = vrot.slane %v6782, 7
    %v6878 = vrot.slane %v6877, 2
    %v6911 = vmax.f32 %v6654, %v6816
    %v6912 = vmax.f32 %v6662, %v6818
    %v6913 = vmax.f32 %v6661, %v6820
    %v6914 = vmax.f32 %v6663, %v6822
    %v6915 = vmax.f32 %v6671, %v6824
    %v6916 = vmax.f32 %v6679, %v6826
    %v6917 = vmax.f32 %v6678, %v6828
    %v6918 = vmax.f32 %v6680, %v6830
    %v6919 = vmax.f32 %v6688, %v6832
    %v6920 = vmax.f32 %v6696, %v6834
    %v6921 = vmax.f32 %v6695, %v6836
    %v6922 = vmax.f32 %v6697, %v6838
    %v6923 = vmax.f32 %v6705, %v6840
    %v6924 = vmax.f32 %v6713, %v6842
    %v6925 = vmax.f32 %v6712, %v6844
    %v6926 = vmax.f32 %v6714, %v6846
    %v6927 = vmax.f32 %v6722, %v6848
    %v6928 = vmax.f32 %v6730, %v6850
    %v6929 = vmax.f32 %v6729, %v6852
    %v6930 = vmax.f32 %v6731, %v6854
    %v6931 = vmax.f32 %v6739, %v6856
    %v6932 = vmax.f32 %v6747, %v6858
    %v6933 = vmax.f32 %v6746, %v6860
    %v6934 = vmax.f32 %v6748, %v6862
    %v6935 = vmax.f32 %v6756, %v6864
    %v6936 = vmax.f32 %v6764, %v6866
    %v6937 = vmax.f32 %v6763, %v6868
    %v6938 = vmax.f32 %v6765, %v6870
    %v6939 = vmax.f32 %v6773, %v6872
    %v6940 = vmax.f32 %v6781, %v6874
    %v6941 = vmax.f32 %v6780, %v6876
    %v6942 = vmax.f32 %v6782, %v6878
    %6943 = vst [vmem:[#allocation4] sm:$0xff] 0.0
    %vm6944 = vcmask 257024
    %6945 = vst.msk [vmem:[#allocation4 + $0x8] sm:$0xf] %vm6944, 0.0
    %6946 = vst [vmem:[#allocation4 + $0xc] sm:$0xff] 0.0
    %6947 = vst.msk [vmem:[#allocation4 + $0x14] sm:$0xf] %vm6944, 0.0
    %6948 = vst [vmem:[#allocation4 + $0x18] sm:$0xff] 0.0
    %6949 = vst.msk [vmem:[#allocation4 + $0x20] sm:$0xf] %vm6944, 0.0
    %6950 = vst [vmem:[#allocation4 + $0x24] sm:$0xff] 0.0
    %6951 = vst.msk [vmem:[#allocation4 + $0x2c] sm:$0xf] %vm6944, 0.0
    %6952 = vst [vmem:[#allocation4 + $0x30] sm:$0xff] 0.0
    %6953 = vst.msk [vmem:[#allocation4 + $0x38] sm:$0xf] %vm6944, 0.0
    %6954 = vst [vmem:[#allocation4 + $0x3c] sm:$0xff] 0.0
    %6955 = vst.msk [vmem:[#allocation4 + $0x44] sm:$0xf] %vm6944, 0.0
    %6956 = vst [vmem:[#allocation4 + $0x48] sm:$0xff] 0.0
    %6957 = vst.msk [vmem:[#allocation4 + $0x50] sm:$0xf] %vm6944, 0.0
    %6958 = vst [vmem:[#allocation4 + $0x54] sm:$0xff] 0.0
    %6959 = vst.msk [vmem:[#allocation4 + $0x5c] sm:$0xf] %vm6944, 0.0
    %v6979 = vunpack.c.l.s4 572653568
    %v6980 = vunpack.c.0.s8 %v6979
    %v6981 = vlaneseq
    %v6982 = vshrl.u32 %v6981, 7
    %v6983 = vsub.s32 %v6980, %v6982
    %v6984 = vrot.slane %v6911, %v6983
    %v6986 = vunpack.c.l.s4 572653568
    %v6987 = vunpack.c.0.s8 %v6986
    %v6988 = vlaneseq
    %v6989 = vshrl.u32 %v6988, 7
    %v6990 = vsub.s32 %v6987, %v6989
    %v6991 = vrot.slane %v6912, %v6990
    %v6993 = vunpack.c.l.s4 572653568
    %v6994 = vunpack.c.0.s8 %v6993
    %v6995 = vlaneseq
    %v6996 = vshrl.u32 %v6995, 7
    %v6997 = vsub.s32 %v6994, %v6996
    %v6998 = vrot.slane %v6913, %v6997
    %v7000 = vunpack.c.l.s4 572653568
    %v7001 = vunpack.c.0.s8 %v7000
    %v7002 = vlaneseq
    %v7003 = vshrl.u32 %v7002, 7
    %v7004 = vsub.s32 %v7001, %v7003
    %v7005 = vrot.slane %v6915, %v7004
    %v7007 = vunpack.c.l.s4 572653568
    %v7008 = vunpack.c.0.s8 %v7007
    %v7009 = vlaneseq
    %v7010 = vshrl.u32 %v7009, 7
    %v7011 = vsub.s32 %v7008, %v7010
    %v7012 = vrot.slane %v6916, %v7011
    %v7014 = vunpack.c.l.s4 572653568
    %v7015 = vunpack.c.0.s8 %v7014
    %v7016 = vlaneseq
    %v7017 = vshrl.u32 %v7016, 7
    %v7018 = vsub.s32 %v7015, %v7017
    %v7019 = vrot.slane %v6917, %v7018
    %v7021 = vunpack.c.l.s4 572653568
    %v7022 = vunpack.c.0.s8 %v7021
    %v7023 = vlaneseq
    %v7024 = vshrl.u32 %v7023, 7
    %v7025 = vsub.s32 %v7022, %v7024
    %v7026 = vrot.slane %v6919, %v7025
    %v7028 = vunpack.c.l.s4 572653568
    %v7029 = vunpack.c.0.s8 %v7028
    %v7030 = vlaneseq
    %v7031 = vshrl.u32 %v7030, 7
    %v7032 = vsub.s32 %v7029, %v7031
    %v7033 = vrot.slane %v6920, %v7032
    %v7035 = vunpack.c.l.s4 572653568
    %v7036 = vunpack.c.0.s8 %v7035
    %v7037 = vlaneseq
    %v7038 = vshrl.u32 %v7037, 7
    %v7039 = vsub.s32 %v7036, %v7038
    %v7040 = vrot.slane %v6921, %v7039
    %v7042 = vunpack.c.l.s4 572653568
    %v7043 = vunpack.c.0.s8 %v7042
    %v7044 = vlaneseq
    %v7045 = vshrl.u32 %v7044, 7
    %v7046 = vsub.s32 %v7043, %v7045
    %v7047 = vrot.slane %v6927, %v7046
    %v7049 = vunpack.c.l.s4 572653568
    %v7050 = vunpack.c.0.s8 %v7049
    %v7051 = vlaneseq
    %v7052 = vshrl.u32 %v7051, 7
    %v7053 = vsub.s32 %v7050, %v7052
    %v7054 = vrot.slane %v6928, %v7053
    %v7056 = vunpack.c.l.s4 572653568
    %v7057 = vunpack.c.0.s8 %v7056
    %v7058 = vlaneseq
    %v7059 = vshrl.u32 %v7058, 7
    %v7060 = vsub.s32 %v7057, %v7059
    %v7061 = vrot.slane %v6929, %v7060
    %v7063 = vunpack.c.l.s4 572653568
    %v7064 = vunpack.c.0.s8 %v7063
    %v7065 = vlaneseq
    %v7066 = vshrl.u32 %v7065, 7
    %v7067 = vsub.s32 %v7064, %v7066
    %v7068 = vrot.slane %v6931, %v7067
    %v7070 = vunpack.c.l.s4 572653568
    %v7071 = vunpack.c.0.s8 %v7070
    %v7072 = vlaneseq
    %v7073 = vshrl.u32 %v7072, 7
    %v7074 = vsub.s32 %v7071, %v7073
    %v7075 = vrot.slane %v6932, %v7074
    %v7077 = vunpack.c.l.s4 572653568
    %v7078 = vunpack.c.0.s8 %v7077
    %v7079 = vlaneseq
    %v7080 = vshrl.u32 %v7079, 7
    %v7081 = vsub.s32 %v7078, %v7080
    %v7082 = vrot.slane %v6933, %v7081
    %v7084 = vunpack.c.l.s4 572653568
    %v7085 = vunpack.c.0.s8 %v7084
    %v7086 = vlaneseq
    %v7087 = vshrl.u32 %v7086, 7
    %v7088 = vsub.s32 %v7085, %v7087
    %v7089 = vrot.slane %v6935, %v7088
    %v7091 = vunpack.c.l.s4 572653568
    %v7092 = vunpack.c.0.s8 %v7091
    %v7093 = vlaneseq
    %v7094 = vshrl.u32 %v7093, 7
    %v7095 = vsub.s32 %v7092, %v7094
    %v7096 = vrot.slane %v6936, %v7095
    %v7098 = vunpack.c.l.s4 572653568
    %v7099 = vunpack.c.0.s8 %v7098
    %v7100 = vlaneseq
    %v7101 = vshrl.u32 %v7100, 7
    %v7102 = vsub.s32 %v7099, %v7101
    %v7103 = vrot.slane %v6937, %v7102
    %v7104 = vsel %vm5125, %v6991, %v6984
    %v7105 = vsel %vm5133, %v6991, %v7104
    %v7106 = vsel %vm5127, %v6998, %v7105
    %v7107 = vsel %vm5135, %v6998, %v7106
    %v7108 = vsel %vm5125, %v7012, %v7005
    %v7109 = vsel %vm5133, %v7012, %v7108
    %v7110 = vsel %vm5127, %v7019, %v7109
    %v7111 = vsel %vm5135, %v7019, %v7110
    %v7112 = vsel %vm5125, %v7033, %v7026
    %v7113 = vsel %vm5133, %v7033, %v7112
    %v7114 = vsel %vm5127, %v7040, %v7113
    %v7115 = vsel %vm5135, %v7040, %v7114
    %v7116 = vsel %vm5125, %v7054, %v7047
    %v7117 = vsel %vm5133, %v7054, %v7116
    %v7118 = vsel %vm5127, %v7061, %v7117
    %v7119 = vsel %vm5135, %v7061, %v7118
    %v7120 = vsel %vm5125, %v7075, %v7068
    %v7121 = vsel %vm5133, %v7075, %v7120
    %v7122 = vsel %vm5127, %v7082, %v7121
    %v7123 = vsel %vm5135, %v7082, %v7122
    %v7124 = vsel %vm5125, %v7096, %v7089
    %v7125 = vsel %vm5133, %v7096, %v7124
    %v7126 = vsel %vm5127, %v7103, %v7125
    %v7127 = vsel %vm5135, %v7103, %v7126
    %s7134 = scalar_lea.vmem [#allocation4], 12
    %vm7135 = vcmask 257025
    %7136 = vst.msk [vmem:[%s7134] sm:$0xe] %vm7135, %v7107
    %7137 = vst.msk [vmem:[%s7134 + $0xc] sm:$0xe] %vm7135, %v7111
    %7138 = vst.msk [vmem:[%s7134 + $0x18] sm:$0xe] %vm7135, %v7115
    %7139 = vst.msk [vmem:[%s7134 + $0x30] sm:$0xe] %vm7135, %v7119
    %7140 = vst.msk [vmem:[%s7134 + $0x3c] sm:$0xe] %vm7135, %v7123
    %7141 = vst.msk [vmem:[%s7134 + $0x48] sm:$0xe] %vm7135, %v7127
    %v7149 = vunpack.c.l.s4 572653568
    %v7150 = vunpack.c.0.s8 %v7149
    %v7151 = vlaneseq
    %v7152 = vshrl.u32 %v7151, 7
    %v7153 = vsub.s32 %v7150, %v7152
    %v7154 = vrot.slane %v6914, %v7153
    %v7156 = vunpack.c.l.s4 572653568
    %v7157 = vunpack.c.0.s8 %v7156
    %v7158 = vlaneseq
    %v7159 = vshrl.u32 %v7158, 7
    %v7160 = vsub.s32 %v7157, %v7159
    %v7161 = vrot.slane %v6918, %v7160
    %v7163 = vunpack.c.l.s4 572653568
    %v7164 = vunpack.c.0.s8 %v7163
    %v7165 = vlaneseq
    %v7166 = vshrl.u32 %v7165, 7
    %v7167 = vsub.s32 %v7164, %v7166
    %v7168 = vrot.slane %v6922, %v7167
    %v7170 = vunpack.c.l.s4 572653568
    %v7171 = vunpack.c.0.s8 %v7170
    %v7172 = vlaneseq
    %v7173 = vshrl.u32 %v7172, 7
    %v7174 = vsub.s32 %v7171, %v7173
    %v7175 = vrot.slane %v6930, %v7174
    %v7177 = vunpack.c.l.s4 572653568
    %v7178 = vunpack.c.0.s8 %v7177
    %v7179 = vlaneseq
    %v7180 = vshrl.u32 %v7179, 7
    %v7181 = vsub.s32 %v7178, %v7180
    %v7182 = vrot.slane %v6934, %v7181
    %v7184 = vunpack.c.l.s4 572653568
    %v7185 = vunpack.c.0.s8 %v7184
    %v7186 = vlaneseq
    %v7187 = vshrl.u32 %v7186, 7
    %v7188 = vsub.s32 %v7185, %v7187
    %v7189 = vrot.slane %v6938, %v7188
    %v7190 = vsel %vm5315, %v6991, %v6984
    %v7191 = vsel %vm5131, %v6991, %v7190
    %v7192 = vsel %vm5125, %v6998, %v7191
    %v7193 = vsel %vm5133, %v6998, %v7192
    %v7194 = vsel %vm5127, %v7154, %v7193
    %v7195 = vsel %vm5135, %v7154, %v7194
    %v7196 = vsel %vm5315, %v7012, %v7005
    %v7197 = vsel %vm5131, %v7012, %v7196
    %v7198 = vsel %vm5125, %v7019, %v7197
    %v7199 = vsel %vm5133, %v7019, %v7198
    %v7200 = vsel %vm5127, %v7161, %v7199
    %v7201 = vsel %vm5135, %v7161, %v7200
    %v7202 = vsel %vm5315, %v7033, %v7026
    %v7203 = vsel %vm5131, %v7033, %v7202
    %v7204 = vsel %vm5125, %v7040, %v7203
    %v7205 = vsel %vm5133, %v7040, %v7204
    %v7206 = vsel %vm5127, %v7168, %v7205
    %v7207 = vsel %vm5135, %v7168, %v7206
    %v7208 = vsel %vm5315, %v7054, %v7047
    %v7209 = vsel %vm5131, %v7054, %v7208
    %v7210 = vsel %vm5125, %v7061, %v7209
    %v7211 = vsel %vm5133, %v7061, %v7210
    %v7212 = vsel %vm5127, %v7175, %v7211
    %v7213 = vsel %vm5135, %v7175, %v7212
    %v7214 = vsel %vm5315, %v7075, %v7068
    %v7215 = vsel %vm5131, %v7075, %v7214
    %v7216 = vsel %vm5125, %v7082, %v7215
    %v7217 = vsel %vm5133, %v7082, %v7216
    %v7218 = vsel %vm5127, %v7182, %v7217
    %v7219 = vsel %vm5135, %v7182, %v7218
    %v7220 = vsel %vm5315, %v7096, %v7089
    %v7221 = vsel %vm5131, %v7096, %v7220
    %v7222 = vsel %vm5125, %v7103, %v7221
    %v7223 = vsel %vm5133, %v7103, %v7222
    %v7224 = vsel %vm5127, %v7189, %v7223
    %v7225 = vsel %vm5135, %v7189, %v7224
    %7226 = vrot.lane.b32.xlu0 %v7195, 32
    %v7227 = vpop.permute.xlu0 %7226
    %7228 = vrot.lane.b32.xlu0 %v7201, 32
    %v7229 = vpop.permute.xlu0 %7228
    %7230 = vrot.lane.b32.xlu0 %v7207, 32
    %v7231 = vpop.permute.xlu0 %7230
    %7232 = vrot.lane.b32.xlu0 %v7213, 32
    %v7233 = vpop.permute.xlu0 %7232
    %7234 = vrot.lane.b32.xlu0 %v7219, 32
    %v7235 = vpop.permute.xlu0 %7234
    %7236 = vrot.lane.b32.xlu0 %v7225, 32
    %v7237 = vpop.permute.xlu0 %7236
    %vm7244 = vcmask 519424
    %7245 = vst.msk [vmem:[%s7134] sm:$0xf] %vm7244, %v7227
    %7246 = vst.msk [vmem:[%s7134 + $0xc] sm:$0xf] %vm7244, %v7229
    %7247 = vst.msk [vmem:[%s7134 + $0x18] sm:$0xf] %vm7244, %v7231
    %7248 = vst.msk [vmem:[%s7134 + $0x30] sm:$0xf] %vm7244, %v7233
    %7249 = vst.msk [vmem:[%s7134 + $0x3c] sm:$0xf] %vm7244, %v7235
    %7250 = vst.msk [vmem:[%s7134 + $0x48] sm:$0xf] %vm7244, %v7237
    %v7251 = vsel %vm5315, %v6998, %v6991
    %v7252 = vsel %vm5131, %v6998, %v7251
    %v7253 = vsel %vm5125, %v7154, %v7252
    %v7254 = vsel %vm5133, %v7154, %v7253
    %v7255 = vsel %vm5315, %v7019, %v7012
    %v7256 = vsel %vm5131, %v7019, %v7255
    %v7257 = vsel %vm5125, %v7161, %v7256
    %v7258 = vsel %vm5133, %v7161, %v7257
    %v7259 = vsel %vm5315, %v7040, %v7033
    %v7260 = vsel %vm5131, %v7040, %v7259
    %v7261 = vsel %vm5125, %v7168, %v7260
    %v7262 = vsel %vm5133, %v7168, %v7261
    %v7263 = vsel %vm5315, %v7061, %v7054
    %v7264 = vsel %vm5131, %v7061, %v7263
    %v7265 = vsel %vm5125, %v7175, %v7264
    %v7266 = vsel %vm5133, %v7175, %v7265
    %v7267 = vsel %vm5315, %v7082, %v7075
    %v7268 = vsel %vm5131, %v7082, %v7267
    %v7269 = vsel %vm5125, %v7182, %v7268
    %v7270 = vsel %vm5133, %v7182, %v7269
    %v7271 = vsel %vm5315, %v7103, %v7096
    %v7272 = vsel %vm5131, %v7103, %v7271
    %v7273 = vsel %vm5125, %v7189, %v7272
    %v7274 = vsel %vm5133, %v7189, %v7273
    %7275 = vrot.lane.b32.xlu0 %v7254, 64
    %v7276 = vpop.permute.xlu0 %7275
    %7277 = vrot.lane.b32.xlu0 %v7258, 64
    %v7278 = vpop.permute.xlu0 %7277
    %7279 = vrot.lane.b32.xlu0 %v7262, 64
    %v7280 = vpop.permute.xlu0 %7279
    %7281 = vrot.lane.b32.xlu0 %v7266, 64
    %v7282 = vpop.permute.xlu0 %7281
    %7283 = vrot.lane.b32.xlu0 %v7270, 64
    %v7284 = vpop.permute.xlu0 %7283
    %7285 = vrot.lane.b32.xlu0 %v7274, 64
    %v7286 = vpop.permute.xlu0 %7285
    %vm7293 = vcmask 780800
    %7294 = vst.msk [vmem:[%s7134] sm:$0x7] %vm7293, %v7276
    %7295 = vst.msk [vmem:[%s7134 + $0xc] sm:$0x7] %vm7293, %v7278
    %7296 = vst.msk [vmem:[%s7134 + $0x18] sm:$0x7] %vm7293, %v7280
    %7297 = vst.msk [vmem:[%s7134 + $0x30] sm:$0x7] %vm7293, %v7282
    %7298 = vst.msk [vmem:[%s7134 + $0x3c] sm:$0x7] %vm7293, %v7284
    %7299 = vst.msk [vmem:[%s7134 + $0x48] sm:$0x7] %vm7293, %v7286
    %v7307 = vunpack.c.l.s4 572653568
    %v7308 = vunpack.c.0.s8 %v7307
    %v7309 = vlaneseq
    %v7310 = vshrl.u32 %v7309, 7
    %v7311 = vsub.s32 %v7308, %v7310
    %v7312 = vrot.slane %v6923, %v7311
    %v7314 = vunpack.c.l.s4 572653568
    %v7315 = vunpack.c.0.s8 %v7314
    %v7316 = vlaneseq
    %v7317 = vshrl.u32 %v7316, 7
    %v7318 = vsub.s32 %v7315, %v7317
    %v7319 = vrot.slane %v6924, %v7318
    %v7321 = vunpack.c.l.s4 572653568
    %v7322 = vunpack.c.0.s8 %v7321
    %v7323 = vlaneseq
    %v7324 = vshrl.u32 %v7323, 7
    %v7325 = vsub.s32 %v7322, %v7324
    %v7326 = vrot.slane %v6925, %v7325
    %v7328 = vunpack.c.l.s4 572653568
    %v7329 = vunpack.c.0.s8 %v7328
    %v7330 = vlaneseq
    %v7331 = vshrl.u32 %v7330, 7
    %v7332 = vsub.s32 %v7329, %v7331
    %v7333 = vrot.slane %v6939, %v7332
    %v7335 = vunpack.c.l.s4 572653568
    %v7336 = vunpack.c.0.s8 %v7335
    %v7337 = vlaneseq
    %v7338 = vshrl.u32 %v7337, 7
    %v7339 = vsub.s32 %v7336, %v7338
    %v7340 = vrot.slane %v6940, %v7339
    %v7342 = vunpack.c.l.s4 572653568
    %v7343 = vunpack.c.0.s8 %v7342
    %v7344 = vlaneseq
    %v7345 = vshrl.u32 %v7344, 7
    %v7346 = vsub.s32 %v7343, %v7345
    %v7347 = vrot.slane %v6941, %v7346
    %v7348 = vsel %vm5125, %v7319, %v7312
    %v7349 = vsel %vm5133, %v7319, %v7348
    %v7350 = vsel %vm5127, %v7326, %v7349
    %v7351 = vsel %vm5135, %v7326, %v7350
    %v7352 = vsel %vm5125, %v7340, %v7333
    %v7353 = vsel %vm5133, %v7340, %v7352
    %v7354 = vsel %vm5127, %v7347, %v7353
    %v7355 = vsel %vm5135, %v7347, %v7354
    %7356 = vrot.lane.b32.xlu0 %v7107, 96
    %v7357 = vpop.permute.xlu0 %7356
    %7358 = vrot.lane.b32.xlu0 %v7111, 96
    %v7359 = vpop.permute.xlu0 %7358
    %7360 = vrot.lane.b32.xlu0 %v7115, 96
    %v7361 = vpop.permute.xlu0 %7360
    %7362 = vrot.lane.b32.xlu0 %v7351, 96
    %v7363 = vpop.permute.xlu0 %7362
    %7364 = vrot.lane.b32.xlu0 %v7119, 96
    %v7365 = vpop.permute.xlu0 %7364
    %7366 = vrot.lane.b32.xlu0 %v7123, 96
    %v7367 = vpop.permute.xlu0 %7366
    %7368 = vrot.lane.b32.xlu0 %v7127, 96
    %v7369 = vpop.permute.xlu0 %7368
    %7370 = vrot.lane.b32.xlu0 %v7355, 96
    %v7371 = vpop.permute.xlu0 %7370
    %vm7380 = vcmask 1044225
    %7381 = vst.msk [vmem:[#allocation4] sm:$0xe] %vm7380, %v7357
    %7382 = vst.msk [vmem:[#allocation4 + $0xc] sm:$0xe] %vm7380, %v7359
    %7383 = vst.msk [vmem:[#allocation4 + $0x18] sm:$0xe] %vm7380, %v7361
    %7384 = vst.msk [vmem:[#allocation4 + $0x24] sm:$0xe] %vm7380, %v7363
    %7385 = vst.msk [vmem:[#allocation4 + $0x30] sm:$0xe] %vm7380, %v7365
    %7386 = vst.msk [vmem:[#allocation4 + $0x3c] sm:$0xe] %vm7380, %v7367
    %7387 = vst.msk [vmem:[#allocation4 + $0x48] sm:$0xe] %vm7380, %v7369
    %7388 = vst.msk [vmem:[#allocation4 + $0x54] sm:$0xe] %vm7380, %v7371
    %v7392 = vunpack.c.l.s4 572653568
    %v7393 = vunpack.c.0.s8 %v7392
    %v7394 = vlaneseq
    %v7395 = vshrl.u32 %v7394, 7
    %v7396 = vsub.s32 %v7393, %v7395
    %v7397 = vrot.slane %v6926, %v7396
    %v7399 = vunpack.c.l.s4 572653568
    %v7400 = vunpack.c.0.s8 %v7399
    %v7401 = vlaneseq
    %v7402 = vshrl.u32 %v7401, 7
    %v7403 = vsub.s32 %v7400, %v7402
    %v7404 = vrot.slane %v6942, %v7403
    %v7405 = vsel %vm5315, %v7319, %v7312
    %v7406 = vsel %vm5131, %v7319, %v7405
    %v7407 = vsel %vm5125, %v7326, %v7406
    %v7408 = vsel %vm5133, %v7326, %v7407
    %v7409 = vsel %vm5127, %v7397, %v7408
    %v7410 = vsel %vm5135, %v7397, %v7409
    %v7411 = vsel %vm5315, %v7340, %v7333
    %v7412 = vsel %vm5131, %v7340, %v7411
    %v7413 = vsel %vm5125, %v7347, %v7412
    %v7414 = vsel %vm5133, %v7347, %v7413
    %v7415 = vsel %vm5127, %v7404, %v7414
    %v7416 = vsel %vm5135, %v7404, %v7415
    %7425 = vst.msk [vmem:[#allocation4 + $0x4] sm:$0xf] %vm6944, %v7195
    %7426 = vst.msk [vmem:[#allocation4 + $0x10] sm:$0xf] %vm6944, %v7201
    %7427 = vst.msk [vmem:[#allocation4 + $0x1c] sm:$0xf] %vm6944, %v7207
    %7428 = vst.msk [vmem:[#allocation4 + $0x28] sm:$0xf] %vm6944, %v7410
    %7429 = vst.msk [vmem:[#allocation4 + $0x34] sm:$0xf] %vm6944, %v7213
    %7430 = vst.msk [vmem:[#allocation4 + $0x40] sm:$0xf] %vm6944, %v7219
    %7431 = vst.msk [vmem:[#allocation4 + $0x4c] sm:$0xf] %vm6944, %v7225
    %7432 = vst.msk [vmem:[#allocation4 + $0x58] sm:$0xf] %vm6944, %v7416
    %v7433 = vsel %vm5315, %v7326, %v7319
    %v7434 = vsel %vm5131, %v7326, %v7433
    %v7435 = vsel %vm5125, %v7397, %v7434
    %v7436 = vsel %vm5133, %v7397, %v7435
    %v7437 = vsel %vm5315, %v7347, %v7340
    %v7438 = vsel %vm5131, %v7347, %v7437
    %v7439 = vsel %vm5125, %v7404, %v7438
    %v7440 = vsel %vm5133, %v7404, %v7439
    %7441 = vrot.lane.b32.xlu0 %v7254, 32
    %v7442 = vpop.permute.xlu0 %7441
    %7443 = vrot.lane.b32.xlu0 %v7258, 32
    %v7444 = vpop.permute.xlu0 %7443
    %7445 = vrot.lane.b32.xlu0 %v7262, 32
    %v7446 = vpop.permute.xlu0 %7445
    %7447 = vrot.lane.b32.xlu0 %v7436, 32
    %v7448 = vpop.permute.xlu0 %7447
    %7449 = vrot.lane.b32.xlu0 %v7266, 32
    %v7450 = vpop.permute.xlu0 %7449
    %7451 = vrot.lane.b32.xlu0 %v7270, 32
    %v7452 = vpop.permute.xlu0 %7451
    %7453 = vrot.lane.b32.xlu0 %v7274, 32
    %v7454 = vpop.permute.xlu0 %7453
    %7455 = vrot.lane.b32.xlu0 %v7440, 32
    %v7456 = vpop.permute.xlu0 %7455
    %vm7465 = vcmask 518400
    %7466 = vst.msk [vmem:[#allocation4 + $0x4] sm:$0x7] %vm7465, %v7442
    %7467 = vst.msk [vmem:[#allocation4 + $0x10] sm:$0x7] %vm7465, %v7444
    %7468 = vst.msk [vmem:[#allocation4 + $0x1c] sm:$0x7] %vm7465, %v7446
    %7469 = vst.msk [vmem:[#allocation4 + $0x28] sm:$0x7] %vm7465, %v7448
    %7470 = vst.msk [vmem:[#allocation4 + $0x34] sm:$0x7] %vm7465, %v7450
    %7471 = vst.msk [vmem:[#allocation4 + $0x40] sm:$0x7] %vm7465, %v7452
    %7472 = vst.msk [vmem:[#allocation4 + $0x4c] sm:$0x7] %vm7465, %v7454
    %7473 = vst.msk [vmem:[#allocation4 + $0x58] sm:$0x7] %vm7465, %v7456
    %7474 = vrot.lane.b32.xlu0 %v7111, 64
    %v7475 = vpop.permute.xlu0 %7474
    %7476 = vrot.lane.b32.xlu0 %v7115, 64
    %v7477 = vpop.permute.xlu0 %7476
    %7478 = vrot.lane.b32.xlu0 %v7351, 64
    %v7479 = vpop.permute.xlu0 %7478
    %7480 = vrot.lane.b32.xlu0 %v7123, 64
    %v7481 = vpop.permute.xlu0 %7480
    %7482 = vrot.lane.b32.xlu0 %v7127, 64
    %v7483 = vpop.permute.xlu0 %7482
    %7484 = vrot.lane.b32.xlu0 %v7355, 64
    %v7485 = vpop.permute.xlu0 %7484
    %vm7492 = vcmask 781825
    %7493 = vst.msk [vmem:[#allocation4 + $0x4] sm:$0xe] %vm7492, %v7475
    %7494 = vst.msk [vmem:[#allocation4 + $0x10] sm:$0xe] %vm7492, %v7477
    %7495 = vst.msk [vmem:[#allocation4 + $0x1c] sm:$0xe] %vm7492, %v7479
    %7496 = vst.msk [vmem:[#allocation4 + $0x34] sm:$0xe] %vm7492, %v7481
    %7497 = vst.msk [vmem:[#allocation4 + $0x40] sm:$0xe] %vm7492, %v7483
    %7498 = vst.msk [vmem:[#allocation4 + $0x4c] sm:$0xe] %vm7492, %v7485
    %7499 = vrot.lane.b32.xlu0 %v7201, 96
    %v7500 = vpop.permute.xlu0 %7499
    %7501 = vrot.lane.b32.xlu0 %v7207, 96
    %v7502 = vpop.permute.xlu0 %7501
    %7503 = vrot.lane.b32.xlu0 %v7410, 96
    %v7504 = vpop.permute.xlu0 %7503
    %7505 = vrot.lane.b32.xlu0 %v7219, 96
    %v7506 = vpop.permute.xlu0 %7505
    %7507 = vrot.lane.b32.xlu0 %v7225, 96
    %v7508 = vpop.permute.xlu0 %7507
    %7509 = vrot.lane.b32.xlu0 %v7416, 96
    %v7510 = vpop.permute.xlu0 %7509
    %vm7517 = vcmask 1044224
    %7518 = vst.msk [vmem:[#allocation4 + $0x4] sm:$0xf] %vm7517, %v7500
    %7519 = vst.msk [vmem:[#allocation4 + $0x10] sm:$0xf] %vm7517, %v7502
    %7520 = vst.msk [vmem:[#allocation4 + $0x1c] sm:$0xf] %vm7517, %v7504
    %7521 = vst.msk [vmem:[#allocation4 + $0x34] sm:$0xf] %vm7517, %v7506
    %7522 = vst.msk [vmem:[#allocation4 + $0x40] sm:$0xf] %vm7517, %v7508
    %7523 = vst.msk [vmem:[#allocation4 + $0x4c] sm:$0xf] %vm7517, %v7510
    %vm7530 = vcmask 256000
    %7531 = vst.msk [vmem:[#allocation4 + $0x8] sm:$0x7] %vm7530, %v7258
    %7532 = vst.msk [vmem:[#allocation4 + $0x14] sm:$0x7] %vm7530, %v7262
    %7533 = vst.msk [vmem:[#allocation4 + $0x20] sm:$0x7] %vm7530, %v7436
    %7534 = vst.msk [vmem:[#allocation4 + $0x38] sm:$0x7] %vm7530, %v7270
    %7535 = vst.msk [vmem:[#allocation4 + $0x44] sm:$0x7] %vm7530, %v7274
    %7536 = vst.msk [vmem:[#allocation4 + $0x50] sm:$0x7] %vm7530, %v7440
    %v7537 = vld [vmem:[#allocation4] sm:$0xff]
    %v7538 = vld [vmem:[#allocation4 + $0x8] sm:$0xf]
    %v7539 = vld [vmem:[#allocation4 + $0xc] sm:$0xff]
    %v7540 = vld [vmem:[#allocation4 + $0x14] sm:$0xf]
    %v7541 = vld [vmem:[#allocation4 + $0x18] sm:$0xff]
    %v7542 = vld [vmem:[#allocation4 + $0x20] sm:$0xf]
    %v7543 = vld [vmem:[#allocation4 + $0x24] sm:$0xff]
    %v7544 = vld [vmem:[#allocation4 + $0x2c] sm:$0xf]
    %v7545 = vld [vmem:[#allocation4 + $0x30] sm:$0xff]
    %v7546 = vld [vmem:[#allocation4 + $0x38] sm:$0xf]
    %v7547 = vld [vmem:[#allocation4 + $0x3c] sm:$0xff]
    %v7548 = vld [vmem:[#allocation4 + $0x44] sm:$0xf]
    %v7549 = vld [vmem:[#allocation4 + $0x48] sm:$0xff]
    %v7550 = vld [vmem:[#allocation4 + $0x50] sm:$0xf]
    %v7551 = vld [vmem:[#allocation4 + $0x54] sm:$0xff]
    %v7552 = vld [vmem:[#allocation4 + $0x5c] sm:$0xf]
    %v7569 = vcombine.low %v7537, %v7539
    %v7570 = vcombine.high %v7537, %v7539
    %v7571 = vcombine.low %v7538, %v7540
    %v7572 = vcombine.low %v7541, %v7543
    %v7573 = vcombine.high %v7541, %v7543
    %v7574 = vcombine.low %v7542, %v7544
    %v7575 = vcombine.low %v7545, %v7547
    %v7576 = vcombine.high %v7545, %v7547
    %v7577 = vcombine.low %v7546, %v7548
    %v7578 = vcombine.low %v7549, %v7551
    %v7579 = vcombine.high %v7549, %v7551
    %v7580 = vcombine.low %v7550, %v7552
    %v7593 = vpack.c.bf16 %v7572, %v7569
    %v7594 = vpack.c.bf16 %v7573, %v7570
    %v7595 = vpack.c.bf16 %v7574, %v7571
    %v7596 = vpack.c.bf16 %v7578, %v7575
    %v7597 = vpack.c.bf16 %v7579, %v7576
    %v7598 = vpack.c.bf16 %v7580, %v7577
    %v7599 = vld [vmem:[%s7] sm:$0xf]
    %v7600 = vld [vmem:[%s7 + $0x4] sm:$0xf]
    %v7601 = vld [vmem:[%s7 + $0x8] sm:$0xf]
    %v7602 = vld [vmem:[%s7 + $0xc] sm:$0xf]
    %v7603 = vld [vmem:[%s7 + $0x10] sm:$0xf]
    %v7604 = vld [vmem:[%s7 + $0x14] sm:$0xf]
    %v7605 = vld [vmem:[%s7 + $0x18] sm:$0xf]
    %v7606 = vld [vmem:[%s7 + $0x1c] sm:$0xf]
    %v7607 = vld [vmem:[%s7 + $0x20] sm:$0xf]
    %v7608 = vld [vmem:[%s7 + $0x24] sm:$0xf]
    %v7609 = vld [vmem:[%s7 + $0x28] sm:$0xf]
    %v7610 = vld [vmem:[%s7 + $0x2c] sm:$0xf]
    %v7611 = vld [vmem:[%s7 + $0x30] sm:$0xf]
    %v7612 = vld [vmem:[%s7 + $0x34] sm:$0xf]
    %v7613 = vld [vmem:[%s7 + $0x38] sm:$0xf]
    %v7614 = vld [vmem:[%s7 + $0x3c] sm:$0xf]
    %v7615 = vld [vmem:[%s7 + $0x40] sm:$0xf]
    %v7616 = vld [vmem:[%s7 + $0x44] sm:$0xf]
    %v7617 = vld [vmem:[%s7 + $0x48] sm:$0xf]
    %v7618 = vld [vmem:[%s7 + $0x4c] sm:$0xf]
    %v7619 = vld [vmem:[%s7 + $0x50] sm:$0xf]
    %v7620 = vld [vmem:[%s7 + $0x54] sm:$0xf]
    %v7621 = vld [vmem:[%s7 + $0x58] sm:$0xf]
    %v7622 = vld [vmem:[%s7 + $0x5c] sm:$0xf]
    %v7623 = vld [vmem:[%s7 + $0x60] sm:$0xf]
    %v7624 = vld [vmem:[%s7 + $0x64] sm:$0xf]
    %v7625 = vld [vmem:[%s7 + $0x68] sm:$0xf]
    %v7626 = vld [vmem:[%s7 + $0x6c] sm:$0xf]
    %v7627 = vld [vmem:[%s7 + $0x70] sm:$0xf]
    %v7628 = vld [vmem:[%s7 + $0x74] sm:$0xf]
    %v7629 = vld [vmem:[%s7 + $0x78] sm:$0xf]
    %v7630 = vld [vmem:[%s7 + $0x7c] sm:$0xf]
    %v7631 = vld [vmem:[%s7 + $0x80] sm:$0xf]
    %v7632 = vld [vmem:[%s7 + $0x84] sm:$0xf]
    %v7633 = vld [vmem:[%s7 + $0x88] sm:$0xf]
    %v7634 = vld [vmem:[%s7 + $0x8c] sm:$0xf]
    %v7671 = vunpack.c.l.b16 %v7599
    %v7672 = vunpack.c.l.b16 %v7600
    %v7673 = vunpack.c.l.b16 %v7601
    %v7674 = vunpack.c.l.b16 %v7602
    %v7675 = vunpack.c.l.b16 %v7603
    %v7676 = vunpack.c.l.b16 %v7604
    %v7677 = vunpack.c.l.b16 %v7605
    %v7678 = vunpack.c.l.b16 %v7606
    %v7679 = vunpack.c.l.b16 %v7607
    %v7680 = vunpack.c.l.b16 %v7608
    %v7681 = vunpack.c.l.b16 %v7609
    %v7682 = vunpack.c.l.b16 %v7610
    %v7683 = vunpack.c.l.b16 %v7611
    %v7684 = vunpack.c.l.b16 %v7612
    %v7685 = vunpack.c.l.b16 %v7613
    %v7686 = vunpack.c.l.b16 %v7614
    %v7687 = vunpack.c.l.b16 %v7615
    %v7688 = vunpack.c.l.b16 %v7616
    %v7689 = vunpack.c.l.b16 %v7617
    %v7690 = vunpack.c.l.b16 %v7618
    %v7691 = vunpack.c.l.b16 %v7619
    %v7692 = vunpack.c.l.b16 %v7620
    %v7693 = vunpack.c.l.b16 %v7621
    %v7694 = vunpack.c.l.b16 %v7622
    %v7695 = vunpack.c.l.b16 %v7623
    %v7696 = vunpack.c.l.b16 %v7624
    %v7697 = vunpack.c.l.b16 %v7625
    %v7698 = vunpack.c.l.b16 %v7626
    %v7699 = vunpack.c.l.b16 %v7627
    %v7700 = vunpack.c.l.b16 %v7628
    %v7701 = vunpack.c.l.b16 %v7629
    %v7702 = vunpack.c.l.b16 %v7630
    %v7703 = vunpack.c.l.b16 %v7631
    %v7704 = vunpack.c.l.b16 %v7632
    %v7705 = vunpack.c.l.b16 %v7633
    %v7706 = vunpack.c.l.b16 %v7634
    %v7707 = vpack.c.b16 %v7672, %v7671
    %v7708 = vpack.c.b16 %v7674, %v7673
    %v7709 = vpack.c.b16 %v7676, %v7675
    %v7710 = vpack.c.b16 %v7678, %v7677
    %v7711 = vpack.c.b16 %v7680, %v7679
    %v7712 = vpack.c.b16 %v7682, %v7681
    %v7713 = vpack.c.b16 %v7684, %v7683
    %v7714 = vpack.c.b16 %v7686, %v7685
    %v7715 = vpack.c.b16 %v7688, %v7687
    %v7716 = vpack.c.b16 %v7690, %v7689
    %v7717 = vpack.c.b16 %v7692, %v7691
    %v7718 = vpack.c.b16 %v7694, %v7693
    %v7719 = vpack.c.b16 %v7696, %v7695
    %v7720 = vpack.c.b16 %v7698, %v7697
    %v7721 = vpack.c.b16 %v7700, %v7699
    %v7722 = vpack.c.b16 %v7702, %v7701
    %v7723 = vpack.c.b16 %v7704, %v7703
    %v7724 = vpack.c.b16 %v7706, %v7705
    %v7744 = vsel %vm2792, %v7595, 0
    %v7747 = vsel %vm2792, %v7598, 0
    %7749 = vmatprep.subr.bf16.mxu0 0
    %7750 = vmatpush1.bf16.msra.mxu0 %v7714
    %7751 = vmatprep.subr.bf16.mxu0 0
    %7752 = vmatpush1.bf16.msra.mxu0 %v7713
    %7753 = vmatprep.subr.bf16.mxu0 0
    %7754 = vmatpush1.bf16.msra.mxu0 %v7712
    %7755 = vmatprep.subr.bf16.mxu0 0
    %7756 = vmatpush1.bf16.msra.mxu0 %v7711
    %7757 = vmatprep.subr.bf16.mxu0 0
    %7758 = vmatpush1.bf16.msra.mxu0 %v7710
    %7759 = vmatprep.subr.bf16.mxu0 0
    %7760 = vmatpush1.bf16.msra.mxu0 %v7709
    %7761 = vmatprep.subr.bf16.mxu0 0
    %7762 = vmatpush1.bf16.msra.mxu0 %v7708
    %7763 = vmatprep.subr.bf16.mxu0 0
    %7764 = vmatpush1.bf16.msra.mxu0 %v7707
    %7765 = vmatprep.subr.bf16.mxu0 0
    %7766 = vmatpush2.bf16.msra.mxu0 %v7722
    %7767 = vmatprep.subr.bf16.mxu0 0
    %7768 = vmatpush2.bf16.msra.mxu0 %v7721
    %7769 = vmatprep.subr.bf16.mxu0 0
    %7770 = vmatpush2.bf16.msra.mxu0 %v7720
    %7771 = vmatprep.subr.bf16.mxu0 0
    %7772 = vmatpush2.bf16.msra.mxu0 %v7719
    %7773 = vmatprep.subr.bf16.mxu0 0
    %7774 = vmatpush2.bf16.msra.mxu0 %v7718
    %7775 = vmatprep.subr.bf16.mxu0 0
    %7776 = vmatpush2.bf16.msra.mxu0 %v7717
    %7777 = vmatprep.subr.bf16.mxu0 0
    %7778 = vmatpush2.bf16.msra.mxu0 %v7716
    %7779 = vmatprep.subr.bf16.mxu0 0
    %7780 = vmatpush2.bf16.msra.mxu0 %v7715
    %7781 = vmatprep.mubr.bf16.mxu0 %v7594
    %7782 = vmatmul.mubr.bf16.gmra.mxu0 %v7593
    %v7783 = vpop.f32.mrf.mxu0
    %v7784 = vadd.f32 0.0, %v7783
    %v7785 = vpop.f32.mrf.mxu0
    %v7786 = vpop.f32.mrf.mxu0
    %v7787 = vadd.f32 0.0, %v7786
    %v7788 = vpop.f32.mrf.mxu0
    %7789 = vmatprep.mubr.bf16.mxu0 %v7597
    %7790 = vmatmul.mubr.bf16.gmra.mxu0 %v7596
    %v7791 = vpop.f32.mrf.mxu0
    %v7792 = vadd.f32 0.0, %v7791
    %v7793 = vpop.f32.mrf.mxu0
    %v7794 = vpop.f32.mrf.mxu0
    %v7795 = vadd.f32 0.0, %v7794
    %v7796 = vpop.f32.mrf.mxu0
    %7797 = vdwg.mxu0
    %7798 = vmatprep.subr.bf16.mxu0 0
    %7799 = vmatpush1.bf16.msra.mxu0 0
    %7800 = vmatprep.subr.bf16.mxu0 0
    %7801 = vmatpush1.bf16.msra.mxu0 0
    %7802 = vmatprep.subr.bf16.mxu0 0
    %7803 = vmatpush1.bf16.msra.mxu0 0
    %7804 = vmatprep.subr.bf16.mxu0 0
    %7805 = vmatpush1.bf16.msra.mxu0 0
    %7806 = vmatprep.subr.bf16.mxu0 0
    %7807 = vmatpush1.bf16.msra.mxu0 0
    %7808 = vmatprep.subr.bf16.mxu0 0
    %7809 = vmatpush1.bf16.msra.mxu0 0
    %7810 = vmatprep.subr.bf16.mxu0 0
    %7811 = vmatpush1.bf16.msra.mxu0 %v7724
    %7812 = vmatprep.subr.bf16.mxu0 0
    %7813 = vmatpush1.bf16.msra.mxu0 %v7723
    %7814 = vmatprep.subr.bf16.mxu0 0
    %7815 = vmatpush2.bf16.msra.mxu0 0
    %7816 = vmatprep.subr.bf16.mxu0 0
    %7817 = vmatpush2.bf16.msra.mxu0 0
    %7818 = vmatprep.subr.bf16.mxu0 0
    %7819 = vmatpush2.bf16.msra.mxu0 0
    %7820 = vmatprep.subr.bf16.mxu0 0
    %7821 = vmatpush2.bf16.msra.mxu0 0
    %7822 = vmatprep.subr.bf16.mxu0 0
    %7823 = vmatpush2.bf16.msra.mxu0 0
    %7824 = vmatprep.subr.bf16.mxu0 0
    %7825 = vmatpush2.bf16.msra.mxu0 0
    %7826 = vmatprep.subr.bf16.mxu0 0
    %7827 = vmatpush2.bf16.msra.mxu0 0
    %7828 = vmatprep.subr.bf16.mxu0 0
    %7829 = vmatpush2.bf16.msra.mxu0 0
    %7830 = vmatprep.mubr.bf16.mxu0 0
    %7831 = vmatmul.mubr.bf16.gmra.mxu0 %v7744
    %v7832 = vpop.f32.mrf.mxu0
    %v7833 = vadd.f32 %v7784, %v7832
    %v7834 = vpop.f32.mrf.mxu0
    %v7835 = vpop.f32.mrf.mxu0
    %v7836 = vadd.f32 %v7787, %v7835
    %v7837 = vpop.f32.mrf.mxu0
    %7838 = vmatprep.mubr.bf16.mxu0 0
    %7839 = vmatmul.mubr.bf16.gmra.mxu0 %v7747
    %v7840 = vpop.f32.mrf.mxu0
    %v7841 = vadd.f32 %v7792, %v7840
    %v7842 = vpop.f32.mrf.mxu0
    %v7843 = vpop.f32.mrf.mxu0
    %v7844 = vadd.f32 %v7795, %v7843
    %v7845 = vpop.f32.mrf.mxu0
    %7846 = vdwg.mxu0
    %v7847 = vsel %vm2792, %v7833, 0.0
    %v7848 = vsel %vm2792, %v7836, 0.0
    %v7849 = vadd.f32 %v7847, %v7848
    %v7850 = vsel %vm2792, %v7841, 0.0
    %v7851 = vadd.f32 %v7849, %v7850
    %v7852 = vsel %vm2792, %v7844, 0.0
    %v7853 = vadd.f32 %v7851, %v7852
    %v7854 = vrot.slane %v7853, 4
    %v7855 = vadd.f32 %v7853, %v7854
    %v7856 = vrot.slane %v7855, 2
    %v7857 = vadd.f32 %v7855, %v7856
    %v7858 = vrot.slane %v7857, 1
    %v7859 = vadd.f32 %v7857, %v7858
    %v7860 = vrcp.pop 32.0
    %v7861 = vmul.f32 %v7859, %v7860
    %v7862 = vmul.f32 %v7833, %v7833
    %v7863 = vmul.f32 %v7836, %v7836
    %v7864 = vmul.f32 %v7841, %v7841
    %v7865 = vmul.f32 %v7844, %v7844
    %v7866 = vsel %vm2792, %v7862, 0.0
    %v7867 = vsel %vm2792, %v7863, 0.0
    %v7868 = vadd.f32 %v7866, %v7867
    %v7869 = vsel %vm2792, %v7864, 0.0
    %v7870 = vadd.f32 %v7868, %v7869
    %v7871 = vsel %vm2792, %v7865, 0.0
    %v7872 = vadd.f32 %v7870, %v7871
    %v7873 = vrot.slane %v7872, 4
    %v7874 = vadd.f32 %v7872, %v7873
    %v7875 = vrot.slane %v7874, 2
    %v7876 = vadd.f32 %v7874, %v7875
    %v7877 = vrot.slane %v7876, 1
    %v7878 = vadd.f32 %v7876, %v7877
    %v7879 = vmul.f32 %v7878, %v7860
    %v7880 = vmul.f32 %v7861, %v7861
    %v7881 = vsub.f32 %v7879, %v7880
    %v7882 = vld [vmem:[%s8] sm:$0x1]
    %v7883 = vadd.f32 %v7881, 1e-05
    %v7884 = vrsqrt.pop %v7883
    %v7885 = vmul.f32 %v7882, %v7884
    %v7886 = vld [vmem:[%s9] sm:$0x1]
    %v7887 = vmul.f32 %v7861, %v7885
    %v7888 = vsub.f32 %v7886, %v7887
    %v7890 = vlaneseq
    %v7891 = vshrl.u32 %v7890, 7
    %v7892 = vsub.s32 0, %v7891
    %v7893 = vrot.slane %v7885, %v7892
    %v7895 = vmul.f32 %v7833, %v7893
    %v7896 = vmul.f32 %v7836, %v7893
    %v7897 = vmul.f32 %v7841, %v7893
    %v7898 = vmul.f32 %v7844, %v7893
    %v7900 = vlaneseq
    %v7901 = vshrl.u32 %v7900, 7
    %v7902 = vsub.s32 0, %v7901
    %v7903 = vrot.slane %v7888, %v7902
    %v7905 = vadd.f32 %v7895, %v7903
    %v7906 = vadd.f32 %v7896, %v7903
    %v7907 = vadd.f32 %v7897, %v7903
    %v7908 = vadd.f32 %v7898, %v7903
    %v7909 = vmax.f32 %v7905, 0.0
    %v7910 = vmax.f32 %v7906, 0.0
    %v7911 = vmax.f32 %v7907, 0.0
    %v7912 = vmax.f32 %v7908, 0.0
    %v7917 = vcombine.high %v7909, %v7909
    %v7918 = vcombine.high %v7910, %v7910
    %v7919 = vcombine.high %v7911, %v7911
    %v7920 = vcombine.high %v7912, %v7912
    %v7925 = vmax.f32 %v7909, %v7917
    %v7926 = vmax.f32 %v7910, %v7918
    %v7927 = vmax.f32 %v7911, %v7919
    %v7928 = vmax.f32 %v7912, %v7920
    %v7934 = vunpack.c.l.s4 1983009808
    %v7935 = vunpack.c.0.s8 %v7934
    %v7936 = vlaneseq
    %v7937 = vshrl.u32 %v7936, 7
    %v7938 = vsub.s32 %v7935, %v7937
    %v7939 = vrot.slane %v7925, %v7938
    %v7940 = vcombine.high %v7939, %v7939
    %v7942 = vunpack.c.l.s4 1983009808
    %v7943 = vunpack.c.0.s8 %v7942
    %v7944 = vlaneseq
    %v7945 = vshrl.u32 %v7944, 7
    %v7946 = vsub.s32 %v7943, %v7945
    %v7947 = vrot.slane %v7926, %v7946
    %v7948 = vcombine.high %v7947, %v7947
    %v7950 = vunpack.c.l.s4 1983009808
    %v7951 = vunpack.c.0.s8 %v7950
    %v7952 = vlaneseq
    %v7953 = vshrl.u32 %v7952, 7
    %v7954 = vsub.s32 %v7951, %v7953
    %v7955 = vrot.slane %v7927, %v7954
    %v7956 = vcombine.high %v7955, %v7955
    %v7958 = vunpack.c.l.s4 1983009808
    %v7959 = vunpack.c.0.s8 %v7958
    %v7960 = vlaneseq
    %v7961 = vshrl.u32 %v7960, 7
    %v7962 = vsub.s32 %v7959, %v7961
    %v7963 = vrot.slane %v7928, %v7962
    %v7964 = vcombine.high %v7963, %v7963
    %v7973 = vrot.slane %v7939, 7
    %v7974 = vrot.slane %v7973, 2
    %v7975 = vrot.slane %v7940, 7
    %v7976 = vrot.slane %v7975, 2
    %v7977 = vrot.slane %v7947, 7
    %v7978 = vrot.slane %v7977, 2
    %v7979 = vrot.slane %v7948, 7
    %v7980 = vrot.slane %v7979, 2
    %v7981 = vrot.slane %v7955, 7
    %v7982 = vrot.slane %v7981, 2
    %v7983 = vrot.slane %v7956, 7
    %v7984 = vrot.slane %v7983, 2
    %v7985 = vrot.slane %v7963, 7
    %v7986 = vrot.slane %v7985, 2
    %v7987 = vrot.slane %v7964, 7
    %v7988 = vrot.slane %v7987, 2
    %v7997 = vmax.f32 %v7939, %v7974
    %v7998 = vmax.f32 %v7940, %v7976
    %v7999 = vmax.f32 %v7947, %v7978
    %v8000 = vmax.f32 %v7948, %v7980
    %v8001 = vmax.f32 %v7955, %v7982
    %v8002 = vmax.f32 %v7956, %v7984
    %v8003 = vmax.f32 %v7963, %v7986
    %v8004 = vmax.f32 %v7964, %v7988
    %vm8005 = vcmask 1041408
    %vm8006 = vcmask 1043458
    %vm8007 = vmor %vm8006, %vm8005
    %vm8008 = vcmask 259076
    %vm8009 = vmor %vm8008, %vm8007
    %8010 = vst.msk [vmem:[#allocation5] sm:$0x3f] %vm8009, 0.0
    %8011 = vst.msk [vmem:[#allocation5 + $0x6] sm:$0x3f] %vm8009, 0.0
    %8012 = vst.msk [vmem:[#allocation5 + $0xc] sm:$0x3f] %vm8009, 0.0
    %8013 = vst.msk [vmem:[#allocation5 + $0x12] sm:$0x3f] %vm8009, 0.0
    %s8014 = scalar_lea.vmem [#allocation5], 6
    %vm8015 = vcmask 253952
    %8016 = vst.msk [vmem:[%s8014 + $0x1] sm:$0x1] %vm8015, %v7997
    %8017 = vst.msk [vmem:[%s8014 + $0xd] sm:$0x1] %vm8015, %v8001
    %v8022 = vsel %vm5129, %v7997, %v7997
    %v8023 = vsel %vm5133, %v7997, %v8022
    %v8024 = vrot.slane %v7998, 7
    %v8025 = vsel %vm5315, %v8024, %v8023
    %v8026 = vsel %vm5127, %v8024, %v8025
    %v8027 = vsel %vm5131, %v8024, %v8026
    %v8028 = vsel %vm5135, %v8024, %v8027
    %v8029 = vsel %vm5129, %v8001, %v8001
    %v8030 = vsel %vm5133, %v8001, %v8029
    %v8031 = vrot.slane %v8002, 7
    %v8032 = vsel %vm5315, %v8031, %v8030
    %v8033 = vsel %vm5127, %v8031, %v8032
    %v8034 = vsel %vm5131, %v8031, %v8033
    %v8035 = vsel %vm5135, %v8031, %v8034
    %8036 = vrot.lane.b32.xlu0 %v8028, 32
    %v8037 = vpop.permute.xlu0 %8036
    %8038 = vrot.lane.b32.xlu0 %v8035, 32
    %v8039 = vpop.permute.xlu0 %8038
    %vm8042 = vcmask 517376
    %8043 = vst.msk [vmem:[%s8014] sm:$0x3] %vm8042, %v8037
    %8044 = vst.msk [vmem:[%s8014 + $0xc] sm:$0x3] %vm8042, %v8039
    %8045 = vrot.lane.b32.xlu0 %v7998, 64
    %v8046 = vpop.permute.xlu0 %8045
    %8047 = vrot.lane.b32.xlu0 %v8002, 64
    %v8048 = vpop.permute.xlu0 %8047
    %vm8051 = vcmask 778752
    %8052 = vst.msk [vmem:[%s8014] sm:$0x1] %vm8051, %v8046
    %8053 = vst.msk [vmem:[%s8014 + $0xc] sm:$0x1] %vm8051, %v8048
    %8056 = vrot.lane.b32.xlu0 %v7997, 96
    %v8057 = vpop.permute.xlu0 %8056
    %8058 = vrot.lane.b32.xlu0 %v7999, 96
    %v8059 = vpop.permute.xlu0 %8058
    %8060 = vrot.lane.b32.xlu0 %v8001, 96
    %v8061 = vpop.permute.xlu0 %8060
    %8062 = vrot.lane.b32.xlu0 %v8003, 96
    %v8063 = vpop.permute.xlu0 %8062
    %vm8068 = vcmask 1041152
    %8069 = vst.msk [vmem:[#allocation5 + $0x1] sm:$0x1] %vm8068, %v8057
    %8070 = vst.msk [vmem:[#allocation5 + $0x7] sm:$0x1] %vm8068, %v8059
    %8071 = vst.msk [vmem:[#allocation5 + $0xd] sm:$0x1] %vm8068, %v8061
    %8072 = vst.msk [vmem:[#allocation5 + $0x13] sm:$0x1] %vm8068, %v8063
    %v8075 = vsel %vm5129, %v7999, %v7999
    %v8076 = vsel %vm5133, %v7999, %v8075
    %v8077 = vrot.slane %v8000, 7
    %v8078 = vsel %vm5315, %v8077, %v8076
    %v8079 = vsel %vm5127, %v8077, %v8078
    %v8080 = vsel %vm5131, %v8077, %v8079
    %v8081 = vsel %vm5135, %v8077, %v8080
    %v8082 = vsel %vm5129, %v8003, %v8003
    %v8083 = vsel %vm5133, %v8003, %v8082
    %v8084 = vrot.slane %v8004, 7
    %v8085 = vsel %vm5315, %v8084, %v8083
    %v8086 = vsel %vm5127, %v8084, %v8085
    %v8087 = vsel %vm5131, %v8084, %v8086
    %v8088 = vsel %vm5135, %v8084, %v8087
    %vm8093 = vcmask 254976
    %8094 = vst.msk [vmem:[#allocation5 + $0x2] sm:$0x3] %vm8093, %v8028
    %8095 = vst.msk [vmem:[#allocation5 + $0x8] sm:$0x3] %vm8093, %v8081
    %8096 = vst.msk [vmem:[#allocation5 + $0xe] sm:$0x3] %vm8093, %v8035
    %8097 = vst.msk [vmem:[#allocation5 + $0x14] sm:$0x3] %vm8093, %v8088
    %8098 = vrot.lane.b32.xlu0 %v7998, 32
    %v8099 = vpop.permute.xlu0 %8098
    %8100 = vrot.lane.b32.xlu0 %v8000, 32
    %v8101 = vpop.permute.xlu0 %8100
    %8102 = vrot.lane.b32.xlu0 %v8002, 32
    %v8103 = vpop.permute.xlu0 %8102
    %8104 = vrot.lane.b32.xlu0 %v8004, 32
    %v8105 = vpop.permute.xlu0 %8104
    %vm8110 = vcmask 516352
    %8111 = vst.msk [vmem:[#allocation5 + $0x2] sm:$0x1] %vm8110, %v8099
    %8112 = vst.msk [vmem:[#allocation5 + $0x8] sm:$0x1] %vm8110, %v8101
    %8113 = vst.msk [vmem:[#allocation5 + $0xe] sm:$0x1] %vm8110, %v8103
    %8114 = vst.msk [vmem:[#allocation5 + $0x14] sm:$0x1] %vm8110, %v8105
    %8115 = vrot.lane.b32.xlu0 %v7999, 64
    %v8116 = vpop.permute.xlu0 %8115
    %8117 = vrot.lane.b32.xlu0 %v8003, 64
    %v8118 = vpop.permute.xlu0 %8117
    %8121 = vst.msk [vmem:[#allocation5 + $0x3] sm:$0x1] %vm8051, %v8116
    %8122 = vst.msk [vmem:[#allocation5 + $0xf] sm:$0x1] %vm8051, %v8118
    %8123 = vrot.lane.b32.xlu0 %v8081, 96
    %v8124 = vpop.permute.xlu0 %8123
    %8125 = vrot.lane.b32.xlu0 %v8088, 96
    %v8126 = vpop.permute.xlu0 %8125
    %vm8129 = vcmask 1042176
    %8130 = vst.msk [vmem:[#allocation5 + $0x2] sm:$0x3] %vm8129, %v8124
    %8131 = vst.msk [vmem:[#allocation5 + $0xe] sm:$0x3] %vm8129, %v8126
    %8132 = vst.msk [vmem:[#allocation5 + $0x4] sm:$0x1] %vm8015, %v8000
    %8133 = vst.msk [vmem:[#allocation5 + $0x10] sm:$0x1] %vm8015, %v8004
    %v8134 = vld [vmem:[#allocation5] sm:$0x3f]
    %v8135 = vld [vmem:[#allocation5 + $0x6] sm:$0x3f]
    %v8136 = vld [vmem:[#allocation5 + $0xc] sm:$0x3f]
    %v8137 = vld [vmem:[#allocation5 + $0x12] sm:$0x3f]
    %v8142 = vcombine.low %v8134, %v8135
    %v8143 = vcombine.high %v8134, %v8135
    %v8144 = vcombine.low %v8136, %v8137
    %v8145 = vcombine.high %v8136, %v8137
    %v8147 = vunpack.c.l.s4 1983009808
    %v8148 = vunpack.c.0.s8 %v8147
    %v8149 = vlaneseq
    %v8150 = vshrl.u32 %v8149, 7
    %v8151 = vsub.s32 %v8148, %v8150
    %v8152 = vrot.slane %v8142, %v8151
    %v8154 = vunpack.c.l.s4 1983009808
    %v8155 = vunpack.c.0.s8 %v8154
    %v8156 = vlaneseq
    %v8157 = vshrl.u32 %v8156, 7
    %v8158 = vsub.s32 %v8155, %v8157
    %v8159 = vrot.slane %v8143, %v8158
    %v8161 = vunpack.c.l.s4 1983009808
    %v8162 = vunpack.c.0.s8 %v8161
    %v8163 = vlaneseq
    %v8164 = vshrl.u32 %v8163, 7
    %v8165 = vsub.s32 %v8162, %v8164
    %v8166 = vrot.slane %v8144, %v8165
    %v8168 = vunpack.c.l.s4 1983009808
    %v8169 = vunpack.c.0.s8 %v8168
    %v8170 = vlaneseq
    %v8171 = vshrl.u32 %v8170, 7
    %v8172 = vsub.s32 %v8169, %v8171
    %v8173 = vrot.slane %v8145, %v8172
    %v8174 = vcombine.low %v8152, %v8166
    %v8175 = vcombine.high %v8152, %v8166
    %v8176 = vcombine.low %v8159, %v8173
    %v8180 = vpack.c.bf16 %v8174, %v8174
    %v8181 = vpack.c.bf16 %v8175, %v8175
    %v8182 = vpack.c.bf16 %v8176, %v8176
    %v8183 = vld [vmem:[%s10] sm:$0xf]
    %v8184 = vld [vmem:[%s10 + $0x4] sm:$0xf]
    %v8185 = vld [vmem:[%s10 + $0x8] sm:$0xf]
    %v8186 = vld [vmem:[%s10 + $0xc] sm:$0xf]
    %v8187 = vld [vmem:[%s10 + $0x10] sm:$0xf]
    %v8188 = vld [vmem:[%s10 + $0x14] sm:$0xf]
    %v8189 = vld [vmem:[%s10 + $0x18] sm:$0xf]
    %v8190 = vld [vmem:[%s10 + $0x1c] sm:$0xf]
    %v8191 = vld [vmem:[%s10 + $0x20] sm:$0xf]
    %v8192 = vld [vmem:[%s10 + $0x24] sm:$0xf]
    %v8193 = vld [vmem:[%s10 + $0x28] sm:$0xf]
    %v8194 = vld [vmem:[%s10 + $0x2c] sm:$0xf]
    %v8195 = vld [vmem:[%s10 + $0x30] sm:$0xf]
    %v8196 = vld [vmem:[%s10 + $0x34] sm:$0xf]
    %v8197 = vld [vmem:[%s10 + $0x38] sm:$0xf]
    %v8198 = vld [vmem:[%s10 + $0x3c] sm:$0xf]
    %v8199 = vld [vmem:[%s10 + $0x40] sm:$0xf]
    %v8200 = vld [vmem:[%s10 + $0x44] sm:$0xf]
    %v8201 = vld [vmem:[%s10 + $0x48] sm:$0xf]
    %v8202 = vld [vmem:[%s10 + $0x4c] sm:$0xf]
    %v8203 = vld [vmem:[%s10 + $0x50] sm:$0xf]
    %v8204 = vld [vmem:[%s10 + $0x54] sm:$0xf]
    %v8205 = vld [vmem:[%s10 + $0x58] sm:$0xf]
    %v8206 = vld [vmem:[%s10 + $0x5c] sm:$0xf]
    %v8207 = vld [vmem:[%s10 + $0x60] sm:$0xf]
    %v8208 = vld [vmem:[%s10 + $0x64] sm:$0xf]
    %v8209 = vld [vmem:[%s10 + $0x68] sm:$0xf]
    %v8210 = vld [vmem:[%s10 + $0x6c] sm:$0xf]
    %v8211 = vld [vmem:[%s10 + $0x70] sm:$0xf]
    %v8212 = vld [vmem:[%s10 + $0x74] sm:$0xf]
    %v8213 = vld [vmem:[%s10 + $0x78] sm:$0xf]
    %v8214 = vld [vmem:[%s10 + $0x7c] sm:$0xf]
    %v8215 = vld [vmem:[%s10 + $0x80] sm:$0xf]
    %v8216 = vld [vmem:[%s10 + $0x84] sm:$0xf]
    %v8217 = vld [vmem:[%s10 + $0x88] sm:$0xf]
    %v8218 = vld [vmem:[%s10 + $0x8c] sm:$0xf]
    %v8255 = vunpack.c.l.b16 %v8183
    %v8256 = vunpack.c.l.b16 %v8184
    %v8257 = vunpack.c.l.b16 %v8185
    %v8258 = vunpack.c.l.b16 %v8186
    %v8259 = vunpack.c.l.b16 %v8187
    %v8260 = vunpack.c.l.b16 %v8188
    %v8261 = vunpack.c.l.b16 %v8189
    %v8262 = vunpack.c.l.b16 %v8190
    %v8263 = vunpack.c.l.b16 %v8191
    %v8264 = vunpack.c.l.b16 %v8192
    %v8265 = vunpack.c.l.b16 %v8193
    %v8266 = vunpack.c.l.b16 %v8194
    %v8267 = vunpack.c.l.b16 %v8195
    %v8268 = vunpack.c.l.b16 %v8196
    %v8269 = vunpack.c.l.b16 %v8197
    %v8270 = vunpack.c.l.b16 %v8198
    %v8271 = vunpack.c.l.b16 %v8199
    %v8272 = vunpack.c.l.b16 %v8200
    %v8273 = vunpack.c.l.b16 %v8201
    %v8274 = vunpack.c.l.b16 %v8202
    %v8275 = vunpack.c.l.b16 %v8203
    %v8276 = vunpack.c.l.b16 %v8204
    %v8277 = vunpack.c.l.b16 %v8205
    %v8278 = vunpack.c.l.b16 %v8206
    %v8279 = vunpack.c.l.b16 %v8207
    %v8280 = vunpack.c.l.b16 %v8208
    %v8281 = vunpack.c.l.b16 %v8209
    %v8282 = vunpack.c.l.b16 %v8210
    %v8283 = vunpack.c.l.b16 %v8211
    %v8284 = vunpack.c.l.b16 %v8212
    %v8285 = vunpack.c.l.b16 %v8213
    %v8286 = vunpack.c.l.b16 %v8214
    %v8287 = vunpack.c.l.b16 %v8215
    %v8288 = vunpack.c.l.b16 %v8216
    %v8289 = vunpack.c.l.b16 %v8217
    %v8290 = vunpack.c.l.b16 %v8218
    %v8291 = vpack.c.b16 %v8256, %v8255
    %v8292 = vpack.c.b16 %v8258, %v8257
    %v8293 = vpack.c.b16 %v8260, %v8259
    %v8294 = vpack.c.b16 %v8262, %v8261
    %v8295 = vpack.c.b16 %v8264, %v8263
    %v8296 = vpack.c.b16 %v8266, %v8265
    %v8297 = vpack.c.b16 %v8268, %v8267
    %v8298 = vpack.c.b16 %v8270, %v8269
    %v8299 = vpack.c.b16 %v8272, %v8271
    %v8300 = vpack.c.b16 %v8274, %v8273
    %v8301 = vpack.c.b16 %v8276, %v8275
    %v8302 = vpack.c.b16 %v8278, %v8277
    %v8303 = vpack.c.b16 %v8280, %v8279
    %v8304 = vpack.c.b16 %v8282, %v8281
    %v8305 = vpack.c.b16 %v8284, %v8283
    %v8306 = vpack.c.b16 %v8286, %v8285
    %v8307 = vpack.c.b16 %v8288, %v8287
    %v8308 = vpack.c.b16 %v8290, %v8289
    %v8328 = vsel %vm2792, %v8182, 0
    %8330 = vmatprep.subr.bf16.mxu0 0
    %8331 = vmatpush1.bf16.msra.mxu0 %v8298
    %8332 = vmatprep.subr.bf16.mxu0 0
    %8333 = vmatpush1.bf16.msra.mxu0 %v8297
    %8334 = vmatprep.subr.bf16.mxu0 0
    %8335 = vmatpush1.bf16.msra.mxu0 %v8296
    %8336 = vmatprep.subr.bf16.mxu0 0
    %8337 = vmatpush1.bf16.msra.mxu0 %v8295
    %8338 = vmatprep.subr.bf16.mxu0 0
    %8339 = vmatpush1.bf16.msra.mxu0 %v8294
    %8340 = vmatprep.subr.bf16.mxu0 0
    %8341 = vmatpush1.bf16.msra.mxu0 %v8293
    %8342 = vmatprep.subr.bf16.mxu0 0
    %8343 = vmatpush1.bf16.msra.mxu0 %v8292
    %8344 = vmatprep.subr.bf16.mxu0 0
    %8345 = vmatpush1.bf16.msra.mxu0 %v8291
    %8346 = vmatprep.subr.bf16.mxu0 0
    %8347 = vmatpush2.bf16.msra.mxu0 %v8306
    %8348 = vmatprep.subr.bf16.mxu0 0
    %8349 = vmatpush2.bf16.msra.mxu0 %v8305
    %8350 = vmatprep.subr.bf16.mxu0 0
    %8351 = vmatpush2.bf16.msra.mxu0 %v8304
    %8352 = vmatprep.subr.bf16.mxu0 0
    %8353 = vmatpush2.bf16.msra.mxu0 %v8303
    %8354 = vmatprep.subr.bf16.mxu0 0
    %8355 = vmatpush2.bf16.msra.mxu0 %v8302
    %8356 = vmatprep.subr.bf16.mxu0 0
    %8357 = vmatpush2.bf16.msra.mxu0 %v8301
    %8358 = vmatprep.subr.bf16.mxu0 0
    %8359 = vmatpush2.bf16.msra.mxu0 %v8300
    %8360 = vmatprep.subr.bf16.mxu0 0
    %8361 = vmatpush2.bf16.msra.mxu0 %v8299
    %8362 = vmatprep.mubr.bf16.mxu0 %v8181
    %8363 = vmatmul.mubr.bf16.gmra.mxu0 %v8180
    %v8364 = vpop.f32.mrf.mxu0
    %v8365 = vadd.f32 0.0, %v8364
    %v8366 = vpop.f32.mrf.mxu0
    %v8367 = vpop.f32.mrf.mxu0
    %v8368 = vpop.f32.mrf.mxu0
    %8369 = vdwg.mxu0
    %8370 = vmatprep.subr.bf16.mxu0 0
    %8371 = vmatpush1.bf16.msra.mxu0 0
    %8372 = vmatprep.subr.bf16.mxu0 0
    %8373 = vmatpush1.bf16.msra.mxu0 0
    %8374 = vmatprep.subr.bf16.mxu0 0
    %8375 = vmatpush1.bf16.msra.mxu0 0
    %8376 = vmatprep.subr.bf16.mxu0 0
    %8377 = vmatpush1.bf16.msra.mxu0 0
    %8378 = vmatprep.subr.bf16.mxu0 0
    %8379 = vmatpush1.bf16.msra.mxu0 0
    %8380 = vmatprep.subr.bf16.mxu0 0
    %8381 = vmatpush1.bf16.msra.mxu0 0
    %8382 = vmatprep.subr.bf16.mxu0 0
    %8383 = vmatpush1.bf16.msra.mxu0 %v8308
    %8384 = vmatprep.subr.bf16.mxu0 0
    %8385 = vmatpush1.bf16.msra.mxu0 %v8307
    %8386 = vmatprep.subr.bf16.mxu0 0
    %8387 = vmatpush2.bf16.msra.mxu0 0
    %8388 = vmatprep.subr.bf16.mxu0 0
    %8389 = vmatpush2.bf16.msra.mxu0 0
    %8390 = vmatprep.subr.bf16.mxu0 0
    %8391 = vmatpush2.bf16.msra.mxu0 0
    %8392 = vmatprep.subr.bf16.mxu0 0
    %8393 = vmatpush2.bf16.msra.mxu0 0
    %8394 = vmatprep.subr.bf16.mxu0 0
    %8395 = vmatpush2.bf16.msra.mxu0 0
    %8396 = vmatprep.subr.bf16.mxu0 0
    %8397 = vmatpush2.bf16.msra.mxu0 0
    %8398 = vmatprep.subr.bf16.mxu0 0
    %8399 = vmatpush2.bf16.msra.mxu0 0
    %8400 = vmatprep.subr.bf16.mxu0 0
    %8401 = vmatpush2.bf16.msra.mxu0 0
    %8402 = vmatprep.mubr.bf16.mxu0 0
    %8403 = vmatmul.mubr.bf16.gmra.mxu0 %v8328
    %v8404 = vpop.f32.mrf.mxu0
    %v8405 = vadd.f32 %v8365, %v8404
    %v8406 = vpop.f32.mrf.mxu0
    %v8407 = vpop.f32.mrf.mxu0
    %v8408 = vpop.f32.mrf.mxu0
    %8409 = vdwg.mxu0
    %v8410 = vsel %vm2792, %v8405, 0.0
    %v8411 = vrot.slane %v8410, 4
    %v8412 = vadd.f32 %v8410, %v8411
    %v8413 = vrot.slane %v8412, 2
    %v8414 = vadd.f32 %v8412, %v8413
    %v8415 = vrot.slane %v8414, 1
    %v8416 = vadd.f32 %v8414, %v8415
    %v8417 = vrcp.pop 8.0
    %v8418 = vmul.f32 %v8416, %v8417
    %v8419 = vmul.f32 %v8405, %v8405
    %v8420 = vsel %vm2792, %v8419, 0.0
    %v8421 = vrot.slane %v8420, 4
    %v8422 = vadd.f32 %v8420, %v8421
    %v8423 = vrot.slane %v8422, 2
    %v8424 = vadd.f32 %v8422, %v8423
    %v8425 = vrot.slane %v8424, 1
    %v8426 = vadd.f32 %v8424, %v8425
    %v8427 = vmul.f32 %v8426, %v8417
    %v8428 = vmul.f32 %v8418, %v8418
    %v8429 = vsub.f32 %v8427, %v8428
    %v8430 = vld [vmem:[%s11] sm:$0x1]
    %v8431 = vadd.f32 %v8429, 1e-05
    %v8432 = vrsqrt.pop %v8431
    %v8433 = vmul.f32 %v8430, %v8432
    %v8434 = vld [vmem:[%s12] sm:$0x1]
    %v8435 = vmul.f32 %v8418, %v8433
    %v8436 = vsub.f32 %v8434, %v8435
    %v8438 = vlaneseq
    %v8439 = vshrl.u32 %v8438, 7
    %v8440 = vsub.s32 0, %v8439
    %v8441 = vrot.slane %v8433, %v8440
    %v8443 = vmul.f32 %v8405, %v8441
    %v8445 = vlaneseq
    %v8446 = vshrl.u32 %v8445, 7
    %v8447 = vsub.s32 0, %v8446
    %v8448 = vrot.slane %v8436, %v8447
    %v8450 = vadd.f32 %v8443, %v8448
    %v8451 = vmax.f32 %v8450, 0.0
    %v8453 = vcombine.high %v8451, %v8451
    %v8455 = vunpack.c.l.s4 1983009808
    %v8456 = vunpack.c.0.s8 %v8455
    %v8457 = vlaneseq
    %v8458 = vshrl.u32 %v8457, 7
    %v8459 = vsub.s32 %v8456, %v8458
    %v8460 = vrot.slane %v8451, %v8459
    %v8462 = vunpack.c.l.s4 1983009808
    %v8463 = vunpack.c.0.s8 %v8462
    %v8464 = vlaneseq
    %v8465 = vshrl.u32 %v8464, 7
    %v8466 = vsub.s32 %v8463, %v8465
    %v8467 = vrot.slane %v8453, %v8466
    %v8468 = vcombine.high %v8460, %v8460
    %v8469 = vcombine.high %v8467, %v8467
    %v8474 = vmax.f32 %v8460, %v8468
    %v8475 = vmax.f32 %v8467, %v8469
    %v8478 = vrot.slane %v8474, 7
    %v8479 = vrot.slane %v8478, 2
    %v8480 = vrot.slane %v8475, 7
    %v8481 = vrot.slane %v8480, 2
    %v8484 = vmax.f32 %v8474, %v8479
    %v8485 = vmax.f32 %v8475, %v8481
    %v8486 = vpack.c.bf16 %v8484, %v8484
    %v8487 = vpack.c.bf16 %v8485, %v8485
    %v8488 = vld [vmem:[%s13] sm:$0xf]
    %v8489 = vld [vmem:[%s13 + $0x4] sm:$0xf]
    %v8490 = vld [vmem:[%s13 + $0x8] sm:$0xf]
    %v8491 = vld [vmem:[%s13 + $0xc] sm:$0xf]
    %v8492 = vld [vmem:[%s14] sm:$0x1]
    %v8494 = vlaneseq
    %v8495 = vshrl.u32 %v8494, 7
    %v8496 = vsub.s32 0, %v8495
    %v8497 = vrot.slane %v8492, %v8496
    %v8501 = vunpack.c.l.b16 %v8486
    %v8502 = vunpack.c.l.b16 %v8487
    %v8503 = vrot.slane %v8502, 7
    %v8504 = vsel %vm5315, %v8503, %v8501
    %v8505 = vpack.c.b16 %v8504, %v8504
    %v8510 = vunpack.c.l.b16 %v8488
    %v8511 = vunpack.c.l.b16 %v8489
    %v8512 = vunpack.c.l.b16 %v8490
    %v8513 = vunpack.c.l.b16 %v8491
    %v8514 = vpack.c.b16 %v8511, %v8510
    %v8515 = vpack.c.b16 %v8513, %v8512
    %v8519 = vsel %vm2792, %v8505, 0
    %8521 = vmatprep.subr.bf16.mxu0 0
    %8522 = vmatpush1.bf16.msra.mxu0 0
    %8523 = vmatprep.subr.bf16.mxu0 0
    %8524 = vmatpush1.bf16.msra.mxu0 0
    %8525 = vmatprep.subr.bf16.mxu0 0
    %8526 = vmatpush1.bf16.msra.mxu0 0
    %8527 = vmatprep.subr.bf16.mxu0 0
    %8528 = vmatpush1.bf16.msra.mxu0 0
    %8529 = vmatprep.subr.bf16.mxu0 0
    %8530 = vmatpush1.bf16.msra.mxu0 0
    %8531 = vmatprep.subr.bf16.mxu0 0
    %8532 = vmatpush1.bf16.msra.mxu0 0
    %8533 = vmatprep.subr.bf16.mxu0 0
    %8534 = vmatpush1.bf16.msra.mxu0 %v8515
    %8535 = vmatprep.subr.bf16.mxu0 0
    %8536 = vmatpush1.bf16.msra.mxu0 %v8514
    %8537 = vmatprep.subr.bf16.mxu0 0
    %8538 = vmatpush2.bf16.msra.mxu0 0
    %8539 = vmatprep.subr.bf16.mxu0 0
    %8540 = vmatpush2.bf16.msra.mxu0 0
    %8541 = vmatprep.subr.bf16.mxu0 0
    %8542 = vmatpush2.bf16.msra.mxu0 0
    %8543 = vmatprep.subr.bf16.mxu0 0
    %8544 = vmatpush2.bf16.msra.mxu0 0
    %8545 = vmatprep.subr.bf16.mxu0 0
    %8546 = vmatpush2.bf16.msra.mxu0 0
    %8547 = vmatprep.subr.bf16.mxu0 0
    %8548 = vmatpush2.bf16.msra.mxu0 0
    %8549 = vmatprep.subr.bf16.mxu0 0
    %8550 = vmatpush2.bf16.msra.mxu0 0
    %8551 = vmatprep.subr.bf16.mxu0 0
    %8552 = vmatpush2.bf16.msra.mxu0 0
    %8553 = vmatprep.mubr.bf16.mxu0 0
    %8554 = vmatmul.mubr.bf16.gmra.mxu0 %v8519
    %v8555 = vpop.f32.mrf.mxu0
    %v8556 = vadd.f32 %v8497, %v8555
    %v8557 = vpop.f32.mrf.mxu0
    %v8558 = vpop.f32.mrf.mxu0
    %v8559 = vpop.f32.mrf.mxu0
    %8560 = vdwg.mxu0
    %vm8561 = vcmask 33792
    %8562 = vst.msk [vmem:[#allocation6] sm:$0x3] %vm8561, %v8556
    // Predicated region
    $region62: #{metaconv_forward.1} parent=1 // pred_check
      _
    $region63: #{metaconv_forward.1} parent=1 // pred_check_branch
      %8564 = sbr.rel (0) target = $region65
    $region64: #{metaconv_forward.1} parent=1 // pred_region
      %s8566 = ssub.s32 32, 32
      %8567 = vsyncadd [#allocation7], %s8566
      %s8569 = sshll.u32 [#allocation6], 4
      %s8570 = int_to_ptr.vmem [resolvable:$true] %s8569
      %8572 = dma.vmem_to_hbm [thread:$0]  %s8570, 32, %s15, [#allocation7]
    $region65: #{metaconv_forward.1} parent=1 // pred_fallthru
      _
    // Predicated region
    $region66: #{metaconv_forward.1} parent=1 // pred_check
      _
    $region67: #{metaconv_forward.1} parent=1 // pred_check_branch
      %8574 = sbr.rel (0) target = $region69
    $region68: #{metaconv_forward.1} parent=1 // pred_region
      %8575 = dma.done [#allocation7], 32
    $region69: #{metaconv_forward.1} parent=1 // pred_fallthru
      _
    %8576 = vsyncpa [#allocation7], 1

</llo_original>
